<compile_context>
chip_gen: v5e
topology: v5e:2x2
jax: 0.10.0
libtpu: 0.0.40
codegen_flags: <defaults>
</compile_context>

<pallas_src>
import functools
import numpy as np

import jax
import jax.numpy as jnp
from jax import lax
from jax.experimental import pallas as pl
from jax.experimental.pallas import tpu as pltpu

PRIMITIVES = [
    "none", "max_pool_3x3", "avg_pool_3x3", "skip_connect",
    "sep_conv_3x3", "sep_conv_5x5", "dil_conv_3x3", "dil_conv_5x5",
]
N_OPS = len(PRIMITIVES)
BN_EPS = 1e-5


def _vmem():
    return pl.BlockSpec(memory_space=pltpu.MemorySpace.VMEM)


def _smem():
    return pl.BlockSpec(memory_space=pltpu.MemorySpace.SMEM)


def _round_up(v, m):
    return ((v + m - 1) // m) * m


# --------------------------------------------------------------------------
# Depthwise stage: ReLU -> depthwise KxK (dilated, stride 1) conv.
# Grid over channels (parallel); one block = all N samples of one channel.
# --------------------------------------------------------------------------
def _depthwise_kernel(xpad_ref, wdw_ref, out_ref, xr_scr, *, K, dil, H, W):
    c = pl.program_id(0)
    # ReLU applied exactly once (ReLU commutes with the zero padding).
    xr_scr[...] = jnp.maximum(xpad_ref[...], 0.0)
    acc = jnp.zeros(out_ref.shape, jnp.float32)
    for kh in range(K):                      # K*K <= 25 taps, unrolled
        for kw in range(K):
            w = wdw_ref[c * (K * K) + kh * K + kw]          # scalar from SMEM
            acc = acc + w * xr_scr[:, :, kh * dil:kh * dil + H,
                                   kw * dil:kw * dil + W]
    out_ref[...] = acc


def relu_depthwise_conv(x, wdw, *, K, dil, pad):
    N, C, H, W = x.shape
    Hp, Wp = H + 2 * pad, W + 2 * pad
    # TODO(synk): padding is still materialized by XLA; moving it in-kernel
    # (interior write into a padded scratch) would save one small HBM copy.
    xpad = jnp.pad(x, ((0, 0), (0, 0), (pad, pad), (pad, pad)))
    kernel = functools.partial(_depthwise_kernel, K=K, dil=dil, H=H, W=W)
    return pl.pallas_call(
        kernel,
        grid=(C,),
        out_shape=jax.ShapeDtypeStruct((N, C, H, W), jnp.float32),
        in_specs=[pl.BlockSpec((N, 1, Hp, Wp), lambda c: (0, c, 0, 0)),
                  _smem()],
        out_specs=pl.BlockSpec((N, 1, H, W), lambda c: (0, c, 0, 0)),
        scratch_shapes=[pltpu.VMEM((N, 1, Hp, Wp), jnp.float32)],
        compiler_params=pltpu.CompilerParams(dimension_semantics=("parallel",)),
    )(xpad, wdw.reshape(-1))


# --------------------------------------------------------------------------
# 3x3 stride-1 pad-1 pooling (max, or avg with count_include_pad=False).
# Grid over channels (parallel).
# --------------------------------------------------------------------------
def _pool3x3_kernel(xpad_ref, invcnt_ref, out_ref, *, H, W, pool):
    acc = xpad_ref[:, :, 0:H, 0:W]
    for kh in range(3):
        for kw in range(3):
            if kh == 0 and kw == 0:
                continue
            win = xpad_ref[:, :, kh:kh + H, kw:kw + W]
            acc = jnp.maximum(acc, win) if pool == "max" else acc + win
    if pool == "avg":
        acc = acc * invcnt_ref[...]          # count_include_pad=False divisor map
    out_ref[...] = acc


def pool3x3(x, *, pool):
    N, C, H, W = x.shape
    pad_val = float(np.finfo(np.float32).min) if pool == "max" else 0.0
    xpad = jnp.pad(x, ((0, 0), (0, 0), (1, 1), (1, 1)), constant_values=pad_val)

    cnt = np.zeros((H, W), np.float32)
    for h in range(H):
        for w in range(W):
            cnt[h, w] = ((min(h + 1, H - 1) - max(h - 1, 0) + 1)
                         * (min(w + 1, W - 1) - max(w - 1, 0) + 1))
    invcnt = jnp.asarray(1.0 / cnt, jnp.float32).reshape(1, 1, H, W)

    kernel = functools.partial(_pool3x3_kernel, H=H, W=W, pool=pool)
    return pl.pallas_call(
        kernel,
        grid=(C,),
        out_shape=jax.ShapeDtypeStruct((N, C, H, W), jnp.float32),
        in_specs=[pl.BlockSpec((N, 1, H + 2, W + 2), lambda c: (0, c, 0, 0)),
                  pl.BlockSpec((1, 1, H, W), lambda c: (0, 0, 0, 0))],
        out_specs=pl.BlockSpec((N, 1, H, W), lambda c: (0, c, 0, 0)),
        compiler_params=pltpu.CompilerParams(dimension_semantics=("parallel",)),
    )(xpad, invcnt)


# --------------------------------------------------------------------------
# Lane-dense stage: [optional 1x1 conv via MXU] -> BatchNorm (training stats,
# one pass, batched over channels) -> [optional fused GDAS combine].
# Operates on (N, C, M) with M = H*W (trailing dim lane-dense).
# --------------------------------------------------------------------------
def _pw_bn_combine_kernel(y_ref, wpw_ref, gamma_ref, beta_ref, hard_ref, idx_ref,
                          out_ref, ypad_scr, *, N, C, M, use_pw, do_combine):
    if use_pw:
        ypad_scr[...] = jnp.zeros_like(ypad_scr)   # zero padded contraction rows

    s = jnp.zeros((C, 1), jnp.float32)
    ss = jnp.zeros((C, 1), jnp.float32)
    for n in range(N):
        yn = y_ref[n, :, :]                        # (C, M), lane-dense
        if use_pw:
            ypad_scr[0:C, :] = yn
            z_full = jnp.dot(wpw_ref[...], ypad_scr[...],
                             preferred_element_type=jnp.float32)   # MXU matmul
            zn = z_full[0:C, :]
        else:
            zn = yn
        # one-pass BN statistics while the value is live (no re-read of scratch)
        s = s + jnp.sum(zn, axis=1, keepdims=True)
        ss = ss + jnp.sum(zn * zn, axis=1, keepdims=True)
        out_ref[n, :, :] = zn                      # stashed; normalized in place

    inv_cnt = 1.0 / float(N * M)
    mu = s * inv_cnt
    var = jnp.maximum(ss * inv_cnt - mu * mu, 0.0)  # biased batch variance
    inv_std = lax.rsqrt(var + BN_EPS)
    scale = gamma_ref[...] * inv_std               # (C, 1)
    shift = beta_ref[...] - mu * scale             # (C, 1)

    if do_combine:                                 # GDAS combine fused into BN affine
        idx = idx_ref[0]
        total = hard_ref[0]
        for i in range(1, N_OPS):
            total = total + hard_ref[i]
        wsel = hard_ref[idx]                       # dynamic scalar from SMEM
        scale = scale * wsel
        shift = shift * wsel + (total - wsel)

    for n in range(N):
        out_ref[n, :, :] = out_ref[n, :, :] * scale + shift


def pw_bn_combine(y, wpw, gamma, beta, hardwts, index, *, use_pw, do_combine):
    N, C, M = y.shape
    cop = _round_up(C, 8)       # padded output-channel dim (sublane multiple)
    ck = _round_up(C, 128)      # padded contraction dim    (lane multiple)
    wpw_p = jnp.zeros((cop, ck), jnp.float32).at[:C, :C].set(wpw)
    kernel = functools.partial(_pw_bn_combine_kernel, N=N, C=C, M=M,
                               use_pw=use_pw, do_combine=do_combine)
    return pl.pallas_call(
        kernel,
        out_shape=jax.ShapeDtypeStruct((N, C, M), jnp.float32),
        in_specs=[_vmem(), _vmem(), _vmem(), _vmem(), _smem(), _smem()],
        out_specs=_vmem(),
        scratch_shapes=[pltpu.VMEM((ck, M), jnp.float32)],
    )(y, wpw_p, gamma.reshape(C, 1), beta.reshape(C, 1), hardwts, index)


# --------------------------------------------------------------------------
# Stand-alone GDAS combine (for the "none" and "skip_connect" branches),
# lane-dense layout.
# --------------------------------------------------------------------------
def _combine_kernel(y_ref, hard_ref, idx_ref, out_ref):
    idx = idx_ref[0]
    total = hard_ref[0]
    for i in range(1, N_OPS):
        total = total + hard_ref[i]
    wsel = hard_ref[idx]
    out_ref[...] = y_ref[...] * wsel + (total - wsel)


def combine_only(y, hardwts, index):
    return pl.pallas_call(
        _combine_kernel,
        out_shape=jax.ShapeDtypeStruct(y.shape, jnp.float32),
        in_specs=[_vmem(), _smem(), _smem()],
        out_specs=_vmem(),
    )(y, hardwts, index)


# --------------------------------------------------------------------------
# Parameter init + MixedOp forward
# --------------------------------------------------------------------------
def init_mixed_op_params(key, C):
    def conv_block_params(k, K):
        k1, k2 = jax.random.split(k)
        return dict(
            wdw=0.1 * jax.random.normal(k1, (C, K, K), jnp.float32),
            wpw=0.1 * jax.random.normal(k2, (C, C), jnp.float32),
            gamma=jnp.ones((C,), jnp.float32),    # fresh BatchNorm2d: gamma=1
            beta=jnp.zeros((C,), jnp.float32),    # fresh BatchNorm2d: beta=0
        )

    keys = jax.random.split(key, 6)
    return dict(
        max_pool=dict(gamma=jnp.ones((C,), jnp.float32), beta=jnp.zeros((C,), jnp.float32)),
        avg_pool=dict(gamma=jnp.ones((C,), jnp.float32), beta=jnp.zeros((C,), jnp.float32)),
        sep3_a=conv_block_params(keys[0], 3), sep3_b=conv_block_params(keys[1], 3),
        sep5_a=conv_block_params(keys[2], 5), sep5_b=conv_block_params(keys[3], 5),
        dil3=conv_block_params(keys[4], 3), dil5=conv_block_params(keys[5], 5),
    )


def mixed_op_forward(params, x, hardwts, index):
    N, C, H, W = x.shape
    M = H * W
    x = x.astype(jnp.float32)
    hw = hardwts.astype(jnp.float32)
    idx = jnp.reshape(index, (1,)).astype(jnp.int32)

    def conv_block(h, p, *, K, dil, pad, do_combine):
        dw = relu_depthwise_conv(h, p["wdw"], K=K, dil=dil, pad=pad)
        # reshape (N,C,H,W)->(N,C,H*W) is a contiguous (free) relayout in XLA
        y = pw_bn_combine(dw.reshape(N, C, M), p["wpw"], p["gamma"], p["beta"],
                          hw, idx, use_pw=True, do_combine=do_combine)
        return y.reshape(N, C, H, W)

    def sep_conv(h, pa, pb, K, pad):
        h1 = conv_block(h, pa, K=K, dil=1, pad=pad, do_combine=False)
        return conv_block(h1, pb, K=K, dil=1, pad=pad, do_combine=True)

    def pool_branch(h, p, pool):
        pooled = pool3x3(h, pool=pool)
        dummy_pw = jnp.zeros((C, C), jnp.float32)   # unused when use_pw=False
        y = pw_bn_combine(pooled.reshape(N, C, M), dummy_pw, p["gamma"], p["beta"],
                          hw, idx, use_pw=False, do_combine=True)
        return y.reshape(N, C, H, W)

    branches = [
        lambda h: combine_only(jnp.zeros((N, C, M), jnp.float32),
                               hw, idx).reshape(N, C, H, W),              # none
        lambda h: pool_branch(h, params["max_pool"], "max"),              # max_pool_3x3+BN
        lambda h: pool_branch(h, params["avg_pool"], "avg"),              # avg_pool_3x3+BN
        lambda h: combine_only(h.reshape(N, C, M),
                               hw, idx).reshape(N, C, H, W),              # skip_connect
        lambda h: sep_conv(h, params["sep3_a"], params["sep3_b"], 3, 1),  # sep_conv_3x3
        lambda h: sep_conv(h, params["sep5_a"], params["sep5_b"], 5, 2),  # sep_conv_5x5
        lambda h: conv_block(h, params["dil3"], K=3, dil=2, pad=2, do_combine=True),
        lambda h: conv_block(h, params["dil5"], K=5, dil=2, pad=4, do_combine=True),
    ]
    # GDAS: only the selected primitive is actually evaluated at runtime.
    return lax.switch(index, branches, x)


if __name__ == "__main__":
    key = jax.random.PRNGKey(0)
    kx, kp, kw = jax.random.split(key, 3)

    N, C, H, W = 2, 4, 16, 16
    x = jax.random.normal(kx, (N, C, H, W), jnp.float32)
    params = init_mixed_op_params(kp, C)

    # Architecture weights (GDAS would use Gumbel straight-through one-hots;
    # any scalars work for the forward semantics).
    hardwts = jax.nn.softmax(jax.random.normal(kw, (N_OPS,), jnp.float32))
    index = jnp.argmax(hardwts).astype(jnp.int32)

    fwd = jax.jit(functools.partial(mixed_op_forward, params))
    out = fwd(x, hardwts, index)
    jax.block_until_ready(out)
    assert out.shape == (N, C, H, W) and out.dtype == jnp.float32

    # TODO(synk): BatchNorm running-statistics (momentum) tracking has no output
    # in the forward pass and is not materialized here.
    print("KERNEL_OK")
</pallas_src>

<mosaic_0001>
module attributes {stable_mosaic.version = 11 : i64} {
  func.func @_combine_kernel(%arg0: memref<2x4x256xf32, #tpu.memory_space<vmem>>, %arg1: memref<8xf32, #tpu.memory_space<smem>>, %arg2: memref<1xi32, #tpu.memory_space<smem>>, %arg3: memref<2x4x256xf32, #tpu.memory_space<vmem>>) attributes {dimension_semantics = [], scalar_prefetch = 0 : i64, scratch_operands = 0 : i64, tpu.core_type = #tpu.core_type<tc>} {
    %c0 = arith.constant 0 : index
    %0 = memref.load %arg2[%c0] : memref<1xi32, #tpu.memory_space<smem>>
    %c0_0 = arith.constant 0 : index
    %1 = memref.load %arg1[%c0_0] : memref<8xf32, #tpu.memory_space<smem>>
    %c1 = arith.constant 1 : index
    %2 = memref.load %arg1[%c1] : memref<8xf32, #tpu.memory_space<smem>>
    %3 = arith.addf %1, %2 : f32
    %c2 = arith.constant 2 : index
    %4 = memref.load %arg1[%c2] : memref<8xf32, #tpu.memory_space<smem>>
    %5 = arith.addf %3, %4 : f32
    %c3 = arith.constant 3 : index
    %6 = memref.load %arg1[%c3] : memref<8xf32, #tpu.memory_space<smem>>
    %7 = arith.addf %5, %6 : f32
    %c4 = arith.constant 4 : index
    %8 = memref.load %arg1[%c4] : memref<8xf32, #tpu.memory_space<smem>>
    %9 = arith.addf %7, %8 : f32
    %c5 = arith.constant 5 : index
    %10 = memref.load %arg1[%c5] : memref<8xf32, #tpu.memory_space<smem>>
    %11 = arith.addf %9, %10 : f32
    %c6 = arith.constant 6 : index
    %12 = memref.load %arg1[%c6] : memref<8xf32, #tpu.memory_space<smem>>
    %13 = arith.addf %11, %12 : f32
    %c7 = arith.constant 7 : index
    %14 = memref.load %arg1[%c7] : memref<8xf32, #tpu.memory_space<smem>>
    %15 = arith.addf %13, %14 : f32
    %16 = arith.index_cast %0 : i32 to index
    %17 = memref.load %arg1[%16] : memref<8xf32, #tpu.memory_space<smem>>
    %c0_1 = arith.constant 0 : index
    %c0_2 = arith.constant 0 : index
    %c0_3 = arith.constant 0 : index
    %18 = vector.load %arg0[%c0_1, %c0_2, %c0_3] : memref<2x4x256xf32, #tpu.memory_space<vmem>>, vector<2x4x256xf32>
    %19 = vector.broadcast %17 : f32 to vector<2x4x256xf32>
    %20 = arith.mulf %18, %19 : vector<2x4x256xf32>
    %21 = arith.subf %15, %17 : f32
    %22 = vector.broadcast %21 : f32 to vector<2x4x256xf32>
    %23 = arith.addf %20, %22 : vector<2x4x256xf32>
    %c0_4 = arith.constant 0 : index
    %c0_5 = arith.constant 0 : index
    %c0_6 = arith.constant 0 : index
    %24 = vector.load %arg3[%c0_4, %c0_5, %c0_6] : memref<2x4x256xf32, #tpu.memory_space<vmem>>, vector<2x4x256xf32>
    tpu.vector_store %arg3[%c0_4, %c0_5, %c0_6], %23 {strides = array<i32>} : memref<2x4x256xf32, #tpu.memory_space<vmem>>, vector<2x4x256xf32>,
    return
  }
}

module attributes {stable_mosaic.version = 11 : i64} {
  func.func @_pool3x3_kernel(%arg0: i32, %arg1: memref<2x1x18x18xf32, #tpu.memory_space<vmem>>, %arg2: memref<1x1x16x16xf32, #tpu.memory_space<vmem>>, %arg3: memref<2x1x16x16xf32, #tpu.memory_space<vmem>>) attributes {dimension_semantics = [#tpu.dimension_semantics<parallel>], iteration_bounds = array<i64: 4>, scalar_prefetch = 0 : i64, scratch_operands = 0 : i64, tpu.core_type = #tpu.core_type<tc>, window_params = [{transform_indices = @transform_0, window_bounds = array<i64: 2, 1, 18, 18>}, {pipeline_mode = #tpu.pipeline_mode<synchronous>, transform_indices = @transform_1, window_bounds = array<i64: 1, 1, 16, 16>}, {transform_indices = @transform_2, window_bounds = array<i64: 2, 1, 16, 16>}]} {
    %c0 = arith.constant 0 : index
    %c0_0 = arith.constant 0 : index
    %c0_1 = arith.constant 0 : index
    %c0_2 = arith.constant 0 : index
    %0 = vector.load %arg1[%c0, %c0_0, %c0_1, %c0_2] : memref<2x1x18x18xf32, #tpu.memory_space<vmem>>, vector<2x1x16x16xf32>
    %c0_3 = arith.constant 0 : index
    %c0_4 = arith.constant 0 : index
    %c0_5 = arith.constant 0 : index
    %c1 = arith.constant 1 : index
    %1 = vector.load %arg1[%c0_3, %c0_4, %c0_5, %c1] : memref<2x1x18x18xf32, #tpu.memory_space<vmem>>, vector<2x1x16x16xf32>
    %2 = arith.maximumf %0, %1 : vector<2x1x16x16xf32>
    %c0_6 = arith.constant 0 : index
    %c0_7 = arith.constant 0 : index
    %c0_8 = arith.constant 0 : index
    %c2 = arith.constant 2 : index
    %3 = vector.load %arg1[%c0_6, %c0_7, %c0_8, %c2] : memref<2x1x18x18xf32, #tpu.memory_space<vmem>>, vector<2x1x16x16xf32>
    %4 = arith.maximumf %2, %3 : vector<2x1x16x16xf32>
    %c0_9 = arith.constant 0 : index
    %c0_10 = arith.constant 0 : index
    %c1_11 = arith.constant 1 : index
    %c0_12 = arith.constant 0 : index
    %5 = vector.load %arg1[%c0_9, %c0_10, %c1_11, %c0_12] : memref<2x1x18x18xf32, #tpu.memory_space<vmem>>, vector<2x1x16x16xf32>
    %6 = arith.maximumf %4, %5 : vector<2x1x16x16xf32>
    %c0_13 = arith.constant 0 : index
    %c0_14 = arith.constant 0 : index
    %c1_15 = arith.constant 1 : index
    %c1_16 = arith.constant 1 : index
    %7 = vector.load %arg1[%c0_13, %c0_14, %c1_15, %c1_16] : memref<2x1x18x18xf32, #tpu.memory_space<vmem>>, vector<2x1x16x16xf32>
    %8 = arith.maximumf %6, %7 : vector<2x1x16x16xf32>
    %c0_17 = arith.constant 0 : index
    %c0_18 = arith.constant 0 : index
    %c1_19 = arith.constant 1 : index
    %c2_20 = arith.constant 2 : index
    %9 = vector.load %arg1[%c0_17, %c0_18, %c1_19, %c2_20] : memref<2x1x18x18xf32, #tpu.memory_space<vmem>>, vector<2x1x16x16xf32>
    %10 = arith.maximumf %8, %9 : vector<2x1x16x16xf32>
    %c0_21 = arith.constant 0 : index
    %c0_22 = arith.constant 0 : index
    %c2_23 = arith.constant 2 : index
    %c0_24 = arith.constant 0 : index
    %11 = vector.load %arg1[%c0_21, %c0_22, %c2_23, %c0_24] : memref<2x1x18x18xf32, #tpu.memory_space<vmem>>, vector<2x1x16x16xf32>
    %12 = arith.maximumf %10, %11 : vector<2x1x16x16xf32>
    %c0_25 = arith.constant 0 : index
    %c0_26 = arith.constant 0 : index
    %c2_27 = arith.constant 2 : index
    %c1_28 = arith.constant 1 : index
    %13 = vector.load %arg1[%c0_25, %c0_26, %c2_27, %c1_28] : memref<2x1x18x18xf32, #tpu.memory_space<vmem>>, vector<2x1x16x16xf32>
    %14 = arith.maximumf %12, %13 : vector<2x1x16x16xf32>
    %c0_29 = arith.constant 0 : index
    %c0_30 = arith.constant 0 : index
    %c2_31 = arith.constant 2 : index
    %c2_32 = arith.constant 2 : index
    %15 = vector.load %arg1[%c0_29, %c0_30, %c2_31, %c2_32] : memref<2x1x18x18xf32, #tpu.memory_space<vmem>>, vector<2x1x16x16xf32>
    %16 = arith.maximumf %14, %15 : vector<2x1x16x16xf32>
    %c0_33 = arith.constant 0 : index
    %c0_34 = arith.constant 0 : index
    %c0_35 = arith.constant 0 : index
    %c0_36 = arith.constant 0 : index
    %17 = vector.load %arg3[%c0_33, %c0_34, %c0_35, %c0_36] : memref<2x1x16x16xf32, #tpu.memory_space<vmem>>, vector<2x1x16x16xf32>
    tpu.vector_store %arg3[%c0_33, %c0_34, %c0_35, %c0_36], %16 {strides = array<i32>} : memref<2x1x16x16xf32, #tpu.memory_space<vmem>>, vector<2x1x16x16xf32>,
    return
  }
  func.func @transform_0(%arg0: i32) -> (i32, i32, i32, i32) {
    %c0_i32 = arith.constant 0 : i32
    %c0_i32_0 = arith.constant 0 : i32
    %c0_i32_1 = arith.constant 0 : i32
    %c0_i32_2 = arith.constant 0 : i32
    return %c0_i32, %arg0, %c0_i32_0, %c0_i32_1 : i32, i32, i32, i32
  }
  func.func @transform_1(%arg0: i32) -> (i32, i32, i32, i32) {
    %c0_i32 = arith.constant 0 : i32
    %c0_i32_0 = arith.constant 0 : i32
    %c0_i32_1 = arith.constant 0 : i32
    %c0_i32_2 = arith.constant 0 : i32
    %c0_i32_3 = arith.constant 0 : i32
    return %c0_i32, %c0_i32_0, %c0_i32_1, %c0_i32_2 : i32, i32, i32, i32
  }
  func.func @transform_2(%arg0: i32) -> (i32, i32, i32, i32) {
    %c0_i32 = arith.constant 0 : i32
    %c0_i32_0 = arith.constant 0 : i32
    %c0_i32_1 = arith.constant 0 : i32
    %c0_i32_2 = arith.constant 0 : i32
    return %c0_i32, %arg0, %c0_i32_0, %c0_i32_1 : i32, i32, i32, i32
  }
}

module attributes {stable_mosaic.version = 11 : i64} {
  func.func @_pw_bn_combine_kernel(%arg0: memref<2x4x256xf32, #tpu.memory_space<vmem>>, %arg1: memref<8x128xf32, #tpu.memory_space<vmem>>, %arg2: memref<4x1xf32, #tpu.memory_space<vmem>>, %arg3: memref<4x1xf32, #tpu.memory_space<vmem>>, %arg4: memref<8xf32, #tpu.memory_space<smem>>, %arg5: memref<1xi32, #tpu.memory_space<smem>>, %arg6: memref<2x4x256xf32, #tpu.memory_space<vmem>>, %arg7: memref<128x256xf32, #tpu.memory_space<vmem>>) attributes {dimension_semantics = [], scalar_prefetch = 0 : i64, scratch_operands = 1 : i64, tpu.core_type = #tpu.core_type<tc>} {
    %cst = arith.constant 0.000000e+00 : f32
    %0 = vector.broadcast %cst : f32 to vector<4x1xf32>
    %cst_0 = arith.constant 0.000000e+00 : f32
    %1 = vector.broadcast %cst_0 : f32 to vector<4x1xf32>
    %c0 = arith.constant 0 : index
    %c0_1 = arith.constant 0 : index
    %c0_2 = arith.constant 0 : index
    %2 = vector.load %arg0[%c0, %c0_1, %c0_2] : memref<2x4x256xf32, #tpu.memory_space<vmem>>, vector<1x4x256xf32>
    %3 = vector.shape_cast %2 : vector<1x4x256xf32> to vector<4x256xf32>
    %cst_3 = arith.constant dense<0.000000e+00> : vector<4xf32>
    %4 = vector.multi_reduction <add>, %3, %cst_3 [1] : vector<4x256xf32> to vector<4xf32>
    %5 = vector.shape_cast %4 : vector<4xf32> to vector<4x1xf32>
    %6 = arith.addf %0, %5 : vector<4x1xf32>
    %7 = arith.mulf %3, %3 : vector<4x256xf32>
    %cst_4 = arith.constant dense<0.000000e+00> : vector<4xf32>
    %8 = vector.multi_reduction <add>, %7, %cst_4 [1] : vector<4x256xf32> to vector<4xf32>
    %9 = vector.shape_cast %8 : vector<4xf32> to vector<4x1xf32>
    %10 = arith.addf %1, %9 : vector<4x1xf32>
    %c0_5 = arith.constant 0 : index
    %c0_6 = arith.constant 0 : index
    %c0_7 = arith.constant 0 : index
    %11 = vector.load %arg6[%c0_5, %c0_6, %c0_7] : memref<2x4x256xf32, #tpu.memory_space<vmem>>, vector<1x4x256xf32>
    %12 = vector.shape_cast %11 : vector<1x4x256xf32> to vector<4x256xf32>
    %13 = vector.shape_cast %3 : vector<4x256xf32> to vector<1x4x256xf32>
    tpu.vector_store %arg6[%c0_5, %c0_6, %c0_7], %13 {strides = array<i32>} : memref<2x4x256xf32, #tpu.memory_space<vmem>>, vector<1x4x256xf32>,
    %c1 = arith.constant 1 : index
    %c0_8 = arith.constant 0 : index
    %c0_9 = arith.constant 0 : index
    %14 = vector.load %arg0[%c1, %c0_8, %c0_9] : memref<2x4x256xf32, #tpu.memory_space<vmem>>, vector<1x4x256xf32>
    %15 = vector.shape_cast %14 : vector<1x4x256xf32> to vector<4x256xf32>
    %cst_10 = arith.constant dense<0.000000e+00> : vector<4xf32>
    %16 = vector.multi_reduction <add>, %15, %cst_10 [1] : vector<4x256xf32> to vector<4xf32>
    %17 = vector.shape_cast %16 : vector<4xf32> to vector<4x1xf32>
    %18 = arith.addf %6, %17 : vector<4x1xf32>
    %19 = arith.mulf %15, %15 : vector<4x256xf32>
    %cst_11 = arith.constant dense<0.000000e+00> : vector<4xf32>
    %20 = vector.multi_reduction <add>, %19, %cst_11 [1] : vector<4x256xf32> to vector<4xf32>
    %21 = vector.shape_cast %20 : vector<4xf32> to vector<4x1xf32>
    %22 = arith.addf %10, %21 : vector<4x1xf32>
    %c1_12 = arith.constant 1 : index
    %c0_13 = arith.constant 0 : index
    %c0_14 = arith.constant 0 : index
    %23 = vector.load %arg6[%c1_12, %c0_13, %c0_14] : memref<2x4x256xf32, #tpu.memory_space<vmem>>, vector<1x4x256xf32>
    %24 = vector.shape_cast %23 : vector<1x4x256xf32> to vector<4x256xf32>
    %25 = vector.shape_cast %15 : vector<4x256xf32> to vector<1x4x256xf32>
    tpu.vector_store %arg6[%c1_12, %c0_13, %c0_14], %25 {strides = array<i32>} : memref<2x4x256xf32, #tpu.memory_space<vmem>>, vector<1x4x256xf32>,
    %cst_15 = arith.constant 0.001953125 : f32
    %26 = vector.broadcast %cst_15 : f32 to vector<4x1xf32>
    %27 = arith.mulf %18, %26 : vector<4x1xf32>
    %cst_16 = arith.constant 0.001953125 : f32
    %28 = vector.broadcast %cst_16 : f32 to vector<4x1xf32>
    %29 = arith.mulf %22, %28 : vector<4x1xf32>
    %30 = arith.mulf %27, %27 : vector<4x1xf32>
    %31 = arith.subf %29, %30 : vector<4x1xf32>
    %cst_17 = arith.constant 0.000000e+00 : f32
    %32 = vector.broadcast %cst_17 : f32 to vector<4x1xf32>
    %33 = arith.maximumf %31, %32 : vector<4x1xf32>
    %cst_18 = arith.constant 9.99999974E-6 : f32
    %34 = vector.broadcast %cst_18 : f32 to vector<4x1xf32>
    %35 = arith.addf %33, %34 : vector<4x1xf32>
    %36 = math.rsqrt %35 : vector<4x1xf32>
    %c0_19 = arith.constant 0 : index
    %c0_20 = arith.constant 0 : index
    %37 = vector.load %arg2[%c0_19, %c0_20] : memref<4x1xf32, #tpu.memory_space<vmem>>, vector<4x1xf32>
    %38 = arith.mulf %37, %36 : vector<4x1xf32>
    %c0_21 = arith.constant 0 : index
    %c0_22 = arith.constant 0 : index
    %39 = vector.load %arg3[%c0_21, %c0_22] : memref<4x1xf32, #tpu.memory_space<vmem>>, vector<4x1xf32>
    %40 = arith.mulf %27, %38 : vector<4x1xf32>
    %41 = arith.subf %39, %40 : vector<4x1xf32>
    %c0_23 = arith.constant 0 : index
    %42 = memref.load %arg5[%c0_23] : memref<1xi32, #tpu.memory_space<smem>>
    %c0_24 = arith.constant 0 : index
    %43 = memref.load %arg4[%c0_24] : memref<8xf32, #tpu.memory_space<smem>>
    %c1_25 = arith.constant 1 : index
    %44 = memref.load %arg4[%c1_25] : memref<8xf32, #tpu.memory_space<smem>>
    %45 = arith.addf %43, %44 : f32
    %c2 = arith.constant 2 : index
    %46 = memref.load %arg4[%c2] : memref<8xf32, #tpu.memory_space<smem>>
    %47 = arith.addf %45, %46 : f32
    %c3 = arith.constant 3 : index
    %48 = memref.load %arg4[%c3] : memref<8xf32, #tpu.memory_space<smem>>
    %49 = arith.addf %47, %48 : f32
    %c4 = arith.constant 4 : index
    %50 = memref.load %arg4[%c4] : memref<8xf32, #tpu.memory_space<smem>>
    %51 = arith.addf %49, %50 : f32
    %c5 = arith.constant 5 : index
    %52 = memref.load %arg4[%c5] : memref<8xf32, #tpu.memory_space<smem>>
    %53 = arith.addf %51, %52 : f32
    %c6 = arith.constant 6 : index
    %54 = memref.load %arg4[%c6] : memref<8xf32, #tpu.memory_space<smem>>
    %55 = arith.addf %53, %54 : f32
    %c7 = arith.constant 7 : index
    %56 = memref.load %arg4[%c7] : memref<8xf32, #tpu.memory_space<smem>>
    %57 = arith.addf %55, %56 : f32
    %58 = arith.index_cast %42 : i32 to index
    %59 = memref.load %arg4[%58] : memref<8xf32, #tpu.memory_space<smem>>
    %60 = vector.broadcast %59 : f32 to vector<4x1xf32>
    %61 = arith.mulf %38, %60 : vector<4x1xf32>
    %62 = vector.broadcast %59 : f32 to vector<4x1xf32>
    %63 = arith.mulf %41, %62 : vector<4x1xf32>
    %64 = arith.subf %57, %59 : f32
    %65 = vector.broadcast %64 : f32 to vector<4x1xf32>
    %66 = arith.addf %63, %65 : vector<4x1xf32>
    %c0_26 = arith.constant 0 : index
    %c0_27 = arith.constant 0 : index
    %c0_28 = arith.constant 0 : index
    %67 = vector.load %arg6[%c0_26, %c0_27, %c0_28] : memref<2x4x256xf32, #tpu.memory_space<vmem>>, vector<1x4x256xf32>
    %68 = vector.shape_cast %67 : vector<1x4x256xf32> to vector<4x256xf32>
    %69 = vector.broadcast %61 : vector<4x1xf32> to vector<4x256xf32>
    %70 = arith.mulf %68, %69 : vector<4x256xf32>
    %71 = vector.broadcast %66 : vector<4x1xf32> to vector<4x256xf32>
    %72 = arith.addf %70, %71 : vector<4x256xf32>
    %c0_29 = arith.constant 0 : index
    %c0_30 = arith.constant 0 : index
    %c0_31 = arith.constant 0 : index
    %73 = vector.load %arg6[%c0_29, %c0_30, %c0_31] : memref<2x4x256xf32, #tpu.memory_space<vmem>>, vector<1x4x256xf32>
    %74 = vector.shape_cast %73 : vector<1x4x256xf32> to vector<4x256xf32>
    %75 = vector.shape_cast %72 : vector<4x256xf32> to vector<1x4x256xf32>
    tpu.vector_store %arg6[%c0_29, %c0_30, %c0_31], %75 {strides = array<i32>} : memref<2x4x256xf32, #tpu.memory_space<vmem>>, vector<1x4x256xf32>,
    %c1_32 = arith.constant 1 : index
    %c0_33 = arith.constant 0 : index
    %c0_34 = arith.constant 0 : index
    %76 = vector.load %arg6[%c1_32, %c0_33, %c0_34] : memref<2x4x256xf32, #tpu.memory_space<vmem>>, vector<1x4x256xf32>
    %77 = vector.shape_cast %76 : vector<1x4x256xf32> to vector<4x256xf32>
    %78 = vector.broadcast %61 : vector<4x1xf32> to vector<4x256xf32>
    %79 = arith.mulf %77, %78 : vector<4x256xf32>
    %80 = vector.broadcast %66 : vector<4x1xf32> to vector<4x256xf32>
    %81 = arith.addf %79, %80 : vector<4x256xf32>
    %c1_35 = arith.constant 1 : index
    %c0_36 = arith.constant 0 : index
    %c0_37 = arith.constant 0 : index
    %82 = vector.load %arg6[%c1_35, %c0_36, %c0_37] : memref<2x4x256xf32, #tpu.memory_space<vmem>>, vector<1x4x256xf32>
    %83 = vector.shape_cast %82 : vector<1x4x256xf32> to vector<4x256xf32>
    %84 = vector.shape_cast %81 : vector<4x256xf32> to vector<1x4x256xf32>
    tpu.vector_store %arg6[%c1_35, %c0_36, %c0_37], %84 {strides = array<i32>} : memref<2x4x256xf32, #tpu.memory_space<vmem>>, vector<1x4x256xf32>,
    return
  }
}

module attributes {stable_mosaic.version = 11 : i64} {
  func.func @_pool3x3_kernel(%arg0: i32, %arg1: memref<2x1x18x18xf32, #tpu.memory_space<vmem>>, %arg2: memref<1x1x16x16xf32, #tpu.memory_space<vmem>>, %arg3: memref<2x1x16x16xf32, #tpu.memory_space<vmem>>) attributes {dimension_semantics = [#tpu.dimension_semantics<parallel>], iteration_bounds = array<i64: 4>, scalar_prefetch = 0 : i64, scratch_operands = 0 : i64, tpu.core_type = #tpu.core_type<tc>, window_params = [{transform_indices = @transform_0, window_bounds = array<i64: 2, 1, 18, 18>}, {pipeline_mode = #tpu.pipeline_mode<synchronous>, transform_indices = @transform_1, window_bounds = array<i64: 1, 1, 16, 16>}, {transform_indices = @transform_2, window_bounds = array<i64: 2, 1, 16, 16>}]} {
    %c0 = arith.constant 0 : index
    %c0_0 = arith.constant 0 : index
    %c0_1 = arith.constant 0 : index
    %c0_2 = arith.constant 0 : index
    %0 = vector.load %arg1[%c0, %c0_0, %c0_1, %c0_2] : memref<2x1x18x18xf32, #tpu.memory_space<vmem>>, vector<2x1x16x16xf32>
    %c0_3 = arith.constant 0 : index
    %c0_4 = arith.constant 0 : index
    %c0_5 = arith.constant 0 : index
    %c1 = arith.constant 1 : index
    %1 = vector.load %arg1[%c0_3, %c0_4, %c0_5, %c1] : memref<2x1x18x18xf32, #tpu.memory_space<vmem>>, vector<2x1x16x16xf32>
    %2 = arith.addf %0, %1 : vector<2x1x16x16xf32>
    %c0_6 = arith.constant 0 : index
    %c0_7 = arith.constant 0 : index
    %c0_8 = arith.constant 0 : index
    %c2 = arith.constant 2 : index
    %3 = vector.load %arg1[%c0_6, %c0_7, %c0_8, %c2] : memref<2x1x18x18xf32, #tpu.memory_space<vmem>>, vector<2x1x16x16xf32>
    %4 = arith.addf %2, %3 : vector<2x1x16x16xf32>
    %c0_9 = arith.constant 0 : index
    %c0_10 = arith.constant 0 : index
    %c1_11 = arith.constant 1 : index
    %c0_12 = arith.constant 0 : index
    %5 = vector.load %arg1[%c0_9, %c0_10, %c1_11, %c0_12] : memref<2x1x18x18xf32, #tpu.memory_space<vmem>>, vector<2x1x16x16xf32>
    %6 = arith.addf %4, %5 : vector<2x1x16x16xf32>
    %c0_13 = arith.constant 0 : index
    %c0_14 = arith.constant 0 : index
    %c1_15 = arith.constant 1 : index
    %c1_16 = arith.constant 1 : index
    %7 = vector.load %arg1[%c0_13, %c0_14, %c1_15, %c1_16] : memref<2x1x18x18xf32, #tpu.memory_space<vmem>>, vector<2x1x16x16xf32>
    %8 = arith.addf %6, %7 : vector<2x1x16x16xf32>
    %c0_17 = arith.constant 0 : index
    %c0_18 = arith.constant 0 : index
    %c1_19 = arith.constant 1 : index
    %c2_20 = arith.constant 2 : index
    %9 = vector.load %arg1[%c0_17, %c0_18, %c1_19, %c2_20] : memref<2x1x18x18xf32, #tpu.memory_space<vmem>>, vector<2x1x16x16xf32>
    %10 = arith.addf %8, %9 : vector<2x1x16x16xf32>
    %c0_21 = arith.constant 0 : index
    %c0_22 = arith.constant 0 : index
    %c2_23 = arith.constant 2 : index
    %c0_24 = arith.constant 0 : index
    %11 = vector.load %arg1[%c0_21, %c0_22, %c2_23, %c0_24] : memref<2x1x18x18xf32, #tpu.memory_space<vmem>>, vector<2x1x16x16xf32>
    %12 = arith.addf %10, %11 : vector<2x1x16x16xf32>
    %c0_25 = arith.constant 0 : index
    %c0_26 = arith.constant 0 : index
    %c2_27 = arith.constant 2 : index
    %c1_28 = arith.constant 1 : index
    %13 = vector.load %arg1[%c0_25, %c0_26, %c2_27, %c1_28] : memref<2x1x18x18xf32, #tpu.memory_space<vmem>>, vector<2x1x16x16xf32>
    %14 = arith.addf %12, %13 : vector<2x1x16x16xf32>
    %c0_29 = arith.constant 0 : index
    %c0_30 = arith.constant 0 : index
    %c2_31 = arith.constant 2 : index
    %c2_32 = arith.constant 2 : index
    %15 = vector.load %arg1[%c0_29, %c0_30, %c2_31, %c2_32] : memref<2x1x18x18xf32, #tpu.memory_space<vmem>>, vector<2x1x16x16xf32>
    %16 = arith.addf %14, %15 : vector<2x1x16x16xf32>
    %c0_33 = arith.constant 0 : index
    %c0_34 = arith.constant 0 : index
    %c0_35 = arith.constant 0 : index
    %c0_36 = arith.constant 0 : index
    %17 = vector.load %arg2[%c0_33, %c0_34, %c0_35, %c0_36] : memref<1x1x16x16xf32, #tpu.memory_space<vmem>>, vector<1x1x16x16xf32>
    %18 = vector.broadcast %17 : vector<1x1x16x16xf32> to vector<2x1x16x16xf32>
    %19 = arith.mulf %16, %18 : vector<2x1x16x16xf32>
    %c0_37 = arith.constant 0 : index
    %c0_38 = arith.constant 0 : index
    %c0_39 = arith.constant 0 : index
    %c0_40 = arith.constant 0 : index
    %20 = vector.load %arg3[%c0_37, %c0_38, %c0_39, %c0_40] : memref<2x1x16x16xf32, #tpu.memory_space<vmem>>, vector<2x1x16x16xf32>
    tpu.vector_store %arg3[%c0_37, %c0_38, %c0_39, %c0_40], %19 {strides = array<i32>} : memref<2x1x16x16xf32, #tpu.memory_space<vmem>>, vector<2x1x16x16xf32>,
    return
  }
  func.func @transform_0(%arg0: i32) -> (i32, i32, i32, i32) {
    %c0_i32 = arith.constant 0 : i32
    %c0_i32_0 = arith.constant 0 : i32
    %c0_i32_1 = arith.constant 0 : i32
    %c0_i32_2 = arith.constant 0 : i32
    return %c0_i32, %arg0, %c0_i32_0, %c0_i32_1 : i32, i32, i32, i32
  }
  func.func @transform_1(%arg0: i32) -> (i32, i32, i32, i32) {
    %c0_i32 = arith.constant 0 : i32
    %c0_i32_0 = arith.constant 0 : i32
    %c0_i32_1 = arith.constant 0 : i32
    %c0_i32_2 = arith.constant 0 : i32
    %c0_i32_3 = arith.constant 0 : i32
    return %c0_i32, %c0_i32_0, %c0_i32_1, %c0_i32_2 : i32, i32, i32, i32
  }
  func.func @transform_2(%arg0: i32) -> (i32, i32, i32, i32) {
    %c0_i32 = arith.constant 0 : i32
    %c0_i32_0 = arith.constant 0 : i32
    %c0_i32_1 = arith.constant 0 : i32
    %c0_i32_2 = arith.constant 0 : i32
    return %c0_i32, %arg0, %c0_i32_0, %c0_i32_1 : i32, i32, i32, i32
  }
}

module attributes {stable_mosaic.version = 11 : i64} {
  func.func @_pw_bn_combine_kernel(%arg0: memref<2x4x256xf32, #tpu.memory_space<vmem>>, %arg1: memref<8x128xf32, #tpu.memory_space<vmem>>, %arg2: memref<4x1xf32, #tpu.memory_space<vmem>>, %arg3: memref<4x1xf32, #tpu.memory_space<vmem>>, %arg4: memref<8xf32, #tpu.memory_space<smem>>, %arg5: memref<1xi32, #tpu.memory_space<smem>>, %arg6: memref<2x4x256xf32, #tpu.memory_space<vmem>>, %arg7: memref<128x256xf32, #tpu.memory_space<vmem>>) attributes {dimension_semantics = [], scalar_prefetch = 0 : i64, scratch_operands = 1 : i64, tpu.core_type = #tpu.core_type<tc>} {
    %cst = arith.constant 0.000000e+00 : f32
    %0 = vector.broadcast %cst : f32 to vector<128x256xf32>
    %c0 = arith.constant 0 : index
    %c0_0 = arith.constant 0 : index
    %1 = vector.load %arg7[%c0, %c0_0] : memref<128x256xf32, #tpu.memory_space<vmem>>, vector<128x256xf32>
    tpu.vector_store %arg7[%c0, %c0_0], %0 {strides = array<i32>} : memref<128x256xf32, #tpu.memory_space<vmem>>, vector<128x256xf32>,
    %cst_1 = arith.constant 0.000000e+00 : f32
    %2 = vector.broadcast %cst_1 : f32 to vector<4x1xf32>
    %cst_2 = arith.constant 0.000000e+00 : f32
    %3 = vector.broadcast %cst_2 : f32 to vector<4x1xf32>
    %c0_3 = arith.constant 0 : index
    %c0_4 = arith.constant 0 : index
    %c0_5 = arith.constant 0 : index
    %4 = vector.load %arg0[%c0_3, %c0_4, %c0_5] : memref<2x4x256xf32, #tpu.memory_space<vmem>>, vector<1x4x256xf32>
    %5 = vector.shape_cast %4 : vector<1x4x256xf32> to vector<4x256xf32>
    %c0_6 = arith.constant 0 : index
    %c0_7 = arith.constant 0 : index
    %6 = vector.load %arg7[%c0_6, %c0_7] : memref<128x256xf32, #tpu.memory_space<vmem>>, vector<4x256xf32>
    tpu.vector_store %arg7[%c0_6, %c0_7], %5 {strides = array<i32>} : memref<128x256xf32, #tpu.memory_space<vmem>>, vector<4x256xf32>,
    %c0_8 = arith.constant 0 : index
    %c0_9 = arith.constant 0 : index
    %7 = vector.load %arg1[%c0_8, %c0_9] : memref<8x128xf32, #tpu.memory_space<vmem>>, vector<8x128xf32>
    %c0_10 = arith.constant 0 : index
    %c0_11 = arith.constant 0 : index
    %8 = vector.load %arg7[%c0_10, %c0_11] : memref<128x256xf32, #tpu.memory_space<vmem>>, vector<128x256xf32>
    %cst_12 = arith.constant dense<0.000000e+00> : vector<8x256xf32>
    %9 = tpu.matmul %7, %8, %cst_12 {dimension_numbers = #tpu.dot_dimension_numbers<[1], [0], [0], [1], [0, 0, 1, 1], [], []>} : vector<8x128xf32>, vector<128x256xf32>, vector<8x256xf32> -> vector<8x256xf32>
    %10 = vector.extract_strided_slice %9 {offsets = [0, 0], sizes = [4, 256], strides = [1, 1]} : vector<8x256xf32> to vector<4x256xf32>
    %cst_13 = arith.constant dense<0.000000e+00> : vector<4xf32>
    %11 = vector.multi_reduction <add>, %10, %cst_13 [1] : vector<4x256xf32> to vector<4xf32>
    %12 = vector.shape_cast %11 : vector<4xf32> to vector<4x1xf32>
    %13 = arith.addf %2, %12 : vector<4x1xf32>
    %14 = arith.mulf %10, %10 : vector<4x256xf32>
    %cst_14 = arith.constant dense<0.000000e+00> : vector<4xf32>
    %15 = vector.multi_reduction <add>, %14, %cst_14 [1] : vector<4x256xf32> to vector<4xf32>
    %16 = vector.shape_cast %15 : vector<4xf32> to vector<4x1xf32>
    %17 = arith.addf %3, %16 : vector<4x1xf32>
    %c0_15 = arith.constant 0 : index
    %c0_16 = arith.constant 0 : index
    %c0_17 = arith.constant 0 : index
    %18 = vector.load %arg6[%c0_15, %c0_16, %c0_17] : memref<2x4x256xf32, #tpu.memory_space<vmem>>, vector<1x4x256xf32>
    %19 = vector.shape_cast %18 : vector<1x4x256xf32> to vector<4x256xf32>
    %20 = vector.shape_cast %10 : vector<4x256xf32> to vector<1x4x256xf32>
    tpu.vector_store %arg6[%c0_15, %c0_16, %c0_17], %20 {strides = array<i32>} : memref<2x4x256xf32, #tpu.memory_space<vmem>>, vector<1x4x256xf32>,
    %c1 = arith.constant 1 : index
    %c0_18 = arith.constant 0 : index
    %c0_19 = arith.constant 0 : index
    %21 = vector.load %arg0[%c1, %c0_18, %c0_19] : memref<2x4x256xf32, #tpu.memory_space<vmem>>, vector<1x4x256xf32>
    %22 = vector.shape_cast %21 : vector<1x4x256xf32> to vector<4x256xf32>
    %c0_20 = arith.constant 0 : index
    %c0_21 = arith.constant 0 : index
    %23 = vector.load %arg7[%c0_20, %c0_21] : memref<128x256xf32, #tpu.memory_space<vmem>>, vector<4x256xf32>
    tpu.vector_store %arg7[%c0_20, %c0_21], %22 {strides = array<i32>} : memref<128x256xf32, #tpu.memory_space<vmem>>, vector<4x256xf32>,
    %c0_22 = arith.constant 0 : index
    %c0_23 = arith.constant 0 : index
    %24 = vector.load %arg1[%c0_22, %c0_23] : memref<8x128xf32, #tpu.memory_space<vmem>>, vector<8x128xf32>
    %c0_24 = arith.constant 0 : index
    %c0_25 = arith.constant 0 : index
    %25 = vector.load %arg7[%c0_24, %c0_25] : memref<128x256xf32, #tpu.memory_space<vmem>>, vector<128x256xf32>
    %cst_26 = arith.constant dense<0.000000e+00> : vector<8x256xf32>
    %26 = tpu.matmul %24, %25, %cst_26 {dimension_numbers = #tpu.dot_dimension_numbers<[1], [0], [0], [1], [0, 0, 1, 1], [], []>} : vector<8x128xf32>, vector<128x256xf32>, vector<8x256xf32> -> vector<8x256xf32>
    %27 = vector.extract_strided_slice %26 {offsets = [0, 0], sizes = [4, 256], strides = [1, 1]} : vector<8x256xf32> to vector<4x256xf32>
    %cst_27 = arith.constant dense<0.000000e+00> : vector<4xf32>
    %28 = vector.multi_reduction <add>, %27, %cst_27 [1] : vector<4x256xf32> to vector<4xf32>
    %29 = vector.shape_cast %28 : vector<4xf32> to vector<4x1xf32>
    %30 = arith.addf %13, %29 : vector<4x1xf32>
    %31 = arith.mulf %27, %27 : vector<4x256xf32>
    %cst_28 = arith.constant dense<0.000000e+00> : vector<4xf32>
    %32 = vector.multi_reduction <add>, %31, %cst_28 [1] : vector<4x256xf32> to vector<4xf32>
    %33 = vector.shape_cast %32 : vector<4xf32> to vector<4x1xf32>
    %34 = arith.addf %17, %33 : vector<4x1xf32>
    %c1_29 = arith.constant 1 : index
    %c0_30 = arith.constant 0 : index
    %c0_31 = arith.constant 0 : index
    %35 = vector.load %arg6[%c1_29, %c0_30, %c0_31] : memref<2x4x256xf32, #tpu.memory_space<vmem>>, vector<1x4x256xf32>
    %36 = vector.shape_cast %35 : vector<1x4x256xf32> to vector<4x256xf32>
    %37 = vector.shape_cast %27 : vector<4x256xf32> to vector<1x4x256xf32>
    tpu.vector_store %arg6[%c1_29, %c0_30, %c0_31], %37 {strides = array<i32>} : memref<2x4x256xf32, #tpu.memory_space<vmem>>, vector<1x4x256xf32>,
    %cst_32 = arith.constant 0.001953125 : f32
    %38 = vector.broadcast %cst_32 : f32 to vector<4x1xf32>
    %39 = arith.mulf %30, %38 : vector<4x1xf32>
    %cst_33 = arith.constant 0.001953125 : f32
    %40 = vector.broadcast %cst_33 : f32 to vector<4x1xf32>
    %41 = arith.mulf %34, %40 : vector<4x1xf32>
    %42 = arith.mulf %39, %39 : vector<4x1xf32>
    %43 = arith.subf %41, %42 : vector<4x1xf32>
    %cst_34 = arith.constant 0.000000e+00 : f32
    %44 = vector.broadcast %cst_34 : f32 to vector<4x1xf32>
    %45 = arith.maximumf %43, %44 : vector<4x1xf32>
    %cst_35 = arith.constant 9.99999974E-6 : f32
    %46 = vector.broadcast %cst_35 : f32 to vector<4x1xf32>
    %47 = arith.addf %45, %46 : vector<4x1xf32>
    %48 = math.rsqrt %47 : vector<4x1xf32>
    %c0_36 = arith.constant 0 : index
    %c0_37 = arith.constant 0 : index
    %49 = vector.load %arg2[%c0_36, %c0_37] : memref<4x1xf32, #tpu.memory_space<vmem>>, vector<4x1xf32>
    %50 = arith.mulf %49, %48 : vector<4x1xf32>
    %c0_38 = arith.constant 0 : index
    %c0_39 = arith.constant 0 : index
    %51 = vector.load %arg3[%c0_38, %c0_39] : memref<4x1xf32, #tpu.memory_space<vmem>>, vector<4x1xf32>
    %52 = arith.mulf %39, %50 : vector<4x1xf32>
    %53 = arith.subf %51, %52 : vector<4x1xf32>
    %c0_40 = arith.constant 0 : index
    %c0_41 = arith.constant 0 : index
    %c0_42 = arith.constant 0 : index
    %54 = vector.load %arg6[%c0_40, %c0_41, %c0_42] : memref<2x4x256xf32, #tpu.memory_space<vmem>>, vector<1x4x256xf32>
    %55 = vector.shape_cast %54 : vector<1x4x256xf32> to vector<4x256xf32>
    %56 = vector.broadcast %50 : vector<4x1xf32> to vector<4x256xf32>
    %57 = arith.mulf %55, %56 : vector<4x256xf32>
    %58 = vector.broadcast %53 : vector<4x1xf32> to vector<4x256xf32>
    %59 = arith.addf %57, %58 : vector<4x256xf32>
    %c0_43 = arith.constant 0 : index
    %c0_44 = arith.constant 0 : index
    %c0_45 = arith.constant 0 : index
    %60 = vector.load %arg6[%c0_43, %c0_44, %c0_45] : memref<2x4x256xf32, #tpu.memory_space<vmem>>, vector<1x4x256xf32>
    %61 = vector.shape_cast %60 : vector<1x4x256xf32> to vector<4x256xf32>
    %62 = vector.shape_cast %59 : vector<4x256xf32> to vector<1x4x256xf32>
    tpu.vector_store %arg6[%c0_43, %c0_44, %c0_45], %62 {strides = array<i32>} : memref<2x4x256xf32, #tpu.memory_space<vmem>>, vector<1x4x256xf32>,
    %c1_46 = arith.constant 1 : index
    %c0_47 = arith.constant 0 : index
    %c0_48 = arith.constant 0 : index
    %63 = vector.load %arg6[%c1_46, %c0_47, %c0_48] : memref<2x4x256xf32, #tpu.memory_space<vmem>>, vector<1x4x256xf32>
    %64 = vector.shape_cast %63 : vector<1x4x256xf32> to vector<4x256xf32>
    %65 = vector.broadcast %50 : vector<4x1xf32> to vector<4x256xf32>
    %66 = arith.mulf %64, %65 : vector<4x256xf32>
    %67 = vector.broadcast %53 : vector<4x1xf32> to vector<4x256xf32>
    %68 = arith.addf %66, %67 : vector<4x256xf32>
    %c1_49 = arith.constant 1 : index
    %c0_50 = arith.constant 0 : index
    %c0_51 = arith.constant 0 : index
    %69 = vector.load %arg6[%c1_49, %c0_50, %c0_51] : memref<2x4x256xf32, #tpu.memory_space<vmem>>, vector<1x4x256xf32>
    %70 = vector.shape_cast %69 : vector<1x4x256xf32> to vector<4x256xf32>
    %71 = vector.shape_cast %68 : vector<4x256xf32> to vector<1x4x256xf32>
    tpu.vector_store %arg6[%c1_49, %c0_50, %c0_51], %71 {strides = array<i32>} : memref<2x4x256xf32, #tpu.memory_space<vmem>>, vector<1x4x256xf32>,
    return
  }
}

module attributes {stable_mosaic.version = 11 : i64} {
  func.func @_pw_bn_combine_kernel(%arg0: memref<2x4x256xf32, #tpu.memory_space<vmem>>, %arg1: memref<8x128xf32, #tpu.memory_space<vmem>>, %arg2: memref<4x1xf32, #tpu.memory_space<vmem>>, %arg3: memref<4x1xf32, #tpu.memory_space<vmem>>, %arg4: memref<8xf32, #tpu.memory_space<smem>>, %arg5: memref<1xi32, #tpu.memory_space<smem>>, %arg6: memref<2x4x256xf32, #tpu.memory_space<vmem>>, %arg7: memref<128x256xf32, #tpu.memory_space<vmem>>) attributes {dimension_semantics = [], scalar_prefetch = 0 : i64, scratch_operands = 1 : i64, tpu.core_type = #tpu.core_type<tc>} {
    %cst = arith.constant 0.000000e+00 : f32
    %0 = vector.broadcast %cst : f32 to vector<128x256xf32>
    %c0 = arith.constant 0 : index
    %c0_0 = arith.constant 0 : index
    %1 = vector.load %arg7[%c0, %c0_0] : memref<128x256xf32, #tpu.memory_space<vmem>>, vector<128x256xf32>
    tpu.vector_store %arg7[%c0, %c0_0], %0 {strides = array<i32>} : memref<128x256xf32, #tpu.memory_space<vmem>>, vector<128x256xf32>,
    %cst_1 = arith.constant 0.000000e+00 : f32
    %2 = vector.broadcast %cst_1 : f32 to vector<4x1xf32>
    %cst_2 = arith.constant 0.000000e+00 : f32
    %3 = vector.broadcast %cst_2 : f32 to vector<4x1xf32>
    %c0_3 = arith.constant 0 : index
    %c0_4 = arith.constant 0 : index
    %c0_5 = arith.constant 0 : index
    %4 = vector.load %arg0[%c0_3, %c0_4, %c0_5] : memref<2x4x256xf32, #tpu.memory_space<vmem>>, vector<1x4x256xf32>
    %5 = vector.shape_cast %4 : vector<1x4x256xf32> to vector<4x256xf32>
    %c0_6 = arith.constant 0 : index
    %c0_7 = arith.constant 0 : index
    %6 = vector.load %arg7[%c0_6, %c0_7] : memref<128x256xf32, #tpu.memory_space<vmem>>, vector<4x256xf32>
    tpu.vector_store %arg7[%c0_6, %c0_7], %5 {strides = array<i32>} : memref<128x256xf32, #tpu.memory_space<vmem>>, vector<4x256xf32>,
    %c0_8 = arith.constant 0 : index
    %c0_9 = arith.constant 0 : index
    %7 = vector.load %arg1[%c0_8, %c0_9] : memref<8x128xf32, #tpu.memory_space<vmem>>, vector<8x128xf32>
    %c0_10 = arith.constant 0 : index
    %c0_11 = arith.constant 0 : index
    %8 = vector.load %arg7[%c0_10, %c0_11] : memref<128x256xf32, #tpu.memory_space<vmem>>, vector<128x256xf32>
    %cst_12 = arith.constant dense<0.000000e+00> : vector<8x256xf32>
    %9 = tpu.matmul %7, %8, %cst_12 {dimension_numbers = #tpu.dot_dimension_numbers<[1], [0], [0], [1], [0, 0, 1, 1], [], []>} : vector<8x128xf32>, vector<128x256xf32>, vector<8x256xf32> -> vector<8x256xf32>
    %10 = vector.extract_strided_slice %9 {offsets = [0, 0], sizes = [4, 256], strides = [1, 1]} : vector<8x256xf32> to vector<4x256xf32>
    %cst_13 = arith.constant dense<0.000000e+00> : vector<4xf32>
    %11 = vector.multi_reduction <add>, %10, %cst_13 [1] : vector<4x256xf32> to vector<4xf32>
    %12 = vector.shape_cast %11 : vector<4xf32> to vector<4x1xf32>
    %13 = arith.addf %2, %12 : vector<4x1xf32>
    %14 = arith.mulf %10, %10 : vector<4x256xf32>
    %cst_14 = arith.constant dense<0.000000e+00> : vector<4xf32>
    %15 = vector.multi_reduction <add>, %14, %cst_14 [1] : vector<4x256xf32> to vector<4xf32>
    %16 = vector.shape_cast %15 : vector<4xf32> to vector<4x1xf32>
    %17 = arith.addf %3, %16 : vector<4x1xf32>
    %c0_15 = arith.constant 0 : index
    %c0_16 = arith.constant 0 : index
    %c0_17 = arith.constant 0 : index
    %18 = vector.load %arg6[%c0_15, %c0_16, %c0_17] : memref<2x4x256xf32, #tpu.memory_space<vmem>>, vector<1x4x256xf32>
    %19 = vector.shape_cast %18 : vector<1x4x256xf32> to vector<4x256xf32>
    %20 = vector.shape_cast %10 : vector<4x256xf32> to vector<1x4x256xf32>
    tpu.vector_store %arg6[%c0_15, %c0_16, %c0_17], %20 {strides = array<i32>} : memref<2x4x256xf32, #tpu.memory_space<vmem>>, vector<1x4x256xf32>,
    %c1 = arith.constant 1 : index
    %c0_18 = arith.constant 0 : index
    %c0_19 = arith.constant 0 : index
    %21 = vector.load %arg0[%c1, %c0_18, %c0_19] : memref<2x4x256xf32, #tpu.memory_space<vmem>>, vector<1x4x256xf32>
    %22 = vector.shape_cast %21 : vector<1x4x256xf32> to vector<4x256xf32>
    %c0_20 = arith.constant 0 : index
    %c0_21 = arith.constant 0 : index
    %23 = vector.load %arg7[%c0_20, %c0_21] : memref<128x256xf32, #tpu.memory_space<vmem>>, vector<4x256xf32>
    tpu.vector_store %arg7[%c0_20, %c0_21], %22 {strides = array<i32>} : memref<128x256xf32, #tpu.memory_space<vmem>>, vector<4x256xf32>,
    %c0_22 = arith.constant 0 : index
    %c0_23 = arith.constant 0 : index
    %24 = vector.load %arg1[%c0_22, %c0_23] : memref<8x128xf32, #tpu.memory_space<vmem>>, vector<8x128xf32>
    %c0_24 = arith.constant 0 : index
    %c0_25 = arith.constant 0 : index
    %25 = vector.load %arg7[%c0_24, %c0_25] : memref<128x256xf32, #tpu.memory_space<vmem>>, vector<128x256xf32>
    %cst_26 = arith.constant dense<0.000000e+00> : vector<8x256xf32>
    %26 = tpu.matmul %24, %25, %cst_26 {dimension_numbers = #tpu.dot_dimension_numbers<[1], [0], [0], [1], [0, 0, 1, 1], [], []>} : vector<8x128xf32>, vector<128x256xf32>, vector<8x256xf32> -> vector<8x256xf32>
    %27 = vector.extract_strided_slice %26 {offsets = [0, 0], sizes = [4, 256], strides = [1, 1]} : vector<8x256xf32> to vector<4x256xf32>
    %cst_27 = arith.constant dense<0.000000e+00> : vector<4xf32>
    %28 = vector.multi_reduction <add>, %27, %cst_27 [1] : vector<4x256xf32> to vector<4xf32>
    %29 = vector.shape_cast %28 : vector<4xf32> to vector<4x1xf32>
    %30 = arith.addf %13, %29 : vector<4x1xf32>
    %31 = arith.mulf %27, %27 : vector<4x256xf32>
    %cst_28 = arith.constant dense<0.000000e+00> : vector<4xf32>
    %32 = vector.multi_reduction <add>, %31, %cst_28 [1] : vector<4x256xf32> to vector<4xf32>
    %33 = vector.shape_cast %32 : vector<4xf32> to vector<4x1xf32>
    %34 = arith.addf %17, %33 : vector<4x1xf32>
    %c1_29 = arith.constant 1 : index
    %c0_30 = arith.constant 0 : index
    %c0_31 = arith.constant 0 : index
    %35 = vector.load %arg6[%c1_29, %c0_30, %c0_31] : memref<2x4x256xf32, #tpu.memory_space<vmem>>, vector<1x4x256xf32>
    %36 = vector.shape_cast %35 : vector<1x4x256xf32> to vector<4x256xf32>
    %37 = vector.shape_cast %27 : vector<4x256xf32> to vector<1x4x256xf32>
    tpu.vector_store %arg6[%c1_29, %c0_30, %c0_31], %37 {strides = array<i32>} : memref<2x4x256xf32, #tpu.memory_space<vmem>>, vector<1x4x256xf32>,
    %cst_32 = arith.constant 0.001953125 : f32
    %38 = vector.broadcast %cst_32 : f32 to vector<4x1xf32>
    %39 = arith.mulf %30, %38 : vector<4x1xf32>
    %cst_33 = arith.constant 0.001953125 : f32
    %40 = vector.broadcast %cst_33 : f32 to vector<4x1xf32>
    %41 = arith.mulf %34, %40 : vector<4x1xf32>
    %42 = arith.mulf %39, %39 : vector<4x1xf32>
    %43 = arith.subf %41, %42 : vector<4x1xf32>
    %cst_34 = arith.constant 0.000000e+00 : f32
    %44 = vector.broadcast %cst_34 : f32 to vector<4x1xf32>
    %45 = arith.maximumf %43, %44 : vector<4x1xf32>
    %cst_35 = arith.constant 9.99999974E-6 : f32
    %46 = vector.broadcast %cst_35 : f32 to vector<4x1xf32>
    %47 = arith.addf %45, %46 : vector<4x1xf32>
    %48 = math.rsqrt %47 : vector<4x1xf32>
    %c0_36 = arith.constant 0 : index
    %c0_37 = arith.constant 0 : index
    %49 = vector.load %arg2[%c0_36, %c0_37] : memref<4x1xf32, #tpu.memory_space<vmem>>, vector<4x1xf32>
    %50 = arith.mulf %49, %48 : vector<4x1xf32>
    %c0_38 = arith.constant 0 : index
    %c0_39 = arith.constant 0 : index
    %51 = vector.load %arg3[%c0_38, %c0_39] : memref<4x1xf32, #tpu.memory_space<vmem>>, vector<4x1xf32>
    %52 = arith.mulf %39, %50 : vector<4x1xf32>
    %53 = arith.subf %51, %52 : vector<4x1xf32>
    %c0_40 = arith.constant 0 : index
    %54 = memref.load %arg5[%c0_40] : memref<1xi32, #tpu.memory_space<smem>>
    %c0_41 = arith.constant 0 : index
    %55 = memref.load %arg4[%c0_41] : memref<8xf32, #tpu.memory_space<smem>>
    %c1_42 = arith.constant 1 : index
    %56 = memref.load %arg4[%c1_42] : memref<8xf32, #tpu.memory_space<smem>>
    %57 = arith.addf %55, %56 : f32
    %c2 = arith.constant 2 : index
    %58 = memref.load %arg4[%c2] : memref<8xf32, #tpu.memory_space<smem>>
    %59 = arith.addf %57, %58 : f32
    %c3 = arith.constant 3 : index
    %60 = memref.load %arg4[%c3] : memref<8xf32, #tpu.memory_space<smem>>
    %61 = arith.addf %59, %60 : f32
    %c4 = arith.constant 4 : index
    %62 = memref.load %arg4[%c4] : memref<8xf32, #tpu.memory_space<smem>>
    %63 = arith.addf %61, %62 : f32
    %c5 = arith.constant 5 : index
    %64 = memref.load %arg4[%c5] : memref<8xf32, #tpu.memory_space<smem>>
    %65 = arith.addf %63, %64 : f32
    %c6 = arith.constant 6 : index
    %66 = memref.load %arg4[%c6] : memref<8xf32, #tpu.memory_space<smem>>
    %67 = arith.addf %65, %66 : f32
    %c7 = arith.constant 7 : index
    %68 = memref.load %arg4[%c7] : memref<8xf32, #tpu.memory_space<smem>>
    %69 = arith.addf %67, %68 : f32
    %70 = arith.index_cast %54 : i32 to index
    %71 = memref.load %arg4[%70] : memref<8xf32, #tpu.memory_space<smem>>
    %72 = vector.broadcast %71 : f32 to vector<4x1xf32>
    %73 = arith.mulf %50, %72 : vector<4x1xf32>
    %74 = vector.broadcast %71 : f32 to vector<4x1xf32>
    %75 = arith.mulf %53, %74 : vector<4x1xf32>
    %76 = arith.subf %69, %71 : f32
    %77 = vector.broadcast %76 : f32 to vector<4x1xf32>
    %78 = arith.addf %75, %77 : vector<4x1xf32>
    %c0_43 = arith.constant 0 : index
    %c0_44 = arith.constant 0 : index
    %c0_45 = arith.constant 0 : index
    %79 = vector.load %arg6[%c0_43, %c0_44, %c0_45] : memref<2x4x256xf32, #tpu.memory_space<vmem>>, vector<1x4x256xf32>
    %80 = vector.shape_cast %79 : vector<1x4x256xf32> to vector<4x256xf32>
    %81 = vector.broadcast %73 : vector<4x1xf32> to vector<4x256xf32>
    %82 = arith.mulf %80, %81 : vector<4x256xf32>
    %83 = vector.broadcast %78 : vector<4x1xf32> to vector<4x256xf32>
    %84 = arith.addf %82, %83 : vector<4x256xf32>
    %c0_46 = arith.constant 0 : index
    %c0_47 = arith.constant 0 : index
    %c0_48 = arith.constant 0 : index
    %85 = vector.load %arg6[%c0_46, %c0_47, %c0_48] : memref<2x4x256xf32, #tpu.memory_space<vmem>>, vector<1x4x256xf32>
    %86 = vector.shape_cast %85 : vector<1x4x256xf32> to vector<4x256xf32>
    %87 = vector.shape_cast %84 : vector<4x256xf32> to vector<1x4x256xf32>
    tpu.vector_store %arg6[%c0_46, %c0_47, %c0_48], %87 {strides = array<i32>} : memref<2x4x256xf32, #tpu.memory_space<vmem>>, vector<1x4x256xf32>,
    %c1_49 = arith.constant 1 : index
    %c0_50 = arith.constant 0 : index
    %c0_51 = arith.constant 0 : index
    %88 = vector.load %arg6[%c1_49, %c0_50, %c0_51] : memref<2x4x256xf32, #tpu.memory_space<vmem>>, vector<1x4x256xf32>
    %89 = vector.shape_cast %88 : vector<1x4x256xf32> to vector<4x256xf32>
    %90 = vector.broadcast %73 : vector<4x1xf32> to vector<4x256xf32>
    %91 = arith.mulf %89, %90 : vector<4x256xf32>
    %92 = vector.broadcast %78 : vector<4x1xf32> to vector<4x256xf32>
    %93 = arith.addf %91, %92 : vector<4x256xf32>
    %c1_52 = arith.constant 1 : index
    %c0_53 = arith.constant 0 : index
    %c0_54 = arith.constant 0 : index
    %94 = vector.load %arg6[%c1_52, %c0_53, %c0_54] : memref<2x4x256xf32, #tpu.memory_space<vmem>>, vector<1x4x256xf32>
    %95 = vector.shape_cast %94 : vector<1x4x256xf32> to vector<4x256xf32>
    %96 = vector.shape_cast %93 : vector<4x256xf32> to vector<1x4x256xf32>
    tpu.vector_store %arg6[%c1_52, %c0_53, %c0_54], %96 {strides = array<i32>} : memref<2x4x256xf32, #tpu.memory_space<vmem>>, vector<1x4x256xf32>,
    return
  }
}

module attributes {stable_mosaic.version = 11 : i64} {
  func.func @_depthwise_kernel(%arg0: i32, %arg1: memref<2x1x18x18xf32, #tpu.memory_space<vmem>>, %arg2: memref<36xf32, #tpu.memory_space<smem>>, %arg3: memref<2x1x16x16xf32, #tpu.memory_space<vmem>>, %arg4: memref<2x1x18x18xf32, #tpu.memory_space<vmem>>) attributes {dimension_semantics = [#tpu.dimension_semantics<parallel>], iteration_bounds = array<i64: 4>, scalar_prefetch = 0 : i64, scratch_operands = 1 : i64, tpu.core_type = #tpu.core_type<tc>, window_params = [{transform_indices = @transform_0, window_bounds = array<i64: 2, 1, 18, 18>}, {transform_indices = @transform_1, window_bounds = array<i64: 36>}, {transform_indices = @transform_2, window_bounds = array<i64: 2, 1, 16, 16>}]} {
    %c0 = arith.constant 0 : index
    %c0_0 = arith.constant 0 : index
    %c0_1 = arith.constant 0 : index
    %c0_2 = arith.constant 0 : index
    %0 = vector.load %arg1[%c0, %c0_0, %c0_1, %c0_2] : memref<2x1x18x18xf32, #tpu.memory_space<vmem>>, vector<2x1x18x18xf32>
    %cst = arith.constant 0.000000e+00 : f32
    %1 = vector.broadcast %cst : f32 to vector<2x1x18x18xf32>
    %2 = arith.maximumf %0, %1 : vector<2x1x18x18xf32>
    %c0_3 = arith.constant 0 : index
    %c0_4 = arith.constant 0 : index
    %c0_5 = arith.constant 0 : index
    %c0_6 = arith.constant 0 : index
    %3 = vector.load %arg4[%c0_3, %c0_4, %c0_5, %c0_6] : memref<2x1x18x18xf32, #tpu.memory_space<vmem>>, vector<2x1x18x18xf32>
    tpu.vector_store %arg4[%c0_3, %c0_4, %c0_5, %c0_6], %2 {strides = array<i32>} : memref<2x1x18x18xf32, #tpu.memory_space<vmem>>, vector<2x1x18x18xf32>,
    %cst_7 = arith.constant 0.000000e+00 : f32
    %4 = vector.broadcast %cst_7 : f32 to vector<2x1x16x16xf32>
    %c9_i32 = arith.constant 9 : i32
    %5 = arith.muli %arg0, %c9_i32 : i32
    %c0_i32 = arith.constant 0 : i32
    %6 = arith.addi %5, %c0_i32 : i32
    %c0_i32_8 = arith.constant 0 : i32
    %7 = arith.addi %6, %c0_i32_8 : i32
    %8 = arith.index_cast %7 : i32 to index
    %9 = memref.load %arg2[%8] : memref<36xf32, #tpu.memory_space<smem>>
    %c0_9 = arith.constant 0 : index
    %c0_10 = arith.constant 0 : index
    %c0_11 = arith.constant 0 : index
    %c0_12 = arith.constant 0 : index
    %10 = vector.load %arg4[%c0_9, %c0_10, %c0_11, %c0_12] : memref<2x1x18x18xf32, #tpu.memory_space<vmem>>, vector<2x1x16x16xf32>
    %11 = vector.broadcast %9 : f32 to vector<2x1x16x16xf32>
    %12 = arith.mulf %11, %10 : vector<2x1x16x16xf32>
    %13 = arith.addf %4, %12 : vector<2x1x16x16xf32>
    %c9_i32_13 = arith.constant 9 : i32
    %14 = arith.muli %arg0, %c9_i32_13 : i32
    %c0_i32_14 = arith.constant 0 : i32
    %15 = arith.addi %14, %c0_i32_14 : i32
    %c1_i32 = arith.constant 1 : i32
    %16 = arith.addi %15, %c1_i32 : i32
    %17 = arith.index_cast %16 : i32 to index
    %18 = memref.load %arg2[%17] : memref<36xf32, #tpu.memory_space<smem>>
    %c0_15 = arith.constant 0 : index
    %c0_16 = arith.constant 0 : index
    %c0_17 = arith.constant 0 : index
    %c1 = arith.constant 1 : index
    %19 = vector.load %arg4[%c0_15, %c0_16, %c0_17, %c1] : memref<2x1x18x18xf32, #tpu.memory_space<vmem>>, vector<2x1x16x16xf32>
    %20 = vector.broadcast %18 : f32 to vector<2x1x16x16xf32>
    %21 = arith.mulf %20, %19 : vector<2x1x16x16xf32>
    %22 = arith.addf %13, %21 : vector<2x1x16x16xf32>
    %c9_i32_18 = arith.constant 9 : i32
    %23 = arith.muli %arg0, %c9_i32_18 : i32
    %c0_i32_19 = arith.constant 0 : i32
    %24 = arith.addi %23, %c0_i32_19 : i32
    %c2_i32 = arith.constant 2 : i32
    %25 = arith.addi %24, %c2_i32 : i32
    %26 = arith.index_cast %25 : i32 to index
    %27 = memref.load %arg2[%26] : memref<36xf32, #tpu.memory_space<smem>>
    %c0_20 = arith.constant 0 : index
    %c0_21 = arith.constant 0 : index
    %c0_22 = arith.constant 0 : index
    %c2 = arith.constant 2 : index
    %28 = vector.load %arg4[%c0_20, %c0_21, %c0_22, %c2] : memref<2x1x18x18xf32, #tpu.memory_space<vmem>>, vector<2x1x16x16xf32>
    %29 = vector.broadcast %27 : f32 to vector<2x1x16x16xf32>
    %30 = arith.mulf %29, %28 : vector<2x1x16x16xf32>
    %31 = arith.addf %22, %30 : vector<2x1x16x16xf32>
    %c9_i32_23 = arith.constant 9 : i32
    %32 = arith.muli %arg0, %c9_i32_23 : i32
    %c3_i32 = arith.constant 3 : i32
    %33 = arith.addi %32, %c3_i32 : i32
    %c0_i32_24 = arith.constant 0 : i32
    %34 = arith.addi %33, %c0_i32_24 : i32
    %35 = arith.index_cast %34 : i32 to index
    %36 = memref.load %arg2[%35] : memref<36xf32, #tpu.memory_space<smem>>
    %c0_25 = arith.constant 0 : index
    %c0_26 = arith.constant 0 : index
    %c1_27 = arith.constant 1 : index
    %c0_28 = arith.constant 0 : index
    %37 = vector.load %arg4[%c0_25, %c0_26, %c1_27, %c0_28] : memref<2x1x18x18xf32, #tpu.memory_space<vmem>>, vector<2x1x16x16xf32>
    %38 = vector.broadcast %36 : f32 to vector<2x1x16x16xf32>
    %39 = arith.mulf %38, %37 : vector<2x1x16x16xf32>
    %40 = arith.addf %31, %39 : vector<2x1x16x16xf32>
    %c9_i32_29 = arith.constant 9 : i32
    %41 = arith.muli %arg0, %c9_i32_29 : i32
    %c3_i32_30 = arith.constant 3 : i32
    %42 = arith.addi %41, %c3_i32_30 : i32
    %c1_i32_31 = arith.constant 1 : i32
    %43 = arith.addi %42, %c1_i32_31 : i32
    %44 = arith.index_cast %43 : i32 to index
    %45 = memref.load %arg2[%44] : memref<36xf32, #tpu.memory_space<smem>>
    %c0_32 = arith.constant 0 : index
    %c0_33 = arith.constant 0 : index
    %c1_34 = arith.constant 1 : index
    %c1_35 = arith.constant 1 : index
    %46 = vector.load %arg4[%c0_32, %c0_33, %c1_34, %c1_35] : memref<2x1x18x18xf32, #tpu.memory_space<vmem>>, vector<2x1x16x16xf32>
    %47 = vector.broadcast %45 : f32 to vector<2x1x16x16xf32>
    %48 = arith.mulf %47, %46 : vector<2x1x16x16xf32>
    %49 = arith.addf %40, %48 : vector<2x1x16x16xf32>
    %c9_i32_36 = arith.constant 9 : i32
    %50 = arith.muli %arg0, %c9_i32_36 : i32
    %c3_i32_37 = arith.constant 3 : i32
    %51 = arith.addi %50, %c3_i32_37 : i32
    %c2_i32_38 = arith.constant 2 : i32
    %52 = arith.addi %51, %c2_i32_38 : i32
    %53 = arith.index_cast %52 : i32 to index
    %54 = memref.load %arg2[%53] : memref<36xf32, #tpu.memory_space<smem>>
    %c0_39 = arith.constant 0 : index
    %c0_40 = arith.constant 0 : index
    %c1_41 = arith.constant 1 : index
    %c2_42 = arith.constant 2 : index
    %55 = vector.load %arg4[%c0_39, %c0_40, %c1_41, %c2_42] : memref<2x1x18x18xf32, #tpu.memory_space<vmem>>, vector<2x1x16x16xf32>
    %56 = vector.broadcast %54 : f32 to vector<2x1x16x16xf32>
    %57 = arith.mulf %56, %55 : vector<2x1x16x16xf32>
    %58 = arith.addf %49, %57 : vector<2x1x16x16xf32>
    %c9_i32_43 = arith.constant 9 : i32
    %59 = arith.muli %arg0, %c9_i32_43 : i32
    %c6_i32 = arith.constant 6 : i32
    %60 = arith.addi %59, %c6_i32 : i32
    %c0_i32_44 = arith.constant 0 : i32
    %61 = arith.addi %60, %c0_i32_44 : i32
    %62 = arith.index_cast %61 : i32 to index
    %63 = memref.load %arg2[%62] : memref<36xf32, #tpu.memory_space<smem>>
    %c0_45 = arith.constant 0 : index
    %c0_46 = arith.constant 0 : index
    %c2_47 = arith.constant 2 : index
    %c0_48 = arith.constant 0 : index
    %64 = vector.load %arg4[%c0_45, %c0_46, %c2_47, %c0_48] : memref<2x1x18x18xf32, #tpu.memory_space<vmem>>, vector<2x1x16x16xf32>
    %65 = vector.broadcast %63 : f32 to vector<2x1x16x16xf32>
    %66 = arith.mulf %65, %64 : vector<2x1x16x16xf32>
    %67 = arith.addf %58, %66 : vector<2x1x16x16xf32>
    %c9_i32_49 = arith.constant 9 : i32
    %68 = arith.muli %arg0, %c9_i32_49 : i32
    %c6_i32_50 = arith.constant 6 : i32
    %69 = arith.addi %68, %c6_i32_50 : i32
    %c1_i32_51 = arith.constant 1 : i32
    %70 = arith.addi %69, %c1_i32_51 : i32
    %71 = arith.index_cast %70 : i32 to index
    %72 = memref.load %arg2[%71] : memref<36xf32, #tpu.memory_space<smem>>
    %c0_52 = arith.constant 0 : index
    %c0_53 = arith.constant 0 : index
    %c2_54 = arith.constant 2 : index
    %c1_55 = arith.constant 1 : index
    %73 = vector.load %arg4[%c0_52, %c0_53, %c2_54, %c1_55] : memref<2x1x18x18xf32, #tpu.memory_space<vmem>>, vector<2x1x16x16xf32>
    %74 = vector.broadcast %72 : f32 to vector<2x1x16x16xf32>
    %75 = arith.mulf %74, %73 : vector<2x1x16x16xf32>
    %76 = arith.addf %67, %75 : vector<2x1x16x16xf32>
    %c9_i32_56 = arith.constant 9 : i32
    %77 = arith.muli %arg0, %c9_i32_56 : i32
    %c6_i32_57 = arith.constant 6 : i32
    %78 = arith.addi %77, %c6_i32_57 : i32
    %c2_i32_58 = arith.constant 2 : i32
    %79 = arith.addi %78, %c2_i32_58 : i32
    %80 = arith.index_cast %79 : i32 to index
    %81 = memref.load %arg2[%80] : memref<36xf32, #tpu.memory_space<smem>>
    %c0_59 = arith.constant 0 : index
    %c0_60 = arith.constant 0 : index
    %c2_61 = arith.constant 2 : index
    %c2_62 = arith.constant 2 : index
    %82 = vector.load %arg4[%c0_59, %c0_60, %c2_61, %c2_62] : memref<2x1x18x18xf32, #tpu.memory_space<vmem>>, vector<2x1x16x16xf32>
    %83 = vector.broadcast %81 : f32 to vector<2x1x16x16xf32>
    %84 = arith.mulf %83, %82 : vector<2x1x16x16xf32>
    %85 = arith.addf %76, %84 : vector<2x1x16x16xf32>
    %c0_63 = arith.constant 0 : index
    %c0_64 = arith.constant 0 : index
    %c0_65 = arith.constant 0 : index
    %c0_66 = arith.constant 0 : index
    %86 = vector.load %arg3[%c0_63, %c0_64, %c0_65, %c0_66] : memref<2x1x16x16xf32, #tpu.memory_space<vmem>>, vector<2x1x16x16xf32>
    tpu.vector_store %arg3[%c0_63, %c0_64, %c0_65, %c0_66], %85 {strides = array<i32>} : memref<2x1x16x16xf32, #tpu.memory_space<vmem>>, vector<2x1x16x16xf32>,
    return
  }
  func.func @transform_0(%arg0: i32) -> (i32, i32, i32, i32) {
    %c0_i32 = arith.constant 0 : i32
    %c0_i32_0 = arith.constant 0 : i32
    %c0_i32_1 = arith.constant 0 : i32
    %c0_i32_2 = arith.constant 0 : i32
    return %c0_i32, %arg0, %c0_i32_0, %c0_i32_1 : i32, i32, i32, i32
  }
  func.func @transform_1(%arg0: i32) -> i32 {
    %c0_i32 = arith.constant 0 : i32
    %c0_i32_0 = arith.constant 0 : i32
    return %c0_i32 : i32
  }
  func.func @transform_2(%arg0: i32) -> (i32, i32, i32, i32) {
    %c0_i32 = arith.constant 0 : i32
    %c0_i32_0 = arith.constant 0 : i32
    %c0_i32_1 = arith.constant 0 : i32
    %c0_i32_2 = arith.constant 0 : i32
    return %c0_i32, %arg0, %c0_i32_0, %c0_i32_1 : i32, i32, i32, i32
  }
}

module attributes {stable_mosaic.version = 11 : i64} {
  func.func @_depthwise_kernel(%arg0: i32, %arg1: memref<2x1x20x20xf32, #tpu.memory_space<vmem>>, %arg2: memref<100xf32, #tpu.memory_space<smem>>, %arg3: memref<2x1x16x16xf32, #tpu.memory_space<vmem>>, %arg4: memref<2x1x20x20xf32, #tpu.memory_space<vmem>>) attributes {dimension_semantics = [#tpu.dimension_semantics<parallel>], iteration_bounds = array<i64: 4>, scalar_prefetch = 0 : i64, scratch_operands = 1 : i64, tpu.core_type = #tpu.core_type<tc>, window_params = [{transform_indices = @transform_0, window_bounds = array<i64: 2, 1, 20, 20>}, {transform_indices = @transform_1, window_bounds = array<i64: 100>}, {transform_indices = @transform_2, window_bounds = array<i64: 2, 1, 16, 16>}]} {
    %c0 = arith.constant 0 : index
    %c0_0 = arith.constant 0 : index
    %c0_1 = arith.constant 0 : index
    %c0_2 = arith.constant 0 : index
    %0 = vector.load %arg1[%c0, %c0_0, %c0_1, %c0_2] : memref<2x1x20x20xf32, #tpu.memory_space<vmem>>, vector<2x1x20x20xf32>
    %cst = arith.constant 0.000000e+00 : f32
    %1 = vector.broadcast %cst : f32 to vector<2x1x20x20xf32>
    %2 = arith.maximumf %0, %1 : vector<2x1x20x20xf32>
    %c0_3 = arith.constant 0 : index
    %c0_4 = arith.constant 0 : index
    %c0_5 = arith.constant 0 : index
    %c0_6 = arith.constant 0 : index
    %3 = vector.load %arg4[%c0_3, %c0_4, %c0_5, %c0_6] : memref<2x1x20x20xf32, #tpu.memory_space<vmem>>, vector<2x1x20x20xf32>
    tpu.vector_store %arg4[%c0_3, %c0_4, %c0_5, %c0_6], %2 {strides = array<i32>} : memref<2x1x20x20xf32, #tpu.memory_space<vmem>>, vector<2x1x20x20xf32>,
    %cst_7 = arith.constant 0.000000e+00 : f32
    %4 = vector.broadcast %cst_7 : f32 to vector<2x1x16x16xf32>
    %c25_i32 = arith.constant 25 : i32
    %5 = arith.muli %arg0, %c25_i32 : i32
    %c0_i32 = arith.constant 0 : i32
    %6 = arith.addi %5, %c0_i32 : i32
    %c0_i32_8 = arith.constant 0 : i32
    %7 = arith.addi %6, %c0_i32_8 : i32
    %8 = arith.index_cast %7 : i32 to index
    %9 = memref.load %arg2[%8] : memref<100xf32, #tpu.memory_space<smem>>
    %c0_9 = arith.constant 0 : index
    %c0_10 = arith.constant 0 : index
    %c0_11 = arith.constant 0 : index
    %c0_12 = arith.constant 0 : index
    %10 = vector.load %arg4[%c0_9, %c0_10, %c0_11, %c0_12] : memref<2x1x20x20xf32, #tpu.memory_space<vmem>>, vector<2x1x16x16xf32>
    %11 = vector.broadcast %9 : f32 to vector<2x1x16x16xf32>
    %12 = arith.mulf %11, %10 : vector<2x1x16x16xf32>
    %13 = arith.addf %4, %12 : vector<2x1x16x16xf32>
    %c25_i32_13 = arith.constant 25 : i32
    %14 = arith.muli %arg0, %c25_i32_13 : i32
    %c0_i32_14 = arith.constant 0 : i32
    %15 = arith.addi %14, %c0_i32_14 : i32
    %c1_i32 = arith.constant 1 : i32
    %16 = arith.addi %15, %c1_i32 : i32
    %17 = arith.index_cast %16 : i32 to index
    %18 = memref.load %arg2[%17] : memref<100xf32, #tpu.memory_space<smem>>
    %c0_15 = arith.constant 0 : index
    %c0_16 = arith.constant 0 : index
    %c0_17 = arith.constant 0 : index
    %c1 = arith.constant 1 : index
    %19 = vector.load %arg4[%c0_15, %c0_16, %c0_17, %c1] : memref<2x1x20x20xf32, #tpu.memory_space<vmem>>, vector<2x1x16x16xf32>
    %20 = vector.broadcast %18 : f32 to vector<2x1x16x16xf32>
    %21 = arith.mulf %20, %19 : vector<2x1x16x16xf32>
    %22 = arith.addf %13, %21 : vector<2x1x16x16xf32>
    %c25_i32_18 = arith.constant 25 : i32
    %23 = arith.muli %arg0, %c25_i32_18 : i32
    %c0_i32_19 = arith.constant 0 : i32
    %24 = arith.addi %23, %c0_i32_19 : i32
    %c2_i32 = arith.constant 2 : i32
    %25 = arith.addi %24, %c2_i32 : i32
    %26 = arith.index_cast %25 : i32 to index
    %27 = memref.load %arg2[%26] : memref<100xf32, #tpu.memory_space<smem>>
    %c0_20 = arith.constant 0 : index
    %c0_21 = arith.constant 0 : index
    %c0_22 = arith.constant 0 : index
    %c2 = arith.constant 2 : index
    %28 = vector.load %arg4[%c0_20, %c0_21, %c0_22, %c2] : memref<2x1x20x20xf32, #tpu.memory_space<vmem>>, vector<2x1x16x16xf32>
    %29 = vector.broadcast %27 : f32 to vector<2x1x16x16xf32>
    %30 = arith.mulf %29, %28 : vector<2x1x16x16xf32>
    %31 = arith.addf %22, %30 : vector<2x1x16x16xf32>
    %c25_i32_23 = arith.constant 25 : i32
    %32 = arith.muli %arg0, %c25_i32_23 : i32
    %c0_i32_24 = arith.constant 0 : i32
    %33 = arith.addi %32, %c0_i32_24 : i32
    %c3_i32 = arith.constant 3 : i32
    %34 = arith.addi %33, %c3_i32 : i32
    %35 = arith.index_cast %34 : i32 to index
    %36 = memref.load %arg2[%35] : memref<100xf32, #tpu.memory_space<smem>>
    %c0_25 = arith.constant 0 : index
    %c0_26 = arith.constant 0 : index
    %c0_27 = arith.constant 0 : index
    %c3 = arith.constant 3 : index
    %37 = vector.load %arg4[%c0_25, %c0_26, %c0_27, %c3] : memref<2x1x20x20xf32, #tpu.memory_space<vmem>>, vector<2x1x16x16xf32>
    %38 = vector.broadcast %36 : f32 to vector<2x1x16x16xf32>
    %39 = arith.mulf %38, %37 : vector<2x1x16x16xf32>
    %40 = arith.addf %31, %39 : vector<2x1x16x16xf32>
    %c25_i32_28 = arith.constant 25 : i32
    %41 = arith.muli %arg0, %c25_i32_28 : i32
    %c0_i32_29 = arith.constant 0 : i32
    %42 = arith.addi %41, %c0_i32_29 : i32
    %c4_i32 = arith.constant 4 : i32
    %43 = arith.addi %42, %c4_i32 : i32
    %44 = arith.index_cast %43 : i32 to index
    %45 = memref.load %arg2[%44] : memref<100xf32, #tpu.memory_space<smem>>
    %c0_30 = arith.constant 0 : index
    %c0_31 = arith.constant 0 : index
    %c0_32 = arith.constant 0 : index
    %c4 = arith.constant 4 : index
    %46 = vector.load %arg4[%c0_30, %c0_31, %c0_32, %c4] : memref<2x1x20x20xf32, #tpu.memory_space<vmem>>, vector<2x1x16x16xf32>
    %47 = vector.broadcast %45 : f32 to vector<2x1x16x16xf32>
    %48 = arith.mulf %47, %46 : vector<2x1x16x16xf32>
    %49 = arith.addf %40, %48 : vector<2x1x16x16xf32>
    %c25_i32_33 = arith.constant 25 : i32
    %50 = arith.muli %arg0, %c25_i32_33 : i32
    %c5_i32 = arith.constant 5 : i32
    %51 = arith.addi %50, %c5_i32 : i32
    %c0_i32_34 = arith.constant 0 : i32
    %52 = arith.addi %51, %c0_i32_34 : i32
    %53 = arith.index_cast %52 : i32 to index
    %54 = memref.load %arg2[%53] : memref<100xf32, #tpu.memory_space<smem>>
    %c0_35 = arith.constant 0 : index
    %c0_36 = arith.constant 0 : index
    %c1_37 = arith.constant 1 : index
    %c0_38 = arith.constant 0 : index
    %55 = vector.load %arg4[%c0_35, %c0_36, %c1_37, %c0_38] : memref<2x1x20x20xf32, #tpu.memory_space<vmem>>, vector<2x1x16x16xf32>
    %56 = vector.broadcast %54 : f32 to vector<2x1x16x16xf32>
    %57 = arith.mulf %56, %55 : vector<2x1x16x16xf32>
    %58 = arith.addf %49, %57 : vector<2x1x16x16xf32>
    %c25_i32_39 = arith.constant 25 : i32
    %59 = arith.muli %arg0, %c25_i32_39 : i32
    %c5_i32_40 = arith.constant 5 : i32
    %60 = arith.addi %59, %c5_i32_40 : i32
    %c1_i32_41 = arith.constant 1 : i32
    %61 = arith.addi %60, %c1_i32_41 : i32
    %62 = arith.index_cast %61 : i32 to index
    %63 = memref.load %arg2[%62] : memref<100xf32, #tpu.memory_space<smem>>
    %c0_42 = arith.constant 0 : index
    %c0_43 = arith.constant 0 : index
    %c1_44 = arith.constant 1 : index
    %c1_45 = arith.constant 1 : index
    %64 = vector.load %arg4[%c0_42, %c0_43, %c1_44, %c1_45] : memref<2x1x20x20xf32, #tpu.memory_space<vmem>>, vector<2x1x16x16xf32>
    %65 = vector.broadcast %63 : f32 to vector<2x1x16x16xf32>
    %66 = arith.mulf %65, %64 : vector<2x1x16x16xf32>
    %67 = arith.addf %58, %66 : vector<2x1x16x16xf32>
    %c25_i32_46 = arith.constant 25 : i32
    %68 = arith.muli %arg0, %c25_i32_46 : i32
    %c5_i32_47 = arith.constant 5 : i32
    %69 = arith.addi %68, %c5_i32_47 : i32
    %c2_i32_48 = arith.constant 2 : i32
    %70 = arith.addi %69, %c2_i32_48 : i32
    %71 = arith.index_cast %70 : i32 to index
    %72 = memref.load %arg2[%71] : memref<100xf32, #tpu.memory_space<smem>>
    %c0_49 = arith.constant 0 : index
    %c0_50 = arith.constant 0 : index
    %c1_51 = arith.constant 1 : index
    %c2_52 = arith.constant 2 : index
    %73 = vector.load %arg4[%c0_49, %c0_50, %c1_51, %c2_52] : memref<2x1x20x20xf32, #tpu.memory_space<vmem>>, vector<2x1x16x16xf32>
    %74 = vector.broadcast %72 : f32 to vector<2x1x16x16xf32>
    %75 = arith.mulf %74, %73 : vector<2x1x16x16xf32>
    %76 = arith.addf %67, %75 : vector<2x1x16x16xf32>
    %c25_i32_53 = arith.constant 25 : i32
    %77 = arith.muli %arg0, %c25_i32_53 : i32
    %c5_i32_54 = arith.constant 5 : i32
    %78 = arith.addi %77, %c5_i32_54 : i32
    %c3_i32_55 = arith.constant 3 : i32
    %79 = arith.addi %78, %c3_i32_55 : i32
    %80 = arith.index_cast %79 : i32 to index
    %81 = memref.load %arg2[%80] : memref<100xf32, #tpu.memory_space<smem>>
    %c0_56 = arith.constant 0 : index
    %c0_57 = arith.constant 0 : index
    %c1_58 = arith.constant 1 : index
    %c3_59 = arith.constant 3 : index
    %82 = vector.load %arg4[%c0_56, %c0_57, %c1_58, %c3_59] : memref<2x1x20x20xf32, #tpu.memory_space<vmem>>, vector<2x1x16x16xf32>
    %83 = vector.broadcast %81 : f32 to vector<2x1x16x16xf32>
    %84 = arith.mulf %83, %82 : vector<2x1x16x16xf32>
    %85 = arith.addf %76, %84 : vector<2x1x16x16xf32>
    %c25_i32_60 = arith.constant 25 : i32
    %86 = arith.muli %arg0, %c25_i32_60 : i32
    %c5_i32_61 = arith.constant 5 : i32
    %87 = arith.addi %86, %c5_i32_61 : i32
    %c4_i32_62 = arith.constant 4 : i32
    %88 = arith.addi %87, %c4_i32_62 : i32
    %89 = arith.index_cast %88 : i32 to index
    %90 = memref.load %arg2[%89] : memref<100xf32, #tpu.memory_space<smem>>
    %c0_63 = arith.constant 0 : index
    %c0_64 = arith.constant 0 : index
    %c1_65 = arith.constant 1 : index
    %c4_66 = arith.constant 4 : index
    %91 = vector.load %arg4[%c0_63, %c0_64, %c1_65, %c4_66] : memref<2x1x20x20xf32, #tpu.memory_space<vmem>>, vector<2x1x16x16xf32>
    %92 = vector.broadcast %90 : f32 to vector<2x1x16x16xf32>
    %93 = arith.mulf %92, %91 : vector<2x1x16x16xf32>
    %94 = arith.addf %85, %93 : vector<2x1x16x16xf32>
    %c25_i32_67 = arith.constant 25 : i32
    %95 = arith.muli %arg0, %c25_i32_67 : i32
    %c10_i32 = arith.constant 10 : i32
    %96 = arith.addi %95, %c10_i32 : i32
    %c0_i32_68 = arith.constant 0 : i32
    %97 = arith.addi %96, %c0_i32_68 : i32
    %98 = arith.index_cast %97 : i32 to index
    %99 = memref.load %arg2[%98] : memref<100xf32, #tpu.memory_space<smem>>
    %c0_69 = arith.constant 0 : index
    %c0_70 = arith.constant 0 : index
    %c2_71 = arith.constant 2 : index
    %c0_72 = arith.constant 0 : index
    %100 = vector.load %arg4[%c0_69, %c0_70, %c2_71, %c0_72] : memref<2x1x20x20xf32, #tpu.memory_space<vmem>>, vector<2x1x16x16xf32>
    %101 = vector.broadcast %99 : f32 to vector<2x1x16x16xf32>
    %102 = arith.mulf %101, %100 : vector<2x1x16x16xf32>
    %103 = arith.addf %94, %102 : vector<2x1x16x16xf32>
    %c25_i32_73 = arith.constant 25 : i32
    %104 = arith.muli %arg0, %c25_i32_73 : i32
    %c10_i32_74 = arith.constant 10 : i32
    %105 = arith.addi %104, %c10_i32_74 : i32
    %c1_i32_75 = arith.constant 1 : i32
    %106 = arith.addi %105, %c1_i32_75 : i32
    %107 = arith.index_cast %106 : i32 to index
    %108 = memref.load %arg2[%107] : memref<100xf32, #tpu.memory_space<smem>>
    %c0_76 = arith.constant 0 : index
    %c0_77 = arith.constant 0 : index
    %c2_78 = arith.constant 2 : index
    %c1_79 = arith.constant 1 : index
    %109 = vector.load %arg4[%c0_76, %c0_77, %c2_78, %c1_79] : memref<2x1x20x20xf32, #tpu.memory_space<vmem>>, vector<2x1x16x16xf32>
    %110 = vector.broadcast %108 : f32 to vector<2x1x16x16xf32>
    %111 = arith.mulf %110, %109 : vector<2x1x16x16xf32>
    %112 = arith.addf %103, %111 : vector<2x1x16x16xf32>
    %c25_i32_80 = arith.constant 25 : i32
    %113 = arith.muli %arg0, %c25_i32_80 : i32
    %c10_i32_81 = arith.constant 10 : i32
    %114 = arith.addi %113, %c10_i32_81 : i32
    %c2_i32_82 = arith.constant 2 : i32
    %115 = arith.addi %114, %c2_i32_82 : i32
    %116 = arith.index_cast %115 : i32 to index
    %117 = memref.load %arg2[%116] : memref<100xf32, #tpu.memory_space<smem>>
    %c0_83 = arith.constant 0 : index
    %c0_84 = arith.constant 0 : index
    %c2_85 = arith.constant 2 : index
    %c2_86 = arith.constant 2 : index
    %118 = vector.load %arg4[%c0_83, %c0_84, %c2_85, %c2_86] : memref<2x1x20x20xf32, #tpu.memory_space<vmem>>, vector<2x1x16x16xf32>
    %119 = vector.broadcast %117 : f32 to vector<2x1x16x16xf32>
    %120 = arith.mulf %119, %118 : vector<2x1x16x16xf32>
    %121 = arith.addf %112, %120 : vector<2x1x16x16xf32>
    %c25_i32_87 = arith.constant 25 : i32
    %122 = arith.muli %arg0, %c25_i32_87 : i32
    %c10_i32_88 = arith.constant 10 : i32
    %123 = arith.addi %122, %c10_i32_88 : i32
    %c3_i32_89 = arith.constant 3 : i32
    %124 = arith.addi %123, %c3_i32_89 : i32
    %125 = arith.index_cast %124 : i32 to index
    %126 = memref.load %arg2[%125] : memref<100xf32, #tpu.memory_space<smem>>
    %c0_90 = arith.constant 0 : index
    %c0_91 = arith.constant 0 : index
    %c2_92 = arith.constant 2 : index
    %c3_93 = arith.constant 3 : index
    %127 = vector.load %arg4[%c0_90, %c0_91, %c2_92, %c3_93] : memref<2x1x20x20xf32, #tpu.memory_space<vmem>>, vector<2x1x16x16xf32>
    %128 = vector.broadcast %126 : f32 to vector<2x1x16x16xf32>
    %129 = arith.mulf %128, %127 : vector<2x1x16x16xf32>
    %130 = arith.addf %121, %129 : vector<2x1x16x16xf32>
    %c25_i32_94 = arith.constant 25 : i32
    %131 = arith.muli %arg0, %c25_i32_94 : i32
    %c10_i32_95 = arith.constant 10 : i32
    %132 = arith.addi %131, %c10_i32_95 : i32
    %c4_i32_96 = arith.constant 4 : i32
    %133 = arith.addi %132, %c4_i32_96 : i32
    %134 = arith.index_cast %133 : i32 to index
    %135 = memref.load %arg2[%134] : memref<100xf32, #tpu.memory_space<smem>>
    %c0_97 = arith.constant 0 : index
    %c0_98 = arith.constant 0 : index
    %c2_99 = arith.constant 2 : index
    %c4_100 = arith.constant 4 : index
    %136 = vector.load %arg4[%c0_97, %c0_98, %c2_99, %c4_100] : memref<2x1x20x20xf32, #tpu.memory_space<vmem>>, vector<2x1x16x16xf32>
    %137 = vector.broadcast %135 : f32 to vector<2x1x16x16xf32>
    %138 = arith.mulf %137, %136 : vector<2x1x16x16xf32>
    %139 = arith.addf %130, %138 : vector<2x1x16x16xf32>
    %c25_i32_101 = arith.constant 25 : i32
    %140 = arith.muli %arg0, %c25_i32_101 : i32
    %c15_i32 = arith.constant 15 : i32
    %141 = arith.addi %140, %c15_i32 : i32
    %c0_i32_102 = arith.constant 0 : i32
    %142 = arith.addi %141, %c0_i32_102 : i32
    %143 = arith.index_cast %142 : i32 to index
    %144 = memref.load %arg2[%143] : memref<100xf32, #tpu.memory_space<smem>>
    %c0_103 = arith.constant 0 : index
    %c0_104 = arith.constant 0 : index
    %c3_105 = arith.constant 3 : index
    %c0_106 = arith.constant 0 : index
    %145 = vector.load %arg4[%c0_103, %c0_104, %c3_105, %c0_106] : memref<2x1x20x20xf32, #tpu.memory_space<vmem>>, vector<2x1x16x16xf32>
    %146 = vector.broadcast %144 : f32 to vector<2x1x16x16xf32>
    %147 = arith.mulf %146, %145 : vector<2x1x16x16xf32>
    %148 = arith.addf %139, %147 : vector<2x1x16x16xf32>
    %c25_i32_107 = arith.constant 25 : i32
    %149 = arith.muli %arg0, %c25_i32_107 : i32
    %c15_i32_108 = arith.constant 15 : i32
    %150 = arith.addi %149, %c15_i32_108 : i32
    %c1_i32_109 = arith.constant 1 : i32
    %151 = arith.addi %150, %c1_i32_109 : i32
    %152 = arith.index_cast %151 : i32 to index
    %153 = memref.load %arg2[%152] : memref<100xf32, #tpu.memory_space<smem>>
    %c0_110 = arith.constant 0 : index
    %c0_111 = arith.constant 0 : index
    %c3_112 = arith.constant 3 : index
    %c1_113 = arith.constant 1 : index
    %154 = vector.load %arg4[%c0_110, %c0_111, %c3_112, %c1_113] : memref<2x1x20x20xf32, #tpu.memory_space<vmem>>, vector<2x1x16x16xf32>
    %155 = vector.broadcast %153 : f32 to vector<2x1x16x16xf32>
    %156 = arith.mulf %155, %154 : vector<2x1x16x16xf32>
    %157 = arith.addf %148, %156 : vector<2x1x16x16xf32>
    %c25_i32_114 = arith.constant 25 : i32
    %158 = arith.muli %arg0, %c25_i32_114 : i32
    %c15_i32_115 = arith.constant 15 : i32
    %159 = arith.addi %158, %c15_i32_115 : i32
    %c2_i32_116 = arith.constant 2 : i32
    %160 = arith.addi %159, %c2_i32_116 : i32
    %161 = arith.index_cast %160 : i32 to index
    %162 = memref.load %arg2[%161] : memref<100xf32, #tpu.memory_space<smem>>
    %c0_117 = arith.constant 0 : index
    %c0_118 = arith.constant 0 : index
    %c3_119 = arith.constant 3 : index
    %c2_120 = arith.constant 2 : index
    %163 = vector.load %arg4[%c0_117, %c0_118, %c3_119, %c2_120] : memref<2x1x20x20xf32, #tpu.memory_space<vmem>>, vector<2x1x16x16xf32>
    %164 = vector.broadcast %162 : f32 to vector<2x1x16x16xf32>
    %165 = arith.mulf %164, %163 : vector<2x1x16x16xf32>
    %166 = arith.addf %157, %165 : vector<2x1x16x16xf32>
    %c25_i32_121 = arith.constant 25 : i32
    %167 = arith.muli %arg0, %c25_i32_121 : i32
    %c15_i32_122 = arith.constant 15 : i32
    %168 = arith.addi %167, %c15_i32_122 : i32
    %c3_i32_123 = arith.constant 3 : i32
    %169 = arith.addi %168, %c3_i32_123 : i32
    %170 = arith.index_cast %169 : i32 to index
    %171 = memref.load %arg2[%170] : memref<100xf32, #tpu.memory_space<smem>>
    %c0_124 = arith.constant 0 : index
    %c0_125 = arith.constant 0 : index
    %c3_126 = arith.constant 3 : index
    %c3_127 = arith.constant 3 : index
    %172 = vector.load %arg4[%c0_124, %c0_125, %c3_126, %c3_127] : memref<2x1x20x20xf32, #tpu.memory_space<vmem>>, vector<2x1x16x16xf32>
    %173 = vector.broadcast %171 : f32 to vector<2x1x16x16xf32>
    %174 = arith.mulf %173, %172 : vector<2x1x16x16xf32>
    %175 = arith.addf %166, %174 : vector<2x1x16x16xf32>
    %c25_i32_128 = arith.constant 25 : i32
    %176 = arith.muli %arg0, %c25_i32_128 : i32
    %c15_i32_129 = arith.constant 15 : i32
    %177 = arith.addi %176, %c15_i32_129 : i32
    %c4_i32_130 = arith.constant 4 : i32
    %178 = arith.addi %177, %c4_i32_130 : i32
    %179 = arith.index_cast %178 : i32 to index
    %180 = memref.load %arg2[%179] : memref<100xf32, #tpu.memory_space<smem>>
    %c0_131 = arith.constant 0 : index
    %c0_132 = arith.constant 0 : index
    %c3_133 = arith.constant 3 : index
    %c4_134 = arith.constant 4 : index
    %181 = vector.load %arg4[%c0_131, %c0_132, %c3_133, %c4_134] : memref<2x1x20x20xf32, #tpu.memory_space<vmem>>, vector<2x1x16x16xf32>
    %182 = vector.broadcast %180 : f32 to vector<2x1x16x16xf32>
    %183 = arith.mulf %182, %181 : vector<2x1x16x16xf32>
    %184 = arith.addf %175, %183 : vector<2x1x16x16xf32>
    %c25_i32_135 = arith.constant 25 : i32
    %185 = arith.muli %arg0, %c25_i32_135 : i32
    %c20_i32 = arith.constant 20 : i32
    %186 = arith.addi %185, %c20_i32 : i32
    %c0_i32_136 = arith.constant 0 : i32
    %187 = arith.addi %186, %c0_i32_136 : i32
    %188 = arith.index_cast %187 : i32 to index
    %189 = memref.load %arg2[%188] : memref<100xf32, #tpu.memory_space<smem>>
    %c0_137 = arith.constant 0 : index
    %c0_138 = arith.constant 0 : index
    %c4_139 = arith.constant 4 : index
    %c0_140 = arith.constant 0 : index
    %190 = vector.load %arg4[%c0_137, %c0_138, %c4_139, %c0_140] : memref<2x1x20x20xf32, #tpu.memory_space<vmem>>, vector<2x1x16x16xf32>
    %191 = vector.broadcast %189 : f32 to vector<2x1x16x16xf32>
    %192 = arith.mulf %191, %190 : vector<2x1x16x16xf32>
    %193 = arith.addf %184, %192 : vector<2x1x16x16xf32>
    %c25_i32_141 = arith.constant 25 : i32
    %194 = arith.muli %arg0, %c25_i32_141 : i32
    %c20_i32_142 = arith.constant 20 : i32
    %195 = arith.addi %194, %c20_i32_142 : i32
    %c1_i32_143 = arith.constant 1 : i32
    %196 = arith.addi %195, %c1_i32_143 : i32
    %197 = arith.index_cast %196 : i32 to index
    %198 = memref.load %arg2[%197] : memref<100xf32, #tpu.memory_space<smem>>
    %c0_144 = arith.constant 0 : index
    %c0_145 = arith.constant 0 : index
    %c4_146 = arith.constant 4 : index
    %c1_147 = arith.constant 1 : index
    %199 = vector.load %arg4[%c0_144, %c0_145, %c4_146, %c1_147] : memref<2x1x20x20xf32, #tpu.memory_space<vmem>>, vector<2x1x16x16xf32>
    %200 = vector.broadcast %198 : f32 to vector<2x1x16x16xf32>
    %201 = arith.mulf %200, %199 : vector<2x1x16x16xf32>
    %202 = arith.addf %193, %201 : vector<2x1x16x16xf32>
    %c25_i32_148 = arith.constant 25 : i32
    %203 = arith.muli %arg0, %c25_i32_148 : i32
    %c20_i32_149 = arith.constant 20 : i32
    %204 = arith.addi %203, %c20_i32_149 : i32
    %c2_i32_150 = arith.constant 2 : i32
    %205 = arith.addi %204, %c2_i32_150 : i32
    %206 = arith.index_cast %205 : i32 to index
    %207 = memref.load %arg2[%206] : memref<100xf32, #tpu.memory_space<smem>>
    %c0_151 = arith.constant 0 : index
    %c0_152 = arith.constant 0 : index
    %c4_153 = arith.constant 4 : index
    %c2_154 = arith.constant 2 : index
    %208 = vector.load %arg4[%c0_151, %c0_152, %c4_153, %c2_154] : memref<2x1x20x20xf32, #tpu.memory_space<vmem>>, vector<2x1x16x16xf32>
    %209 = vector.broadcast %207 : f32 to vector<2x1x16x16xf32>
    %210 = arith.mulf %209, %208 : vector<2x1x16x16xf32>
    %211 = arith.addf %202, %210 : vector<2x1x16x16xf32>
    %c25_i32_155 = arith.constant 25 : i32
    %212 = arith.muli %arg0, %c25_i32_155 : i32
    %c20_i32_156 = arith.constant 20 : i32
    %213 = arith.addi %212, %c20_i32_156 : i32
    %c3_i32_157 = arith.constant 3 : i32
    %214 = arith.addi %213, %c3_i32_157 : i32
    %215 = arith.index_cast %214 : i32 to index
    %216 = memref.load %arg2[%215] : memref<100xf32, #tpu.memory_space<smem>>
    %c0_158 = arith.constant 0 : index
    %c0_159 = arith.constant 0 : index
    %c4_160 = arith.constant 4 : index
    %c3_161 = arith.constant 3 : index
    %217 = vector.load %arg4[%c0_158, %c0_159, %c4_160, %c3_161] : memref<2x1x20x20xf32, #tpu.memory_space<vmem>>, vector<2x1x16x16xf32>
    %218 = vector.broadcast %216 : f32 to vector<2x1x16x16xf32>
    %219 = arith.mulf %218, %217 : vector<2x1x16x16xf32>
    %220 = arith.addf %211, %219 : vector<2x1x16x16xf32>
    %c25_i32_162 = arith.constant 25 : i32
    %221 = arith.muli %arg0, %c25_i32_162 : i32
    %c20_i32_163 = arith.constant 20 : i32
    %222 = arith.addi %221, %c20_i32_163 : i32
    %c4_i32_164 = arith.constant 4 : i32
    %223 = arith.addi %222, %c4_i32_164 : i32
    %224 = arith.index_cast %223 : i32 to index
    %225 = memref.load %arg2[%224] : memref<100xf32, #tpu.memory_space<smem>>
    %c0_165 = arith.constant 0 : index
    %c0_166 = arith.constant 0 : index
    %c4_167 = arith.constant 4 : index
    %c4_168 = arith.constant 4 : index
    %226 = vector.load %arg4[%c0_165, %c0_166, %c4_167, %c4_168] : memref<2x1x20x20xf32, #tpu.memory_space<vmem>>, vector<2x1x16x16xf32>
    %227 = vector.broadcast %225 : f32 to vector<2x1x16x16xf32>
    %228 = arith.mulf %227, %226 : vector<2x1x16x16xf32>
    %229 = arith.addf %220, %228 : vector<2x1x16x16xf32>
    %c0_169 = arith.constant 0 : index
    %c0_170 = arith.constant 0 : index
    %c0_171 = arith.constant 0 : index
    %c0_172 = arith.constant 0 : index
    %230 = vector.load %arg3[%c0_169, %c0_170, %c0_171, %c0_172] : memref<2x1x16x16xf32, #tpu.memory_space<vmem>>, vector<2x1x16x16xf32>
    tpu.vector_store %arg3[%c0_169, %c0_170, %c0_171, %c0_172], %229 {strides = array<i32>} : memref<2x1x16x16xf32, #tpu.memory_space<vmem>>, vector<2x1x16x16xf32>,
    return
  }
  func.func @transform_0(%arg0: i32) -> (i32, i32, i32, i32) {
    %c0_i32 = arith.constant 0 : i32
    %c0_i32_0 = arith.constant 0 : i32
    %c0_i32_1 = arith.constant 0 : i32
    %c0_i32_2 = arith.constant 0 : i32
    return %c0_i32, %arg0, %c0_i32_0, %c0_i32_1 : i32, i32, i32, i32
  }
  func.func @transform_1(%arg0: i32) -> i32 {
    %c0_i32 = arith.constant 0 : i32
    %c0_i32_0 = arith.constant 0 : i32
    return %c0_i32 : i32
  }
  func.func @transform_2(%arg0: i32) -> (i32, i32, i32, i32) {
    %c0_i32 = arith.constant 0 : i32
    %c0_i32_0 = arith.constant 0 : i32
    %c0_i32_1 = arith.constant 0 : i32
    %c0_i32_2 = arith.constant 0 : i32
    return %c0_i32, %arg0, %c0_i32_0, %c0_i32_1 : i32, i32, i32, i32
  }
}

module attributes {stable_mosaic.version = 11 : i64} {
  func.func @_depthwise_kernel(%arg0: i32, %arg1: memref<2x1x20x20xf32, #tpu.memory_space<vmem>>, %arg2: memref<36xf32, #tpu.memory_space<smem>>, %arg3: memref<2x1x16x16xf32, #tpu.memory_space<vmem>>, %arg4: memref<2x1x20x20xf32, #tpu.memory_space<vmem>>) attributes {dimension_semantics = [#tpu.dimension_semantics<parallel>], iteration_bounds = array<i64: 4>, scalar_prefetch = 0 : i64, scratch_operands = 1 : i64, tpu.core_type = #tpu.core_type<tc>, window_params = [{transform_indices = @transform_0, window_bounds = array<i64: 2, 1, 20, 20>}, {transform_indices = @transform_1, window_bounds = array<i64: 36>}, {transform_indices = @transform_2, window_bounds = array<i64: 2, 1, 16, 16>}]} {
    %c0 = arith.constant 0 : index
    %c0_0 = arith.constant 0 : index
    %c0_1 = arith.constant 0 : index
    %c0_2 = arith.constant 0 : index
    %0 = vector.load %arg1[%c0, %c0_0, %c0_1, %c0_2] : memref<2x1x20x20xf32, #tpu.memory_space<vmem>>, vector<2x1x20x20xf32>
    %cst = arith.constant 0.000000e+00 : f32
    %1 = vector.broadcast %cst : f32 to vector<2x1x20x20xf32>
    %2 = arith.maximumf %0, %1 : vector<2x1x20x20xf32>
    %c0_3 = arith.constant 0 : index
    %c0_4 = arith.constant 0 : index
    %c0_5 = arith.constant 0 : index
    %c0_6 = arith.constant 0 : index
    %3 = vector.load %arg4[%c0_3, %c0_4, %c0_5, %c0_6] : memref<2x1x20x20xf32, #tpu.memory_space<vmem>>, vector<2x1x20x20xf32>
    tpu.vector_store %arg4[%c0_3, %c0_4, %c0_5, %c0_6], %2 {strides = array<i32>} : memref<2x1x20x20xf32, #tpu.memory_space<vmem>>, vector<2x1x20x20xf32>,
    %cst_7 = arith.constant 0.000000e+00 : f32
    %4 = vector.broadcast %cst_7 : f32 to vector<2x1x16x16xf32>
    %c9_i32 = arith.constant 9 : i32
    %5 = arith.muli %arg0, %c9_i32 : i32
    %c0_i32 = arith.constant 0 : i32
    %6 = arith.addi %5, %c0_i32 : i32
    %c0_i32_8 = arith.constant 0 : i32
    %7 = arith.addi %6, %c0_i32_8 : i32
    %8 = arith.index_cast %7 : i32 to index
    %9 = memref.load %arg2[%8] : memref<36xf32, #tpu.memory_space<smem>>
    %c0_9 = arith.constant 0 : index
    %c0_10 = arith.constant 0 : index
    %c0_11 = arith.constant 0 : index
    %c0_12 = arith.constant 0 : index
    %10 = vector.load %arg4[%c0_9, %c0_10, %c0_11, %c0_12] : memref<2x1x20x20xf32, #tpu.memory_space<vmem>>, vector<2x1x16x16xf32>
    %11 = vector.broadcast %9 : f32 to vector<2x1x16x16xf32>
    %12 = arith.mulf %11, %10 : vector<2x1x16x16xf32>
    %13 = arith.addf %4, %12 : vector<2x1x16x16xf32>
    %c9_i32_13 = arith.constant 9 : i32
    %14 = arith.muli %arg0, %c9_i32_13 : i32
    %c0_i32_14 = arith.constant 0 : i32
    %15 = arith.addi %14, %c0_i32_14 : i32
    %c1_i32 = arith.constant 1 : i32
    %16 = arith.addi %15, %c1_i32 : i32
    %17 = arith.index_cast %16 : i32 to index
    %18 = memref.load %arg2[%17] : memref<36xf32, #tpu.memory_space<smem>>
    %c0_15 = arith.constant 0 : index
    %c0_16 = arith.constant 0 : index
    %c0_17 = arith.constant 0 : index
    %c2 = arith.constant 2 : index
    %19 = vector.load %arg4[%c0_15, %c0_16, %c0_17, %c2] : memref<2x1x20x20xf32, #tpu.memory_space<vmem>>, vector<2x1x16x16xf32>
    %20 = vector.broadcast %18 : f32 to vector<2x1x16x16xf32>
    %21 = arith.mulf %20, %19 : vector<2x1x16x16xf32>
    %22 = arith.addf %13, %21 : vector<2x1x16x16xf32>
    %c9_i32_18 = arith.constant 9 : i32
    %23 = arith.muli %arg0, %c9_i32_18 : i32
    %c0_i32_19 = arith.constant 0 : i32
    %24 = arith.addi %23, %c0_i32_19 : i32
    %c2_i32 = arith.constant 2 : i32
    %25 = arith.addi %24, %c2_i32 : i32
    %26 = arith.index_cast %25 : i32 to index
    %27 = memref.load %arg2[%26] : memref<36xf32, #tpu.memory_space<smem>>
    %c0_20 = arith.constant 0 : index
    %c0_21 = arith.constant 0 : index
    %c0_22 = arith.constant 0 : index
    %c4 = arith.constant 4 : index
    %28 = vector.load %arg4[%c0_20, %c0_21, %c0_22, %c4] : memref<2x1x20x20xf32, #tpu.memory_space<vmem>>, vector<2x1x16x16xf32>
    %29 = vector.broadcast %27 : f32 to vector<2x1x16x16xf32>
    %30 = arith.mulf %29, %28 : vector<2x1x16x16xf32>
    %31 = arith.addf %22, %30 : vector<2x1x16x16xf32>
    %c9_i32_23 = arith.constant 9 : i32
    %32 = arith.muli %arg0, %c9_i32_23 : i32
    %c3_i32 = arith.constant 3 : i32
    %33 = arith.addi %32, %c3_i32 : i32
    %c0_i32_24 = arith.constant 0 : i32
    %34 = arith.addi %33, %c0_i32_24 : i32
    %35 = arith.index_cast %34 : i32 to index
    %36 = memref.load %arg2[%35] : memref<36xf32, #tpu.memory_space<smem>>
    %c0_25 = arith.constant 0 : index
    %c0_26 = arith.constant 0 : index
    %c2_27 = arith.constant 2 : index
    %c0_28 = arith.constant 0 : index
    %37 = vector.load %arg4[%c0_25, %c0_26, %c2_27, %c0_28] : memref<2x1x20x20xf32, #tpu.memory_space<vmem>>, vector<2x1x16x16xf32>
    %38 = vector.broadcast %36 : f32 to vector<2x1x16x16xf32>
    %39 = arith.mulf %38, %37 : vector<2x1x16x16xf32>
    %40 = arith.addf %31, %39 : vector<2x1x16x16xf32>
    %c9_i32_29 = arith.constant 9 : i32
    %41 = arith.muli %arg0, %c9_i32_29 : i32
    %c3_i32_30 = arith.constant 3 : i32
    %42 = arith.addi %41, %c3_i32_30 : i32
    %c1_i32_31 = arith.constant 1 : i32
    %43 = arith.addi %42, %c1_i32_31 : i32
    %44 = arith.index_cast %43 : i32 to index
    %45 = memref.load %arg2[%44] : memref<36xf32, #tpu.memory_space<smem>>
    %c0_32 = arith.constant 0 : index
    %c0_33 = arith.constant 0 : index
    %c2_34 = arith.constant 2 : index
    %c2_35 = arith.constant 2 : index
    %46 = vector.load %arg4[%c0_32, %c0_33, %c2_34, %c2_35] : memref<2x1x20x20xf32, #tpu.memory_space<vmem>>, vector<2x1x16x16xf32>
    %47 = vector.broadcast %45 : f32 to vector<2x1x16x16xf32>
    %48 = arith.mulf %47, %46 : vector<2x1x16x16xf32>
    %49 = arith.addf %40, %48 : vector<2x1x16x16xf32>
    %c9_i32_36 = arith.constant 9 : i32
    %50 = arith.muli %arg0, %c9_i32_36 : i32
    %c3_i32_37 = arith.constant 3 : i32
    %51 = arith.addi %50, %c3_i32_37 : i32
    %c2_i32_38 = arith.constant 2 : i32
    %52 = arith.addi %51, %c2_i32_38 : i32
    %53 = arith.index_cast %52 : i32 to index
    %54 = memref.load %arg2[%53] : memref<36xf32, #tpu.memory_space<smem>>
    %c0_39 = arith.constant 0 : index
    %c0_40 = arith.constant 0 : index
    %c2_41 = arith.constant 2 : index
    %c4_42 = arith.constant 4 : index
    %55 = vector.load %arg4[%c0_39, %c0_40, %c2_41, %c4_42] : memref<2x1x20x20xf32, #tpu.memory_space<vmem>>, vector<2x1x16x16xf32>
    %56 = vector.broadcast %54 : f32 to vector<2x1x16x16xf32>
    %57 = arith.mulf %56, %55 : vector<2x1x16x16xf32>
    %58 = arith.addf %49, %57 : vector<2x1x16x16xf32>
    %c9_i32_43 = arith.constant 9 : i32
    %59 = arith.muli %arg0, %c9_i32_43 : i32
    %c6_i32 = arith.constant 6 : i32
    %60 = arith.addi %59, %c6_i32 : i32
    %c0_i32_44 = arith.constant 0 : i32
    %61 = arith.addi %60, %c0_i32_44 : i32
    %62 = arith.index_cast %61 : i32 to index
    %63 = memref.load %arg2[%62] : memref<36xf32, #tpu.memory_space<smem>>
    %c0_45 = arith.constant 0 : index
    %c0_46 = arith.constant 0 : index
    %c4_47 = arith.constant 4 : index
    %c0_48 = arith.constant 0 : index
    %64 = vector.load %arg4[%c0_45, %c0_46, %c4_47, %c0_48] : memref<2x1x20x20xf32, #tpu.memory_space<vmem>>, vector<2x1x16x16xf32>
    %65 = vector.broadcast %63 : f32 to vector<2x1x16x16xf32>
    %66 = arith.mulf %65, %64 : vector<2x1x16x16xf32>
    %67 = arith.addf %58, %66 : vector<2x1x16x16xf32>
    %c9_i32_49 = arith.constant 9 : i32
    %68 = arith.muli %arg0, %c9_i32_49 : i32
    %c6_i32_50 = arith.constant 6 : i32
    %69 = arith.addi %68, %c6_i32_50 : i32
    %c1_i32_51 = arith.constant 1 : i32
    %70 = arith.addi %69, %c1_i32_51 : i32
    %71 = arith.index_cast %70 : i32 to index
    %72 = memref.load %arg2[%71] : memref<36xf32, #tpu.memory_space<smem>>
    %c0_52 = arith.constant 0 : index
    %c0_53 = arith.constant 0 : index
    %c4_54 = arith.constant 4 : index
    %c2_55 = arith.constant 2 : index
    %73 = vector.load %arg4[%c0_52, %c0_53, %c4_54, %c2_55] : memref<2x1x20x20xf32, #tpu.memory_space<vmem>>, vector<2x1x16x16xf32>
    %74 = vector.broadcast %72 : f32 to vector<2x1x16x16xf32>
    %75 = arith.mulf %74, %73 : vector<2x1x16x16xf32>
    %76 = arith.addf %67, %75 : vector<2x1x16x16xf32>
    %c9_i32_56 = arith.constant 9 : i32
    %77 = arith.muli %arg0, %c9_i32_56 : i32
    %c6_i32_57 = arith.constant 6 : i32
    %78 = arith.addi %77, %c6_i32_57 : i32
    %c2_i32_58 = arith.constant 2 : i32
    %79 = arith.addi %78, %c2_i32_58 : i32
    %80 = arith.index_cast %79 : i32 to index
    %81 = memref.load %arg2[%80] : memref<36xf32, #tpu.memory_space<smem>>
    %c0_59 = arith.constant 0 : index
    %c0_60 = arith.constant 0 : index
    %c4_61 = arith.constant 4 : index
    %c4_62 = arith.constant 4 : index
    %82 = vector.load %arg4[%c0_59, %c0_60, %c4_61, %c4_62] : memref<2x1x20x20xf32, #tpu.memory_space<vmem>>, vector<2x1x16x16xf32>
    %83 = vector.broadcast %81 : f32 to vector<2x1x16x16xf32>
    %84 = arith.mulf %83, %82 : vector<2x1x16x16xf32>
    %85 = arith.addf %76, %84 : vector<2x1x16x16xf32>
    %c0_63 = arith.constant 0 : index
    %c0_64 = arith.constant 0 : index
    %c0_65 = arith.constant 0 : index
    %c0_66 = arith.constant 0 : index
    %86 = vector.load %arg3[%c0_63, %c0_64, %c0_65, %c0_66] : memref<2x1x16x16xf32, #tpu.memory_space<vmem>>, vector<2x1x16x16xf32>
    tpu.vector_store %arg3[%c0_63, %c0_64, %c0_65, %c0_66], %85 {strides = array<i32>} : memref<2x1x16x16xf32, #tpu.memory_space<vmem>>, vector<2x1x16x16xf32>,
    return
  }
  func.func @transform_0(%arg0: i32) -> (i32, i32, i32, i32) {
    %c0_i32 = arith.constant 0 : i32
    %c0_i32_0 = arith.constant 0 : i32
    %c0_i32_1 = arith.constant 0 : i32
    %c0_i32_2 = arith.constant 0 : i32
    return %c0_i32, %arg0, %c0_i32_0, %c0_i32_1 : i32, i32, i32, i32
  }
  func.func @transform_1(%arg0: i32) -> i32 {
    %c0_i32 = arith.constant 0 : i32
    %c0_i32_0 = arith.constant 0 : i32
    return %c0_i32 : i32
  }
  func.func @transform_2(%arg0: i32) -> (i32, i32, i32, i32) {
    %c0_i32 = arith.constant 0 : i32
    %c0_i32_0 = arith.constant 0 : i32
    %c0_i32_1 = arith.constant 0 : i32
    %c0_i32_2 = arith.constant 0 : i32
    return %c0_i32, %arg0, %c0_i32_0, %c0_i32_1 : i32, i32, i32, i32
  }
}

module attributes {stable_mosaic.version = 11 : i64} {
  func.func @_depthwise_kernel(%arg0: i32, %arg1: memref<2x1x24x24xf32, #tpu.memory_space<vmem>>, %arg2: memref<100xf32, #tpu.memory_space<smem>>, %arg3: memref<2x1x16x16xf32, #tpu.memory_space<vmem>>, %arg4: memref<2x1x24x24xf32, #tpu.memory_space<vmem>>) attributes {dimension_semantics = [#tpu.dimension_semantics<parallel>], iteration_bounds = array<i64: 4>, scalar_prefetch = 0 : i64, scratch_operands = 1 : i64, tpu.core_type = #tpu.core_type<tc>, window_params = [{transform_indices = @transform_0, window_bounds = array<i64: 2, 1, 24, 24>}, {transform_indices = @transform_1, window_bounds = array<i64: 100>}, {transform_indices = @transform_2, window_bounds = array<i64: 2, 1, 16, 16>}]} {
    %c0 = arith.constant 0 : index
    %c0_0 = arith.constant 0 : index
    %c0_1 = arith.constant 0 : index
    %c0_2 = arith.constant 0 : index
    %0 = vector.load %arg1[%c0, %c0_0, %c0_1, %c0_2] : memref<2x1x24x24xf32, #tpu.memory_space<vmem>>, vector<2x1x24x24xf32>
    %cst = arith.constant 0.000000e+00 : f32
    %1 = vector.broadcast %cst : f32 to vector<2x1x24x24xf32>
    %2 = arith.maximumf %0, %1 : vector<2x1x24x24xf32>
    %c0_3 = arith.constant 0 : index
    %c0_4 = arith.constant 0 : index
    %c0_5 = arith.constant 0 : index
    %c0_6 = arith.constant 0 : index
    %3 = vector.load %arg4[%c0_3, %c0_4, %c0_5, %c0_6] : memref<2x1x24x24xf32, #tpu.memory_space<vmem>>, vector<2x1x24x24xf32>
    tpu.vector_store %arg4[%c0_3, %c0_4, %c0_5, %c0_6], %2 {strides = array<i32>} : memref<2x1x24x24xf32, #tpu.memory_space<vmem>>, vector<2x1x24x24xf32>,
    %cst_7 = arith.constant 0.000000e+00 : f32
    %4 = vector.broadcast %cst_7 : f32 to vector<2x1x16x16xf32>
    %c25_i32 = arith.constant 25 : i32
    %5 = arith.muli %arg0, %c25_i32 : i32
    %c0_i32 = arith.constant 0 : i32
    %6 = arith.addi %5, %c0_i32 : i32
    %c0_i32_8 = arith.constant 0 : i32
    %7 = arith.addi %6, %c0_i32_8 : i32
    %8 = arith.index_cast %7 : i32 to index
    %9 = memref.load %arg2[%8] : memref<100xf32, #tpu.memory_space<smem>>
    %c0_9 = arith.constant 0 : index
    %c0_10 = arith.constant 0 : index
    %c0_11 = arith.constant 0 : index
    %c0_12 = arith.constant 0 : index
    %10 = vector.load %arg4[%c0_9, %c0_10, %c0_11, %c0_12] : memref<2x1x24x24xf32, #tpu.memory_space<vmem>>, vector<2x1x16x16xf32>
    %11 = vector.broadcast %9 : f32 to vector<2x1x16x16xf32>
    %12 = arith.mulf %11, %10 : vector<2x1x16x16xf32>
    %13 = arith.addf %4, %12 : vector<2x1x16x16xf32>
    %c25_i32_13 = arith.constant 25 : i32
    %14 = arith.muli %arg0, %c25_i32_13 : i32
    %c0_i32_14 = arith.constant 0 : i32
    %15 = arith.addi %14, %c0_i32_14 : i32
    %c1_i32 = arith.constant 1 : i32
    %16 = arith.addi %15, %c1_i32 : i32
    %17 = arith.index_cast %16 : i32 to index
    %18 = memref.load %arg2[%17] : memref<100xf32, #tpu.memory_space<smem>>
    %c0_15 = arith.constant 0 : index
    %c0_16 = arith.constant 0 : index
    %c0_17 = arith.constant 0 : index
    %c2 = arith.constant 2 : index
    %19 = vector.load %arg4[%c0_15, %c0_16, %c0_17, %c2] : memref<2x1x24x24xf32, #tpu.memory_space<vmem>>, vector<2x1x16x16xf32>
    %20 = vector.broadcast %18 : f32 to vector<2x1x16x16xf32>
    %21 = arith.mulf %20, %19 : vector<2x1x16x16xf32>
    %22 = arith.addf %13, %21 : vector<2x1x16x16xf32>
    %c25_i32_18 = arith.constant 25 : i32
    %23 = arith.muli %arg0, %c25_i32_18 : i32
    %c0_i32_19 = arith.constant 0 : i32
    %24 = arith.addi %23, %c0_i32_19 : i32
    %c2_i32 = arith.constant 2 : i32
    %25 = arith.addi %24, %c2_i32 : i32
    %26 = arith.index_cast %25 : i32 to index
    %27 = memref.load %arg2[%26] : memref<100xf32, #tpu.memory_space<smem>>
    %c0_20 = arith.constant 0 : index
    %c0_21 = arith.constant 0 : index
    %c0_22 = arith.constant 0 : index
    %c4 = arith.constant 4 : index
    %28 = vector.load %arg4[%c0_20, %c0_21, %c0_22, %c4] : memref<2x1x24x24xf32, #tpu.memory_space<vmem>>, vector<2x1x16x16xf32>
    %29 = vector.broadcast %27 : f32 to vector<2x1x16x16xf32>
    %30 = arith.mulf %29, %28 : vector<2x1x16x16xf32>
    %31 = arith.addf %22, %30 : vector<2x1x16x16xf32>
    %c25_i32_23 = arith.constant 25 : i32
    %32 = arith.muli %arg0, %c25_i32_23 : i32
    %c0_i32_24 = arith.constant 0 : i32
    %33 = arith.addi %32, %c0_i32_24 : i32
    %c3_i32 = arith.constant 3 : i32
    %34 = arith.addi %33, %c3_i32 : i32
    %35 = arith.index_cast %34 : i32 to index
    %36 = memref.load %arg2[%35] : memref<100xf32, #tpu.memory_space<smem>>
    %c0_25 = arith.constant 0 : index
    %c0_26 = arith.constant 0 : index
    %c0_27 = arith.constant 0 : index
    %c6 = arith.constant 6 : index
    %37 = vector.load %arg4[%c0_25, %c0_26, %c0_27, %c6] : memref<2x1x24x24xf32, #tpu.memory_space<vmem>>, vector<2x1x16x16xf32>
    %38 = vector.broadcast %36 : f32 to vector<2x1x16x16xf32>
    %39 = arith.mulf %38, %37 : vector<2x1x16x16xf32>
    %40 = arith.addf %31, %39 : vector<2x1x16x16xf32>
    %c25_i32_28 = arith.constant 25 : i32
    %41 = arith.muli %arg0, %c25_i32_28 : i32
    %c0_i32_29 = arith.constant 0 : i32
    %42 = arith.addi %41, %c0_i32_29 : i32
    %c4_i32 = arith.constant 4 : i32
    %43 = arith.addi %42, %c4_i32 : i32
    %44 = arith.index_cast %43 : i32 to index
    %45 = memref.load %arg2[%44] : memref<100xf32, #tpu.memory_space<smem>>
    %c0_30 = arith.constant 0 : index
    %c0_31 = arith.constant 0 : index
    %c0_32 = arith.constant 0 : index
    %c8 = arith.constant 8 : index
    %46 = vector.load %arg4[%c0_30, %c0_31, %c0_32, %c8] : memref<2x1x24x24xf32, #tpu.memory_space<vmem>>, vector<2x1x16x16xf32>
    %47 = vector.broadcast %45 : f32 to vector<2x1x16x16xf32>
    %48 = arith.mulf %47, %46 : vector<2x1x16x16xf32>
    %49 = arith.addf %40, %48 : vector<2x1x16x16xf32>
    %c25_i32_33 = arith.constant 25 : i32
    %50 = arith.muli %arg0, %c25_i32_33 : i32
    %c5_i32 = arith.constant 5 : i32
    %51 = arith.addi %50, %c5_i32 : i32
    %c0_i32_34 = arith.constant 0 : i32
    %52 = arith.addi %51, %c0_i32_34 : i32
    %53 = arith.index_cast %52 : i32 to index
    %54 = memref.load %arg2[%53] : memref<100xf32, #tpu.memory_space<smem>>
    %c0_35 = arith.constant 0 : index
    %c0_36 = arith.constant 0 : index
    %c2_37 = arith.constant 2 : index
    %c0_38 = arith.constant 0 : index
    %55 = vector.load %arg4[%c0_35, %c0_36, %c2_37, %c0_38] : memref<2x1x24x24xf32, #tpu.memory_space<vmem>>, vector<2x1x16x16xf32>
    %56 = vector.broadcast %54 : f32 to vector<2x1x16x16xf32>
    %57 = arith.mulf %56, %55 : vector<2x1x16x16xf32>
    %58 = arith.addf %49, %57 : vector<2x1x16x16xf32>
    %c25_i32_39 = arith.constant 25 : i32
    %59 = arith.muli %arg0, %c25_i32_39 : i32
    %c5_i32_40 = arith.constant 5 : i32
    %60 = arith.addi %59, %c5_i32_40 : i32
    %c1_i32_41 = arith.constant 1 : i32
    %61 = arith.addi %60, %c1_i32_41 : i32
    %62 = arith.index_cast %61 : i32 to index
    %63 = memref.load %arg2[%62] : memref<100xf32, #tpu.memory_space<smem>>
    %c0_42 = arith.constant 0 : index
    %c0_43 = arith.constant 0 : index
    %c2_44 = arith.constant 2 : index
    %c2_45 = arith.constant 2 : index
    %64 = vector.load %arg4[%c0_42, %c0_43, %c2_44, %c2_45] : memref<2x1x24x24xf32, #tpu.memory_space<vmem>>, vector<2x1x16x16xf32>
    %65 = vector.broadcast %63 : f32 to vector<2x1x16x16xf32>
    %66 = arith.mulf %65, %64 : vector<2x1x16x16xf32>
    %67 = arith.addf %58, %66 : vector<2x1x16x16xf32>
    %c25_i32_46 = arith.constant 25 : i32
    %68 = arith.muli %arg0, %c25_i32_46 : i32
    %c5_i32_47 = arith.constant 5 : i32
    %69 = arith.addi %68, %c5_i32_47 : i32
    %c2_i32_48 = arith.constant 2 : i32
    %70 = arith.addi %69, %c2_i32_48 : i32
    %71 = arith.index_cast %70 : i32 to index
    %72 = memref.load %arg2[%71] : memref<100xf32, #tpu.memory_space<smem>>
    %c0_49 = arith.constant 0 : index
    %c0_50 = arith.constant 0 : index
    %c2_51 = arith.constant 2 : index
    %c4_52 = arith.constant 4 : index
    %73 = vector.load %arg4[%c0_49, %c0_50, %c2_51, %c4_52] : memref<2x1x24x24xf32, #tpu.memory_space<vmem>>, vector<2x1x16x16xf32>
    %74 = vector.broadcast %72 : f32 to vector<2x1x16x16xf32>
    %75 = arith.mulf %74, %73 : vector<2x1x16x16xf32>
    %76 = arith.addf %67, %75 : vector<2x1x16x16xf32>
    %c25_i32_53 = arith.constant 25 : i32
    %77 = arith.muli %arg0, %c25_i32_53 : i32
    %c5_i32_54 = arith.constant 5 : i32
    %78 = arith.addi %77, %c5_i32_54 : i32
    %c3_i32_55 = arith.constant 3 : i32
    %79 = arith.addi %78, %c3_i32_55 : i32
    %80 = arith.index_cast %79 : i32 to index
    %81 = memref.load %arg2[%80] : memref<100xf32, #tpu.memory_space<smem>>
    %c0_56 = arith.constant 0 : index
    %c0_57 = arith.constant 0 : index
    %c2_58 = arith.constant 2 : index
    %c6_59 = arith.constant 6 : index
    %82 = vector.load %arg4[%c0_56, %c0_57, %c2_58, %c6_59] : memref<2x1x24x24xf32, #tpu.memory_space<vmem>>, vector<2x1x16x16xf32>
    %83 = vector.broadcast %81 : f32 to vector<2x1x16x16xf32>
    %84 = arith.mulf %83, %82 : vector<2x1x16x16xf32>
    %85 = arith.addf %76, %84 : vector<2x1x16x16xf32>
    %c25_i32_60 = arith.constant 25 : i32
    %86 = arith.muli %arg0, %c25_i32_60 : i32
    %c5_i32_61 = arith.constant 5 : i32
    %87 = arith.addi %86, %c5_i32_61 : i32
    %c4_i32_62 = arith.constant 4 : i32
    %88 = arith.addi %87, %c4_i32_62 : i32
    %89 = arith.index_cast %88 : i32 to index
    %90 = memref.load %arg2[%89] : memref<100xf32, #tpu.memory_space<smem>>
    %c0_63 = arith.constant 0 : index
    %c0_64 = arith.constant 0 : index
    %c2_65 = arith.constant 2 : index
    %c8_66 = arith.constant 8 : index
    %91 = vector.load %arg4[%c0_63, %c0_64, %c2_65, %c8_66] : memref<2x1x24x24xf32, #tpu.memory_space<vmem>>, vector<2x1x16x16xf32>
    %92 = vector.broadcast %90 : f32 to vector<2x1x16x16xf32>
    %93 = arith.mulf %92, %91 : vector<2x1x16x16xf32>
    %94 = arith.addf %85, %93 : vector<2x1x16x16xf32>
    %c25_i32_67 = arith.constant 25 : i32
    %95 = arith.muli %arg0, %c25_i32_67 : i32
    %c10_i32 = arith.constant 10 : i32
    %96 = arith.addi %95, %c10_i32 : i32
    %c0_i32_68 = arith.constant 0 : i32
    %97 = arith.addi %96, %c0_i32_68 : i32
    %98 = arith.index_cast %97 : i32 to index
    %99 = memref.load %arg2[%98] : memref<100xf32, #tpu.memory_space<smem>>
    %c0_69 = arith.constant 0 : index
    %c0_70 = arith.constant 0 : index
    %c4_71 = arith.constant 4 : index
    %c0_72 = arith.constant 0 : index
    %100 = vector.load %arg4[%c0_69, %c0_70, %c4_71, %c0_72] : memref<2x1x24x24xf32, #tpu.memory_space<vmem>>, vector<2x1x16x16xf32>
    %101 = vector.broadcast %99 : f32 to vector<2x1x16x16xf32>
    %102 = arith.mulf %101, %100 : vector<2x1x16x16xf32>
    %103 = arith.addf %94, %102 : vector<2x1x16x16xf32>
    %c25_i32_73 = arith.constant 25 : i32
    %104 = arith.muli %arg0, %c25_i32_73 : i32
    %c10_i32_74 = arith.constant 10 : i32
    %105 = arith.addi %104, %c10_i32_74 : i32
    %c1_i32_75 = arith.constant 1 : i32
    %106 = arith.addi %105, %c1_i32_75 : i32
    %107 = arith.index_cast %106 : i32 to index
    %108 = memref.load %arg2[%107] : memref<100xf32, #tpu.memory_space<smem>>
    %c0_76 = arith.constant 0 : index
    %c0_77 = arith.constant 0 : index
    %c4_78 = arith.constant 4 : index
    %c2_79 = arith.constant 2 : index
    %109 = vector.load %arg4[%c0_76, %c0_77, %c4_78, %c2_79] : memref<2x1x24x24xf32, #tpu.memory_space<vmem>>, vector<2x1x16x16xf32>
    %110 = vector.broadcast %108 : f32 to vector<2x1x16x16xf32>
    %111 = arith.mulf %110, %109 : vector<2x1x16x16xf32>
    %112 = arith.addf %103, %111 : vector<2x1x16x16xf32>
    %c25_i32_80 = arith.constant 25 : i32
    %113 = arith.muli %arg0, %c25_i32_80 : i32
    %c10_i32_81 = arith.constant 10 : i32
    %114 = arith.addi %113, %c10_i32_81 : i32
    %c2_i32_82 = arith.constant 2 : i32
    %115 = arith.addi %114, %c2_i32_82 : i32
    %116 = arith.index_cast %115 : i32 to index
    %117 = memref.load %arg2[%116] : memref<100xf32, #tpu.memory_space<smem>>
    %c0_83 = arith.constant 0 : index
    %c0_84 = arith.constant 0 : index
    %c4_85 = arith.constant 4 : index
    %c4_86 = arith.constant 4 : index
    %118 = vector.load %arg4[%c0_83, %c0_84, %c4_85, %c4_86] : memref<2x1x24x24xf32, #tpu.memory_space<vmem>>, vector<2x1x16x16xf32>
    %119 = vector.broadcast %117 : f32 to vector<2x1x16x16xf32>
    %120 = arith.mulf %119, %118 : vector<2x1x16x16xf32>
    %121 = arith.addf %112, %120 : vector<2x1x16x16xf32>
    %c25_i32_87 = arith.constant 25 : i32
    %122 = arith.muli %arg0, %c25_i32_87 : i32
    %c10_i32_88 = arith.constant 10 : i32
    %123 = arith.addi %122, %c10_i32_88 : i32
    %c3_i32_89 = arith.constant 3 : i32
    %124 = arith.addi %123, %c3_i32_89 : i32
    %125 = arith.index_cast %124 : i32 to index
    %126 = memref.load %arg2[%125] : memref<100xf32, #tpu.memory_space<smem>>
    %c0_90 = arith.constant 0 : index
    %c0_91 = arith.constant 0 : index
    %c4_92 = arith.constant 4 : index
    %c6_93 = arith.constant 6 : index
    %127 = vector.load %arg4[%c0_90, %c0_91, %c4_92, %c6_93] : memref<2x1x24x24xf32, #tpu.memory_space<vmem>>, vector<2x1x16x16xf32>
    %128 = vector.broadcast %126 : f32 to vector<2x1x16x16xf32>
    %129 = arith.mulf %128, %127 : vector<2x1x16x16xf32>
    %130 = arith.addf %121, %129 : vector<2x1x16x16xf32>
    %c25_i32_94 = arith.constant 25 : i32
    %131 = arith.muli %arg0, %c25_i32_94 : i32
    %c10_i32_95 = arith.constant 10 : i32
    %132 = arith.addi %131, %c10_i32_95 : i32
    %c4_i32_96 = arith.constant 4 : i32
    %133 = arith.addi %132, %c4_i32_96 : i32
    %134 = arith.index_cast %133 : i32 to index
    %135 = memref.load %arg2[%134] : memref<100xf32, #tpu.memory_space<smem>>
    %c0_97 = arith.constant 0 : index
    %c0_98 = arith.constant 0 : index
    %c4_99 = arith.constant 4 : index
    %c8_100 = arith.constant 8 : index
    %136 = vector.load %arg4[%c0_97, %c0_98, %c4_99, %c8_100] : memref<2x1x24x24xf32, #tpu.memory_space<vmem>>, vector<2x1x16x16xf32>
    %137 = vector.broadcast %135 : f32 to vector<2x1x16x16xf32>
    %138 = arith.mulf %137, %136 : vector<2x1x16x16xf32>
    %139 = arith.addf %130, %138 : vector<2x1x16x16xf32>
    %c25_i32_101 = arith.constant 25 : i32
    %140 = arith.muli %arg0, %c25_i32_101 : i32
    %c15_i32 = arith.constant 15 : i32
    %141 = arith.addi %140, %c15_i32 : i32
    %c0_i32_102 = arith.constant 0 : i32
    %142 = arith.addi %141, %c0_i32_102 : i32
    %143 = arith.index_cast %142 : i32 to index
    %144 = memref.load %arg2[%143] : memref<100xf32, #tpu.memory_space<smem>>
    %c0_103 = arith.constant 0 : index
    %c0_104 = arith.constant 0 : index
    %c6_105 = arith.constant 6 : index
    %c0_106 = arith.constant 0 : index
    %145 = vector.load %arg4[%c0_103, %c0_104, %c6_105, %c0_106] : memref<2x1x24x24xf32, #tpu.memory_space<vmem>>, vector<2x1x16x16xf32>
    %146 = vector.broadcast %144 : f32 to vector<2x1x16x16xf32>
    %147 = arith.mulf %146, %145 : vector<2x1x16x16xf32>
    %148 = arith.addf %139, %147 : vector<2x1x16x16xf32>
    %c25_i32_107 = arith.constant 25 : i32
    %149 = arith.muli %arg0, %c25_i32_107 : i32
    %c15_i32_108 = arith.constant 15 : i32
    %150 = arith.addi %149, %c15_i32_108 : i32
    %c1_i32_109 = arith.constant 1 : i32
    %151 = arith.addi %150, %c1_i32_109 : i32
    %152 = arith.index_cast %151 : i32 to index
    %153 = memref.load %arg2[%152] : memref<100xf32, #tpu.memory_space<smem>>
    %c0_110 = arith.constant 0 : index
    %c0_111 = arith.constant 0 : index
    %c6_112 = arith.constant 6 : index
    %c2_113 = arith.constant 2 : index
    %154 = vector.load %arg4[%c0_110, %c0_111, %c6_112, %c2_113] : memref<2x1x24x24xf32, #tpu.memory_space<vmem>>, vector<2x1x16x16xf32>
    %155 = vector.broadcast %153 : f32 to vector<2x1x16x16xf32>
    %156 = arith.mulf %155, %154 : vector<2x1x16x16xf32>
    %157 = arith.addf %148, %156 : vector<2x1x16x16xf32>
    %c25_i32_114 = arith.constant 25 : i32
    %158 = arith.muli %arg0, %c25_i32_114 : i32
    %c15_i32_115 = arith.constant 15 : i32
    %159 = arith.addi %158, %c15_i32_115 : i32
    %c2_i32_116 = arith.constant 2 : i32
    %160 = arith.addi %159, %c2_i32_116 : i32
    %161 = arith.index_cast %160 : i32 to index
    %162 = memref.load %arg2[%161] : memref<100xf32, #tpu.memory_space<smem>>
    %c0_117 = arith.constant 0 : index
    %c0_118 = arith.constant 0 : index
    %c6_119 = arith.constant 6 : index
    %c4_120 = arith.constant 4 : index
    %163 = vector.load %arg4[%c0_117, %c0_118, %c6_119, %c4_120] : memref<2x1x24x24xf32, #tpu.memory_space<vmem>>, vector<2x1x16x16xf32>
    %164 = vector.broadcast %162 : f32 to vector<2x1x16x16xf32>
    %165 = arith.mulf %164, %163 : vector<2x1x16x16xf32>
    %166 = arith.addf %157, %165 : vector<2x1x16x16xf32>
    %c25_i32_121 = arith.constant 25 : i32
    %167 = arith.muli %arg0, %c25_i32_121 : i32
    %c15_i32_122 = arith.constant 15 : i32
    %168 = arith.addi %167, %c15_i32_122 : i32
    %c3_i32_123 = arith.constant 3 : i32
    %169 = arith.addi %168, %c3_i32_123 : i32
    %170 = arith.index_cast %169 : i32 to index
    %171 = memref.load %arg2[%170] : memref<100xf32, #tpu.memory_space<smem>>
    %c0_124 = arith.constant 0 : index
    %c0_125 = arith.constant 0 : index
    %c6_126 = arith.constant 6 : index
    %c6_127 = arith.constant 6 : index
    %172 = vector.load %arg4[%c0_124, %c0_125, %c6_126, %c6_127] : memref<2x1x24x24xf32, #tpu.memory_space<vmem>>, vector<2x1x16x16xf32>
    %173 = vector.broadcast %171 : f32 to vector<2x1x16x16xf32>
    %174 = arith.mulf %173, %172 : vector<2x1x16x16xf32>
    %175 = arith.addf %166, %174 : vector<2x1x16x16xf32>
    %c25_i32_128 = arith.constant 25 : i32
    %176 = arith.muli %arg0, %c25_i32_128 : i32
    %c15_i32_129 = arith.constant 15 : i32
    %177 = arith.addi %176, %c15_i32_129 : i32
    %c4_i32_130 = arith.constant 4 : i32
    %178 = arith.addi %177, %c4_i32_130 : i32
    %179 = arith.index_cast %178 : i32 to index
    %180 = memref.load %arg2[%179] : memref<100xf32, #tpu.memory_space<smem>>
    %c0_131 = arith.constant 0 : index
    %c0_132 = arith.constant 0 : index
    %c6_133 = arith.constant 6 : index
    %c8_134 = arith.constant 8 : index
    %181 = vector.load %arg4[%c0_131, %c0_132, %c6_133, %c8_134] : memref<2x1x24x24xf32, #tpu.memory_space<vmem>>, vector<2x1x16x16xf32>
    %182 = vector.broadcast %180 : f32 to vector<2x1x16x16xf32>
    %183 = arith.mulf %182, %181 : vector<2x1x16x16xf32>
    %184 = arith.addf %175, %183 : vector<2x1x16x16xf32>
    %c25_i32_135 = arith.constant 25 : i32
    %185 = arith.muli %arg0, %c25_i32_135 : i32
    %c20_i32 = arith.constant 20 : i32
    %186 = arith.addi %185, %c20_i32 : i32
    %c0_i32_136 = arith.constant 0 : i32
    %187 = arith.addi %186, %c0_i32_136 : i32
    %188 = arith.index_cast %187 : i32 to index
    %189 = memref.load %arg2[%188] : memref<100xf32, #tpu.memory_space<smem>>
    %c0_137 = arith.constant 0 : index
    %c0_138 = arith.constant 0 : index
    %c8_139 = arith.constant 8 : index
    %c0_140 = arith.constant 0 : index
    %190 = vector.load %arg4[%c0_137, %c0_138, %c8_139, %c0_140] : memref<2x1x24x24xf32, #tpu.memory_space<vmem>>, vector<2x1x16x16xf32>
    %191 = vector.broadcast %189 : f32 to vector<2x1x16x16xf32>
    %192 = arith.mulf %191, %190 : vector<2x1x16x16xf32>
    %193 = arith.addf %184, %192 : vector<2x1x16x16xf32>
    %c25_i32_141 = arith.constant 25 : i32
    %194 = arith.muli %arg0, %c25_i32_141 : i32
    %c20_i32_142 = arith.constant 20 : i32
    %195 = arith.addi %194, %c20_i32_142 : i32
    %c1_i32_143 = arith.constant 1 : i32
    %196 = arith.addi %195, %c1_i32_143 : i32
    %197 = arith.index_cast %196 : i32 to index
    %198 = memref.load %arg2[%197] : memref<100xf32, #tpu.memory_space<smem>>
    %c0_144 = arith.constant 0 : index
    %c0_145 = arith.constant 0 : index
    %c8_146 = arith.constant 8 : index
    %c2_147 = arith.constant 2 : index
    %199 = vector.load %arg4[%c0_144, %c0_145, %c8_146, %c2_147] : memref<2x1x24x24xf32, #tpu.memory_space<vmem>>, vector<2x1x16x16xf32>
    %200 = vector.broadcast %198 : f32 to vector<2x1x16x16xf32>
    %201 = arith.mulf %200, %199 : vector<2x1x16x16xf32>
    %202 = arith.addf %193, %201 : vector<2x1x16x16xf32>
    %c25_i32_148 = arith.constant 25 : i32
    %203 = arith.muli %arg0, %c25_i32_148 : i32
    %c20_i32_149 = arith.constant 20 : i32
    %204 = arith.addi %203, %c20_i32_149 : i32
    %c2_i32_150 = arith.constant 2 : i32
    %205 = arith.addi %204, %c2_i32_150 : i32
    %206 = arith.index_cast %205 : i32 to index
    %207 = memref.load %arg2[%206] : memref<100xf32, #tpu.memory_space<smem>>
    %c0_151 = arith.constant 0 : index
    %c0_152 = arith.constant 0 : index
    %c8_153 = arith.constant 8 : index
    %c4_154 = arith.constant 4 : index
    %208 = vector.load %arg4[%c0_151, %c0_152, %c8_153, %c4_154] : memref<2x1x24x24xf32, #tpu.memory_space<vmem>>, vector<2x1x16x16xf32>
    %209 = vector.broadcast %207 : f32 to vector<2x1x16x16xf32>
    %210 = arith.mulf %209, %208 : vector<2x1x16x16xf32>
    %211 = arith.addf %202, %210 : vector<2x1x16x16xf32>
    %c25_i32_155 = arith.constant 25 : i32
    %212 = arith.muli %arg0, %c25_i32_155 : i32
    %c20_i32_156 = arith.constant 20 : i32
    %213 = arith.addi %212, %c20_i32_156 : i32
    %c3_i32_157 = arith.constant 3 : i32
    %214 = arith.addi %213, %c3_i32_157 : i32
    %215 = arith.index_cast %214 : i32 to index
    %216 = memref.load %arg2[%215] : memref<100xf32, #tpu.memory_space<smem>>
    %c0_158 = arith.constant 0 : index
    %c0_159 = arith.constant 0 : index
    %c8_160 = arith.constant 8 : index
    %c6_161 = arith.constant 6 : index
    %217 = vector.load %arg4[%c0_158, %c0_159, %c8_160, %c6_161] : memref<2x1x24x24xf32, #tpu.memory_space<vmem>>, vector<2x1x16x16xf32>
    %218 = vector.broadcast %216 : f32 to vector<2x1x16x16xf32>
    %219 = arith.mulf %218, %217 : vector<2x1x16x16xf32>
    %220 = arith.addf %211, %219 : vector<2x1x16x16xf32>
    %c25_i32_162 = arith.constant 25 : i32
    %221 = arith.muli %arg0, %c25_i32_162 : i32
    %c20_i32_163 = arith.constant 20 : i32
    %222 = arith.addi %221, %c20_i32_163 : i32
    %c4_i32_164 = arith.constant 4 : i32
    %223 = arith.addi %222, %c4_i32_164 : i32
    %224 = arith.index_cast %223 : i32 to index
    %225 = memref.load %arg2[%224] : memref<100xf32, #tpu.memory_space<smem>>
    %c0_165 = arith.constant 0 : index
    %c0_166 = arith.constant 0 : index
    %c8_167 = arith.constant 8 : index
    %c8_168 = arith.constant 8 : index
    %226 = vector.load %arg4[%c0_165, %c0_166, %c8_167, %c8_168] : memref<2x1x24x24xf32, #tpu.memory_space<vmem>>, vector<2x1x16x16xf32>
    %227 = vector.broadcast %225 : f32 to vector<2x1x16x16xf32>
    %228 = arith.mulf %227, %226 : vector<2x1x16x16xf32>
    %229 = arith.addf %220, %228 : vector<2x1x16x16xf32>
    %c0_169 = arith.constant 0 : index
    %c0_170 = arith.constant 0 : index
    %c0_171 = arith.constant 0 : index
    %c0_172 = arith.constant 0 : index
    %230 = vector.load %arg3[%c0_169, %c0_170, %c0_171, %c0_172] : memref<2x1x16x16xf32, #tpu.memory_space<vmem>>, vector<2x1x16x16xf32>
    tpu.vector_store %arg3[%c0_169, %c0_170, %c0_171, %c0_172], %229 {strides = array<i32>} : memref<2x1x16x16xf32, #tpu.memory_space<vmem>>, vector<2x1x16x16xf32>,
    return
  }
  func.func @transform_0(%arg0: i32) -> (i32, i32, i32, i32) {
    %c0_i32 = arith.constant 0 : i32
    %c0_i32_0 = arith.constant 0 : i32
    %c0_i32_1 = arith.constant 0 : i32
    %c0_i32_2 = arith.constant 0 : i32
    return %c0_i32, %arg0, %c0_i32_0, %c0_i32_1 : i32, i32, i32, i32
  }
  func.func @transform_1(%arg0: i32) -> i32 {
    %c0_i32 = arith.constant 0 : i32
    %c0_i32_0 = arith.constant 0 : i32
    return %c0_i32 : i32
  }
  func.func @transform_2(%arg0: i32) -> (i32, i32, i32, i32) {
    %c0_i32 = arith.constant 0 : i32
    %c0_i32_0 = arith.constant 0 : i32
    %c0_i32_1 = arith.constant 0 : i32
    %c0_i32_2 = arith.constant 0 : i32
    return %c0_i32, %arg0, %c0_i32_0, %c0_i32_1 : i32, i32, i32, i32
  }
}

</mosaic_0001>

<llo_original>
// kernel: branch_0_fun.1
$region0: #{branch_0_fun.1}
  #allocation0 [shape = 'u32[]', space=smem, size = 0x4, offset = 0x4, fixed_abs, tag = 'smem constant byte address 0x4 - core index']
  #allocation1 [shape = 'u32[72,128]{1,0:T(1,128)}', space=vmem, size = 0x9000, scoped, tag = 'internal scratch']
  #allocation2 [shape = 's32[1]{0:T(128)S(6)}', space=smem, size = 0x200, scoped, tag = 'scoped memory for branch_0_fun.1']
  %s0 = inlined_call_operand.vmem [shape: f32[2,4,256], index: 0, kind: input, shape index: {}]
  %s1 = inlined_call_operand.vmem [shape: f32[8], index: 1, kind: input, shape index: {}]
  %s2 = inlined_call_operand.<no memory space> [shape: s32[1], index: 2, kind: input, shape index: {}]
  %s3 = inlined_call_operand.vmem [shape: f32[2,4,256], index: 3, kind: output, shape index: {}]
  %s4 = sld [smem:[#allocation0]]
  $region26: #{branch_0_fun.1} parent=0
    _
  %s6 = ssub.s32 1, %s4
  %s7 = scalar_select 0, %s6, %s4
  %8 = sst [smem:[#allocation2]] %s2
  $region1: #{branch_0_fun.1} parent=0
    #allocation3 [shape = 'u8[512]{0}', space=smem, size = 0x200, scoped, tag = 'input window, operand 1, single buffered']
    #allocation4 [shape = 's32[1]{0}', space=sflag, size = 0x4, scoped, tag = 'scoped memory for branch_0_fun.1']
    %9 = vsyncpa [#allocation4], 0
    // Predicated region
    $region2: #{branch_0_fun.1} parent=1 // pred_check
      _
    $region3: #{branch_0_fun.1} parent=1 // pred_check_branch
      %11 = sbr.rel (0) target = $region5
    $region4: #{branch_0_fun.1} parent=1 // pred_region
      _
    $region5: #{branch_0_fun.1} parent=1 // pred_fallthru
      _
    // Predicated region
    $region6: #{branch_0_fun.1} parent=1 // pred_check
      _
    $region7: #{branch_0_fun.1} parent=1 // pred_check_branch
      %13 = sbr.rel (0) target = $region9
    $region8: #{branch_0_fun.1} parent=1 // pred_region
      %15 = vsyncadd [#allocation4], 0
      %s17 = sshll.u32 %s1, 4
      %s18 = int_to_ptr.vmem [resolvable:$true] %s17
      %20 = dma.vmem_to_smem %s18, 16, [#allocation3], [#allocation4]
    $region9: #{branch_0_fun.1} parent=1 // pred_fallthru
      _
    // Predicated region
    $region10: #{branch_0_fun.1} parent=1 // pred_check
      _
    $region11: #{branch_0_fun.1} parent=1 // pred_check_branch
      %22 = sbr.rel (0) target = $region13
    $region12: #{branch_0_fun.1} parent=1 // pred_region
      _
    $region13: #{branch_0_fun.1} parent=1 // pred_fallthru
      _
    // Predicated region
    $region14: #{branch_0_fun.1} parent=1 // pred_check
      _
    $region15: #{branch_0_fun.1} parent=1 // pred_check_branch
      %24 = sbr.rel (0) target = $region17
    $region16: #{branch_0_fun.1} parent=1 // pred_region
      %26 = dma.done [#allocation4], 16
    $region17: #{branch_0_fun.1} parent=1 // pred_fallthru
      _
    %27 = sfence
    %s28 = sld [smem:[#allocation2]]
    %s29 = sld [smem:[#allocation3]]
    %s30 = sld [smem:[#allocation3 + $0x1]]
    %s31 = sadd.f32 %s29, %s30
    %s32 = sld [smem:[#allocation3 + $0x2]]
    %s33 = sadd.f32 %s31, %s32
    %s34 = sld [smem:[#allocation3 + $0x3]]
    %s35 = sadd.f32 %s33, %s34
    %s36 = sld [smem:[#allocation3 + $0x4]]
    %s37 = sadd.f32 %s35, %s36
    %s38 = sld [smem:[#allocation3 + $0x5]]
    %s39 = sadd.f32 %s37, %s38
    %s40 = sld [smem:[#allocation3 + $0x6]]
    %s41 = sadd.f32 %s39, %s40
    %s42 = sld [smem:[#allocation3 + $0x7]]
    %s43 = sadd.f32 %s41, %s42
    %s44 = sld [smem:[#allocation3 + %s28]]
    %v45 = vld [vmem:[%s0] sm:$0xff]
    %v46 = vld [vmem:[%s0 + $0x8] sm:$0xff]
    %v47 = vstv %s44
    %v48 = vmul.f32 %v45, %v47
    %v49 = vmul.f32 %v46, %v47
    %s50 = ssub.f32 %s43, %s44
    %v51 = vstv %s50
    %v52 = vadd.f32 %v48, %v51
    %v53 = vadd.f32 %v49, %v51
    %54 = vst [vmem:[%s3] sm:$0xff] %v52
    %55 = vst [vmem:[%s3 + $0x8] sm:$0xff] %v53
    // Predicated region
    $region18: #{branch_0_fun.1} parent=1 // pred_check
      _
    $region19: #{branch_0_fun.1} parent=1 // pred_check_branch
      %57 = sbr.rel (0) target = $region21
    $region20: #{branch_0_fun.1} parent=1 // pred_region
      _
    $region21: #{branch_0_fun.1} parent=1 // pred_fallthru
      _
    // Predicated region
    $region22: #{branch_0_fun.1} parent=1 // pred_check
      _
    $region23: #{branch_0_fun.1} parent=1 // pred_check_branch
      %59 = sbr.rel (0) target = $region25
    $region24: #{branch_0_fun.1} parent=1 // pred_region
      _
    $region25: #{branch_0_fun.1} parent=1 // pred_fallthru
      _
    %60 = vsyncpa [#allocation4], 1

// kernel: branch_1_fun.2
$region0: #{branch_1_fun.2}
  #allocation0 [shape = 'u32[]', space=smem, size = 0x4, offset = 0x4, fixed_abs, tag = 'smem constant byte address 0x4 - core index']
  #allocation1 [shape = 'u32[72,128]{1,0:T(1,128)}', space=vmem, size = 0x9000, scoped, tag = 'internal scratch']
  %s0 = inlined_call_operand.vmem [shape: f32[2,4,18,18], index: 0, kind: input, shape index: {}]
  %s1 = inlined_call_operand.vmem [shape: f32[1,1,16,16], index: 1, kind: input, shape index: {}]
  %s2 = inlined_call_operand.vmem [shape: f32[2,4,16,16], index: 2, kind: output, shape index: {}]
  %s3 = sld [smem:[#allocation0]]
  $region113: #{branch_1_fun.2} parent=0
    _
  %s5 = ssub.s32 1, %s3
  %s6 = scalar_select 0, %s5, %s3
  $region1: #{branch_1_fun.2} parent=0
    #allocation2 [shape = 'u8[49152]{0}', space=vmem, size = 0xc000, scoped, tag = 'input window, operand 0']
    #allocation3 [shape = 'u8[32768]{0}', space=vmem, size = 0x8000, scoped, tag = 'output window, operand 0']
    loop: start=0, step=1, limit=6
    $region2: #{branch_1_fun.2} parent=1 // loop_pre_header
      _
    $region3: #{branch_1_fun.2} parent=1 // loop_header
      %s8 = sphi 0, %s12
      %p9 = scmp.ge.s32.totalorder %s8, 6
      %s18 = sphi 0, %s20
      %s21 = sphi 0, %s18
      %s22 = sphi 0, %s21
      %s38 = sphi 0, %s22
      %s42 = sphi 0, %s42
      %s44 = sphi 0, %s42
      %s45 = sphi 0, %s44
      %s59 = sphi 0, %s45
      %s65 = sphi 0, %s67
      %s68 = sphi 0, %s65
      %s69 = sphi 0, %s68
      %s85 = sphi 0, %s69
    $region4: #{branch_1_fun.2} parent=1 // loop_header_branch
      %11 = sbr.rel (%p9) target = $region8
    $region5: #{branch_1_fun.2} parent=1 // loop_body
      %s13 = ssub.s32 %s8, 1
      %s14 = ssub.s32 %s8, 2
      %s15 = sadd.s32 %s8, 1
      %s16 = ssub.s32 %s8, %s15
      %p17 = scmp.eq.s32.totalorder %s16, 0
      %s19 = sadd.s32 %s18, 1
      %s20 = scalar_select %p17, %s18, %s19
      %p23 = pneg %p17
      %p24 = scmp.eq.s32.totalorder %s8, 3
      %p25 = por %p23, %p24
      %p26 = scmp.ne.s32.totalorder %s18, %s21
      %p27 = scmp.eq.s32.totalorder %s8, 0
      %p28 = por %p26, %p27
      %p29 = scmp.ne.s32.totalorder %s18, %s21
      %p30 = scmp.eq.s32.totalorder %s13, 3
      %p31 = por %p29, %p30
      %p32 = scmp.ne.s32.totalorder %s21, %s22
      %p33 = scmp.eq.s32.totalorder %s13, 0
      %p34 = por %p32, %p33
      %p35 = scmp.ne.s32.totalorder %s21, %s22
      %p36 = scmp.eq.s32.totalorder %s14, 3
      %p37 = por %p35, %p36
      %p39 = scmp.ne.s32.totalorder %s22, %s38
      %p40 = scmp.eq.s32.totalorder %s14, 0
      %p41 = por %p39, %p40
      %s43 = sadd.s32 %s42, 1
      %p46 = scmp.eq.s32.totalorder %s8, 3
      %p47 = scmp.ne.s32.totalorder %s42, %s44
      %p48 = scmp.eq.s32.totalorder %s8, 0
      %p49 = por %p47, %p48
      %p50 = scmp.ne.s32.totalorder %s42, %s44
      %p51 = scmp.eq.s32.totalorder %s13, 3
      %p52 = por %p50, %p51
      %p53 = scmp.ne.s32.totalorder %s44, %s45
      %p54 = scmp.eq.s32.totalorder %s13, 0
      %p55 = por %p53, %p54
      %p56 = scmp.ne.s32.totalorder %s44, %s45
      %p57 = scmp.eq.s32.totalorder %s14, 3
      %p58 = por %p56, %p57
      %p60 = scmp.ne.s32.totalorder %s45, %s59
      %p61 = scmp.eq.s32.totalorder %s14, 0
      %p62 = por %p60, %p61
      %s63 = ssub.s32 %s8, %s15
      %p64 = scmp.eq.s32.totalorder %s63, 0
      %s66 = sadd.s32 %s65, 1
      %s67 = scalar_select %p64, %s65, %s66
      %p70 = pneg %p64
      %p71 = scmp.eq.s32.totalorder %s8, 3
      %p72 = por %p70, %p71
      %p73 = scmp.ne.s32.totalorder %s65, %s68
      %p74 = scmp.eq.s32.totalorder %s8, 0
      %p75 = por %p73, %p74
      %p76 = scmp.ne.s32.totalorder %s65, %s68
      %p77 = scmp.eq.s32.totalorder %s13, 3
      %p78 = por %p76, %p77
      %p79 = scmp.ne.s32.totalorder %s68, %s69
      %p80 = scmp.eq.s32.totalorder %s13, 0
      %p81 = por %p79, %p80
      %p82 = scmp.ne.s32.totalorder %s68, %s69
      %p83 = scmp.eq.s32.totalorder %s14, 3
      %p84 = por %p82, %p83
      %p86 = scmp.ne.s32.totalorder %s69, %s85
      %p87 = scmp.eq.s32.totalorder %s14, 0
      %p88 = por %p86, %p87
      %p89 = scmp.le.s32.totalorder 1, %s8
      %p90 = scmp.lt.s32.totalorder %s8, 5
      %p91 = pnand %p89, %p90
      %p92 = pneg %p91
      // Predicated region
      $region9: #{branch_1_fun.2} parent=5 // pred_check
        _
      $region10: #{branch_1_fun.2} parent=5 // pred_check_branch
        %94 = sbr.rel (%p91) target = $region12
      $region11: #{branch_1_fun.2} parent=5 // pred_region
        %s95 = ssub.s32 %s8, 1
        // Predicated region
        $region13: #{branch_1_fun.2} parent=11 // pred_check
          %p96 = pneg %p55
        $region14: #{branch_1_fun.2} parent=11 // pred_check_branch
          %98 = sbr.rel (%p96) target = $region16
        $region15: #{branch_1_fun.2} parent=11 // pred_region
          _
        $region16: #{branch_1_fun.2} parent=11 // pred_fallthru
          _
      $region12: #{branch_1_fun.2} parent=5 // pred_fallthru
        _
      %p99 = scmp.lt.s32.totalorder %s8, 4
      // Predicated region
      $region17: #{branch_1_fun.2} parent=5 // pred_check
        %p100 = pneg %p99
      $region18: #{branch_1_fun.2} parent=5 // pred_check_branch
        %102 = sbr.rel (%p100) target = $region20
      $region19: #{branch_1_fun.2} parent=5 // pred_region
        // Predicated region
        $region21: #{branch_1_fun.2} parent=19 // pred_check
          %p103 = pneg %p28
        $region22: #{branch_1_fun.2} parent=19 // pred_check_branch
          %105 = sbr.rel (%p103) target = $region24
        $region23: #{branch_1_fun.2} parent=19 // pred_region
          %s106 = sand.u32 %s18, 1
          %s107 = sand.u32 %s18, 1
          %s108 = smul.addr %s107, 48
          %s109 = scalar_lea.vmem [#allocation2], %s108
          %s110 = smul.addr %s8, 3
          %s111 = smul.addr %s110, 8
          %s112 = scalar_lea.vmem %s0, %s111
          // Predicated region
          $region25: #{branch_1_fun.2} parent=23 // pred_check
            _
          $region26: #{branch_1_fun.2} parent=23 // pred_check_branch
            %114 = sbr.rel (0) target = $region28
          $region27: #{branch_1_fun.2} parent=23 // pred_region
            // Predicated region
            $region29: #{branch_1_fun.2} parent=27 // pred_check
              _
            $region30: #{branch_1_fun.2} parent=27 // pred_check_branch
              %116 = sbr.rel (0) target = $region32
            $region31: #{branch_1_fun.2} parent=27 // pred_region
              // Predicated region
              $region44: #{branch_1_fun.2} parent=31 // pred_check
                _
              $region45: #{branch_1_fun.2} parent=31 // pred_check_branch
                %142 = sbr.rel (0) target = $region47
              $region46: #{branch_1_fun.2} parent=31 // pred_region
                loop: start=0, step=1, limit=1
                $region48: #{branch_1_fun.2} parent=46 // loop_pre_header
                  _
                $region49: #{branch_1_fun.2} parent=46 // loop_header
                  %s144 = sphi 0, %s148
                  %p145 = scmp.ge.s32.totalorder %s144, 1
                  %s149 = sphi %s112, %s112
                  %s150 = sphi %s109, %s109
                $region50: #{branch_1_fun.2} parent=46 // loop_header_branch
                  %147 = sbr.rel (%p145) target = $region54
                $region51: #{branch_1_fun.2} parent=46 // loop_body
                  %v151 = vld [vmem:[%s149] sm:$0xff]
                  %152 = vst [vmem:[%s150] sm:$0xff] %v151
                  %v153 = vld [vmem:[%s149 + $0x8] sm:$0xff]
                  %154 = vst [vmem:[%s150 + $0x8] sm:$0xff] %v153
                  %v155 = vld [vmem:[%s149 + $0x10] sm:$0xff]
                  %156 = vst [vmem:[%s150 + $0x10] sm:$0xff] %v155
                  %v157 = vld [vmem:[%s149 + $0x60] sm:$0xff]
                  %158 = vst [vmem:[%s150 + $0x18] sm:$0xff] %v157
                  %v159 = vld [vmem:[%s149 + $0x68] sm:$0xff]
                  %160 = vst [vmem:[%s150 + $0x20] sm:$0xff] %v159
                  %v161 = vld [vmem:[%s149 + $0x70] sm:$0xff]
                  %162 = vst [vmem:[%s150 + $0x28] sm:$0xff] %v161
                $region52: #{branch_1_fun.2} parent=46 // loop_footer
                  %s148 = sadd.s32 1, %s144
                $region53: #{branch_1_fun.2} parent=46 // loop_footer_branch
                  %143 = sbr.rel target = $region49
                $region54: #{branch_1_fun.2} parent=46 // loop_exit
                  _
              $region47: #{branch_1_fun.2} parent=31 // pred_fallthru
                _
              // Predicated region
              $region55: #{branch_1_fun.2} parent=31 // pred_check
                _
              $region56: #{branch_1_fun.2} parent=31 // pred_check_branch
                %164 = sbr.rel target = $region58
              $region57: #{branch_1_fun.2} parent=31 // pred_region
                _
              $region58: #{branch_1_fun.2} parent=31 // pred_fallthru
                _
            $region32: #{branch_1_fun.2} parent=27 // pred_fallthru
              _
            // Predicated region
            $region33: #{branch_1_fun.2} parent=27 // pred_check
              _
            $region34: #{branch_1_fun.2} parent=27 // pred_check_branch
              %118 = sbr.rel target = $region36
            $region35: #{branch_1_fun.2} parent=27 // pred_region
              %s120 = ssub.s32 256, 1
              loop: start=0, step=1, limit=1
              $region37: #{branch_1_fun.2} parent=35 // loop_pre_header
                _
              $region38: #{branch_1_fun.2} parent=35 // loop_header
                %s122 = sphi 0, %s126
                %p123 = scmp.ge.s32.totalorder %s122, 1
                %s127 = sphi %s112, %s112
                %s128 = sphi %s109, %s109
              $region39: #{branch_1_fun.2} parent=35 // loop_header_branch
                %125 = sbr.rel (%p123) target = $region43
              $region40: #{branch_1_fun.2} parent=35 // loop_body
                %v129 = vld [vmem:[%s127] sm:%s120]
                %130 = vst [vmem:[%s128] sm:%s120] %v129
                %v131 = vld [vmem:[%s127 + $0x8] sm:%s120]
                %132 = vst [vmem:[%s128 + $0x8] sm:%s120] %v131
                %v133 = vld [vmem:[%s127 + $0x10] sm:%s120]
                %134 = vst [vmem:[%s128 + $0x10] sm:%s120] %v133
                %v135 = vld [vmem:[%s127 + $0x60] sm:%s120]
                %136 = vst [vmem:[%s128 + $0x18] sm:%s120] %v135
                %v137 = vld [vmem:[%s127 + $0x68] sm:%s120]
                %138 = vst [vmem:[%s128 + $0x20] sm:%s120] %v137
                %v139 = vld [vmem:[%s127 + $0x70] sm:%s120]
                %140 = vst [vmem:[%s128 + $0x28] sm:%s120] %v139
              $region41: #{branch_1_fun.2} parent=35 // loop_footer
                %s126 = sadd.s32 1, %s122
              $region42: #{branch_1_fun.2} parent=35 // loop_footer_branch
                %121 = sbr.rel target = $region38
              $region43: #{branch_1_fun.2} parent=35 // loop_exit
                _
            $region36: #{branch_1_fun.2} parent=27 // pred_fallthru
              _
          $region28: #{branch_1_fun.2} parent=23 // pred_fallthru
            _
          %165 = vnop
        $region24: #{branch_1_fun.2} parent=19 // pred_fallthru
          _
      $region20: #{branch_1_fun.2} parent=5 // pred_fallthru
        _
      %p166 = scmp.le.s32.totalorder 1, %s8
      %p167 = scmp.lt.s32.totalorder %s8, 5
      %p168 = pnand %p166, %p167
      %p169 = pneg %p168
      // Predicated region
      $region59: #{branch_1_fun.2} parent=5 // pred_check
        _
      $region60: #{branch_1_fun.2} parent=5 // pred_check_branch
        %171 = sbr.rel (%p168) target = $region62
      $region61: #{branch_1_fun.2} parent=5 // pred_region
        %s172 = ssub.s32 %s8, 1
        %s173 = sand.u32 %s21, 1
        %s174 = sand.u32 %s21, 1
        %s175 = smul.addr %s174, 48
        %s176 = scalar_lea.vmem [#allocation2], %s175
        // Predicated region
        $region63: #{branch_1_fun.2} parent=61 // pred_check
          %p177 = pneg %p34
        $region64: #{branch_1_fun.2} parent=61 // pred_check_branch
          %179 = sbr.rel (%p177) target = $region66
        $region65: #{branch_1_fun.2} parent=61 // pred_region
          _
        $region66: #{branch_1_fun.2} parent=61 // pred_fallthru
          _
        %s180 = sand.u32 %s21, 1
        %s181 = sand.u32 %s21, 1
        %s182 = smul.addr %s181, 48
        %s183 = scalar_lea.vmem [#allocation2], %s182
        %p184 = pneg %p34
        %p185 = pneg %p31
        %p186 = pneg %p55
        %p187 = pneg %p52
        %p188 = pneg %p81
        %p189 = pneg %p78
        %s190 = sand.u32 %s68, 1
        %s191 = sand.u32 %s68, 1
        %s192 = smul.addr %s191, 32
        %s193 = scalar_lea.vmem [#allocation3], %s192
        %v194 = vld [vmem:[%s176] sm:$0xff]
        %v195 = vld [vmem:[%s176 + $0x8] sm:$0xff]
        %v196 = vld [vmem:[%s176 + $0x18] sm:$0xff]
        %v197 = vld [vmem:[%s176 + $0x20] sm:$0xff]
        %202 = vrot.lane.b32.xlu0 %v194, 127
        %v203 = vpop.permute.xlu0 %202
        %204 = vrot.lane.b32.xlu0 %v195, 127
        %v205 = vpop.permute.xlu0 %204
        %206 = vrot.lane.b32.xlu0 %v196, 127
        %v207 = vpop.permute.xlu0 %206
        %208 = vrot.lane.b32.xlu0 %v197, 127
        %v209 = vpop.permute.xlu0 %208
        %v214 = vmax.f32 %v194, %v203
        %v215 = vmax.f32 %v195, %v205
        %v216 = vmax.f32 %v196, %v207
        %v217 = vmax.f32 %v197, %v209
        %218 = vrot.lane.b32.xlu0 %v194, 126
        %v219 = vpop.permute.xlu0 %218
        %220 = vrot.lane.b32.xlu0 %v195, 126
        %v221 = vpop.permute.xlu0 %220
        %222 = vrot.lane.b32.xlu0 %v196, 126
        %v223 = vpop.permute.xlu0 %222
        %224 = vrot.lane.b32.xlu0 %v197, 126
        %v225 = vpop.permute.xlu0 %224
        %v230 = vmax.f32 %v214, %v219
        %v231 = vmax.f32 %v215, %v221
        %v232 = vmax.f32 %v216, %v223
        %v233 = vmax.f32 %v217, %v225
        %v234 = vld [vmem:[%s176 + $0x1] sm:$0xff]
        %v235 = vld [vmem:[%s176 + $0x9] sm:$0xff]
        %v236 = vld [vmem:[%s176 + $0x19] sm:$0xff]
        %v237 = vld [vmem:[%s176 + $0x21] sm:$0xff]
        %v238 = vmax.f32 %v230, %v234
        %v239 = vmax.f32 %v231, %v235
        %v240 = vmax.f32 %v232, %v236
        %v241 = vmax.f32 %v233, %v237
        %246 = vrot.lane.b32.xlu0 %v234, 127
        %v247 = vpop.permute.xlu0 %246
        %248 = vrot.lane.b32.xlu0 %v235, 127
        %v249 = vpop.permute.xlu0 %248
        %250 = vrot.lane.b32.xlu0 %v236, 127
        %v251 = vpop.permute.xlu0 %250
        %252 = vrot.lane.b32.xlu0 %v237, 127
        %v253 = vpop.permute.xlu0 %252
        %v258 = vmax.f32 %v238, %v247
        %v259 = vmax.f32 %v239, %v249
        %v260 = vmax.f32 %v240, %v251
        %v261 = vmax.f32 %v241, %v253
        %262 = vrot.lane.b32.xlu0 %v234, 126
        %v263 = vpop.permute.xlu0 %262
        %264 = vrot.lane.b32.xlu0 %v235, 126
        %v265 = vpop.permute.xlu0 %264
        %266 = vrot.lane.b32.xlu0 %v236, 126
        %v267 = vpop.permute.xlu0 %266
        %268 = vrot.lane.b32.xlu0 %v237, 126
        %v269 = vpop.permute.xlu0 %268
        %v274 = vmax.f32 %v258, %v263
        %v275 = vmax.f32 %v259, %v265
        %v276 = vmax.f32 %v260, %v267
        %v277 = vmax.f32 %v261, %v269
        %v278 = vld [vmem:[%s176 + $0x2] sm:$0xff]
        %v279 = vld [vmem:[%s176 + $0xa] sm:$0xff]
        %v280 = vld [vmem:[%s176 + $0x1a] sm:$0xff]
        %v281 = vld [vmem:[%s176 + $0x22] sm:$0xff]
        %v282 = vmax.f32 %v274, %v278
        %v283 = vmax.f32 %v275, %v279
        %v284 = vmax.f32 %v276, %v280
        %v285 = vmax.f32 %v277, %v281
        %290 = vrot.lane.b32.xlu0 %v278, 127
        %v291 = vpop.permute.xlu0 %290
        %292 = vrot.lane.b32.xlu0 %v279, 127
        %v293 = vpop.permute.xlu0 %292
        %294 = vrot.lane.b32.xlu0 %v280, 127
        %v295 = vpop.permute.xlu0 %294
        %296 = vrot.lane.b32.xlu0 %v281, 127
        %v297 = vpop.permute.xlu0 %296
        %v302 = vmax.f32 %v282, %v291
        %v303 = vmax.f32 %v283, %v293
        %v304 = vmax.f32 %v284, %v295
        %v305 = vmax.f32 %v285, %v297
        %306 = vrot.lane.b32.xlu0 %v278, 126
        %v307 = vpop.permute.xlu0 %306
        %308 = vrot.lane.b32.xlu0 %v279, 126
        %v309 = vpop.permute.xlu0 %308
        %310 = vrot.lane.b32.xlu0 %v280, 126
        %v311 = vpop.permute.xlu0 %310
        %312 = vrot.lane.b32.xlu0 %v281, 126
        %v313 = vpop.permute.xlu0 %312
        %v318 = vmax.f32 %v302, %v307
        %v319 = vmax.f32 %v303, %v309
        %v320 = vmax.f32 %v304, %v311
        %v321 = vmax.f32 %v305, %v313
        %vm322 = vcmask 130048
        %323 = vst.msk [vmem:[%s193] sm:$0xff] %vm322, %v318
        %324 = vst.msk [vmem:[%s193 + $0x8] sm:$0xff] %vm322, %v319
        %325 = vst.msk [vmem:[%s193 + $0x10] sm:$0xff] %vm322, %v320
        %326 = vst.msk [vmem:[%s193 + $0x18] sm:$0xff] %vm322, %v321
        %s327 = sand.u32 %s68, 1
        %s328 = sand.u32 %s68, 1
        %s329 = smul.addr %s328, 32
        %s330 = scalar_lea.vmem [#allocation3], %s329
        // Predicated region
        $region67: #{branch_1_fun.2} parent=61 // pred_check
          %p331 = pneg %p78
        $region68: #{branch_1_fun.2} parent=61 // pred_check_branch
          %333 = sbr.rel (%p331) target = $region70
        $region69: #{branch_1_fun.2} parent=61 // pred_region
          %s334 = smul.addr %s13, 2
          %s335 = smul.addr %s334, 8
          %s336 = scalar_lea.vmem %s2, %s335
          // Predicated region
          $region71: #{branch_1_fun.2} parent=69 // pred_check
            _
          $region72: #{branch_1_fun.2} parent=69 // pred_check_branch
            %338 = sbr.rel (0) target = $region74
          $region73: #{branch_1_fun.2} parent=69 // pred_region
            // Predicated region
            $region75: #{branch_1_fun.2} parent=73 // pred_check
              _
            $region76: #{branch_1_fun.2} parent=73 // pred_check_branch
              %340 = sbr.rel (0) target = $region78
            $region77: #{branch_1_fun.2} parent=73 // pred_region
              // Predicated region
              $region90: #{branch_1_fun.2} parent=77 // pred_check
                _
              $region91: #{branch_1_fun.2} parent=77 // pred_check_branch
                %362 = sbr.rel (0) target = $region93
              $region92: #{branch_1_fun.2} parent=77 // pred_region
                loop: start=0, step=1, limit=1
                $region94: #{branch_1_fun.2} parent=92 // loop_pre_header
                  _
                $region95: #{branch_1_fun.2} parent=92 // loop_header
                  %s364 = sphi 0, %s368
                  %p365 = scmp.ge.s32.totalorder %s364, 1
                  %s369 = sphi %s330, %s330
                  %s370 = sphi %s336, %s336
                $region96: #{branch_1_fun.2} parent=92 // loop_header_branch
                  %367 = sbr.rel (%p365) target = $region100
                $region97: #{branch_1_fun.2} parent=92 // loop_body
                  %v371 = vld [vmem:[%s369] sm:$0xff]
                  %372 = vst [vmem:[%s370] sm:$0xff] %v371
                  %v373 = vld [vmem:[%s369 + $0x8] sm:$0xff]
                  %374 = vst [vmem:[%s370 + $0x8] sm:$0xff] %v373
                  %v375 = vld [vmem:[%s369 + $0x10] sm:$0xff]
                  %376 = vst [vmem:[%s370 + $0x40] sm:$0xff] %v375
                  %v377 = vld [vmem:[%s369 + $0x18] sm:$0xff]
                  %378 = vst [vmem:[%s370 + $0x48] sm:$0xff] %v377
                $region98: #{branch_1_fun.2} parent=92 // loop_footer
                  %s368 = sadd.s32 1, %s364
                $region99: #{branch_1_fun.2} parent=92 // loop_footer_branch
                  %363 = sbr.rel target = $region95
                $region100: #{branch_1_fun.2} parent=92 // loop_exit
                  _
              $region93: #{branch_1_fun.2} parent=77 // pred_fallthru
                _
              // Predicated region
              $region101: #{branch_1_fun.2} parent=77 // pred_check
                _
              $region102: #{branch_1_fun.2} parent=77 // pred_check_branch
                %380 = sbr.rel target = $region104
              $region103: #{branch_1_fun.2} parent=77 // pred_region
                _
              $region104: #{branch_1_fun.2} parent=77 // pred_fallthru
                _
            $region78: #{branch_1_fun.2} parent=73 // pred_fallthru
              _
            // Predicated region
            $region79: #{branch_1_fun.2} parent=73 // pred_check
              _
            $region80: #{branch_1_fun.2} parent=73 // pred_check_branch
              %342 = sbr.rel target = $region82
            $region81: #{branch_1_fun.2} parent=73 // pred_region
              %s344 = ssub.s32 256, 1
              loop: start=0, step=1, limit=1
              $region83: #{branch_1_fun.2} parent=81 // loop_pre_header
                _
              $region84: #{branch_1_fun.2} parent=81 // loop_header
                %s346 = sphi 0, %s350
                %p347 = scmp.ge.s32.totalorder %s346, 1
                %s351 = sphi %s330, %s330
                %s352 = sphi %s336, %s336
              $region85: #{branch_1_fun.2} parent=81 // loop_header_branch
                %349 = sbr.rel (%p347) target = $region89
              $region86: #{branch_1_fun.2} parent=81 // loop_body
                %v353 = vld [vmem:[%s351] sm:%s344]
                %354 = vst [vmem:[%s352] sm:%s344] %v353
                %v355 = vld [vmem:[%s351 + $0x8] sm:%s344]
                %356 = vst [vmem:[%s352 + $0x8] sm:%s344] %v355
                %v357 = vld [vmem:[%s351 + $0x10] sm:%s344]
                %358 = vst [vmem:[%s352 + $0x40] sm:%s344] %v357
                %v359 = vld [vmem:[%s351 + $0x18] sm:%s344]
                %360 = vst [vmem:[%s352 + $0x48] sm:%s344] %v359
              $region87: #{branch_1_fun.2} parent=81 // loop_footer
                %s350 = sadd.s32 1, %s346
              $region88: #{branch_1_fun.2} parent=81 // loop_footer_branch
                %345 = sbr.rel target = $region84
              $region89: #{branch_1_fun.2} parent=81 // loop_exit
                _
            $region82: #{branch_1_fun.2} parent=73 // pred_fallthru
              _
          $region74: #{branch_1_fun.2} parent=69 // pred_fallthru
            _
          %381 = vnop
        $region70: #{branch_1_fun.2} parent=61 // pred_fallthru
          _
      $region62: #{branch_1_fun.2} parent=5 // pred_fallthru
        _
      %p382 = scmp.le.s32.totalorder 2, %s8
      // Predicated region
      $region105: #{branch_1_fun.2} parent=5 // pred_check
        %p383 = pneg %p382
      $region106: #{branch_1_fun.2} parent=5 // pred_check_branch
        %385 = sbr.rel (%p383) target = $region108
      $region107: #{branch_1_fun.2} parent=5 // pred_region
        %s386 = ssub.s32 %s8, 2
        // Predicated region
        $region109: #{branch_1_fun.2} parent=107 // pred_check
          %p387 = pneg %p84
        $region110: #{branch_1_fun.2} parent=107 // pred_check_branch
          %389 = sbr.rel (%p387) target = $region112
        $region111: #{branch_1_fun.2} parent=107 // pred_region
          %s390 = sand.u32 %s69, 1
          %s391 = sand.u32 %s69, 1
          %s392 = smul.addr %s391, 32
          %s393 = scalar_lea.vmem [#allocation3], %s392
        $region112: #{branch_1_fun.2} parent=107 // pred_fallthru
          _
      $region108: #{branch_1_fun.2} parent=5 // pred_fallthru
        _
    $region6: #{branch_1_fun.2} parent=1 // loop_footer
      %s12 = sadd.s32 1, %s8
    $region7: #{branch_1_fun.2} parent=1 // loop_footer_branch
      %7 = sbr.rel target = $region3
    $region8: #{branch_1_fun.2} parent=1 // loop_exit
      _

// kernel: branch_2_fun.2
$region0: #{branch_2_fun.2}
  #allocation0 [shape = 'u32[]', space=smem, size = 0x4, offset = 0x4, fixed_abs, tag = 'smem constant byte address 0x4 - core index']
  #allocation1 [shape = 'u32[72,128]{1,0:T(1,128)}', space=vmem, size = 0x9000, scoped, tag = 'internal scratch']
  %s0 = inlined_call_operand.vmem [shape: f32[2,4,18,18], index: 0, kind: input, shape index: {}]
  %s1 = inlined_call_operand.vmem [shape: f32[1,1,16,16], index: 1, kind: input, shape index: {}]
  %s2 = inlined_call_operand.vmem [shape: f32[2,4,16,16], index: 2, kind: output, shape index: {}]
  %s3 = sld [smem:[#allocation0]]
  $region113: #{branch_2_fun.2} parent=0
    _
  %s5 = ssub.s32 1, %s3
  %s6 = scalar_select 0, %s5, %s3
  $region1: #{branch_2_fun.2} parent=0
    #allocation2 [shape = 'u8[49152]{0}', space=vmem, size = 0xc000, scoped, tag = 'input window, operand 0']
    #allocation3 [shape = 'u8[32768]{0}', space=vmem, size = 0x8000, scoped, tag = 'output window, operand 0']
    loop: start=0, step=1, limit=6
    $region2: #{branch_2_fun.2} parent=1 // loop_pre_header
      _
    $region3: #{branch_2_fun.2} parent=1 // loop_header
      %s8 = sphi 0, %s12
      %p9 = scmp.ge.s32.totalorder %s8, 6
      %s18 = sphi 0, %s20
      %s21 = sphi 0, %s18
      %s22 = sphi 0, %s21
      %s38 = sphi 0, %s22
      %s42 = sphi 0, %s42
      %s44 = sphi 0, %s42
      %s45 = sphi 0, %s44
      %s59 = sphi 0, %s45
      %s65 = sphi 0, %s67
      %s68 = sphi 0, %s65
      %s69 = sphi 0, %s68
      %s85 = sphi 0, %s69
    $region4: #{branch_2_fun.2} parent=1 // loop_header_branch
      %11 = sbr.rel (%p9) target = $region8
    $region5: #{branch_2_fun.2} parent=1 // loop_body
      %s13 = ssub.s32 %s8, 1
      %s14 = ssub.s32 %s8, 2
      %s15 = sadd.s32 %s8, 1
      %s16 = ssub.s32 %s8, %s15
      %p17 = scmp.eq.s32.totalorder %s16, 0
      %s19 = sadd.s32 %s18, 1
      %s20 = scalar_select %p17, %s18, %s19
      %p23 = pneg %p17
      %p24 = scmp.eq.s32.totalorder %s8, 3
      %p25 = por %p23, %p24
      %p26 = scmp.ne.s32.totalorder %s18, %s21
      %p27 = scmp.eq.s32.totalorder %s8, 0
      %p28 = por %p26, %p27
      %p29 = scmp.ne.s32.totalorder %s18, %s21
      %p30 = scmp.eq.s32.totalorder %s13, 3
      %p31 = por %p29, %p30
      %p32 = scmp.ne.s32.totalorder %s21, %s22
      %p33 = scmp.eq.s32.totalorder %s13, 0
      %p34 = por %p32, %p33
      %p35 = scmp.ne.s32.totalorder %s21, %s22
      %p36 = scmp.eq.s32.totalorder %s14, 3
      %p37 = por %p35, %p36
      %p39 = scmp.ne.s32.totalorder %s22, %s38
      %p40 = scmp.eq.s32.totalorder %s14, 0
      %p41 = por %p39, %p40
      %s43 = sadd.s32 %s42, 1
      %p46 = scmp.eq.s32.totalorder %s8, 3
      %p47 = scmp.ne.s32.totalorder %s42, %s44
      %p48 = scmp.eq.s32.totalorder %s8, 0
      %p49 = por %p47, %p48
      %p50 = scmp.ne.s32.totalorder %s42, %s44
      %p51 = scmp.eq.s32.totalorder %s13, 3
      %p52 = por %p50, %p51
      %p53 = scmp.ne.s32.totalorder %s44, %s45
      %p54 = scmp.eq.s32.totalorder %s13, 0
      %p55 = por %p53, %p54
      %p56 = scmp.ne.s32.totalorder %s44, %s45
      %p57 = scmp.eq.s32.totalorder %s14, 3
      %p58 = por %p56, %p57
      %p60 = scmp.ne.s32.totalorder %s45, %s59
      %p61 = scmp.eq.s32.totalorder %s14, 0
      %p62 = por %p60, %p61
      %s63 = ssub.s32 %s8, %s15
      %p64 = scmp.eq.s32.totalorder %s63, 0
      %s66 = sadd.s32 %s65, 1
      %s67 = scalar_select %p64, %s65, %s66
      %p70 = pneg %p64
      %p71 = scmp.eq.s32.totalorder %s8, 3
      %p72 = por %p70, %p71
      %p73 = scmp.ne.s32.totalorder %s65, %s68
      %p74 = scmp.eq.s32.totalorder %s8, 0
      %p75 = por %p73, %p74
      %p76 = scmp.ne.s32.totalorder %s65, %s68
      %p77 = scmp.eq.s32.totalorder %s13, 3
      %p78 = por %p76, %p77
      %p79 = scmp.ne.s32.totalorder %s68, %s69
      %p80 = scmp.eq.s32.totalorder %s13, 0
      %p81 = por %p79, %p80
      %p82 = scmp.ne.s32.totalorder %s68, %s69
      %p83 = scmp.eq.s32.totalorder %s14, 3
      %p84 = por %p82, %p83
      %p86 = scmp.ne.s32.totalorder %s69, %s85
      %p87 = scmp.eq.s32.totalorder %s14, 0
      %p88 = por %p86, %p87
      %p89 = scmp.le.s32.totalorder 1, %s8
      %p90 = scmp.lt.s32.totalorder %s8, 5
      %p91 = pnand %p89, %p90
      %p92 = pneg %p91
      // Predicated region
      $region9: #{branch_2_fun.2} parent=5 // pred_check
        _
      $region10: #{branch_2_fun.2} parent=5 // pred_check_branch
        %94 = sbr.rel (%p91) target = $region12
      $region11: #{branch_2_fun.2} parent=5 // pred_region
        %s95 = ssub.s32 %s8, 1
        // Predicated region
        $region13: #{branch_2_fun.2} parent=11 // pred_check
          %p96 = pneg %p55
        $region14: #{branch_2_fun.2} parent=11 // pred_check_branch
          %98 = sbr.rel (%p96) target = $region16
        $region15: #{branch_2_fun.2} parent=11 // pred_region
          _
        $region16: #{branch_2_fun.2} parent=11 // pred_fallthru
          _
      $region12: #{branch_2_fun.2} parent=5 // pred_fallthru
        _
      %p99 = scmp.lt.s32.totalorder %s8, 4
      // Predicated region
      $region17: #{branch_2_fun.2} parent=5 // pred_check
        %p100 = pneg %p99
      $region18: #{branch_2_fun.2} parent=5 // pred_check_branch
        %102 = sbr.rel (%p100) target = $region20
      $region19: #{branch_2_fun.2} parent=5 // pred_region
        // Predicated region
        $region21: #{branch_2_fun.2} parent=19 // pred_check
          %p103 = pneg %p28
        $region22: #{branch_2_fun.2} parent=19 // pred_check_branch
          %105 = sbr.rel (%p103) target = $region24
        $region23: #{branch_2_fun.2} parent=19 // pred_region
          %s106 = sand.u32 %s18, 1
          %s107 = sand.u32 %s18, 1
          %s108 = smul.addr %s107, 48
          %s109 = scalar_lea.vmem [#allocation2], %s108
          %s110 = smul.addr %s8, 3
          %s111 = smul.addr %s110, 8
          %s112 = scalar_lea.vmem %s0, %s111
          // Predicated region
          $region25: #{branch_2_fun.2} parent=23 // pred_check
            _
          $region26: #{branch_2_fun.2} parent=23 // pred_check_branch
            %114 = sbr.rel (0) target = $region28
          $region27: #{branch_2_fun.2} parent=23 // pred_region
            // Predicated region
            $region29: #{branch_2_fun.2} parent=27 // pred_check
              _
            $region30: #{branch_2_fun.2} parent=27 // pred_check_branch
              %116 = sbr.rel (0) target = $region32
            $region31: #{branch_2_fun.2} parent=27 // pred_region
              // Predicated region
              $region44: #{branch_2_fun.2} parent=31 // pred_check
                _
              $region45: #{branch_2_fun.2} parent=31 // pred_check_branch
                %142 = sbr.rel (0) target = $region47
              $region46: #{branch_2_fun.2} parent=31 // pred_region
                loop: start=0, step=1, limit=1
                $region48: #{branch_2_fun.2} parent=46 // loop_pre_header
                  _
                $region49: #{branch_2_fun.2} parent=46 // loop_header
                  %s144 = sphi 0, %s148
                  %p145 = scmp.ge.s32.totalorder %s144, 1
                  %s149 = sphi %s112, %s112
                  %s150 = sphi %s109, %s109
                $region50: #{branch_2_fun.2} parent=46 // loop_header_branch
                  %147 = sbr.rel (%p145) target = $region54
                $region51: #{branch_2_fun.2} parent=46 // loop_body
                  %v151 = vld [vmem:[%s149] sm:$0xff]
                  %152 = vst [vmem:[%s150] sm:$0xff] %v151
                  %v153 = vld [vmem:[%s149 + $0x8] sm:$0xff]
                  %154 = vst [vmem:[%s150 + $0x8] sm:$0xff] %v153
                  %v155 = vld [vmem:[%s149 + $0x10] sm:$0xff]
                  %156 = vst [vmem:[%s150 + $0x10] sm:$0xff] %v155
                  %v157 = vld [vmem:[%s149 + $0x60] sm:$0xff]
                  %158 = vst [vmem:[%s150 + $0x18] sm:$0xff] %v157
                  %v159 = vld [vmem:[%s149 + $0x68] sm:$0xff]
                  %160 = vst [vmem:[%s150 + $0x20] sm:$0xff] %v159
                  %v161 = vld [vmem:[%s149 + $0x70] sm:$0xff]
                  %162 = vst [vmem:[%s150 + $0x28] sm:$0xff] %v161
                $region52: #{branch_2_fun.2} parent=46 // loop_footer
                  %s148 = sadd.s32 1, %s144
                $region53: #{branch_2_fun.2} parent=46 // loop_footer_branch
                  %143 = sbr.rel target = $region49
                $region54: #{branch_2_fun.2} parent=46 // loop_exit
                  _
              $region47: #{branch_2_fun.2} parent=31 // pred_fallthru
                _
              // Predicated region
              $region55: #{branch_2_fun.2} parent=31 // pred_check
                _
              $region56: #{branch_2_fun.2} parent=31 // pred_check_branch
                %164 = sbr.rel target = $region58
              $region57: #{branch_2_fun.2} parent=31 // pred_region
                _
              $region58: #{branch_2_fun.2} parent=31 // pred_fallthru
                _
            $region32: #{branch_2_fun.2} parent=27 // pred_fallthru
              _
            // Predicated region
            $region33: #{branch_2_fun.2} parent=27 // pred_check
              _
            $region34: #{branch_2_fun.2} parent=27 // pred_check_branch
              %118 = sbr.rel target = $region36
            $region35: #{branch_2_fun.2} parent=27 // pred_region
              %s120 = ssub.s32 256, 1
              loop: start=0, step=1, limit=1
              $region37: #{branch_2_fun.2} parent=35 // loop_pre_header
                _
              $region38: #{branch_2_fun.2} parent=35 // loop_header
                %s122 = sphi 0, %s126
                %p123 = scmp.ge.s32.totalorder %s122, 1
                %s127 = sphi %s112, %s112
                %s128 = sphi %s109, %s109
              $region39: #{branch_2_fun.2} parent=35 // loop_header_branch
                %125 = sbr.rel (%p123) target = $region43
              $region40: #{branch_2_fun.2} parent=35 // loop_body
                %v129 = vld [vmem:[%s127] sm:%s120]
                %130 = vst [vmem:[%s128] sm:%s120] %v129
                %v131 = vld [vmem:[%s127 + $0x8] sm:%s120]
                %132 = vst [vmem:[%s128 + $0x8] sm:%s120] %v131
                %v133 = vld [vmem:[%s127 + $0x10] sm:%s120]
                %134 = vst [vmem:[%s128 + $0x10] sm:%s120] %v133
                %v135 = vld [vmem:[%s127 + $0x60] sm:%s120]
                %136 = vst [vmem:[%s128 + $0x18] sm:%s120] %v135
                %v137 = vld [vmem:[%s127 + $0x68] sm:%s120]
                %138 = vst [vmem:[%s128 + $0x20] sm:%s120] %v137
                %v139 = vld [vmem:[%s127 + $0x70] sm:%s120]
                %140 = vst [vmem:[%s128 + $0x28] sm:%s120] %v139
              $region41: #{branch_2_fun.2} parent=35 // loop_footer
                %s126 = sadd.s32 1, %s122
              $region42: #{branch_2_fun.2} parent=35 // loop_footer_branch
                %121 = sbr.rel target = $region38
              $region43: #{branch_2_fun.2} parent=35 // loop_exit
                _
            $region36: #{branch_2_fun.2} parent=27 // pred_fallthru
              _
          $region28: #{branch_2_fun.2} parent=23 // pred_fallthru
            _
          %165 = vnop
        $region24: #{branch_2_fun.2} parent=19 // pred_fallthru
          _
      $region20: #{branch_2_fun.2} parent=5 // pred_fallthru
        _
      %p166 = scmp.le.s32.totalorder 1, %s8
      %p167 = scmp.lt.s32.totalorder %s8, 5
      %p168 = pnand %p166, %p167
      %p169 = pneg %p168
      // Predicated region
      $region59: #{branch_2_fun.2} parent=5 // pred_check
        _
      $region60: #{branch_2_fun.2} parent=5 // pred_check_branch
        %171 = sbr.rel (%p168) target = $region62
      $region61: #{branch_2_fun.2} parent=5 // pred_region
        %s172 = ssub.s32 %s8, 1
        %s173 = sand.u32 %s21, 1
        %s174 = sand.u32 %s21, 1
        %s175 = smul.addr %s174, 48
        %s176 = scalar_lea.vmem [#allocation2], %s175
        // Predicated region
        $region63: #{branch_2_fun.2} parent=61 // pred_check
          %p177 = pneg %p34
        $region64: #{branch_2_fun.2} parent=61 // pred_check_branch
          %179 = sbr.rel (%p177) target = $region66
        $region65: #{branch_2_fun.2} parent=61 // pred_region
          _
        $region66: #{branch_2_fun.2} parent=61 // pred_fallthru
          _
        %s180 = sand.u32 %s21, 1
        %s181 = sand.u32 %s21, 1
        %s182 = smul.addr %s181, 48
        %s183 = scalar_lea.vmem [#allocation2], %s182
        %p184 = pneg %p34
        %p185 = pneg %p31
        %p186 = pneg %p55
        %p187 = pneg %p52
        %p188 = pneg %p81
        %p189 = pneg %p78
        %s190 = sand.u32 %s68, 1
        %s191 = sand.u32 %s68, 1
        %s192 = smul.addr %s191, 32
        %s193 = scalar_lea.vmem [#allocation3], %s192
        %v194 = vld [vmem:[%s176] sm:$0xff]
        %v195 = vld [vmem:[%s176 + $0x8] sm:$0xff]
        %v196 = vld [vmem:[%s176 + $0x18] sm:$0xff]
        %v197 = vld [vmem:[%s176 + $0x20] sm:$0xff]
        %202 = vrot.lane.b32.xlu0 %v194, 127
        %v203 = vpop.permute.xlu0 %202
        %204 = vrot.lane.b32.xlu0 %v195, 127
        %v205 = vpop.permute.xlu0 %204
        %206 = vrot.lane.b32.xlu0 %v196, 127
        %v207 = vpop.permute.xlu0 %206
        %208 = vrot.lane.b32.xlu0 %v197, 127
        %v209 = vpop.permute.xlu0 %208
        %v214 = vadd.f32 %v194, %v203
        %v215 = vadd.f32 %v195, %v205
        %v216 = vadd.f32 %v196, %v207
        %v217 = vadd.f32 %v197, %v209
        %218 = vrot.lane.b32.xlu0 %v194, 126
        %v219 = vpop.permute.xlu0 %218
        %220 = vrot.lane.b32.xlu0 %v195, 126
        %v221 = vpop.permute.xlu0 %220
        %222 = vrot.lane.b32.xlu0 %v196, 126
        %v223 = vpop.permute.xlu0 %222
        %224 = vrot.lane.b32.xlu0 %v197, 126
        %v225 = vpop.permute.xlu0 %224
        %v230 = vadd.f32 %v214, %v219
        %v231 = vadd.f32 %v215, %v221
        %v232 = vadd.f32 %v216, %v223
        %v233 = vadd.f32 %v217, %v225
        %v234 = vld [vmem:[%s176 + $0x1] sm:$0xff]
        %v235 = vld [vmem:[%s176 + $0x9] sm:$0xff]
        %v236 = vld [vmem:[%s176 + $0x19] sm:$0xff]
        %v237 = vld [vmem:[%s176 + $0x21] sm:$0xff]
        %v238 = vadd.f32 %v230, %v234
        %v239 = vadd.f32 %v231, %v235
        %v240 = vadd.f32 %v232, %v236
        %v241 = vadd.f32 %v233, %v237
        %246 = vrot.lane.b32.xlu0 %v234, 127
        %v247 = vpop.permute.xlu0 %246
        %248 = vrot.lane.b32.xlu0 %v235, 127
        %v249 = vpop.permute.xlu0 %248
        %250 = vrot.lane.b32.xlu0 %v236, 127
        %v251 = vpop.permute.xlu0 %250
        %252 = vrot.lane.b32.xlu0 %v237, 127
        %v253 = vpop.permute.xlu0 %252
        %v258 = vadd.f32 %v238, %v247
        %v259 = vadd.f32 %v239, %v249
        %v260 = vadd.f32 %v240, %v251
        %v261 = vadd.f32 %v241, %v253
        %262 = vrot.lane.b32.xlu0 %v234, 126
        %v263 = vpop.permute.xlu0 %262
        %264 = vrot.lane.b32.xlu0 %v235, 126
        %v265 = vpop.permute.xlu0 %264
        %266 = vrot.lane.b32.xlu0 %v236, 126
        %v267 = vpop.permute.xlu0 %266
        %268 = vrot.lane.b32.xlu0 %v237, 126
        %v269 = vpop.permute.xlu0 %268
        %v274 = vadd.f32 %v258, %v263
        %v275 = vadd.f32 %v259, %v265
        %v276 = vadd.f32 %v260, %v267
        %v277 = vadd.f32 %v261, %v269
        %v278 = vld [vmem:[%s176 + $0x2] sm:$0xff]
        %v279 = vld [vmem:[%s176 + $0xa] sm:$0xff]
        %v280 = vld [vmem:[%s176 + $0x1a] sm:$0xff]
        %v281 = vld [vmem:[%s176 + $0x22] sm:$0xff]
        %v282 = vadd.f32 %v274, %v278
        %v283 = vadd.f32 %v275, %v279
        %v284 = vadd.f32 %v276, %v280
        %v285 = vadd.f32 %v277, %v281
        %290 = vrot.lane.b32.xlu0 %v278, 127
        %v291 = vpop.permute.xlu0 %290
        %292 = vrot.lane.b32.xlu0 %v279, 127
        %v293 = vpop.permute.xlu0 %292
        %294 = vrot.lane.b32.xlu0 %v280, 127
        %v295 = vpop.permute.xlu0 %294
        %296 = vrot.lane.b32.xlu0 %v281, 127
        %v297 = vpop.permute.xlu0 %296
        %v302 = vadd.f32 %v282, %v291
        %v303 = vadd.f32 %v283, %v293
        %v304 = vadd.f32 %v284, %v295
        %v305 = vadd.f32 %v285, %v297
        %306 = vrot.lane.b32.xlu0 %v278, 126
        %v307 = vpop.permute.xlu0 %306
        %308 = vrot.lane.b32.xlu0 %v279, 126
        %v309 = vpop.permute.xlu0 %308
        %310 = vrot.lane.b32.xlu0 %v280, 126
        %v311 = vpop.permute.xlu0 %310
        %312 = vrot.lane.b32.xlu0 %v281, 126
        %v313 = vpop.permute.xlu0 %312
        %v318 = vadd.f32 %v302, %v307
        %v319 = vadd.f32 %v303, %v309
        %v320 = vadd.f32 %v304, %v311
        %v321 = vadd.f32 %v305, %v313
        %v322 = vld [vmem:[%s1] sm:$0xff]
        %v323 = vld [vmem:[%s1 + $0x8] sm:$0xff]
        %v324 = vmul.f32 %v318, %v322
        %v325 = vmul.f32 %v319, %v323
        %v326 = vmul.f32 %v320, %v322
        %v327 = vmul.f32 %v321, %v323
        %vm328 = vcmask 130048
        %329 = vst.msk [vmem:[%s193] sm:$0xff] %vm328, %v324
        %330 = vst.msk [vmem:[%s193 + $0x8] sm:$0xff] %vm328, %v325
        %331 = vst.msk [vmem:[%s193 + $0x10] sm:$0xff] %vm328, %v326
        %332 = vst.msk [vmem:[%s193 + $0x18] sm:$0xff] %vm328, %v327
        %s333 = sand.u32 %s68, 1
        %s334 = sand.u32 %s68, 1
        %s335 = smul.addr %s334, 32
        %s336 = scalar_lea.vmem [#allocation3], %s335
        // Predicated region
        $region67: #{branch_2_fun.2} parent=61 // pred_check
          %p337 = pneg %p78
        $region68: #{branch_2_fun.2} parent=61 // pred_check_branch
          %339 = sbr.rel (%p337) target = $region70
        $region69: #{branch_2_fun.2} parent=61 // pred_region
          %s340 = smul.addr %s13, 2
          %s341 = smul.addr %s340, 8
          %s342 = scalar_lea.vmem %s2, %s341
          // Predicated region
          $region71: #{branch_2_fun.2} parent=69 // pred_check
            _
          $region72: #{branch_2_fun.2} parent=69 // pred_check_branch
            %344 = sbr.rel (0) target = $region74
          $region73: #{branch_2_fun.2} parent=69 // pred_region
            // Predicated region
            $region75: #{branch_2_fun.2} parent=73 // pred_check
              _
            $region76: #{branch_2_fun.2} parent=73 // pred_check_branch
              %346 = sbr.rel (0) target = $region78
            $region77: #{branch_2_fun.2} parent=73 // pred_region
              // Predicated region
              $region90: #{branch_2_fun.2} parent=77 // pred_check
                _
              $region91: #{branch_2_fun.2} parent=77 // pred_check_branch
                %368 = sbr.rel (0) target = $region93
              $region92: #{branch_2_fun.2} parent=77 // pred_region
                loop: start=0, step=1, limit=1
                $region94: #{branch_2_fun.2} parent=92 // loop_pre_header
                  _
                $region95: #{branch_2_fun.2} parent=92 // loop_header
                  %s370 = sphi 0, %s374
                  %p371 = scmp.ge.s32.totalorder %s370, 1
                  %s375 = sphi %s336, %s336
                  %s376 = sphi %s342, %s342
                $region96: #{branch_2_fun.2} parent=92 // loop_header_branch
                  %373 = sbr.rel (%p371) target = $region100
                $region97: #{branch_2_fun.2} parent=92 // loop_body
                  %v377 = vld [vmem:[%s375] sm:$0xff]
                  %378 = vst [vmem:[%s376] sm:$0xff] %v377
                  %v379 = vld [vmem:[%s375 + $0x8] sm:$0xff]
                  %380 = vst [vmem:[%s376 + $0x8] sm:$0xff] %v379
                  %v381 = vld [vmem:[%s375 + $0x10] sm:$0xff]
                  %382 = vst [vmem:[%s376 + $0x40] sm:$0xff] %v381
                  %v383 = vld [vmem:[%s375 + $0x18] sm:$0xff]
                  %384 = vst [vmem:[%s376 + $0x48] sm:$0xff] %v383
                $region98: #{branch_2_fun.2} parent=92 // loop_footer
                  %s374 = sadd.s32 1, %s370
                $region99: #{branch_2_fun.2} parent=92 // loop_footer_branch
                  %369 = sbr.rel target = $region95
                $region100: #{branch_2_fun.2} parent=92 // loop_exit
                  _
              $region93: #{branch_2_fun.2} parent=77 // pred_fallthru
                _
              // Predicated region
              $region101: #{branch_2_fun.2} parent=77 // pred_check
                _
              $region102: #{branch_2_fun.2} parent=77 // pred_check_branch
                %386 = sbr.rel target = $region104
              $region103: #{branch_2_fun.2} parent=77 // pred_region
                _
              $region104: #{branch_2_fun.2} parent=77 // pred_fallthru
                _
            $region78: #{branch_2_fun.2} parent=73 // pred_fallthru
              _
            // Predicated region
            $region79: #{branch_2_fun.2} parent=73 // pred_check
              _
            $region80: #{branch_2_fun.2} parent=73 // pred_check_branch
              %348 = sbr.rel target = $region82
            $region81: #{branch_2_fun.2} parent=73 // pred_region
              %s350 = ssub.s32 256, 1
              loop: start=0, step=1, limit=1
              $region83: #{branch_2_fun.2} parent=81 // loop_pre_header
                _
              $region84: #{branch_2_fun.2} parent=81 // loop_header
                %s352 = sphi 0, %s356
                %p353 = scmp.ge.s32.totalorder %s352, 1
                %s357 = sphi %s336, %s336
                %s358 = sphi %s342, %s342
              $region85: #{branch_2_fun.2} parent=81 // loop_header_branch
                %355 = sbr.rel (%p353) target = $region89
              $region86: #{branch_2_fun.2} parent=81 // loop_body
                %v359 = vld [vmem:[%s357] sm:%s350]
                %360 = vst [vmem:[%s358] sm:%s350] %v359
                %v361 = vld [vmem:[%s357 + $0x8] sm:%s350]
                %362 = vst [vmem:[%s358 + $0x8] sm:%s350] %v361
                %v363 = vld [vmem:[%s357 + $0x10] sm:%s350]
                %364 = vst [vmem:[%s358 + $0x40] sm:%s350] %v363
                %v365 = vld [vmem:[%s357 + $0x18] sm:%s350]
                %366 = vst [vmem:[%s358 + $0x48] sm:%s350] %v365
              $region87: #{branch_2_fun.2} parent=81 // loop_footer
                %s356 = sadd.s32 1, %s352
              $region88: #{branch_2_fun.2} parent=81 // loop_footer_branch
                %351 = sbr.rel target = $region84
              $region89: #{branch_2_fun.2} parent=81 // loop_exit
                _
            $region82: #{branch_2_fun.2} parent=73 // pred_fallthru
              _
          $region74: #{branch_2_fun.2} parent=69 // pred_fallthru
            _
          %387 = vnop
        $region70: #{branch_2_fun.2} parent=61 // pred_fallthru
          _
      $region62: #{branch_2_fun.2} parent=5 // pred_fallthru
        _
      %p388 = scmp.le.s32.totalorder 2, %s8
      // Predicated region
      $region105: #{branch_2_fun.2} parent=5 // pred_check
        %p389 = pneg %p388
      $region106: #{branch_2_fun.2} parent=5 // pred_check_branch
        %391 = sbr.rel (%p389) target = $region108
      $region107: #{branch_2_fun.2} parent=5 // pred_region
        %s392 = ssub.s32 %s8, 2
        // Predicated region
        $region109: #{branch_2_fun.2} parent=107 // pred_check
          %p393 = pneg %p84
        $region110: #{branch_2_fun.2} parent=107 // pred_check_branch
          %395 = sbr.rel (%p393) target = $region112
        $region111: #{branch_2_fun.2} parent=107 // pred_region
          %s396 = sand.u32 %s69, 1
          %s397 = sand.u32 %s69, 1
          %s398 = smul.addr %s397, 32
          %s399 = scalar_lea.vmem [#allocation3], %s398
        $region112: #{branch_2_fun.2} parent=107 // pred_fallthru
          _
      $region108: #{branch_2_fun.2} parent=5 // pred_fallthru
        _
    $region6: #{branch_2_fun.2} parent=1 // loop_footer
      %s12 = sadd.s32 1, %s8
    $region7: #{branch_2_fun.2} parent=1 // loop_footer_branch
      %7 = sbr.rel target = $region3
    $region8: #{branch_2_fun.2} parent=1 // loop_exit
      _

// kernel: branch_1_fun.3
$region0: #{branch_1_fun.3}
  #allocation0 [shape = 'u32[]', space=smem, size = 0x4, offset = 0x4, fixed_abs, tag = 'smem constant byte address 0x4 - core index']
  #allocation1 [shape = 'u32[72,128]{1,0:T(1,128)}', space=vmem, size = 0x9000, scoped, tag = 'internal scratch']
  #allocation2 [shape = 'f32[128,256]{1,0:T(8,128)}', space=vmem, size = 0x20000, scoped, tag = 'scratch operand']
  #allocation3 [shape = 's32[1]{0:T(128)S(6)}', space=smem, size = 0x200, scoped, tag = 'scoped memory for branch_1_fun.3']
  %s0 = inlined_call_operand.vmem [shape: f32[2,4,256], index: 0, kind: input, shape index: {}]
  %s1 = inlined_call_operand.vmem [shape: f32[8,128], index: 1, kind: input, shape index: {}]
  %s2 = inlined_call_operand.vmem [shape: f32[4,1], index: 2, kind: input, shape index: {}]
  %s3 = inlined_call_operand.vmem [shape: f32[4,1], index: 3, kind: input, shape index: {}]
  %s4 = inlined_call_operand.vmem [shape: f32[8], index: 4, kind: input, shape index: {}]
  %s5 = inlined_call_operand.<no memory space> [shape: s32[1], index: 5, kind: input, shape index: {}]
  %s6 = inlined_call_operand.vmem [shape: f32[2,4,256], index: 6, kind: output, shape index: {}]
  %s7 = sld [smem:[#allocation0]]
  $region38: #{branch_1_fun.3} parent=0
    _
  %s9 = ssub.s32 1, %s7
  %s10 = scalar_select 0, %s9, %s7
  %11 = sst [smem:[#allocation3]] %s5
  $region1: #{branch_1_fun.3} parent=0
    #allocation4 [shape = 'u8[512]{0}', space=smem, size = 0x200, scoped, tag = 'input window, operand 4, single buffered']
    #allocation5 [shape = 's32[1]{0}', space=sflag, size = 0x4, scoped, tag = 'scoped memory for branch_1_fun.3']
    %12 = vsyncpa [#allocation5], 0
    // Predicated region
    $region2: #{branch_1_fun.3} parent=1 // pred_check
      _
    $region3: #{branch_1_fun.3} parent=1 // pred_check_branch
      %14 = sbr.rel (0) target = $region5
    $region4: #{branch_1_fun.3} parent=1 // pred_region
      _
    $region5: #{branch_1_fun.3} parent=1 // pred_fallthru
      _
    // Predicated region
    $region6: #{branch_1_fun.3} parent=1 // pred_check
      _
    $region7: #{branch_1_fun.3} parent=1 // pred_check_branch
      %16 = sbr.rel (0) target = $region9
    $region8: #{branch_1_fun.3} parent=1 // pred_region
      _
    $region9: #{branch_1_fun.3} parent=1 // pred_fallthru
      _
    // Predicated region
    $region10: #{branch_1_fun.3} parent=1 // pred_check
      _
    $region11: #{branch_1_fun.3} parent=1 // pred_check_branch
      %18 = sbr.rel (0) target = $region13
    $region12: #{branch_1_fun.3} parent=1 // pred_region
      _
    $region13: #{branch_1_fun.3} parent=1 // pred_fallthru
      _
    // Predicated region
    $region14: #{branch_1_fun.3} parent=1 // pred_check
      _
    $region15: #{branch_1_fun.3} parent=1 // pred_check_branch
      %20 = sbr.rel (0) target = $region17
    $region16: #{branch_1_fun.3} parent=1 // pred_region
      _
    $region17: #{branch_1_fun.3} parent=1 // pred_fallthru
      _
    // Predicated region
    $region18: #{branch_1_fun.3} parent=1 // pred_check
      _
    $region19: #{branch_1_fun.3} parent=1 // pred_check_branch
      %22 = sbr.rel (0) target = $region21
    $region20: #{branch_1_fun.3} parent=1 // pred_region
      %24 = vsyncadd [#allocation5], 0
      %s26 = sshll.u32 %s4, 4
      %s27 = int_to_ptr.vmem [resolvable:$true] %s26
      %29 = dma.vmem_to_smem %s27, 16, [#allocation4], [#allocation5]
    $region21: #{branch_1_fun.3} parent=1 // pred_fallthru
      _
    // Predicated region
    $region22: #{branch_1_fun.3} parent=1 // pred_check
      _
    $region23: #{branch_1_fun.3} parent=1 // pred_check_branch
      %31 = sbr.rel (0) target = $region25
    $region24: #{branch_1_fun.3} parent=1 // pred_region
      _
    $region25: #{branch_1_fun.3} parent=1 // pred_fallthru
      _
    // Predicated region
    $region26: #{branch_1_fun.3} parent=1 // pred_check
      _
    $region27: #{branch_1_fun.3} parent=1 // pred_check_branch
      %33 = sbr.rel (0) target = $region29
    $region28: #{branch_1_fun.3} parent=1 // pred_region
      %35 = dma.done [#allocation5], 16
    $region29: #{branch_1_fun.3} parent=1 // pred_fallthru
      _
    %36 = sfence
    %v37 = vld [vmem:[%s0] sm:$0xff]
    %39 = vst [vmem:[#allocation1] ss:$2 sm:$0xff] %v37
    %v40 = vld.sshfl [vmem:[#allocation1] sm:$0xff pattern:$0x75316420]
    %v41 = vld.sshfl [vmem:[#allocation1 + $0x8] sm:$0xff pattern:$0x75316420]
    %vm44 = vcmask 1043456
    %v45 = vsel %vm44, %v40, 0.0
    %v46 = vsel %vm44, %v41, 0.0
    %v47 = vadd.f32 %v45, %v46
    %48 = vadd.xlane.f32.xlu0 %v47
    %v49 = vpop.xlane.xlu0 %48
    %v50 = vadd.f32 %v49, 0.0
    %v51 = vmul.f32 %v37, %v37
    %53 = vst [vmem:[#allocation1] ss:$2 sm:$0xff] %v51
    %v54 = vld.sshfl [vmem:[#allocation1] sm:$0xff pattern:$0x75316420]
    %v55 = vld.sshfl [vmem:[#allocation1 + $0x8] sm:$0xff pattern:$0x75316420]
    %v58 = vsel %vm44, %v54, 0.0
    %v59 = vsel %vm44, %v55, 0.0
    %v60 = vadd.f32 %v58, %v59
    %61 = vadd.xlane.f32.xlu0 %v60
    %v62 = vpop.xlane.xlu0 %61
    %v63 = vadd.f32 %v62, 0.0
    %64 = vst [vmem:[%s6] sm:$0xff] %v37
    %s65 = scalar_lea.vmem %s0, 8
    %v66 = vld [vmem:[%s65] sm:$0xff]
    %68 = vst [vmem:[#allocation1] ss:$2 sm:$0xff] %v66
    %v69 = vld.sshfl [vmem:[#allocation1] sm:$0xff pattern:$0x75316420]
    %v70 = vld.sshfl [vmem:[#allocation1 + $0x8] sm:$0xff pattern:$0x75316420]
    %v73 = vsel %vm44, %v69, 0.0
    %v74 = vsel %vm44, %v70, 0.0
    %v75 = vadd.f32 %v73, %v74
    %76 = vadd.xlane.f32.xlu0 %v75
    %v77 = vpop.xlane.xlu0 %76
    %v78 = vadd.f32 %v50, %v77
    %v79 = vmul.f32 %v66, %v66
    %81 = vst [vmem:[#allocation1] ss:$2 sm:$0xff] %v79
    %v82 = vld.sshfl [vmem:[#allocation1] sm:$0xff pattern:$0x75316420]
    %v83 = vld.sshfl [vmem:[#allocation1 + $0x8] sm:$0xff pattern:$0x75316420]
    %v86 = vsel %vm44, %v82, 0.0
    %v87 = vsel %vm44, %v83, 0.0
    %v88 = vadd.f32 %v86, %v87
    %89 = vadd.xlane.f32.xlu0 %v88
    %v90 = vpop.xlane.xlu0 %89
    %v91 = vadd.f32 %v63, %v90
    %s92 = scalar_lea.vmem %s6, 8
    %93 = vst [vmem:[%s92] sm:$0xff] %v66
    %v94 = vmul.f32 %v78, 0.001953125
    %v95 = vmul.f32 %v91, 0.001953125
    %v96 = vmul.f32 %v94, %v94
    %v97 = vsub.f32 %v95, %v96
    %v98 = vmax.f32 %v97, 0.0
    %v99 = vadd.f32 %v98, 1e-05
    %v100 = vrsqrt.pop %v99
    %v101 = vmul.f32 %v100, %v99
    %v102 = vmul.f32 %v101, %v100
    %v103 = vmul.f32 0.5, %v102
    %v104 = vsub.f32 1.5, %v103
    %v105 = vmul.f32 %v100, %v104
    %vm106 = vweird.f32 %v99
    %vm107 = vweird.f32 %v100
    %vm108 = vmor %vm106, %vm107
    %v109 = vsel %vm108, %v100, %v105
    %v110 = vld [vmem:[%s2] sm:$0xf]
    %v111 = vmul.f32 %v110, %v109
    %v112 = vld [vmem:[%s3] sm:$0xf]
    %v113 = vmul.f32 %v94, %v111
    %v114 = vsub.f32 %v112, %v113
    %s115 = sld [smem:[#allocation3]]
    %s116 = sld [smem:[#allocation4]]
    %s117 = sld [smem:[#allocation4 + $0x1]]
    %s118 = sadd.f32 %s116, %s117
    %s119 = sld [smem:[#allocation4 + $0x2]]
    %s120 = sadd.f32 %s118, %s119
    %s121 = sld [smem:[#allocation4 + $0x3]]
    %s122 = sadd.f32 %s120, %s121
    %s123 = sld [smem:[#allocation4 + $0x4]]
    %s124 = sadd.f32 %s122, %s123
    %s125 = sld [smem:[#allocation4 + $0x5]]
    %s126 = sadd.f32 %s124, %s125
    %s127 = sld [smem:[#allocation4 + $0x6]]
    %s128 = sadd.f32 %s126, %s127
    %s129 = sld [smem:[#allocation4 + $0x7]]
    %s130 = sadd.f32 %s128, %s129
    %s131 = sld [smem:[#allocation4 + %s115]]
    %v132 = vstv %s131
    %v133 = vmul.f32 %v111, %v132
    %v134 = vmul.f32 %v114, %v132
    %s135 = ssub.f32 %s130, %s131
    %v136 = vstv %s135
    %v137 = vadd.f32 %v134, %v136
    %v138 = vld [vmem:[%s6] sm:$0xff]
    %140 = vset.pattern.permute.xlu0 0
    %141 = vperm.xlu0 %140, %v133
    %v142 = vpop.permute.xlu0 %141
    %v144 = vunpack.c.l.s4 839922192
    %v145 = vunpack.c.0.s8 %v144
    %v146 = vperm.slane %v142, %v145
    %v148 = vmul.f32 %v138, %v146
    %150 = vset.pattern.permute.xlu0 0
    %151 = vperm.xlu0 %150, %v137
    %v152 = vpop.permute.xlu0 %151
    %v154 = vunpack.c.l.s4 839922192
    %v155 = vunpack.c.0.s8 %v154
    %v156 = vperm.slane %v152, %v155
    %v158 = vadd.f32 %v148, %v156
    %159 = vst [vmem:[%s6] sm:$0xff] %v158
    %v160 = vld [vmem:[%s92] sm:$0xff]
    %v161 = vmul.f32 %v160, %v146
    %v162 = vadd.f32 %v161, %v156
    %163 = vst [vmem:[%s92] sm:$0xff] %v162
    // Predicated region
    $region30: #{branch_1_fun.3} parent=1 // pred_check
      _
    $region31: #{branch_1_fun.3} parent=1 // pred_check_branch
      %165 = sbr.rel (0) target = $region33
    $region32: #{branch_1_fun.3} parent=1 // pred_region
      _
    $region33: #{branch_1_fun.3} parent=1 // pred_fallthru
      _
    // Predicated region
    $region34: #{branch_1_fun.3} parent=1 // pred_check
      _
    $region35: #{branch_1_fun.3} parent=1 // pred_check_branch
      %167 = sbr.rel (0) target = $region37
    $region36: #{branch_1_fun.3} parent=1 // pred_region
      _
    $region37: #{branch_1_fun.3} parent=1 // pred_fallthru
      _
    %168 = vsyncpa [#allocation5], 1

// kernel: branch_4_fun.5
$region0: #{branch_4_fun.5}
  #allocation0 [shape = 'u32[]', space=smem, size = 0x4, offset = 0x4, fixed_abs, tag = 'smem constant byte address 0x4 - core index']
  #allocation1 [shape = 'u32[72,128]{1,0:T(1,128)}', space=vmem, size = 0x9000, scoped, tag = 'internal scratch']
  #allocation2 [shape = 'f32[128,256]{1,0:T(8,128)}', space=vmem, size = 0x20000, scoped, tag = 'scratch operand']
  #allocation3 [shape = 's32[1]{0:T(128)S(6)}', space=smem, size = 0x200, scoped, tag = 'scoped memory for branch_4_fun.5']
  %s0 = inlined_call_operand.vmem [shape: f32[2,4,256], index: 0, kind: input, shape index: {}]
  %s1 = inlined_call_operand.vmem [shape: f32[8,128], index: 1, kind: input, shape index: {}]
  %s2 = inlined_call_operand.vmem [shape: f32[4,1], index: 2, kind: input, shape index: {}]
  %s3 = inlined_call_operand.vmem [shape: f32[4,1], index: 3, kind: input, shape index: {}]
  %s4 = inlined_call_operand.vmem [shape: f32[8], index: 4, kind: input, shape index: {}]
  %s5 = inlined_call_operand.<no memory space> [shape: s32[1], index: 5, kind: input, shape index: {}]
  %s6 = inlined_call_operand.vmem [shape: f32[2,4,256], index: 6, kind: output, shape index: {}]
  %s7 = sld [smem:[#allocation0]]
  $region38: #{branch_4_fun.5} parent=0
    _
  %s9 = ssub.s32 1, %s7
  %s10 = scalar_select 0, %s9, %s7
  %11 = sst [smem:[#allocation3]] %s5
  $region1: #{branch_4_fun.5} parent=0
    #allocation4 [shape = 'u8[512]{0}', space=smem, size = 0x200, scoped, tag = 'input window, operand 4, single buffered']
    #allocation5 [shape = 's32[1]{0}', space=sflag, size = 0x4, scoped, tag = 'scoped memory for branch_4_fun.5']
    %12 = vsyncpa [#allocation5], 0
    // Predicated region
    $region2: #{branch_4_fun.5} parent=1 // pred_check
      _
    $region3: #{branch_4_fun.5} parent=1 // pred_check_branch
      %14 = sbr.rel (0) target = $region5
    $region4: #{branch_4_fun.5} parent=1 // pred_region
      _
    $region5: #{branch_4_fun.5} parent=1 // pred_fallthru
      _
    // Predicated region
    $region6: #{branch_4_fun.5} parent=1 // pred_check
      _
    $region7: #{branch_4_fun.5} parent=1 // pred_check_branch
      %16 = sbr.rel (0) target = $region9
    $region8: #{branch_4_fun.5} parent=1 // pred_region
      _
    $region9: #{branch_4_fun.5} parent=1 // pred_fallthru
      _
    // Predicated region
    $region10: #{branch_4_fun.5} parent=1 // pred_check
      _
    $region11: #{branch_4_fun.5} parent=1 // pred_check_branch
      %18 = sbr.rel (0) target = $region13
    $region12: #{branch_4_fun.5} parent=1 // pred_region
      _
    $region13: #{branch_4_fun.5} parent=1 // pred_fallthru
      _
    // Predicated region
    $region14: #{branch_4_fun.5} parent=1 // pred_check
      _
    $region15: #{branch_4_fun.5} parent=1 // pred_check_branch
      %20 = sbr.rel (0) target = $region17
    $region16: #{branch_4_fun.5} parent=1 // pred_region
      _
    $region17: #{branch_4_fun.5} parent=1 // pred_fallthru
      _
    // Predicated region
    $region18: #{branch_4_fun.5} parent=1 // pred_check
      _
    $region19: #{branch_4_fun.5} parent=1 // pred_check_branch
      %22 = sbr.rel (0) target = $region21
    $region20: #{branch_4_fun.5} parent=1 // pred_region
      %24 = vsyncadd [#allocation5], 0
      %s26 = sshll.u32 %s4, 4
      %s27 = int_to_ptr.vmem [resolvable:$true] %s26
      %29 = dma.vmem_to_smem %s27, 16, [#allocation4], [#allocation5]
    $region21: #{branch_4_fun.5} parent=1 // pred_fallthru
      _
    // Predicated region
    $region22: #{branch_4_fun.5} parent=1 // pred_check
      _
    $region23: #{branch_4_fun.5} parent=1 // pred_check_branch
      %31 = sbr.rel (0) target = $region25
    $region24: #{branch_4_fun.5} parent=1 // pred_region
      _
    $region25: #{branch_4_fun.5} parent=1 // pred_fallthru
      _
    // Predicated region
    $region26: #{branch_4_fun.5} parent=1 // pred_check
      _
    $region27: #{branch_4_fun.5} parent=1 // pred_check_branch
      %33 = sbr.rel (0) target = $region29
    $region28: #{branch_4_fun.5} parent=1 // pred_region
      %35 = dma.done [#allocation5], 16
    $region29: #{branch_4_fun.5} parent=1 // pred_fallthru
      _
    %36 = sfence
    %37 = vst [vmem:[#allocation2] sm:$0xff] 0.0
    %38 = vst [vmem:[#allocation2 + $0x8] sm:$0xff] 0.0
    %39 = vst [vmem:[#allocation2 + $0x10] sm:$0xff] 0.0
    %40 = vst [vmem:[#allocation2 + $0x18] sm:$0xff] 0.0
    %41 = vst [vmem:[#allocation2 + $0x20] sm:$0xff] 0.0
    %42 = vst [vmem:[#allocation2 + $0x28] sm:$0xff] 0.0
    %43 = vst [vmem:[#allocation2 + $0x30] sm:$0xff] 0.0
    %44 = vst [vmem:[#allocation2 + $0x38] sm:$0xff] 0.0
    %45 = vst [vmem:[#allocation2 + $0x40] sm:$0xff] 0.0
    %46 = vst [vmem:[#allocation2 + $0x48] sm:$0xff] 0.0
    %47 = vst [vmem:[#allocation2 + $0x50] sm:$0xff] 0.0
    %48 = vst [vmem:[#allocation2 + $0x58] sm:$0xff] 0.0
    %49 = vst [vmem:[#allocation2 + $0x60] sm:$0xff] 0.0
    %50 = vst [vmem:[#allocation2 + $0x68] sm:$0xff] 0.0
    %51 = vst [vmem:[#allocation2 + $0x70] sm:$0xff] 0.0
    %52 = vst [vmem:[#allocation2 + $0x78] sm:$0xff] 0.0
    %53 = vst [vmem:[#allocation2 + $0x80] sm:$0xff] 0.0
    %54 = vst [vmem:[#allocation2 + $0x88] sm:$0xff] 0.0
    %55 = vst [vmem:[#allocation2 + $0x90] sm:$0xff] 0.0
    %56 = vst [vmem:[#allocation2 + $0x98] sm:$0xff] 0.0
    %57 = vst [vmem:[#allocation2 + $0xa0] sm:$0xff] 0.0
    %58 = vst [vmem:[#allocation2 + $0xa8] sm:$0xff] 0.0
    %59 = vst [vmem:[#allocation2 + $0xb0] sm:$0xff] 0.0
    %60 = vst [vmem:[#allocation2 + $0xb8] sm:$0xff] 0.0
    %61 = vst [vmem:[#allocation2 + $0xc0] sm:$0xff] 0.0
    %62 = vst [vmem:[#allocation2 + $0xc8] sm:$0xff] 0.0
    %63 = vst [vmem:[#allocation2 + $0xd0] sm:$0xff] 0.0
    %64 = vst [vmem:[#allocation2 + $0xd8] sm:$0xff] 0.0
    %65 = vst [vmem:[#allocation2 + $0xe0] sm:$0xff] 0.0
    %66 = vst [vmem:[#allocation2 + $0xe8] sm:$0xff] 0.0
    %67 = vst [vmem:[#allocation2 + $0xf0] sm:$0xff] 0.0
    %68 = vst [vmem:[#allocation2 + $0xf8] sm:$0xff] 0.0
    %v69 = vld [vmem:[%s0] sm:$0xff]
    %71 = vst [vmem:[#allocation1] ss:$2 sm:$0xff] %v69
    %v72 = vld.sshfl [vmem:[#allocation1] sm:$0xff pattern:$0x75316420]
    %v73 = vld.sshfl [vmem:[#allocation1 + $0x8] sm:$0xff pattern:$0x75316420]
    %76 = vst [vmem:[#allocation2] sm:$0xf] %v72
    %77 = vst [vmem:[#allocation2 + $0x8] sm:$0xf] %v73
    %v78 = vld [vmem:[%s1] sm:$0xff]
    %v79 = vld [vmem:[#allocation2] sm:$0xff]
    %v80 = vld [vmem:[#allocation2 + $0x8] sm:$0xff]
    %v81 = vld [vmem:[#allocation2 + $0x10] sm:$0xff]
    %v82 = vld [vmem:[#allocation2 + $0x18] sm:$0xff]
    %v83 = vld [vmem:[#allocation2 + $0x20] sm:$0xff]
    %v84 = vld [vmem:[#allocation2 + $0x28] sm:$0xff]
    %v85 = vld [vmem:[#allocation2 + $0x30] sm:$0xff]
    %v86 = vld [vmem:[#allocation2 + $0x38] sm:$0xff]
    %v87 = vld [vmem:[#allocation2 + $0x40] sm:$0xff]
    %v88 = vld [vmem:[#allocation2 + $0x48] sm:$0xff]
    %v89 = vld [vmem:[#allocation2 + $0x50] sm:$0xff]
    %v90 = vld [vmem:[#allocation2 + $0x58] sm:$0xff]
    %v91 = vld [vmem:[#allocation2 + $0x60] sm:$0xff]
    %v92 = vld [vmem:[#allocation2 + $0x68] sm:$0xff]
    %v93 = vld [vmem:[#allocation2 + $0x70] sm:$0xff]
    %v94 = vld [vmem:[#allocation2 + $0x78] sm:$0xff]
    %v95 = vld [vmem:[#allocation2 + $0x80] sm:$0xff]
    %v96 = vld [vmem:[#allocation2 + $0x88] sm:$0xff]
    %v97 = vld [vmem:[#allocation2 + $0x90] sm:$0xff]
    %v98 = vld [vmem:[#allocation2 + $0x98] sm:$0xff]
    %v99 = vld [vmem:[#allocation2 + $0xa0] sm:$0xff]
    %v100 = vld [vmem:[#allocation2 + $0xa8] sm:$0xff]
    %v101 = vld [vmem:[#allocation2 + $0xb0] sm:$0xff]
    %v102 = vld [vmem:[#allocation2 + $0xb8] sm:$0xff]
    %v103 = vld [vmem:[#allocation2 + $0xc0] sm:$0xff]
    %v104 = vld [vmem:[#allocation2 + $0xc8] sm:$0xff]
    %v105 = vld [vmem:[#allocation2 + $0xd0] sm:$0xff]
    %v106 = vld [vmem:[#allocation2 + $0xd8] sm:$0xff]
    %v107 = vld [vmem:[#allocation2 + $0xe0] sm:$0xff]
    %v108 = vld [vmem:[#allocation2 + $0xe8] sm:$0xff]
    %v109 = vld [vmem:[#allocation2 + $0xf0] sm:$0xff]
    %v110 = vld [vmem:[#allocation2 + $0xf8] sm:$0xff]
    %111 = vmatpush.msra.mxu0 %v109
    %112 = vmatpush.msra.mxu0 %v107
    %113 = vmatpush.msra.mxu0 %v105
    %114 = vmatpush.msra.mxu0 %v103
    %115 = vmatpush.msra.mxu0 %v101
    %116 = vmatpush.msra.mxu0 %v99
    %117 = vmatpush.msra.mxu0 %v97
    %118 = vmatpush.msra.mxu0 %v95
    %119 = vmatpush.msra.mxu0 %v93
    %120 = vmatpush.msra.mxu0 %v91
    %121 = vmatpush.msra.mxu0 %v89
    %122 = vmatpush.msra.mxu0 %v87
    %123 = vmatpush.msra.mxu0 %v85
    %124 = vmatpush.msra.mxu0 %v83
    %125 = vmatpush.msra.mxu0 %v81
    %126 = vmatpush.msra.mxu0 %v79
    %127 = vmatmul.f32.gmra.mxu0 %v78
    %v128 = vpop.f32.mrf.mxu0
    %v129 = vadd.f32 0.0, %v128
    %130 = vdwg.mxu0
    %131 = vmatpush.msra.mxu0 %v110
    %132 = vmatpush.msra.mxu0 %v108
    %133 = vmatpush.msra.mxu0 %v106
    %134 = vmatpush.msra.mxu0 %v104
    %135 = vmatpush.msra.mxu0 %v102
    %136 = vmatpush.msra.mxu0 %v100
    %137 = vmatpush.msra.mxu0 %v98
    %138 = vmatpush.msra.mxu0 %v96
    %139 = vmatpush.msra.mxu0 %v94
    %140 = vmatpush.msra.mxu0 %v92
    %141 = vmatpush.msra.mxu0 %v90
    %142 = vmatpush.msra.mxu0 %v88
    %143 = vmatpush.msra.mxu0 %v86
    %144 = vmatpush.msra.mxu0 %v84
    %145 = vmatpush.msra.mxu0 %v82
    %146 = vmatpush.msra.mxu0 %v80
    %147 = vmatmul.f32.gmra.mxu0 %v78
    %v148 = vpop.f32.mrf.mxu0
    %v149 = vadd.f32 0.0, %v148
    %150 = vdwg.mxu0
    %vm151 = vcmask 1043456
    %v152 = vsel %vm151, %v129, 0.0
    %v153 = vsel %vm151, %v149, 0.0
    %v154 = vadd.f32 %v152, %v153
    %155 = vadd.xlane.f32.xlu0 %v154
    %v156 = vpop.xlane.xlu0 %155
    %v157 = vadd.f32 %v156, 0.0
    %v158 = vmul.f32 %v129, %v129
    %v159 = vmul.f32 %v149, %v149
    %v160 = vsel %vm151, %v158, 0.0
    %v161 = vsel %vm151, %v159, 0.0
    %v162 = vadd.f32 %v160, %v161
    %163 = vadd.xlane.f32.xlu0 %v162
    %v164 = vpop.xlane.xlu0 %163
    %v165 = vadd.f32 %v164, 0.0
    %v168 = vrot.slane %v149, 4
    %v169 = vsel %vm151, %v129, %v168
    %171 = vst [vmem:[%s6] sm:$0xff] %v169
    %s172 = scalar_lea.vmem %s0, 8
    %v173 = vld [vmem:[%s172] sm:$0xff]
    %175 = vst [vmem:[#allocation1] ss:$2 sm:$0xff] %v173
    %v176 = vld.sshfl [vmem:[#allocation1] sm:$0xff pattern:$0x75316420]
    %v177 = vld.sshfl [vmem:[#allocation1 + $0x8] sm:$0xff pattern:$0x75316420]
    %180 = vst [vmem:[#allocation2] sm:$0xf] %v176
    %181 = vst [vmem:[#allocation2 + $0x8] sm:$0xf] %v177
    %v182 = vld [vmem:[%s1] sm:$0xff]
    %v183 = vld [vmem:[#allocation2] sm:$0xff]
    %v184 = vld [vmem:[#allocation2 + $0x8] sm:$0xff]
    %v185 = vld [vmem:[#allocation2 + $0x10] sm:$0xff]
    %v186 = vld [vmem:[#allocation2 + $0x18] sm:$0xff]
    %v187 = vld [vmem:[#allocation2 + $0x20] sm:$0xff]
    %v188 = vld [vmem:[#allocation2 + $0x28] sm:$0xff]
    %v189 = vld [vmem:[#allocation2 + $0x30] sm:$0xff]
    %v190 = vld [vmem:[#allocation2 + $0x38] sm:$0xff]
    %v191 = vld [vmem:[#allocation2 + $0x40] sm:$0xff]
    %v192 = vld [vmem:[#allocation2 + $0x48] sm:$0xff]
    %v193 = vld [vmem:[#allocation2 + $0x50] sm:$0xff]
    %v194 = vld [vmem:[#allocation2 + $0x58] sm:$0xff]
    %v195 = vld [vmem:[#allocation2 + $0x60] sm:$0xff]
    %v196 = vld [vmem:[#allocation2 + $0x68] sm:$0xff]
    %v197 = vld [vmem:[#allocation2 + $0x70] sm:$0xff]
    %v198 = vld [vmem:[#allocation2 + $0x78] sm:$0xff]
    %v199 = vld [vmem:[#allocation2 + $0x80] sm:$0xff]
    %v200 = vld [vmem:[#allocation2 + $0x88] sm:$0xff]
    %v201 = vld [vmem:[#allocation2 + $0x90] sm:$0xff]
    %v202 = vld [vmem:[#allocation2 + $0x98] sm:$0xff]
    %v203 = vld [vmem:[#allocation2 + $0xa0] sm:$0xff]
    %v204 = vld [vmem:[#allocation2 + $0xa8] sm:$0xff]
    %v205 = vld [vmem:[#allocation2 + $0xb0] sm:$0xff]
    %v206 = vld [vmem:[#allocation2 + $0xb8] sm:$0xff]
    %v207 = vld [vmem:[#allocation2 + $0xc0] sm:$0xff]
    %v208 = vld [vmem:[#allocation2 + $0xc8] sm:$0xff]
    %v209 = vld [vmem:[#allocation2 + $0xd0] sm:$0xff]
    %v210 = vld [vmem:[#allocation2 + $0xd8] sm:$0xff]
    %v211 = vld [vmem:[#allocation2 + $0xe0] sm:$0xff]
    %v212 = vld [vmem:[#allocation2 + $0xe8] sm:$0xff]
    %v213 = vld [vmem:[#allocation2 + $0xf0] sm:$0xff]
    %v214 = vld [vmem:[#allocation2 + $0xf8] sm:$0xff]
    %215 = vmatpush.msra.mxu0 %v213
    %216 = vmatpush.msra.mxu0 %v211
    %217 = vmatpush.msra.mxu0 %v209
    %218 = vmatpush.msra.mxu0 %v207
    %219 = vmatpush.msra.mxu0 %v205
    %220 = vmatpush.msra.mxu0 %v203
    %221 = vmatpush.msra.mxu0 %v201
    %222 = vmatpush.msra.mxu0 %v199
    %223 = vmatpush.msra.mxu0 %v197
    %224 = vmatpush.msra.mxu0 %v195
    %225 = vmatpush.msra.mxu0 %v193
    %226 = vmatpush.msra.mxu0 %v191
    %227 = vmatpush.msra.mxu0 %v189
    %228 = vmatpush.msra.mxu0 %v187
    %229 = vmatpush.msra.mxu0 %v185
    %230 = vmatpush.msra.mxu0 %v183
    %231 = vmatmul.f32.gmra.mxu0 %v182
    %v232 = vpop.f32.mrf.mxu0
    %v233 = vadd.f32 0.0, %v232
    %234 = vdwg.mxu0
    %235 = vmatpush.msra.mxu0 %v214
    %236 = vmatpush.msra.mxu0 %v212
    %237 = vmatpush.msra.mxu0 %v210
    %238 = vmatpush.msra.mxu0 %v208
    %239 = vmatpush.msra.mxu0 %v206
    %240 = vmatpush.msra.mxu0 %v204
    %241 = vmatpush.msra.mxu0 %v202
    %242 = vmatpush.msra.mxu0 %v200
    %243 = vmatpush.msra.mxu0 %v198
    %244 = vmatpush.msra.mxu0 %v196
    %245 = vmatpush.msra.mxu0 %v194
    %246 = vmatpush.msra.mxu0 %v192
    %247 = vmatpush.msra.mxu0 %v190
    %248 = vmatpush.msra.mxu0 %v188
    %249 = vmatpush.msra.mxu0 %v186
    %250 = vmatpush.msra.mxu0 %v184
    %251 = vmatmul.f32.gmra.mxu0 %v182
    %v252 = vpop.f32.mrf.mxu0
    %v253 = vadd.f32 0.0, %v252
    %254 = vdwg.mxu0
    %v255 = vsel %vm151, %v233, 0.0
    %v256 = vsel %vm151, %v253, 0.0
    %v257 = vadd.f32 %v255, %v256
    %258 = vadd.xlane.f32.xlu0 %v257
    %v259 = vpop.xlane.xlu0 %258
    %v260 = vadd.f32 %v157, %v259
    %v261 = vmul.f32 %v233, %v233
    %v262 = vmul.f32 %v253, %v253
    %v263 = vsel %vm151, %v261, 0.0
    %v264 = vsel %vm151, %v262, 0.0
    %v265 = vadd.f32 %v263, %v264
    %266 = vadd.xlane.f32.xlu0 %v265
    %v267 = vpop.xlane.xlu0 %266
    %v268 = vadd.f32 %v165, %v267
    %v271 = vrot.slane %v253, 4
    %v272 = vsel %vm151, %v233, %v271
    %s274 = scalar_lea.vmem %s6, 8
    %275 = vst [vmem:[%s274] sm:$0xff] %v272
    %v276 = vmul.f32 %v260, 0.001953125
    %v277 = vmul.f32 %v268, 0.001953125
    %v278 = vmul.f32 %v276, %v276
    %v279 = vsub.f32 %v277, %v278
    %v280 = vmax.f32 %v279, 0.0
    %v281 = vadd.f32 %v280, 1e-05
    %v282 = vrsqrt.pop %v281
    %v283 = vmul.f32 %v282, %v281
    %v284 = vmul.f32 %v283, %v282
    %v285 = vmul.f32 0.5, %v284
    %v286 = vsub.f32 1.5, %v285
    %v287 = vmul.f32 %v282, %v286
    %vm288 = vweird.f32 %v281
    %vm289 = vweird.f32 %v282
    %vm290 = vmor %vm288, %vm289
    %v291 = vsel %vm290, %v282, %v287
    %v292 = vld [vmem:[%s2] sm:$0xf]
    %v293 = vmul.f32 %v292, %v291
    %v294 = vld [vmem:[%s3] sm:$0xf]
    %v295 = vmul.f32 %v276, %v293
    %v296 = vsub.f32 %v294, %v295
    %v297 = vld [vmem:[%s6] sm:$0xff]
    %299 = vset.pattern.permute.xlu0 0
    %300 = vperm.xlu0 %299, %v293
    %v301 = vpop.permute.xlu0 %300
    %v303 = vunpack.c.l.s4 839922192
    %v304 = vunpack.c.0.s8 %v303
    %v305 = vperm.slane %v301, %v304
    %v307 = vmul.f32 %v297, %v305
    %309 = vset.pattern.permute.xlu0 0
    %310 = vperm.xlu0 %309, %v296
    %v311 = vpop.permute.xlu0 %310
    %v313 = vunpack.c.l.s4 839922192
    %v314 = vunpack.c.0.s8 %v313
    %v315 = vperm.slane %v311, %v314
    %v317 = vadd.f32 %v307, %v315
    %318 = vst [vmem:[%s6] sm:$0xff] %v317
    %v319 = vld [vmem:[%s274] sm:$0xff]
    %v320 = vmul.f32 %v319, %v305
    %v321 = vadd.f32 %v320, %v315
    %322 = vst [vmem:[%s274] sm:$0xff] %v321
    // Predicated region
    $region30: #{branch_4_fun.5} parent=1 // pred_check
      _
    $region31: #{branch_4_fun.5} parent=1 // pred_check_branch
      %324 = sbr.rel (0) target = $region33
    $region32: #{branch_4_fun.5} parent=1 // pred_region
      _
    $region33: #{branch_4_fun.5} parent=1 // pred_fallthru
      _
    // Predicated region
    $region34: #{branch_4_fun.5} parent=1 // pred_check
      _
    $region35: #{branch_4_fun.5} parent=1 // pred_check_branch
      %326 = sbr.rel (0) target = $region37
    $region36: #{branch_4_fun.5} parent=1 // pred_region
      _
    $region37: #{branch_4_fun.5} parent=1 // pred_fallthru
      _
    %327 = vsyncpa [#allocation5], 1

// kernel: branch_4_fun.7
$region0: #{branch_4_fun.7}
  #allocation0 [shape = 'u32[]', space=smem, size = 0x4, offset = 0x4, fixed_abs, tag = 'smem constant byte address 0x4 - core index']
  #allocation1 [shape = 'u32[72,128]{1,0:T(1,128)}', space=vmem, size = 0x9000, scoped, tag = 'internal scratch']
  #allocation2 [shape = 'f32[128,256]{1,0:T(8,128)}', space=vmem, size = 0x20000, scoped, tag = 'scratch operand']
  #allocation3 [shape = 's32[1]{0:T(128)S(6)}', space=smem, size = 0x200, scoped, tag = 'scoped memory for branch_4_fun.7']
  %s0 = inlined_call_operand.vmem [shape: f32[2,4,256], index: 0, kind: input, shape index: {}]
  %s1 = inlined_call_operand.vmem [shape: f32[8,128], index: 1, kind: input, shape index: {}]
  %s2 = inlined_call_operand.vmem [shape: f32[4,1], index: 2, kind: input, shape index: {}]
  %s3 = inlined_call_operand.vmem [shape: f32[4,1], index: 3, kind: input, shape index: {}]
  %s4 = inlined_call_operand.vmem [shape: f32[8], index: 4, kind: input, shape index: {}]
  %s5 = inlined_call_operand.<no memory space> [shape: s32[1], index: 5, kind: input, shape index: {}]
  %s6 = inlined_call_operand.vmem [shape: f32[2,4,256], index: 6, kind: output, shape index: {}]
  %s7 = sld [smem:[#allocation0]]
  $region38: #{branch_4_fun.7} parent=0
    _
  %s9 = ssub.s32 1, %s7
  %s10 = scalar_select 0, %s9, %s7
  %11 = sst [smem:[#allocation3]] %s5
  $region1: #{branch_4_fun.7} parent=0
    #allocation4 [shape = 'u8[512]{0}', space=smem, size = 0x200, scoped, tag = 'input window, operand 4, single buffered']
    #allocation5 [shape = 's32[1]{0}', space=sflag, size = 0x4, scoped, tag = 'scoped memory for branch_4_fun.7']
    %12 = vsyncpa [#allocation5], 0
    // Predicated region
    $region2: #{branch_4_fun.7} parent=1 // pred_check
      _
    $region3: #{branch_4_fun.7} parent=1 // pred_check_branch
      %14 = sbr.rel (0) target = $region5
    $region4: #{branch_4_fun.7} parent=1 // pred_region
      _
    $region5: #{branch_4_fun.7} parent=1 // pred_fallthru
      _
    // Predicated region
    $region6: #{branch_4_fun.7} parent=1 // pred_check
      _
    $region7: #{branch_4_fun.7} parent=1 // pred_check_branch
      %16 = sbr.rel (0) target = $region9
    $region8: #{branch_4_fun.7} parent=1 // pred_region
      _
    $region9: #{branch_4_fun.7} parent=1 // pred_fallthru
      _
    // Predicated region
    $region10: #{branch_4_fun.7} parent=1 // pred_check
      _
    $region11: #{branch_4_fun.7} parent=1 // pred_check_branch
      %18 = sbr.rel (0) target = $region13
    $region12: #{branch_4_fun.7} parent=1 // pred_region
      _
    $region13: #{branch_4_fun.7} parent=1 // pred_fallthru
      _
    // Predicated region
    $region14: #{branch_4_fun.7} parent=1 // pred_check
      _
    $region15: #{branch_4_fun.7} parent=1 // pred_check_branch
      %20 = sbr.rel (0) target = $region17
    $region16: #{branch_4_fun.7} parent=1 // pred_region
      _
    $region17: #{branch_4_fun.7} parent=1 // pred_fallthru
      _
    // Predicated region
    $region18: #{branch_4_fun.7} parent=1 // pred_check
      _
    $region19: #{branch_4_fun.7} parent=1 // pred_check_branch
      %22 = sbr.rel (0) target = $region21
    $region20: #{branch_4_fun.7} parent=1 // pred_region
      %24 = vsyncadd [#allocation5], 0
      %s26 = sshll.u32 %s4, 4
      %s27 = int_to_ptr.vmem [resolvable:$true] %s26
      %29 = dma.vmem_to_smem %s27, 16, [#allocation4], [#allocation5]
    $region21: #{branch_4_fun.7} parent=1 // pred_fallthru
      _
    // Predicated region
    $region22: #{branch_4_fun.7} parent=1 // pred_check
      _
    $region23: #{branch_4_fun.7} parent=1 // pred_check_branch
      %31 = sbr.rel (0) target = $region25
    $region24: #{branch_4_fun.7} parent=1 // pred_region
      _
    $region25: #{branch_4_fun.7} parent=1 // pred_fallthru
      _
    // Predicated region
    $region26: #{branch_4_fun.7} parent=1 // pred_check
      _
    $region27: #{branch_4_fun.7} parent=1 // pred_check_branch
      %33 = sbr.rel (0) target = $region29
    $region28: #{branch_4_fun.7} parent=1 // pred_region
      %35 = dma.done [#allocation5], 16
    $region29: #{branch_4_fun.7} parent=1 // pred_fallthru
      _
    %36 = sfence
    %37 = vst [vmem:[#allocation2] sm:$0xff] 0.0
    %38 = vst [vmem:[#allocation2 + $0x8] sm:$0xff] 0.0
    %39 = vst [vmem:[#allocation2 + $0x10] sm:$0xff] 0.0
    %40 = vst [vmem:[#allocation2 + $0x18] sm:$0xff] 0.0
    %41 = vst [vmem:[#allocation2 + $0x20] sm:$0xff] 0.0
    %42 = vst [vmem:[#allocation2 + $0x28] sm:$0xff] 0.0
    %43 = vst [vmem:[#allocation2 + $0x30] sm:$0xff] 0.0
    %44 = vst [vmem:[#allocation2 + $0x38] sm:$0xff] 0.0
    %45 = vst [vmem:[#allocation2 + $0x40] sm:$0xff] 0.0
    %46 = vst [vmem:[#allocation2 + $0x48] sm:$0xff] 0.0
    %47 = vst [vmem:[#allocation2 + $0x50] sm:$0xff] 0.0
    %48 = vst [vmem:[#allocation2 + $0x58] sm:$0xff] 0.0
    %49 = vst [vmem:[#allocation2 + $0x60] sm:$0xff] 0.0
    %50 = vst [vmem:[#allocation2 + $0x68] sm:$0xff] 0.0
    %51 = vst [vmem:[#allocation2 + $0x70] sm:$0xff] 0.0
    %52 = vst [vmem:[#allocation2 + $0x78] sm:$0xff] 0.0
    %53 = vst [vmem:[#allocation2 + $0x80] sm:$0xff] 0.0
    %54 = vst [vmem:[#allocation2 + $0x88] sm:$0xff] 0.0
    %55 = vst [vmem:[#allocation2 + $0x90] sm:$0xff] 0.0
    %56 = vst [vmem:[#allocation2 + $0x98] sm:$0xff] 0.0
    %57 = vst [vmem:[#allocation2 + $0xa0] sm:$0xff] 0.0
    %58 = vst [vmem:[#allocation2 + $0xa8] sm:$0xff] 0.0
    %59 = vst [vmem:[#allocation2 + $0xb0] sm:$0xff] 0.0
    %60 = vst [vmem:[#allocation2 + $0xb8] sm:$0xff] 0.0
    %61 = vst [vmem:[#allocation2 + $0xc0] sm:$0xff] 0.0
    %62 = vst [vmem:[#allocation2 + $0xc8] sm:$0xff] 0.0
    %63 = vst [vmem:[#allocation2 + $0xd0] sm:$0xff] 0.0
    %64 = vst [vmem:[#allocation2 + $0xd8] sm:$0xff] 0.0
    %65 = vst [vmem:[#allocation2 + $0xe0] sm:$0xff] 0.0
    %66 = vst [vmem:[#allocation2 + $0xe8] sm:$0xff] 0.0
    %67 = vst [vmem:[#allocation2 + $0xf0] sm:$0xff] 0.0
    %68 = vst [vmem:[#allocation2 + $0xf8] sm:$0xff] 0.0
    %v69 = vld [vmem:[%s0] sm:$0xff]
    %71 = vst [vmem:[#allocation1] ss:$2 sm:$0xff] %v69
    %v72 = vld.sshfl [vmem:[#allocation1] sm:$0xff pattern:$0x75316420]
    %v73 = vld.sshfl [vmem:[#allocation1 + $0x8] sm:$0xff pattern:$0x75316420]
    %76 = vst [vmem:[#allocation2] sm:$0xf] %v72
    %77 = vst [vmem:[#allocation2 + $0x8] sm:$0xf] %v73
    %v78 = vld [vmem:[%s1] sm:$0xff]
    %v79 = vld [vmem:[#allocation2] sm:$0xff]
    %v80 = vld [vmem:[#allocation2 + $0x8] sm:$0xff]
    %v81 = vld [vmem:[#allocation2 + $0x10] sm:$0xff]
    %v82 = vld [vmem:[#allocation2 + $0x18] sm:$0xff]
    %v83 = vld [vmem:[#allocation2 + $0x20] sm:$0xff]
    %v84 = vld [vmem:[#allocation2 + $0x28] sm:$0xff]
    %v85 = vld [vmem:[#allocation2 + $0x30] sm:$0xff]
    %v86 = vld [vmem:[#allocation2 + $0x38] sm:$0xff]
    %v87 = vld [vmem:[#allocation2 + $0x40] sm:$0xff]
    %v88 = vld [vmem:[#allocation2 + $0x48] sm:$0xff]
    %v89 = vld [vmem:[#allocation2 + $0x50] sm:$0xff]
    %v90 = vld [vmem:[#allocation2 + $0x58] sm:$0xff]
    %v91 = vld [vmem:[#allocation2 + $0x60] sm:$0xff]
    %v92 = vld [vmem:[#allocation2 + $0x68] sm:$0xff]
    %v93 = vld [vmem:[#allocation2 + $0x70] sm:$0xff]
    %v94 = vld [vmem:[#allocation2 + $0x78] sm:$0xff]
    %v95 = vld [vmem:[#allocation2 + $0x80] sm:$0xff]
    %v96 = vld [vmem:[#allocation2 + $0x88] sm:$0xff]
    %v97 = vld [vmem:[#allocation2 + $0x90] sm:$0xff]
    %v98 = vld [vmem:[#allocation2 + $0x98] sm:$0xff]
    %v99 = vld [vmem:[#allocation2 + $0xa0] sm:$0xff]
    %v100 = vld [vmem:[#allocation2 + $0xa8] sm:$0xff]
    %v101 = vld [vmem:[#allocation2 + $0xb0] sm:$0xff]
    %v102 = vld [vmem:[#allocation2 + $0xb8] sm:$0xff]
    %v103 = vld [vmem:[#allocation2 + $0xc0] sm:$0xff]
    %v104 = vld [vmem:[#allocation2 + $0xc8] sm:$0xff]
    %v105 = vld [vmem:[#allocation2 + $0xd0] sm:$0xff]
    %v106 = vld [vmem:[#allocation2 + $0xd8] sm:$0xff]
    %v107 = vld [vmem:[#allocation2 + $0xe0] sm:$0xff]
    %v108 = vld [vmem:[#allocation2 + $0xe8] sm:$0xff]
    %v109 = vld [vmem:[#allocation2 + $0xf0] sm:$0xff]
    %v110 = vld [vmem:[#allocation2 + $0xf8] sm:$0xff]
    %111 = vmatpush.msra.mxu0 %v109
    %112 = vmatpush.msra.mxu0 %v107
    %113 = vmatpush.msra.mxu0 %v105
    %114 = vmatpush.msra.mxu0 %v103
    %115 = vmatpush.msra.mxu0 %v101
    %116 = vmatpush.msra.mxu0 %v99
    %117 = vmatpush.msra.mxu0 %v97
    %118 = vmatpush.msra.mxu0 %v95
    %119 = vmatpush.msra.mxu0 %v93
    %120 = vmatpush.msra.mxu0 %v91
    %121 = vmatpush.msra.mxu0 %v89
    %122 = vmatpush.msra.mxu0 %v87
    %123 = vmatpush.msra.mxu0 %v85
    %124 = vmatpush.msra.mxu0 %v83
    %125 = vmatpush.msra.mxu0 %v81
    %126 = vmatpush.msra.mxu0 %v79
    %127 = vmatmul.f32.gmra.mxu0 %v78
    %v128 = vpop.f32.mrf.mxu0
    %v129 = vadd.f32 0.0, %v128
    %130 = vdwg.mxu0
    %131 = vmatpush.msra.mxu0 %v110
    %132 = vmatpush.msra.mxu0 %v108
    %133 = vmatpush.msra.mxu0 %v106
    %134 = vmatpush.msra.mxu0 %v104
    %135 = vmatpush.msra.mxu0 %v102
    %136 = vmatpush.msra.mxu0 %v100
    %137 = vmatpush.msra.mxu0 %v98
    %138 = vmatpush.msra.mxu0 %v96
    %139 = vmatpush.msra.mxu0 %v94
    %140 = vmatpush.msra.mxu0 %v92
    %141 = vmatpush.msra.mxu0 %v90
    %142 = vmatpush.msra.mxu0 %v88
    %143 = vmatpush.msra.mxu0 %v86
    %144 = vmatpush.msra.mxu0 %v84
    %145 = vmatpush.msra.mxu0 %v82
    %146 = vmatpush.msra.mxu0 %v80
    %147 = vmatmul.f32.gmra.mxu0 %v78
    %v148 = vpop.f32.mrf.mxu0
    %v149 = vadd.f32 0.0, %v148
    %150 = vdwg.mxu0
    %vm151 = vcmask 1043456
    %v152 = vsel %vm151, %v129, 0.0
    %v153 = vsel %vm151, %v149, 0.0
    %v154 = vadd.f32 %v152, %v153
    %155 = vadd.xlane.f32.xlu0 %v154
    %v156 = vpop.xlane.xlu0 %155
    %v157 = vadd.f32 %v156, 0.0
    %v158 = vmul.f32 %v129, %v129
    %v159 = vmul.f32 %v149, %v149
    %v160 = vsel %vm151, %v158, 0.0
    %v161 = vsel %vm151, %v159, 0.0
    %v162 = vadd.f32 %v160, %v161
    %163 = vadd.xlane.f32.xlu0 %v162
    %v164 = vpop.xlane.xlu0 %163
    %v165 = vadd.f32 %v164, 0.0
    %v168 = vrot.slane %v149, 4
    %v169 = vsel %vm151, %v129, %v168
    %171 = vst [vmem:[%s6] sm:$0xff] %v169
    %s172 = scalar_lea.vmem %s0, 8
    %v173 = vld [vmem:[%s172] sm:$0xff]
    %175 = vst [vmem:[#allocation1] ss:$2 sm:$0xff] %v173
    %v176 = vld.sshfl [vmem:[#allocation1] sm:$0xff pattern:$0x75316420]
    %v177 = vld.sshfl [vmem:[#allocation1 + $0x8] sm:$0xff pattern:$0x75316420]
    %180 = vst [vmem:[#allocation2] sm:$0xf] %v176
    %181 = vst [vmem:[#allocation2 + $0x8] sm:$0xf] %v177
    %v182 = vld [vmem:[%s1] sm:$0xff]
    %v183 = vld [vmem:[#allocation2] sm:$0xff]
    %v184 = vld [vmem:[#allocation2 + $0x8] sm:$0xff]
    %v185 = vld [vmem:[#allocation2 + $0x10] sm:$0xff]
    %v186 = vld [vmem:[#allocation2 + $0x18] sm:$0xff]
    %v187 = vld [vmem:[#allocation2 + $0x20] sm:$0xff]
    %v188 = vld [vmem:[#allocation2 + $0x28] sm:$0xff]
    %v189 = vld [vmem:[#allocation2 + $0x30] sm:$0xff]
    %v190 = vld [vmem:[#allocation2 + $0x38] sm:$0xff]
    %v191 = vld [vmem:[#allocation2 + $0x40] sm:$0xff]
    %v192 = vld [vmem:[#allocation2 + $0x48] sm:$0xff]
    %v193 = vld [vmem:[#allocation2 + $0x50] sm:$0xff]
    %v194 = vld [vmem:[#allocation2 + $0x58] sm:$0xff]
    %v195 = vld [vmem:[#allocation2 + $0x60] sm:$0xff]
    %v196 = vld [vmem:[#allocation2 + $0x68] sm:$0xff]
    %v197 = vld [vmem:[#allocation2 + $0x70] sm:$0xff]
    %v198 = vld [vmem:[#allocation2 + $0x78] sm:$0xff]
    %v199 = vld [vmem:[#allocation2 + $0x80] sm:$0xff]
    %v200 = vld [vmem:[#allocation2 + $0x88] sm:$0xff]
    %v201 = vld [vmem:[#allocation2 + $0x90] sm:$0xff]
    %v202 = vld [vmem:[#allocation2 + $0x98] sm:$0xff]
    %v203 = vld [vmem:[#allocation2 + $0xa0] sm:$0xff]
    %v204 = vld [vmem:[#allocation2 + $0xa8] sm:$0xff]
    %v205 = vld [vmem:[#allocation2 + $0xb0] sm:$0xff]
    %v206 = vld [vmem:[#allocation2 + $0xb8] sm:$0xff]
    %v207 = vld [vmem:[#allocation2 + $0xc0] sm:$0xff]
    %v208 = vld [vmem:[#allocation2 + $0xc8] sm:$0xff]
    %v209 = vld [vmem:[#allocation2 + $0xd0] sm:$0xff]
    %v210 = vld [vmem:[#allocation2 + $0xd8] sm:$0xff]
    %v211 = vld [vmem:[#allocation2 + $0xe0] sm:$0xff]
    %v212 = vld [vmem:[#allocation2 + $0xe8] sm:$0xff]
    %v213 = vld [vmem:[#allocation2 + $0xf0] sm:$0xff]
    %v214 = vld [vmem:[#allocation2 + $0xf8] sm:$0xff]
    %215 = vmatpush.msra.mxu0 %v213
    %216 = vmatpush.msra.mxu0 %v211
    %217 = vmatpush.msra.mxu0 %v209
    %218 = vmatpush.msra.mxu0 %v207
    %219 = vmatpush.msra.mxu0 %v205
    %220 = vmatpush.msra.mxu0 %v203
    %221 = vmatpush.msra.mxu0 %v201
    %222 = vmatpush.msra.mxu0 %v199
    %223 = vmatpush.msra.mxu0 %v197
    %224 = vmatpush.msra.mxu0 %v195
    %225 = vmatpush.msra.mxu0 %v193
    %226 = vmatpush.msra.mxu0 %v191
    %227 = vmatpush.msra.mxu0 %v189
    %228 = vmatpush.msra.mxu0 %v187
    %229 = vmatpush.msra.mxu0 %v185
    %230 = vmatpush.msra.mxu0 %v183
    %231 = vmatmul.f32.gmra.mxu0 %v182
    %v232 = vpop.f32.mrf.mxu0
    %v233 = vadd.f32 0.0, %v232
    %234 = vdwg.mxu0
    %235 = vmatpush.msra.mxu0 %v214
    %236 = vmatpush.msra.mxu0 %v212
    %237 = vmatpush.msra.mxu0 %v210
    %238 = vmatpush.msra.mxu0 %v208
    %239 = vmatpush.msra.mxu0 %v206
    %240 = vmatpush.msra.mxu0 %v204
    %241 = vmatpush.msra.mxu0 %v202
    %242 = vmatpush.msra.mxu0 %v200
    %243 = vmatpush.msra.mxu0 %v198
    %244 = vmatpush.msra.mxu0 %v196
    %245 = vmatpush.msra.mxu0 %v194
    %246 = vmatpush.msra.mxu0 %v192
    %247 = vmatpush.msra.mxu0 %v190
    %248 = vmatpush.msra.mxu0 %v188
    %249 = vmatpush.msra.mxu0 %v186
    %250 = vmatpush.msra.mxu0 %v184
    %251 = vmatmul.f32.gmra.mxu0 %v182
    %v252 = vpop.f32.mrf.mxu0
    %v253 = vadd.f32 0.0, %v252
    %254 = vdwg.mxu0
    %v255 = vsel %vm151, %v233, 0.0
    %v256 = vsel %vm151, %v253, 0.0
    %v257 = vadd.f32 %v255, %v256
    %258 = vadd.xlane.f32.xlu0 %v257
    %v259 = vpop.xlane.xlu0 %258
    %v260 = vadd.f32 %v157, %v259
    %v261 = vmul.f32 %v233, %v233
    %v262 = vmul.f32 %v253, %v253
    %v263 = vsel %vm151, %v261, 0.0
    %v264 = vsel %vm151, %v262, 0.0
    %v265 = vadd.f32 %v263, %v264
    %266 = vadd.xlane.f32.xlu0 %v265
    %v267 = vpop.xlane.xlu0 %266
    %v268 = vadd.f32 %v165, %v267
    %v271 = vrot.slane %v253, 4
    %v272 = vsel %vm151, %v233, %v271
    %s274 = scalar_lea.vmem %s6, 8
    %275 = vst [vmem:[%s274] sm:$0xff] %v272
    %v276 = vmul.f32 %v260, 0.001953125
    %v277 = vmul.f32 %v268, 0.001953125
    %v278 = vmul.f32 %v276, %v276
    %v279 = vsub.f32 %v277, %v278
    %v280 = vmax.f32 %v279, 0.0
    %v281 = vadd.f32 %v280, 1e-05
    %v282 = vrsqrt.pop %v281
    %v283 = vmul.f32 %v282, %v281
    %v284 = vmul.f32 %v283, %v282
    %v285 = vmul.f32 0.5, %v284
    %v286 = vsub.f32 1.5, %v285
    %v287 = vmul.f32 %v282, %v286
    %vm288 = vweird.f32 %v281
    %vm289 = vweird.f32 %v282
    %vm290 = vmor %vm288, %vm289
    %v291 = vsel %vm290, %v282, %v287
    %v292 = vld [vmem:[%s2] sm:$0xf]
    %v293 = vmul.f32 %v292, %v291
    %v294 = vld [vmem:[%s3] sm:$0xf]
    %v295 = vmul.f32 %v276, %v293
    %v296 = vsub.f32 %v294, %v295
    %s297 = sld [smem:[#allocation3]]
    %s298 = sld [smem:[#allocation4]]
    %s299 = sld [smem:[#allocation4 + $0x1]]
    %s300 = sadd.f32 %s298, %s299
    %s301 = sld [smem:[#allocation4 + $0x2]]
    %s302 = sadd.f32 %s300, %s301
    %s303 = sld [smem:[#allocation4 + $0x3]]
    %s304 = sadd.f32 %s302, %s303
    %s305 = sld [smem:[#allocation4 + $0x4]]
    %s306 = sadd.f32 %s304, %s305
    %s307 = sld [smem:[#allocation4 + $0x5]]
    %s308 = sadd.f32 %s306, %s307
    %s309 = sld [smem:[#allocation4 + $0x6]]
    %s310 = sadd.f32 %s308, %s309
    %s311 = sld [smem:[#allocation4 + $0x7]]
    %s312 = sadd.f32 %s310, %s311
    %s313 = sld [smem:[#allocation4 + %s297]]
    %v314 = vstv %s313
    %v315 = vmul.f32 %v293, %v314
    %v316 = vmul.f32 %v296, %v314
    %s317 = ssub.f32 %s312, %s313
    %v318 = vstv %s317
    %v319 = vadd.f32 %v316, %v318
    %v320 = vld [vmem:[%s6] sm:$0xff]
    %322 = vset.pattern.permute.xlu0 0
    %323 = vperm.xlu0 %322, %v315
    %v324 = vpop.permute.xlu0 %323
    %v326 = vunpack.c.l.s4 839922192
    %v327 = vunpack.c.0.s8 %v326
    %v328 = vperm.slane %v324, %v327
    %v330 = vmul.f32 %v320, %v328
    %332 = vset.pattern.permute.xlu0 0
    %333 = vperm.xlu0 %332, %v319
    %v334 = vpop.permute.xlu0 %333
    %v336 = vunpack.c.l.s4 839922192
    %v337 = vunpack.c.0.s8 %v336
    %v338 = vperm.slane %v334, %v337
    %v340 = vadd.f32 %v330, %v338
    %341 = vst [vmem:[%s6] sm:$0xff] %v340
    %v342 = vld [vmem:[%s274] sm:$0xff]
    %v343 = vmul.f32 %v342, %v328
    %v344 = vadd.f32 %v343, %v338
    %345 = vst [vmem:[%s274] sm:$0xff] %v344
    // Predicated region
    $region30: #{branch_4_fun.7} parent=1 // pred_check
      _
    $region31: #{branch_4_fun.7} parent=1 // pred_check_branch
      %347 = sbr.rel (0) target = $region33
    $region32: #{branch_4_fun.7} parent=1 // pred_region
      _
    $region33: #{branch_4_fun.7} parent=1 // pred_fallthru
      _
    // Predicated region
    $region34: #{branch_4_fun.7} parent=1 // pred_check
      _
    $region35: #{branch_4_fun.7} parent=1 // pred_check_branch
      %349 = sbr.rel (0) target = $region37
    $region36: #{branch_4_fun.7} parent=1 // pred_region
      _
    $region37: #{branch_4_fun.7} parent=1 // pred_fallthru
      _
    %350 = vsyncpa [#allocation5], 1

// kernel: branch_4_fun.4
$region0: #{branch_4_fun.4}
  #allocation0 [shape = 'u32[]', space=smem, size = 0x4, offset = 0x4, fixed_abs, tag = 'smem constant byte address 0x4 - core index']
  #allocation1 [shape = 'u32[72,128]{1,0:T(1,128)}', space=vmem, size = 0x9000, scoped, tag = 'internal scratch']
  #allocation2 [shape = 'f32[2,1,18,18]{3,2,1,0:T(8,128)}', space=vmem, size = 0x6000, scoped, tag = 'scratch operand']
  %s0 = inlined_call_operand.vmem [shape: f32[2,4,18,18], index: 0, kind: input, shape index: {}]
  %s1 = inlined_call_operand.vmem [shape: f32[36], index: 1, kind: input, shape index: {}]
  %s2 = inlined_call_operand.vmem [shape: f32[2,4,16,16], index: 2, kind: output, shape index: {}]
  %s3 = sld [smem:[#allocation0]]
  $region117: #{branch_4_fun.4} parent=0
    _
  %s5 = ssub.s32 1, %s3
  %s6 = scalar_select 0, %s5, %s3
  $region1: #{branch_4_fun.4} parent=0
    #allocation3 [shape = 'u8[49152]{0}', space=vmem, size = 0xc000, scoped, tag = 'input window, operand 0']
    #allocation4 [shape = 'u8[512]{0}', space=smem, size = 0x200, scoped, tag = 'input window, operand 1, single buffered']
    #allocation5 [shape = 's32[2]{0}', space=sflag, size = 0x8, scoped, tag = 'scoped memory for branch_4_fun.4']
    #allocation6 [shape = 'u8[32768]{0}', space=vmem, size = 0x8000, scoped, tag = 'output window, operand 0']
    %7 = vsyncpa [#allocation5], 0
    loop: start=0, step=1, limit=6
    $region2: #{branch_4_fun.4} parent=1 // loop_pre_header
      _
    $region3: #{branch_4_fun.4} parent=1 // loop_header
      %s9 = sphi 0, %s13
      %p10 = scmp.ge.s32.totalorder %s9, 6
      %s19 = sphi 0, %s21
      %s22 = sphi 0, %s19
      %s23 = sphi 0, %s22
      %s39 = sphi 0, %s23
      %s43 = sphi 0, %s43
      %s45 = sphi 0, %s43
      %s46 = sphi 0, %s45
      %s60 = sphi 0, %s46
      %s66 = sphi 0, %s68
      %s69 = sphi 0, %s66
      %s70 = sphi 0, %s69
      %s86 = sphi 0, %s70
    $region4: #{branch_4_fun.4} parent=1 // loop_header_branch
      %12 = sbr.rel (%p10) target = $region8
    $region5: #{branch_4_fun.4} parent=1 // loop_body
      %s14 = ssub.s32 %s9, 1
      %s15 = ssub.s32 %s9, 2
      %s16 = sadd.s32 %s9, 1
      %s17 = ssub.s32 %s9, %s16
      %p18 = scmp.eq.s32.totalorder %s17, 0
      %s20 = sadd.s32 %s19, 1
      %s21 = scalar_select %p18, %s19, %s20
      %p24 = pneg %p18
      %p25 = scmp.eq.s32.totalorder %s9, 3
      %p26 = por %p24, %p25
      %p27 = scmp.ne.s32.totalorder %s19, %s22
      %p28 = scmp.eq.s32.totalorder %s9, 0
      %p29 = por %p27, %p28
      %p30 = scmp.ne.s32.totalorder %s19, %s22
      %p31 = scmp.eq.s32.totalorder %s14, 3
      %p32 = por %p30, %p31
      %p33 = scmp.ne.s32.totalorder %s22, %s23
      %p34 = scmp.eq.s32.totalorder %s14, 0
      %p35 = por %p33, %p34
      %p36 = scmp.ne.s32.totalorder %s22, %s23
      %p37 = scmp.eq.s32.totalorder %s15, 3
      %p38 = por %p36, %p37
      %p40 = scmp.ne.s32.totalorder %s23, %s39
      %p41 = scmp.eq.s32.totalorder %s15, 0
      %p42 = por %p40, %p41
      %s44 = sadd.s32 %s43, 1
      %p47 = scmp.eq.s32.totalorder %s9, 3
      %p48 = scmp.ne.s32.totalorder %s43, %s45
      %p49 = scmp.eq.s32.totalorder %s9, 0
      %p50 = por %p48, %p49
      %p51 = scmp.ne.s32.totalorder %s43, %s45
      %p52 = scmp.eq.s32.totalorder %s14, 3
      %p53 = por %p51, %p52
      %p54 = scmp.ne.s32.totalorder %s45, %s46
      %p55 = scmp.eq.s32.totalorder %s14, 0
      %p56 = por %p54, %p55
      %p57 = scmp.ne.s32.totalorder %s45, %s46
      %p58 = scmp.eq.s32.totalorder %s15, 3
      %p59 = por %p57, %p58
      %p61 = scmp.ne.s32.totalorder %s46, %s60
      %p62 = scmp.eq.s32.totalorder %s15, 0
      %p63 = por %p61, %p62
      %s64 = ssub.s32 %s9, %s16
      %p65 = scmp.eq.s32.totalorder %s64, 0
      %s67 = sadd.s32 %s66, 1
      %s68 = scalar_select %p65, %s66, %s67
      %p71 = pneg %p65
      %p72 = scmp.eq.s32.totalorder %s9, 3
      %p73 = por %p71, %p72
      %p74 = scmp.ne.s32.totalorder %s66, %s69
      %p75 = scmp.eq.s32.totalorder %s9, 0
      %p76 = por %p74, %p75
      %p77 = scmp.ne.s32.totalorder %s66, %s69
      %p78 = scmp.eq.s32.totalorder %s14, 3
      %p79 = por %p77, %p78
      %p80 = scmp.ne.s32.totalorder %s69, %s70
      %p81 = scmp.eq.s32.totalorder %s14, 0
      %p82 = por %p80, %p81
      %p83 = scmp.ne.s32.totalorder %s69, %s70
      %p84 = scmp.eq.s32.totalorder %s15, 3
      %p85 = por %p83, %p84
      %p87 = scmp.ne.s32.totalorder %s70, %s86
      %p88 = scmp.eq.s32.totalorder %s15, 0
      %p89 = por %p87, %p88
      %p90 = scmp.le.s32.totalorder 1, %s9
      %p91 = scmp.lt.s32.totalorder %s9, 5
      %p92 = pnand %p90, %p91
      %p93 = pneg %p92
      // Predicated region
      $region9: #{branch_4_fun.4} parent=5 // pred_check
        _
      $region10: #{branch_4_fun.4} parent=5 // pred_check_branch
        %95 = sbr.rel (%p92) target = $region12
      $region11: #{branch_4_fun.4} parent=5 // pred_region
        %s96 = ssub.s32 %s9, 1
        // Predicated region
        $region13: #{branch_4_fun.4} parent=11 // pred_check
          %p97 = pneg %p56
        $region14: #{branch_4_fun.4} parent=11 // pred_check_branch
          %99 = sbr.rel (%p97) target = $region16
        $region15: #{branch_4_fun.4} parent=11 // pred_region
          %101 = vsyncadd [#allocation5], 0
          %s103 = sshll.u32 %s1, 4
          %s104 = int_to_ptr.vmem [resolvable:$true] %s103
          %106 = dma.vmem_to_smem %s104, 16, [#allocation4], [#allocation5]
        $region16: #{branch_4_fun.4} parent=11 // pred_fallthru
          _
      $region12: #{branch_4_fun.4} parent=5 // pred_fallthru
        _
      %p107 = scmp.lt.s32.totalorder %s9, 4
      // Predicated region
      $region17: #{branch_4_fun.4} parent=5 // pred_check
        %p108 = pneg %p107
      $region18: #{branch_4_fun.4} parent=5 // pred_check_branch
        %110 = sbr.rel (%p108) target = $region20
      $region19: #{branch_4_fun.4} parent=5 // pred_region
        // Predicated region
        $region21: #{branch_4_fun.4} parent=19 // pred_check
          %p111 = pneg %p29
        $region22: #{branch_4_fun.4} parent=19 // pred_check_branch
          %113 = sbr.rel (%p111) target = $region24
        $region23: #{branch_4_fun.4} parent=19 // pred_region
          %s114 = sand.u32 %s19, 1
          %s115 = sand.u32 %s19, 1
          %s116 = smul.addr %s115, 48
          %s117 = scalar_lea.vmem [#allocation3], %s116
          %s118 = smul.addr %s9, 3
          %s119 = smul.addr %s118, 8
          %s120 = scalar_lea.vmem %s0, %s119
          // Predicated region
          $region25: #{branch_4_fun.4} parent=23 // pred_check
            _
          $region26: #{branch_4_fun.4} parent=23 // pred_check_branch
            %122 = sbr.rel (0) target = $region28
          $region27: #{branch_4_fun.4} parent=23 // pred_region
            // Predicated region
            $region29: #{branch_4_fun.4} parent=27 // pred_check
              _
            $region30: #{branch_4_fun.4} parent=27 // pred_check_branch
              %124 = sbr.rel (0) target = $region32
            $region31: #{branch_4_fun.4} parent=27 // pred_region
              // Predicated region
              $region44: #{branch_4_fun.4} parent=31 // pred_check
                _
              $region45: #{branch_4_fun.4} parent=31 // pred_check_branch
                %150 = sbr.rel (0) target = $region47
              $region46: #{branch_4_fun.4} parent=31 // pred_region
                loop: start=0, step=1, limit=1
                $region48: #{branch_4_fun.4} parent=46 // loop_pre_header
                  _
                $region49: #{branch_4_fun.4} parent=46 // loop_header
                  %s152 = sphi 0, %s156
                  %p153 = scmp.ge.s32.totalorder %s152, 1
                  %s157 = sphi %s120, %s120
                  %s158 = sphi %s117, %s117
                $region50: #{branch_4_fun.4} parent=46 // loop_header_branch
                  %155 = sbr.rel (%p153) target = $region54
                $region51: #{branch_4_fun.4} parent=46 // loop_body
                  %v159 = vld [vmem:[%s157] sm:$0xff]
                  %160 = vst [vmem:[%s158] sm:$0xff] %v159
                  %v161 = vld [vmem:[%s157 + $0x8] sm:$0xff]
                  %162 = vst [vmem:[%s158 + $0x8] sm:$0xff] %v161
                  %v163 = vld [vmem:[%s157 + $0x10] sm:$0xff]
                  %164 = vst [vmem:[%s158 + $0x10] sm:$0xff] %v163
                  %v165 = vld [vmem:[%s157 + $0x60] sm:$0xff]
                  %166 = vst [vmem:[%s158 + $0x18] sm:$0xff] %v165
                  %v167 = vld [vmem:[%s157 + $0x68] sm:$0xff]
                  %168 = vst [vmem:[%s158 + $0x20] sm:$0xff] %v167
                  %v169 = vld [vmem:[%s157 + $0x70] sm:$0xff]
                  %170 = vst [vmem:[%s158 + $0x28] sm:$0xff] %v169
                $region52: #{branch_4_fun.4} parent=46 // loop_footer
                  %s156 = sadd.s32 1, %s152
                $region53: #{branch_4_fun.4} parent=46 // loop_footer_branch
                  %151 = sbr.rel target = $region49
                $region54: #{branch_4_fun.4} parent=46 // loop_exit
                  _
              $region47: #{branch_4_fun.4} parent=31 // pred_fallthru
                _
              // Predicated region
              $region55: #{branch_4_fun.4} parent=31 // pred_check
                _
              $region56: #{branch_4_fun.4} parent=31 // pred_check_branch
                %172 = sbr.rel target = $region58
              $region57: #{branch_4_fun.4} parent=31 // pred_region
                _
              $region58: #{branch_4_fun.4} parent=31 // pred_fallthru
                _
            $region32: #{branch_4_fun.4} parent=27 // pred_fallthru
              _
            // Predicated region
            $region33: #{branch_4_fun.4} parent=27 // pred_check
              _
            $region34: #{branch_4_fun.4} parent=27 // pred_check_branch
              %126 = sbr.rel target = $region36
            $region35: #{branch_4_fun.4} parent=27 // pred_region
              %s128 = ssub.s32 256, 1
              loop: start=0, step=1, limit=1
              $region37: #{branch_4_fun.4} parent=35 // loop_pre_header
                _
              $region38: #{branch_4_fun.4} parent=35 // loop_header
                %s130 = sphi 0, %s134
                %p131 = scmp.ge.s32.totalorder %s130, 1
                %s135 = sphi %s120, %s120
                %s136 = sphi %s117, %s117
              $region39: #{branch_4_fun.4} parent=35 // loop_header_branch
                %133 = sbr.rel (%p131) target = $region43
              $region40: #{branch_4_fun.4} parent=35 // loop_body
                %v137 = vld [vmem:[%s135] sm:%s128]
                %138 = vst [vmem:[%s136] sm:%s128] %v137
                %v139 = vld [vmem:[%s135 + $0x8] sm:%s128]
                %140 = vst [vmem:[%s136 + $0x8] sm:%s128] %v139
                %v141 = vld [vmem:[%s135 + $0x10] sm:%s128]
                %142 = vst [vmem:[%s136 + $0x10] sm:%s128] %v141
                %v143 = vld [vmem:[%s135 + $0x60] sm:%s128]
                %144 = vst [vmem:[%s136 + $0x18] sm:%s128] %v143
                %v145 = vld [vmem:[%s135 + $0x68] sm:%s128]
                %146 = vst [vmem:[%s136 + $0x20] sm:%s128] %v145
                %v147 = vld [vmem:[%s135 + $0x70] sm:%s128]
                %148 = vst [vmem:[%s136 + $0x28] sm:%s128] %v147
              $region41: #{branch_4_fun.4} parent=35 // loop_footer
                %s134 = sadd.s32 1, %s130
              $region42: #{branch_4_fun.4} parent=35 // loop_footer_branch
                %129 = sbr.rel target = $region38
              $region43: #{branch_4_fun.4} parent=35 // loop_exit
                _
            $region36: #{branch_4_fun.4} parent=27 // pred_fallthru
              _
          $region28: #{branch_4_fun.4} parent=23 // pred_fallthru
            _
          %173 = vnop
        $region24: #{branch_4_fun.4} parent=19 // pred_fallthru
          _
      $region20: #{branch_4_fun.4} parent=5 // pred_fallthru
        _
      %p174 = scmp.le.s32.totalorder 1, %s9
      %p175 = scmp.lt.s32.totalorder %s9, 5
      %p176 = pnand %p174, %p175
      %p177 = pneg %p176
      // Predicated region
      $region59: #{branch_4_fun.4} parent=5 // pred_check
        _
      $region60: #{branch_4_fun.4} parent=5 // pred_check_branch
        %179 = sbr.rel (%p176) target = $region62
      $region61: #{branch_4_fun.4} parent=5 // pred_region
        %s180 = ssub.s32 %s9, 1
        %s181 = sand.u32 %s22, 1
        %s182 = sand.u32 %s22, 1
        %s183 = smul.addr %s182, 48
        %s184 = scalar_lea.vmem [#allocation3], %s183
        // Predicated region
        $region63: #{branch_4_fun.4} parent=61 // pred_check
          %p185 = pneg %p35
        $region64: #{branch_4_fun.4} parent=61 // pred_check_branch
          %187 = sbr.rel (%p185) target = $region66
        $region65: #{branch_4_fun.4} parent=61 // pred_region
          _
        $region66: #{branch_4_fun.4} parent=61 // pred_fallthru
          _
        // Predicated region
        $region67: #{branch_4_fun.4} parent=61 // pred_check
          %p188 = pneg %p56
        $region68: #{branch_4_fun.4} parent=61 // pred_check_branch
          %190 = sbr.rel (%p188) target = $region70
        $region69: #{branch_4_fun.4} parent=61 // pred_region
          %192 = dma.done [#allocation5], 16
        $region70: #{branch_4_fun.4} parent=61 // pred_fallthru
          _
        %193 = sfence
        %s194 = sand.u32 %s22, 1
        %s195 = sand.u32 %s22, 1
        %s196 = smul.addr %s195, 48
        %s197 = scalar_lea.vmem [#allocation3], %s196
        %p198 = pneg %p35
        %p199 = pneg %p32
        %p200 = pneg %p56
        %p201 = pneg %p53
        %p202 = pneg %p82
        %p203 = pneg %p79
        %s204 = sand.u32 %s69, 1
        %s205 = sand.u32 %s69, 1
        %s206 = smul.addr %s205, 32
        %s207 = scalar_lea.vmem [#allocation6], %s206
        %v208 = vld [vmem:[%s184] sm:$0xff]
        %v209 = vld [vmem:[%s184 + $0x8] sm:$0xff]
        %v210 = vld [vmem:[%s184 + $0x10] sm:$0x3]
        %v211 = vld [vmem:[%s184 + $0x18] sm:$0xff]
        %v212 = vld [vmem:[%s184 + $0x20] sm:$0xff]
        %v213 = vld [vmem:[%s184 + $0x28] sm:$0x3]
        %v214 = vmax.f32 %v208, 0.0
        %v215 = vmax.f32 %v209, 0.0
        %v216 = vmax.f32 %v210, 0.0
        %v217 = vmax.f32 %v211, 0.0
        %v218 = vmax.f32 %v212, 0.0
        %v219 = vmax.f32 %v213, 0.0
        %vm220 = vcmask 146432
        %221 = vst.msk [vmem:[#allocation2] sm:$0xff] %vm220, %v214
        %222 = vst.msk [vmem:[#allocation2 + $0x8] sm:$0xff] %vm220, %v215
        %vm223 = vcmask 140288
        %224 = vst.msk [vmem:[#allocation2 + $0x10] sm:$0x3] %vm223, %v216
        %225 = vst.msk [vmem:[#allocation2 + $0x18] sm:$0xff] %vm220, %v217
        %226 = vst.msk [vmem:[#allocation2 + $0x20] sm:$0xff] %vm220, %v218
        %227 = vst.msk [vmem:[#allocation2 + $0x28] sm:$0x3] %vm223, %v219
        %s228 = smul.u32 %s14, 9
        %s229 = sld [smem:[#allocation4 + %s228]]
        %v230 = vld [vmem:[#allocation2] sm:$0xff]
        %v231 = vld [vmem:[#allocation2 + $0x8] sm:$0xff]
        %v232 = vld [vmem:[#allocation2 + $0x18] sm:$0xff]
        %v233 = vld [vmem:[#allocation2 + $0x20] sm:$0xff]
        %v234 = vstv %s229
        %v235 = vmul.f32 %v234, %v230
        %v236 = vmul.f32 %v234, %v231
        %v237 = vmul.f32 %v234, %v232
        %v238 = vmul.f32 %v234, %v233
        %v239 = vadd.f32 %v235, 0.0
        %v240 = vadd.f32 %v236, 0.0
        %v241 = vadd.f32 %v237, 0.0
        %v242 = vadd.f32 %v238, 0.0
        %s243 = sadd.s32 %s228, 1
        %s244 = sld [smem:[#allocation4 + %s243]]
        %v245 = vstv %s244
        %v246 = vmul.f32 %v245, %v230
        %v247 = vmul.f32 %v245, %v231
        %v248 = vmul.f32 %v245, %v232
        %v249 = vmul.f32 %v245, %v233
        %254 = vrot.lane.b32.xlu0 %v246, 127
        %v255 = vpop.permute.xlu0 %254
        %256 = vrot.lane.b32.xlu0 %v247, 127
        %v257 = vpop.permute.xlu0 %256
        %258 = vrot.lane.b32.xlu0 %v248, 127
        %v259 = vpop.permute.xlu0 %258
        %260 = vrot.lane.b32.xlu0 %v249, 127
        %v261 = vpop.permute.xlu0 %260
        %v266 = vadd.f32 %v239, %v255
        %v267 = vadd.f32 %v240, %v257
        %v268 = vadd.f32 %v241, %v259
        %v269 = vadd.f32 %v242, %v261
        %s270 = sadd.s32 %s228, 2
        %s271 = sld [smem:[#allocation4 + %s270]]
        %v272 = vstv %s271
        %v273 = vmul.f32 %v272, %v230
        %v274 = vmul.f32 %v272, %v231
        %v275 = vmul.f32 %v272, %v232
        %v276 = vmul.f32 %v272, %v233
        %281 = vrot.lane.b32.xlu0 %v273, 126
        %v282 = vpop.permute.xlu0 %281
        %283 = vrot.lane.b32.xlu0 %v274, 126
        %v284 = vpop.permute.xlu0 %283
        %285 = vrot.lane.b32.xlu0 %v275, 126
        %v286 = vpop.permute.xlu0 %285
        %287 = vrot.lane.b32.xlu0 %v276, 126
        %v288 = vpop.permute.xlu0 %287
        %v293 = vadd.f32 %v266, %v282
        %v294 = vadd.f32 %v267, %v284
        %v295 = vadd.f32 %v268, %v286
        %v296 = vadd.f32 %v269, %v288
        %s297 = sadd.s32 %s228, 3
        %s298 = sld [smem:[#allocation4 + %s297]]
        %v299 = vld [vmem:[#allocation2 + $0x1] sm:$0xff]
        %v300 = vld [vmem:[#allocation2 + $0x9] sm:$0xff]
        %v301 = vld [vmem:[#allocation2 + $0x19] sm:$0xff]
        %v302 = vld [vmem:[#allocation2 + $0x21] sm:$0xff]
        %v303 = vstv %s298
        %v304 = vmul.f32 %v303, %v299
        %v305 = vmul.f32 %v303, %v300
        %v306 = vmul.f32 %v303, %v301
        %v307 = vmul.f32 %v303, %v302
        %v308 = vadd.f32 %v293, %v304
        %v309 = vadd.f32 %v294, %v305
        %v310 = vadd.f32 %v295, %v306
        %v311 = vadd.f32 %v296, %v307
        %s312 = sadd.s32 %s228, 4
        %s313 = sld [smem:[#allocation4 + %s312]]
        %v314 = vstv %s313
        %v315 = vmul.f32 %v314, %v299
        %v316 = vmul.f32 %v314, %v300
        %v317 = vmul.f32 %v314, %v301
        %v318 = vmul.f32 %v314, %v302
        %323 = vrot.lane.b32.xlu0 %v315, 127
        %v324 = vpop.permute.xlu0 %323
        %325 = vrot.lane.b32.xlu0 %v316, 127
        %v326 = vpop.permute.xlu0 %325
        %327 = vrot.lane.b32.xlu0 %v317, 127
        %v328 = vpop.permute.xlu0 %327
        %329 = vrot.lane.b32.xlu0 %v318, 127
        %v330 = vpop.permute.xlu0 %329
        %v335 = vadd.f32 %v308, %v324
        %v336 = vadd.f32 %v309, %v326
        %v337 = vadd.f32 %v310, %v328
        %v338 = vadd.f32 %v311, %v330
        %s339 = sadd.s32 %s228, 5
        %s340 = sld [smem:[#allocation4 + %s339]]
        %v341 = vstv %s340
        %v342 = vmul.f32 %v341, %v299
        %v343 = vmul.f32 %v341, %v300
        %v344 = vmul.f32 %v341, %v301
        %v345 = vmul.f32 %v341, %v302
        %350 = vrot.lane.b32.xlu0 %v342, 126
        %v351 = vpop.permute.xlu0 %350
        %352 = vrot.lane.b32.xlu0 %v343, 126
        %v353 = vpop.permute.xlu0 %352
        %354 = vrot.lane.b32.xlu0 %v344, 126
        %v355 = vpop.permute.xlu0 %354
        %356 = vrot.lane.b32.xlu0 %v345, 126
        %v357 = vpop.permute.xlu0 %356
        %v362 = vadd.f32 %v335, %v351
        %v363 = vadd.f32 %v336, %v353
        %v364 = vadd.f32 %v337, %v355
        %v365 = vadd.f32 %v338, %v357
        %s366 = sadd.s32 %s228, 6
        %s367 = sld [smem:[#allocation4 + %s366]]
        %v368 = vld [vmem:[#allocation2 + $0x2] sm:$0xff]
        %v369 = vld [vmem:[#allocation2 + $0xa] sm:$0xff]
        %v370 = vld [vmem:[#allocation2 + $0x1a] sm:$0xff]
        %v371 = vld [vmem:[#allocation2 + $0x22] sm:$0xff]
        %v372 = vstv %s367
        %v373 = vmul.f32 %v372, %v368
        %v374 = vmul.f32 %v372, %v369
        %v375 = vmul.f32 %v372, %v370
        %v376 = vmul.f32 %v372, %v371
        %v377 = vadd.f32 %v362, %v373
        %v378 = vadd.f32 %v363, %v374
        %v379 = vadd.f32 %v364, %v375
        %v380 = vadd.f32 %v365, %v376
        %s381 = sadd.s32 %s228, 7
        %s382 = sld [smem:[#allocation4 + %s381]]
        %v383 = vstv %s382
        %v384 = vmul.f32 %v383, %v368
        %v385 = vmul.f32 %v383, %v369
        %v386 = vmul.f32 %v383, %v370
        %v387 = vmul.f32 %v383, %v371
        %392 = vrot.lane.b32.xlu0 %v384, 127
        %v393 = vpop.permute.xlu0 %392
        %394 = vrot.lane.b32.xlu0 %v385, 127
        %v395 = vpop.permute.xlu0 %394
        %396 = vrot.lane.b32.xlu0 %v386, 127
        %v397 = vpop.permute.xlu0 %396
        %398 = vrot.lane.b32.xlu0 %v387, 127
        %v399 = vpop.permute.xlu0 %398
        %v404 = vadd.f32 %v377, %v393
        %v405 = vadd.f32 %v378, %v395
        %v406 = vadd.f32 %v379, %v397
        %v407 = vadd.f32 %v380, %v399
        %s408 = sadd.s32 %s228, 8
        %s409 = sld [smem:[#allocation4 + %s408]]
        %v410 = vstv %s409
        %v411 = vmul.f32 %v410, %v368
        %v412 = vmul.f32 %v410, %v369
        %v413 = vmul.f32 %v410, %v370
        %v414 = vmul.f32 %v410, %v371
        %419 = vrot.lane.b32.xlu0 %v411, 126
        %v420 = vpop.permute.xlu0 %419
        %421 = vrot.lane.b32.xlu0 %v412, 126
        %v422 = vpop.permute.xlu0 %421
        %423 = vrot.lane.b32.xlu0 %v413, 126
        %v424 = vpop.permute.xlu0 %423
        %425 = vrot.lane.b32.xlu0 %v414, 126
        %v426 = vpop.permute.xlu0 %425
        %v431 = vadd.f32 %v404, %v420
        %v432 = vadd.f32 %v405, %v422
        %v433 = vadd.f32 %v406, %v424
        %v434 = vadd.f32 %v407, %v426
        %vm435 = vcmask 130048
        %436 = vst.msk [vmem:[%s207] sm:$0xff] %vm435, %v431
        %437 = vst.msk [vmem:[%s207 + $0x8] sm:$0xff] %vm435, %v432
        %438 = vst.msk [vmem:[%s207 + $0x10] sm:$0xff] %vm435, %v433
        %439 = vst.msk [vmem:[%s207 + $0x18] sm:$0xff] %vm435, %v434
        %s440 = sand.u32 %s69, 1
        %s441 = sand.u32 %s69, 1
        %s442 = smul.addr %s441, 32
        %s443 = scalar_lea.vmem [#allocation6], %s442
        // Predicated region
        $region71: #{branch_4_fun.4} parent=61 // pred_check
          %p444 = pneg %p79
        $region72: #{branch_4_fun.4} parent=61 // pred_check_branch
          %446 = sbr.rel (%p444) target = $region74
        $region73: #{branch_4_fun.4} parent=61 // pred_region
          %s447 = smul.addr %s14, 2
          %s448 = smul.addr %s447, 8
          %s449 = scalar_lea.vmem %s2, %s448
          // Predicated region
          $region75: #{branch_4_fun.4} parent=73 // pred_check
            _
          $region76: #{branch_4_fun.4} parent=73 // pred_check_branch
            %451 = sbr.rel (0) target = $region78
          $region77: #{branch_4_fun.4} parent=73 // pred_region
            // Predicated region
            $region79: #{branch_4_fun.4} parent=77 // pred_check
              _
            $region80: #{branch_4_fun.4} parent=77 // pred_check_branch
              %453 = sbr.rel (0) target = $region82
            $region81: #{branch_4_fun.4} parent=77 // pred_region
              // Predicated region
              $region94: #{branch_4_fun.4} parent=81 // pred_check
                _
              $region95: #{branch_4_fun.4} parent=81 // pred_check_branch
                %475 = sbr.rel (0) target = $region97
              $region96: #{branch_4_fun.4} parent=81 // pred_region
                loop: start=0, step=1, limit=1
                $region98: #{branch_4_fun.4} parent=96 // loop_pre_header
                  _
                $region99: #{branch_4_fun.4} parent=96 // loop_header
                  %s477 = sphi 0, %s481
                  %p478 = scmp.ge.s32.totalorder %s477, 1
                  %s482 = sphi %s443, %s443
                  %s483 = sphi %s449, %s449
                $region100: #{branch_4_fun.4} parent=96 // loop_header_branch
                  %480 = sbr.rel (%p478) target = $region104
                $region101: #{branch_4_fun.4} parent=96 // loop_body
                  %v484 = vld [vmem:[%s482] sm:$0xff]
                  %485 = vst [vmem:[%s483] sm:$0xff] %v484
                  %v486 = vld [vmem:[%s482 + $0x8] sm:$0xff]
                  %487 = vst [vmem:[%s483 + $0x8] sm:$0xff] %v486
                  %v488 = vld [vmem:[%s482 + $0x10] sm:$0xff]
                  %489 = vst [vmem:[%s483 + $0x40] sm:$0xff] %v488
                  %v490 = vld [vmem:[%s482 + $0x18] sm:$0xff]
                  %491 = vst [vmem:[%s483 + $0x48] sm:$0xff] %v490
                $region102: #{branch_4_fun.4} parent=96 // loop_footer
                  %s481 = sadd.s32 1, %s477
                $region103: #{branch_4_fun.4} parent=96 // loop_footer_branch
                  %476 = sbr.rel target = $region99
                $region104: #{branch_4_fun.4} parent=96 // loop_exit
                  _
              $region97: #{branch_4_fun.4} parent=81 // pred_fallthru
                _
              // Predicated region
              $region105: #{branch_4_fun.4} parent=81 // pred_check
                _
              $region106: #{branch_4_fun.4} parent=81 // pred_check_branch
                %493 = sbr.rel target = $region108
              $region107: #{branch_4_fun.4} parent=81 // pred_region
                _
              $region108: #{branch_4_fun.4} parent=81 // pred_fallthru
                _
            $region82: #{branch_4_fun.4} parent=77 // pred_fallthru
              _
            // Predicated region
            $region83: #{branch_4_fun.4} parent=77 // pred_check
              _
            $region84: #{branch_4_fun.4} parent=77 // pred_check_branch
              %455 = sbr.rel target = $region86
            $region85: #{branch_4_fun.4} parent=77 // pred_region
              %s457 = ssub.s32 256, 1
              loop: start=0, step=1, limit=1
              $region87: #{branch_4_fun.4} parent=85 // loop_pre_header
                _
              $region88: #{branch_4_fun.4} parent=85 // loop_header
                %s459 = sphi 0, %s463
                %p460 = scmp.ge.s32.totalorder %s459, 1
                %s464 = sphi %s443, %s443
                %s465 = sphi %s449, %s449
              $region89: #{branch_4_fun.4} parent=85 // loop_header_branch
                %462 = sbr.rel (%p460) target = $region93
              $region90: #{branch_4_fun.4} parent=85 // loop_body
                %v466 = vld [vmem:[%s464] sm:%s457]
                %467 = vst [vmem:[%s465] sm:%s457] %v466
                %v468 = vld [vmem:[%s464 + $0x8] sm:%s457]
                %469 = vst [vmem:[%s465 + $0x8] sm:%s457] %v468
                %v470 = vld [vmem:[%s464 + $0x10] sm:%s457]
                %471 = vst [vmem:[%s465 + $0x40] sm:%s457] %v470
                %v472 = vld [vmem:[%s464 + $0x18] sm:%s457]
                %473 = vst [vmem:[%s465 + $0x48] sm:%s457] %v472
              $region91: #{branch_4_fun.4} parent=85 // loop_footer
                %s463 = sadd.s32 1, %s459
              $region92: #{branch_4_fun.4} parent=85 // loop_footer_branch
                %458 = sbr.rel target = $region88
              $region93: #{branch_4_fun.4} parent=85 // loop_exit
                _
            $region86: #{branch_4_fun.4} parent=77 // pred_fallthru
              _
          $region78: #{branch_4_fun.4} parent=73 // pred_fallthru
            _
          %494 = vnop
        $region74: #{branch_4_fun.4} parent=61 // pred_fallthru
          _
      $region62: #{branch_4_fun.4} parent=5 // pred_fallthru
        _
      %p495 = scmp.le.s32.totalorder 2, %s9
      // Predicated region
      $region109: #{branch_4_fun.4} parent=5 // pred_check
        %p496 = pneg %p495
      $region110: #{branch_4_fun.4} parent=5 // pred_check_branch
        %498 = sbr.rel (%p496) target = $region112
      $region111: #{branch_4_fun.4} parent=5 // pred_region
        %s499 = ssub.s32 %s9, 2
        // Predicated region
        $region113: #{branch_4_fun.4} parent=111 // pred_check
          %p500 = pneg %p85
        $region114: #{branch_4_fun.4} parent=111 // pred_check_branch
          %502 = sbr.rel (%p500) target = $region116
        $region115: #{branch_4_fun.4} parent=111 // pred_region
          %s503 = sand.u32 %s70, 1
          %s504 = sand.u32 %s70, 1
          %s505 = smul.addr %s504, 32
          %s506 = scalar_lea.vmem [#allocation6], %s505
        $region116: #{branch_4_fun.4} parent=111 // pred_fallthru
          _
      $region112: #{branch_4_fun.4} parent=5 // pred_fallthru
        _
    $region6: #{branch_4_fun.4} parent=1 // loop_footer
      %s13 = sadd.s32 1, %s9
    $region7: #{branch_4_fun.4} parent=1 // loop_footer_branch
      %8 = sbr.rel target = $region3
    $region8: #{branch_4_fun.4} parent=1 // loop_exit
      _
    %507 = vsyncpa [#allocation5], 1
    %s508 = scalar_lea.sflag [#allocation5], 1
    %509 = vsyncpa %s508, 1

// kernel: branch_5_fun.4
$region0: #{branch_5_fun.4}
  #allocation0 [shape = 'u32[]', space=smem, size = 0x4, offset = 0x4, fixed_abs, tag = 'smem constant byte address 0x4 - core index']
  #allocation1 [shape = 'u32[72,128]{1,0:T(1,128)}', space=vmem, size = 0x9000, scoped, tag = 'internal scratch']
  #allocation2 [shape = 'f32[2,1,20,20]{3,2,1,0:T(8,128)}', space=vmem, size = 0x6000, scoped, tag = 'scratch operand']
  %s0 = inlined_call_operand.vmem [shape: f32[2,4,20,20], index: 0, kind: input, shape index: {}]
  %s1 = inlined_call_operand.vmem [shape: f32[100], index: 1, kind: input, shape index: {}]
  %s2 = inlined_call_operand.vmem [shape: f32[2,4,16,16], index: 2, kind: output, shape index: {}]
  %s3 = sld [smem:[#allocation0]]
  $region117: #{branch_5_fun.4} parent=0
    _
  %s5 = ssub.s32 1, %s3
  %s6 = scalar_select 0, %s5, %s3
  $region1: #{branch_5_fun.4} parent=0
    #allocation3 [shape = 'u8[49152]{0}', space=vmem, size = 0xc000, scoped, tag = 'input window, operand 0']
    #allocation4 [shape = 'u8[512]{0}', space=smem, size = 0x200, scoped, tag = 'input window, operand 1, single buffered']
    #allocation5 [shape = 's32[2]{0}', space=sflag, size = 0x8, scoped, tag = 'scoped memory for branch_5_fun.4']
    #allocation6 [shape = 'u8[32768]{0}', space=vmem, size = 0x8000, scoped, tag = 'output window, operand 0']
    %7 = vsyncpa [#allocation5], 0
    loop: start=0, step=1, limit=6
    $region2: #{branch_5_fun.4} parent=1 // loop_pre_header
      _
    $region3: #{branch_5_fun.4} parent=1 // loop_header
      %s9 = sphi 0, %s13
      %p10 = scmp.ge.s32.totalorder %s9, 6
      %s19 = sphi 0, %s21
      %s22 = sphi 0, %s19
      %s23 = sphi 0, %s22
      %s39 = sphi 0, %s23
      %s43 = sphi 0, %s43
      %s45 = sphi 0, %s43
      %s46 = sphi 0, %s45
      %s60 = sphi 0, %s46
      %s66 = sphi 0, %s68
      %s69 = sphi 0, %s66
      %s70 = sphi 0, %s69
      %s86 = sphi 0, %s70
    $region4: #{branch_5_fun.4} parent=1 // loop_header_branch
      %12 = sbr.rel (%p10) target = $region8
    $region5: #{branch_5_fun.4} parent=1 // loop_body
      %s14 = ssub.s32 %s9, 1
      %s15 = ssub.s32 %s9, 2
      %s16 = sadd.s32 %s9, 1
      %s17 = ssub.s32 %s9, %s16
      %p18 = scmp.eq.s32.totalorder %s17, 0
      %s20 = sadd.s32 %s19, 1
      %s21 = scalar_select %p18, %s19, %s20
      %p24 = pneg %p18
      %p25 = scmp.eq.s32.totalorder %s9, 3
      %p26 = por %p24, %p25
      %p27 = scmp.ne.s32.totalorder %s19, %s22
      %p28 = scmp.eq.s32.totalorder %s9, 0
      %p29 = por %p27, %p28
      %p30 = scmp.ne.s32.totalorder %s19, %s22
      %p31 = scmp.eq.s32.totalorder %s14, 3
      %p32 = por %p30, %p31
      %p33 = scmp.ne.s32.totalorder %s22, %s23
      %p34 = scmp.eq.s32.totalorder %s14, 0
      %p35 = por %p33, %p34
      %p36 = scmp.ne.s32.totalorder %s22, %s23
      %p37 = scmp.eq.s32.totalorder %s15, 3
      %p38 = por %p36, %p37
      %p40 = scmp.ne.s32.totalorder %s23, %s39
      %p41 = scmp.eq.s32.totalorder %s15, 0
      %p42 = por %p40, %p41
      %s44 = sadd.s32 %s43, 1
      %p47 = scmp.eq.s32.totalorder %s9, 3
      %p48 = scmp.ne.s32.totalorder %s43, %s45
      %p49 = scmp.eq.s32.totalorder %s9, 0
      %p50 = por %p48, %p49
      %p51 = scmp.ne.s32.totalorder %s43, %s45
      %p52 = scmp.eq.s32.totalorder %s14, 3
      %p53 = por %p51, %p52
      %p54 = scmp.ne.s32.totalorder %s45, %s46
      %p55 = scmp.eq.s32.totalorder %s14, 0
      %p56 = por %p54, %p55
      %p57 = scmp.ne.s32.totalorder %s45, %s46
      %p58 = scmp.eq.s32.totalorder %s15, 3
      %p59 = por %p57, %p58
      %p61 = scmp.ne.s32.totalorder %s46, %s60
      %p62 = scmp.eq.s32.totalorder %s15, 0
      %p63 = por %p61, %p62
      %s64 = ssub.s32 %s9, %s16
      %p65 = scmp.eq.s32.totalorder %s64, 0
      %s67 = sadd.s32 %s66, 1
      %s68 = scalar_select %p65, %s66, %s67
      %p71 = pneg %p65
      %p72 = scmp.eq.s32.totalorder %s9, 3
      %p73 = por %p71, %p72
      %p74 = scmp.ne.s32.totalorder %s66, %s69
      %p75 = scmp.eq.s32.totalorder %s9, 0
      %p76 = por %p74, %p75
      %p77 = scmp.ne.s32.totalorder %s66, %s69
      %p78 = scmp.eq.s32.totalorder %s14, 3
      %p79 = por %p77, %p78
      %p80 = scmp.ne.s32.totalorder %s69, %s70
      %p81 = scmp.eq.s32.totalorder %s14, 0
      %p82 = por %p80, %p81
      %p83 = scmp.ne.s32.totalorder %s69, %s70
      %p84 = scmp.eq.s32.totalorder %s15, 3
      %p85 = por %p83, %p84
      %p87 = scmp.ne.s32.totalorder %s70, %s86
      %p88 = scmp.eq.s32.totalorder %s15, 0
      %p89 = por %p87, %p88
      %p90 = scmp.le.s32.totalorder 1, %s9
      %p91 = scmp.lt.s32.totalorder %s9, 5
      %p92 = pnand %p90, %p91
      %p93 = pneg %p92
      // Predicated region
      $region9: #{branch_5_fun.4} parent=5 // pred_check
        _
      $region10: #{branch_5_fun.4} parent=5 // pred_check_branch
        %95 = sbr.rel (%p92) target = $region12
      $region11: #{branch_5_fun.4} parent=5 // pred_region
        %s96 = ssub.s32 %s9, 1
        // Predicated region
        $region13: #{branch_5_fun.4} parent=11 // pred_check
          %p97 = pneg %p56
        $region14: #{branch_5_fun.4} parent=11 // pred_check_branch
          %99 = sbr.rel (%p97) target = $region16
        $region15: #{branch_5_fun.4} parent=11 // pred_region
          %101 = vsyncadd [#allocation5], 0
          %s103 = sshll.u32 %s1, 4
          %s104 = int_to_ptr.vmem [resolvable:$true] %s103
          %106 = dma.vmem_to_smem %s104, 16, [#allocation4], [#allocation5]
        $region16: #{branch_5_fun.4} parent=11 // pred_fallthru
          _
      $region12: #{branch_5_fun.4} parent=5 // pred_fallthru
        _
      %p107 = scmp.lt.s32.totalorder %s9, 4
      // Predicated region
      $region17: #{branch_5_fun.4} parent=5 // pred_check
        %p108 = pneg %p107
      $region18: #{branch_5_fun.4} parent=5 // pred_check_branch
        %110 = sbr.rel (%p108) target = $region20
      $region19: #{branch_5_fun.4} parent=5 // pred_region
        // Predicated region
        $region21: #{branch_5_fun.4} parent=19 // pred_check
          %p111 = pneg %p29
        $region22: #{branch_5_fun.4} parent=19 // pred_check_branch
          %113 = sbr.rel (%p111) target = $region24
        $region23: #{branch_5_fun.4} parent=19 // pred_region
          %s114 = sand.u32 %s19, 1
          %s115 = sand.u32 %s19, 1
          %s116 = smul.addr %s115, 48
          %s117 = scalar_lea.vmem [#allocation3], %s116
          %s118 = smul.addr %s9, 3
          %s119 = smul.addr %s118, 8
          %s120 = scalar_lea.vmem %s0, %s119
          // Predicated region
          $region25: #{branch_5_fun.4} parent=23 // pred_check
            _
          $region26: #{branch_5_fun.4} parent=23 // pred_check_branch
            %122 = sbr.rel (0) target = $region28
          $region27: #{branch_5_fun.4} parent=23 // pred_region
            // Predicated region
            $region29: #{branch_5_fun.4} parent=27 // pred_check
              _
            $region30: #{branch_5_fun.4} parent=27 // pred_check_branch
              %124 = sbr.rel (0) target = $region32
            $region31: #{branch_5_fun.4} parent=27 // pred_region
              // Predicated region
              $region44: #{branch_5_fun.4} parent=31 // pred_check
                _
              $region45: #{branch_5_fun.4} parent=31 // pred_check_branch
                %150 = sbr.rel (0) target = $region47
              $region46: #{branch_5_fun.4} parent=31 // pred_region
                loop: start=0, step=1, limit=1
                $region48: #{branch_5_fun.4} parent=46 // loop_pre_header
                  _
                $region49: #{branch_5_fun.4} parent=46 // loop_header
                  %s152 = sphi 0, %s156
                  %p153 = scmp.ge.s32.totalorder %s152, 1
                  %s157 = sphi %s120, %s120
                  %s158 = sphi %s117, %s117
                $region50: #{branch_5_fun.4} parent=46 // loop_header_branch
                  %155 = sbr.rel (%p153) target = $region54
                $region51: #{branch_5_fun.4} parent=46 // loop_body
                  %v159 = vld [vmem:[%s157] sm:$0xff]
                  %160 = vst [vmem:[%s158] sm:$0xff] %v159
                  %v161 = vld [vmem:[%s157 + $0x8] sm:$0xff]
                  %162 = vst [vmem:[%s158 + $0x8] sm:$0xff] %v161
                  %v163 = vld [vmem:[%s157 + $0x10] sm:$0xff]
                  %164 = vst [vmem:[%s158 + $0x10] sm:$0xff] %v163
                  %v165 = vld [vmem:[%s157 + $0x60] sm:$0xff]
                  %166 = vst [vmem:[%s158 + $0x18] sm:$0xff] %v165
                  %v167 = vld [vmem:[%s157 + $0x68] sm:$0xff]
                  %168 = vst [vmem:[%s158 + $0x20] sm:$0xff] %v167
                  %v169 = vld [vmem:[%s157 + $0x70] sm:$0xff]
                  %170 = vst [vmem:[%s158 + $0x28] sm:$0xff] %v169
                $region52: #{branch_5_fun.4} parent=46 // loop_footer
                  %s156 = sadd.s32 1, %s152
                $region53: #{branch_5_fun.4} parent=46 // loop_footer_branch
                  %151 = sbr.rel target = $region49
                $region54: #{branch_5_fun.4} parent=46 // loop_exit
                  _
              $region47: #{branch_5_fun.4} parent=31 // pred_fallthru
                _
              // Predicated region
              $region55: #{branch_5_fun.4} parent=31 // pred_check
                _
              $region56: #{branch_5_fun.4} parent=31 // pred_check_branch
                %172 = sbr.rel target = $region58
              $region57: #{branch_5_fun.4} parent=31 // pred_region
                _
              $region58: #{branch_5_fun.4} parent=31 // pred_fallthru
                _
            $region32: #{branch_5_fun.4} parent=27 // pred_fallthru
              _
            // Predicated region
            $region33: #{branch_5_fun.4} parent=27 // pred_check
              _
            $region34: #{branch_5_fun.4} parent=27 // pred_check_branch
              %126 = sbr.rel target = $region36
            $region35: #{branch_5_fun.4} parent=27 // pred_region
              %s128 = ssub.s32 256, 1
              loop: start=0, step=1, limit=1
              $region37: #{branch_5_fun.4} parent=35 // loop_pre_header
                _
              $region38: #{branch_5_fun.4} parent=35 // loop_header
                %s130 = sphi 0, %s134
                %p131 = scmp.ge.s32.totalorder %s130, 1
                %s135 = sphi %s120, %s120
                %s136 = sphi %s117, %s117
              $region39: #{branch_5_fun.4} parent=35 // loop_header_branch
                %133 = sbr.rel (%p131) target = $region43
              $region40: #{branch_5_fun.4} parent=35 // loop_body
                %v137 = vld [vmem:[%s135] sm:%s128]
                %138 = vst [vmem:[%s136] sm:%s128] %v137
                %v139 = vld [vmem:[%s135 + $0x8] sm:%s128]
                %140 = vst [vmem:[%s136 + $0x8] sm:%s128] %v139
                %v141 = vld [vmem:[%s135 + $0x10] sm:%s128]
                %142 = vst [vmem:[%s136 + $0x10] sm:%s128] %v141
                %v143 = vld [vmem:[%s135 + $0x60] sm:%s128]
                %144 = vst [vmem:[%s136 + $0x18] sm:%s128] %v143
                %v145 = vld [vmem:[%s135 + $0x68] sm:%s128]
                %146 = vst [vmem:[%s136 + $0x20] sm:%s128] %v145
                %v147 = vld [vmem:[%s135 + $0x70] sm:%s128]
                %148 = vst [vmem:[%s136 + $0x28] sm:%s128] %v147
              $region41: #{branch_5_fun.4} parent=35 // loop_footer
                %s134 = sadd.s32 1, %s130
              $region42: #{branch_5_fun.4} parent=35 // loop_footer_branch
                %129 = sbr.rel target = $region38
              $region43: #{branch_5_fun.4} parent=35 // loop_exit
                _
            $region36: #{branch_5_fun.4} parent=27 // pred_fallthru
              _
          $region28: #{branch_5_fun.4} parent=23 // pred_fallthru
            _
          %173 = vnop
        $region24: #{branch_5_fun.4} parent=19 // pred_fallthru
          _
      $region20: #{branch_5_fun.4} parent=5 // pred_fallthru
        _
      %p174 = scmp.le.s32.totalorder 1, %s9
      %p175 = scmp.lt.s32.totalorder %s9, 5
      %p176 = pnand %p174, %p175
      %p177 = pneg %p176
      // Predicated region
      $region59: #{branch_5_fun.4} parent=5 // pred_check
        _
      $region60: #{branch_5_fun.4} parent=5 // pred_check_branch
        %179 = sbr.rel (%p176) target = $region62
      $region61: #{branch_5_fun.4} parent=5 // pred_region
        %s180 = ssub.s32 %s9, 1
        %s181 = sand.u32 %s22, 1
        %s182 = sand.u32 %s22, 1
        %s183 = smul.addr %s182, 48
        %s184 = scalar_lea.vmem [#allocation3], %s183
        // Predicated region
        $region63: #{branch_5_fun.4} parent=61 // pred_check
          %p185 = pneg %p35
        $region64: #{branch_5_fun.4} parent=61 // pred_check_branch
          %187 = sbr.rel (%p185) target = $region66
        $region65: #{branch_5_fun.4} parent=61 // pred_region
          _
        $region66: #{branch_5_fun.4} parent=61 // pred_fallthru
          _
        // Predicated region
        $region67: #{branch_5_fun.4} parent=61 // pred_check
          %p188 = pneg %p56
        $region68: #{branch_5_fun.4} parent=61 // pred_check_branch
          %190 = sbr.rel (%p188) target = $region70
        $region69: #{branch_5_fun.4} parent=61 // pred_region
          %192 = dma.done [#allocation5], 16
        $region70: #{branch_5_fun.4} parent=61 // pred_fallthru
          _
        %193 = sfence
        %s194 = sand.u32 %s22, 1
        %s195 = sand.u32 %s22, 1
        %s196 = smul.addr %s195, 48
        %s197 = scalar_lea.vmem [#allocation3], %s196
        %p198 = pneg %p35
        %p199 = pneg %p32
        %p200 = pneg %p56
        %p201 = pneg %p53
        %p202 = pneg %p82
        %p203 = pneg %p79
        %s204 = sand.u32 %s69, 1
        %s205 = sand.u32 %s69, 1
        %s206 = smul.addr %s205, 32
        %s207 = scalar_lea.vmem [#allocation6], %s206
        %v208 = vld [vmem:[%s184] sm:$0xff]
        %v209 = vld [vmem:[%s184 + $0x8] sm:$0xff]
        %v210 = vld [vmem:[%s184 + $0x10] sm:$0xf]
        %v211 = vld [vmem:[%s184 + $0x18] sm:$0xff]
        %v212 = vld [vmem:[%s184 + $0x20] sm:$0xff]
        %v213 = vld [vmem:[%s184 + $0x28] sm:$0xf]
        %v214 = vmax.f32 %v208, 0.0
        %v215 = vmax.f32 %v209, 0.0
        %v216 = vmax.f32 %v210, 0.0
        %v217 = vmax.f32 %v211, 0.0
        %v218 = vmax.f32 %v212, 0.0
        %v219 = vmax.f32 %v213, 0.0
        %vm220 = vcmask 162816
        %221 = vst.msk [vmem:[#allocation2] sm:$0xff] %vm220, %v214
        %222 = vst.msk [vmem:[#allocation2 + $0x8] sm:$0xff] %vm220, %v215
        %vm223 = vcmask 158720
        %224 = vst.msk [vmem:[#allocation2 + $0x10] sm:$0xf] %vm223, %v216
        %225 = vst.msk [vmem:[#allocation2 + $0x18] sm:$0xff] %vm220, %v217
        %226 = vst.msk [vmem:[#allocation2 + $0x20] sm:$0xff] %vm220, %v218
        %227 = vst.msk [vmem:[#allocation2 + $0x28] sm:$0xf] %vm223, %v219
        %s228 = smul.u32 %s14, 25
        %s229 = sld [smem:[#allocation4 + %s228]]
        %v230 = vld [vmem:[#allocation2] sm:$0xff]
        %v231 = vld [vmem:[#allocation2 + $0x8] sm:$0xff]
        %v232 = vld [vmem:[#allocation2 + $0x18] sm:$0xff]
        %v233 = vld [vmem:[#allocation2 + $0x20] sm:$0xff]
        %v234 = vstv %s229
        %v235 = vmul.f32 %v234, %v230
        %v236 = vmul.f32 %v234, %v231
        %v237 = vmul.f32 %v234, %v232
        %v238 = vmul.f32 %v234, %v233
        %v239 = vadd.f32 %v235, 0.0
        %v240 = vadd.f32 %v236, 0.0
        %v241 = vadd.f32 %v237, 0.0
        %v242 = vadd.f32 %v238, 0.0
        %s243 = sadd.s32 %s228, 1
        %s244 = sld [smem:[#allocation4 + %s243]]
        %v245 = vstv %s244
        %v246 = vmul.f32 %v245, %v230
        %v247 = vmul.f32 %v245, %v231
        %v248 = vmul.f32 %v245, %v232
        %v249 = vmul.f32 %v245, %v233
        %254 = vrot.lane.b32.xlu0 %v246, 127
        %v255 = vpop.permute.xlu0 %254
        %256 = vrot.lane.b32.xlu0 %v247, 127
        %v257 = vpop.permute.xlu0 %256
        %258 = vrot.lane.b32.xlu0 %v248, 127
        %v259 = vpop.permute.xlu0 %258
        %260 = vrot.lane.b32.xlu0 %v249, 127
        %v261 = vpop.permute.xlu0 %260
        %v266 = vadd.f32 %v239, %v255
        %v267 = vadd.f32 %v240, %v257
        %v268 = vadd.f32 %v241, %v259
        %v269 = vadd.f32 %v242, %v261
        %s270 = sadd.s32 %s228, 2
        %s271 = sld [smem:[#allocation4 + %s270]]
        %v272 = vstv %s271
        %v273 = vmul.f32 %v272, %v230
        %v274 = vmul.f32 %v272, %v231
        %v275 = vmul.f32 %v272, %v232
        %v276 = vmul.f32 %v272, %v233
        %281 = vrot.lane.b32.xlu0 %v273, 126
        %v282 = vpop.permute.xlu0 %281
        %283 = vrot.lane.b32.xlu0 %v274, 126
        %v284 = vpop.permute.xlu0 %283
        %285 = vrot.lane.b32.xlu0 %v275, 126
        %v286 = vpop.permute.xlu0 %285
        %287 = vrot.lane.b32.xlu0 %v276, 126
        %v288 = vpop.permute.xlu0 %287
        %v293 = vadd.f32 %v266, %v282
        %v294 = vadd.f32 %v267, %v284
        %v295 = vadd.f32 %v268, %v286
        %v296 = vadd.f32 %v269, %v288
        %s297 = sadd.s32 %s228, 3
        %s298 = sld [smem:[#allocation4 + %s297]]
        %v299 = vstv %s298
        %v300 = vmul.f32 %v299, %v230
        %v301 = vmul.f32 %v299, %v231
        %v302 = vmul.f32 %v299, %v232
        %v303 = vmul.f32 %v299, %v233
        %308 = vrot.lane.b32.xlu0 %v300, 125
        %v309 = vpop.permute.xlu0 %308
        %310 = vrot.lane.b32.xlu0 %v301, 125
        %v311 = vpop.permute.xlu0 %310
        %312 = vrot.lane.b32.xlu0 %v302, 125
        %v313 = vpop.permute.xlu0 %312
        %314 = vrot.lane.b32.xlu0 %v303, 125
        %v315 = vpop.permute.xlu0 %314
        %v320 = vadd.f32 %v293, %v309
        %v321 = vadd.f32 %v294, %v311
        %v322 = vadd.f32 %v295, %v313
        %v323 = vadd.f32 %v296, %v315
        %s324 = sadd.s32 %s228, 4
        %s325 = sld [smem:[#allocation4 + %s324]]
        %v326 = vstv %s325
        %v327 = vmul.f32 %v326, %v230
        %v328 = vmul.f32 %v326, %v231
        %v329 = vmul.f32 %v326, %v232
        %v330 = vmul.f32 %v326, %v233
        %335 = vrot.lane.b32.xlu0 %v327, 124
        %v336 = vpop.permute.xlu0 %335
        %337 = vrot.lane.b32.xlu0 %v328, 124
        %v338 = vpop.permute.xlu0 %337
        %339 = vrot.lane.b32.xlu0 %v329, 124
        %v340 = vpop.permute.xlu0 %339
        %341 = vrot.lane.b32.xlu0 %v330, 124
        %v342 = vpop.permute.xlu0 %341
        %v347 = vadd.f32 %v320, %v336
        %v348 = vadd.f32 %v321, %v338
        %v349 = vadd.f32 %v322, %v340
        %v350 = vadd.f32 %v323, %v342
        %s351 = sadd.s32 %s228, 5
        %s352 = sld [smem:[#allocation4 + %s351]]
        %v353 = vld [vmem:[#allocation2 + $0x1] sm:$0xff]
        %v354 = vld [vmem:[#allocation2 + $0x9] sm:$0xff]
        %v355 = vld [vmem:[#allocation2 + $0x19] sm:$0xff]
        %v356 = vld [vmem:[#allocation2 + $0x21] sm:$0xff]
        %v357 = vstv %s352
        %v358 = vmul.f32 %v357, %v353
        %v359 = vmul.f32 %v357, %v354
        %v360 = vmul.f32 %v357, %v355
        %v361 = vmul.f32 %v357, %v356
        %v362 = vadd.f32 %v347, %v358
        %v363 = vadd.f32 %v348, %v359
        %v364 = vadd.f32 %v349, %v360
        %v365 = vadd.f32 %v350, %v361
        %s366 = sadd.s32 %s228, 6
        %s367 = sld [smem:[#allocation4 + %s366]]
        %v368 = vstv %s367
        %v369 = vmul.f32 %v368, %v353
        %v370 = vmul.f32 %v368, %v354
        %v371 = vmul.f32 %v368, %v355
        %v372 = vmul.f32 %v368, %v356
        %377 = vrot.lane.b32.xlu0 %v369, 127
        %v378 = vpop.permute.xlu0 %377
        %379 = vrot.lane.b32.xlu0 %v370, 127
        %v380 = vpop.permute.xlu0 %379
        %381 = vrot.lane.b32.xlu0 %v371, 127
        %v382 = vpop.permute.xlu0 %381
        %383 = vrot.lane.b32.xlu0 %v372, 127
        %v384 = vpop.permute.xlu0 %383
        %v389 = vadd.f32 %v362, %v378
        %v390 = vadd.f32 %v363, %v380
        %v391 = vadd.f32 %v364, %v382
        %v392 = vadd.f32 %v365, %v384
        %s393 = sadd.s32 %s228, 7
        %s394 = sld [smem:[#allocation4 + %s393]]
        %v395 = vstv %s394
        %v396 = vmul.f32 %v395, %v353
        %v397 = vmul.f32 %v395, %v354
        %v398 = vmul.f32 %v395, %v355
        %v399 = vmul.f32 %v395, %v356
        %404 = vrot.lane.b32.xlu0 %v396, 126
        %v405 = vpop.permute.xlu0 %404
        %406 = vrot.lane.b32.xlu0 %v397, 126
        %v407 = vpop.permute.xlu0 %406
        %408 = vrot.lane.b32.xlu0 %v398, 126
        %v409 = vpop.permute.xlu0 %408
        %410 = vrot.lane.b32.xlu0 %v399, 126
        %v411 = vpop.permute.xlu0 %410
        %v416 = vadd.f32 %v389, %v405
        %v417 = vadd.f32 %v390, %v407
        %v418 = vadd.f32 %v391, %v409
        %v419 = vadd.f32 %v392, %v411
        %s420 = sadd.s32 %s228, 8
        %s421 = sld [smem:[#allocation4 + %s420]]
        %v422 = vstv %s421
        %v423 = vmul.f32 %v422, %v353
        %v424 = vmul.f32 %v422, %v354
        %v425 = vmul.f32 %v422, %v355
        %v426 = vmul.f32 %v422, %v356
        %431 = vrot.lane.b32.xlu0 %v423, 125
        %v432 = vpop.permute.xlu0 %431
        %433 = vrot.lane.b32.xlu0 %v424, 125
        %v434 = vpop.permute.xlu0 %433
        %435 = vrot.lane.b32.xlu0 %v425, 125
        %v436 = vpop.permute.xlu0 %435
        %437 = vrot.lane.b32.xlu0 %v426, 125
        %v438 = vpop.permute.xlu0 %437
        %v443 = vadd.f32 %v416, %v432
        %v444 = vadd.f32 %v417, %v434
        %v445 = vadd.f32 %v418, %v436
        %v446 = vadd.f32 %v419, %v438
        %s447 = sadd.s32 %s228, 9
        %s448 = sld [smem:[#allocation4 + %s447]]
        %v449 = vstv %s448
        %v450 = vmul.f32 %v449, %v353
        %v451 = vmul.f32 %v449, %v354
        %v452 = vmul.f32 %v449, %v355
        %v453 = vmul.f32 %v449, %v356
        %458 = vrot.lane.b32.xlu0 %v450, 124
        %v459 = vpop.permute.xlu0 %458
        %460 = vrot.lane.b32.xlu0 %v451, 124
        %v461 = vpop.permute.xlu0 %460
        %462 = vrot.lane.b32.xlu0 %v452, 124
        %v463 = vpop.permute.xlu0 %462
        %464 = vrot.lane.b32.xlu0 %v453, 124
        %v465 = vpop.permute.xlu0 %464
        %v470 = vadd.f32 %v443, %v459
        %v471 = vadd.f32 %v444, %v461
        %v472 = vadd.f32 %v445, %v463
        %v473 = vadd.f32 %v446, %v465
        %s474 = sadd.s32 %s228, 10
        %s475 = sld [smem:[#allocation4 + %s474]]
        %v476 = vld [vmem:[#allocation2 + $0x2] sm:$0xff]
        %v477 = vld [vmem:[#allocation2 + $0xa] sm:$0xff]
        %v478 = vld [vmem:[#allocation2 + $0x1a] sm:$0xff]
        %v479 = vld [vmem:[#allocation2 + $0x22] sm:$0xff]
        %v480 = vstv %s475
        %v481 = vmul.f32 %v480, %v476
        %v482 = vmul.f32 %v480, %v477
        %v483 = vmul.f32 %v480, %v478
        %v484 = vmul.f32 %v480, %v479
        %v485 = vadd.f32 %v470, %v481
        %v486 = vadd.f32 %v471, %v482
        %v487 = vadd.f32 %v472, %v483
        %v488 = vadd.f32 %v473, %v484
        %s489 = sadd.s32 %s228, 11
        %s490 = sld [smem:[#allocation4 + %s489]]
        %v491 = vstv %s490
        %v492 = vmul.f32 %v491, %v476
        %v493 = vmul.f32 %v491, %v477
        %v494 = vmul.f32 %v491, %v478
        %v495 = vmul.f32 %v491, %v479
        %500 = vrot.lane.b32.xlu0 %v492, 127
        %v501 = vpop.permute.xlu0 %500
        %502 = vrot.lane.b32.xlu0 %v493, 127
        %v503 = vpop.permute.xlu0 %502
        %504 = vrot.lane.b32.xlu0 %v494, 127
        %v505 = vpop.permute.xlu0 %504
        %506 = vrot.lane.b32.xlu0 %v495, 127
        %v507 = vpop.permute.xlu0 %506
        %v512 = vadd.f32 %v485, %v501
        %v513 = vadd.f32 %v486, %v503
        %v514 = vadd.f32 %v487, %v505
        %v515 = vadd.f32 %v488, %v507
        %s516 = sadd.s32 %s228, 12
        %s517 = sld [smem:[#allocation4 + %s516]]
        %v518 = vstv %s517
        %v519 = vmul.f32 %v518, %v476
        %v520 = vmul.f32 %v518, %v477
        %v521 = vmul.f32 %v518, %v478
        %v522 = vmul.f32 %v518, %v479
        %527 = vrot.lane.b32.xlu0 %v519, 126
        %v528 = vpop.permute.xlu0 %527
        %529 = vrot.lane.b32.xlu0 %v520, 126
        %v530 = vpop.permute.xlu0 %529
        %531 = vrot.lane.b32.xlu0 %v521, 126
        %v532 = vpop.permute.xlu0 %531
        %533 = vrot.lane.b32.xlu0 %v522, 126
        %v534 = vpop.permute.xlu0 %533
        %v539 = vadd.f32 %v512, %v528
        %v540 = vadd.f32 %v513, %v530
        %v541 = vadd.f32 %v514, %v532
        %v542 = vadd.f32 %v515, %v534
        %s543 = sadd.s32 %s228, 13
        %s544 = sld [smem:[#allocation4 + %s543]]
        %v545 = vstv %s544
        %v546 = vmul.f32 %v545, %v476
        %v547 = vmul.f32 %v545, %v477
        %v548 = vmul.f32 %v545, %v478
        %v549 = vmul.f32 %v545, %v479
        %554 = vrot.lane.b32.xlu0 %v546, 125
        %v555 = vpop.permute.xlu0 %554
        %556 = vrot.lane.b32.xlu0 %v547, 125
        %v557 = vpop.permute.xlu0 %556
        %558 = vrot.lane.b32.xlu0 %v548, 125
        %v559 = vpop.permute.xlu0 %558
        %560 = vrot.lane.b32.xlu0 %v549, 125
        %v561 = vpop.permute.xlu0 %560
        %v566 = vadd.f32 %v539, %v555
        %v567 = vadd.f32 %v540, %v557
        %v568 = vadd.f32 %v541, %v559
        %v569 = vadd.f32 %v542, %v561
        %s570 = sadd.s32 %s228, 14
        %s571 = sld [smem:[#allocation4 + %s570]]
        %v572 = vstv %s571
        %v573 = vmul.f32 %v572, %v476
        %v574 = vmul.f32 %v572, %v477
        %v575 = vmul.f32 %v572, %v478
        %v576 = vmul.f32 %v572, %v479
        %581 = vrot.lane.b32.xlu0 %v573, 124
        %v582 = vpop.permute.xlu0 %581
        %583 = vrot.lane.b32.xlu0 %v574, 124
        %v584 = vpop.permute.xlu0 %583
        %585 = vrot.lane.b32.xlu0 %v575, 124
        %v586 = vpop.permute.xlu0 %585
        %587 = vrot.lane.b32.xlu0 %v576, 124
        %v588 = vpop.permute.xlu0 %587
        %v593 = vadd.f32 %v566, %v582
        %v594 = vadd.f32 %v567, %v584
        %v595 = vadd.f32 %v568, %v586
        %v596 = vadd.f32 %v569, %v588
        %s597 = sadd.s32 %s228, 15
        %s598 = sld [smem:[#allocation4 + %s597]]
        %v599 = vld [vmem:[#allocation2 + $0x3] sm:$0xff]
        %v600 = vld [vmem:[#allocation2 + $0xb] sm:$0xff]
        %v601 = vld [vmem:[#allocation2 + $0x1b] sm:$0xff]
        %v602 = vld [vmem:[#allocation2 + $0x23] sm:$0xff]
        %v603 = vstv %s598
        %v604 = vmul.f32 %v603, %v599
        %v605 = vmul.f32 %v603, %v600
        %v606 = vmul.f32 %v603, %v601
        %v607 = vmul.f32 %v603, %v602
        %v608 = vadd.f32 %v593, %v604
        %v609 = vadd.f32 %v594, %v605
        %v610 = vadd.f32 %v595, %v606
        %v611 = vadd.f32 %v596, %v607
        %s612 = sadd.s32 %s228, 16
        %s613 = sld [smem:[#allocation4 + %s612]]
        %v614 = vstv %s613
        %v615 = vmul.f32 %v614, %v599
        %v616 = vmul.f32 %v614, %v600
        %v617 = vmul.f32 %v614, %v601
        %v618 = vmul.f32 %v614, %v602
        %623 = vrot.lane.b32.xlu0 %v615, 127
        %v624 = vpop.permute.xlu0 %623
        %625 = vrot.lane.b32.xlu0 %v616, 127
        %v626 = vpop.permute.xlu0 %625
        %627 = vrot.lane.b32.xlu0 %v617, 127
        %v628 = vpop.permute.xlu0 %627
        %629 = vrot.lane.b32.xlu0 %v618, 127
        %v630 = vpop.permute.xlu0 %629
        %v635 = vadd.f32 %v608, %v624
        %v636 = vadd.f32 %v609, %v626
        %v637 = vadd.f32 %v610, %v628
        %v638 = vadd.f32 %v611, %v630
        %s639 = sadd.s32 %s228, 17
        %s640 = sld [smem:[#allocation4 + %s639]]
        %v641 = vstv %s640
        %v642 = vmul.f32 %v641, %v599
        %v643 = vmul.f32 %v641, %v600
        %v644 = vmul.f32 %v641, %v601
        %v645 = vmul.f32 %v641, %v602
        %650 = vrot.lane.b32.xlu0 %v642, 126
        %v651 = vpop.permute.xlu0 %650
        %652 = vrot.lane.b32.xlu0 %v643, 126
        %v653 = vpop.permute.xlu0 %652
        %654 = vrot.lane.b32.xlu0 %v644, 126
        %v655 = vpop.permute.xlu0 %654
        %656 = vrot.lane.b32.xlu0 %v645, 126
        %v657 = vpop.permute.xlu0 %656
        %v662 = vadd.f32 %v635, %v651
        %v663 = vadd.f32 %v636, %v653
        %v664 = vadd.f32 %v637, %v655
        %v665 = vadd.f32 %v638, %v657
        %s666 = sadd.s32 %s228, 18
        %s667 = sld [smem:[#allocation4 + %s666]]
        %v668 = vstv %s667
        %v669 = vmul.f32 %v668, %v599
        %v670 = vmul.f32 %v668, %v600
        %v671 = vmul.f32 %v668, %v601
        %v672 = vmul.f32 %v668, %v602
        %677 = vrot.lane.b32.xlu0 %v669, 125
        %v678 = vpop.permute.xlu0 %677
        %679 = vrot.lane.b32.xlu0 %v670, 125
        %v680 = vpop.permute.xlu0 %679
        %681 = vrot.lane.b32.xlu0 %v671, 125
        %v682 = vpop.permute.xlu0 %681
        %683 = vrot.lane.b32.xlu0 %v672, 125
        %v684 = vpop.permute.xlu0 %683
        %v689 = vadd.f32 %v662, %v678
        %v690 = vadd.f32 %v663, %v680
        %v691 = vadd.f32 %v664, %v682
        %v692 = vadd.f32 %v665, %v684
        %s693 = sadd.s32 %s228, 19
        %s694 = sld [smem:[#allocation4 + %s693]]
        %v695 = vstv %s694
        %v696 = vmul.f32 %v695, %v599
        %v697 = vmul.f32 %v695, %v600
        %v698 = vmul.f32 %v695, %v601
        %v699 = vmul.f32 %v695, %v602
        %704 = vrot.lane.b32.xlu0 %v696, 124
        %v705 = vpop.permute.xlu0 %704
        %706 = vrot.lane.b32.xlu0 %v697, 124
        %v707 = vpop.permute.xlu0 %706
        %708 = vrot.lane.b32.xlu0 %v698, 124
        %v709 = vpop.permute.xlu0 %708
        %710 = vrot.lane.b32.xlu0 %v699, 124
        %v711 = vpop.permute.xlu0 %710
        %v716 = vadd.f32 %v689, %v705
        %v717 = vadd.f32 %v690, %v707
        %v718 = vadd.f32 %v691, %v709
        %v719 = vadd.f32 %v692, %v711
        %s720 = sadd.s32 %s228, 20
        %s721 = sld [smem:[#allocation4 + %s720]]
        %v722 = vld [vmem:[#allocation2 + $0x4] sm:$0xff]
        %v723 = vld [vmem:[#allocation2 + $0xc] sm:$0xff]
        %v724 = vld [vmem:[#allocation2 + $0x1c] sm:$0xff]
        %v725 = vld [vmem:[#allocation2 + $0x24] sm:$0xff]
        %v726 = vstv %s721
        %v727 = vmul.f32 %v726, %v722
        %v728 = vmul.f32 %v726, %v723
        %v729 = vmul.f32 %v726, %v724
        %v730 = vmul.f32 %v726, %v725
        %v731 = vadd.f32 %v716, %v727
        %v732 = vadd.f32 %v717, %v728
        %v733 = vadd.f32 %v718, %v729
        %v734 = vadd.f32 %v719, %v730
        %s735 = sadd.s32 %s228, 21
        %s736 = sld [smem:[#allocation4 + %s735]]
        %v737 = vstv %s736
        %v738 = vmul.f32 %v737, %v722
        %v739 = vmul.f32 %v737, %v723
        %v740 = vmul.f32 %v737, %v724
        %v741 = vmul.f32 %v737, %v725
        %746 = vrot.lane.b32.xlu0 %v738, 127
        %v747 = vpop.permute.xlu0 %746
        %748 = vrot.lane.b32.xlu0 %v739, 127
        %v749 = vpop.permute.xlu0 %748
        %750 = vrot.lane.b32.xlu0 %v740, 127
        %v751 = vpop.permute.xlu0 %750
        %752 = vrot.lane.b32.xlu0 %v741, 127
        %v753 = vpop.permute.xlu0 %752
        %v758 = vadd.f32 %v731, %v747
        %v759 = vadd.f32 %v732, %v749
        %v760 = vadd.f32 %v733, %v751
        %v761 = vadd.f32 %v734, %v753
        %s762 = sadd.s32 %s228, 22
        %s763 = sld [smem:[#allocation4 + %s762]]
        %v764 = vstv %s763
        %v765 = vmul.f32 %v764, %v722
        %v766 = vmul.f32 %v764, %v723
        %v767 = vmul.f32 %v764, %v724
        %v768 = vmul.f32 %v764, %v725
        %773 = vrot.lane.b32.xlu0 %v765, 126
        %v774 = vpop.permute.xlu0 %773
        %775 = vrot.lane.b32.xlu0 %v766, 126
        %v776 = vpop.permute.xlu0 %775
        %777 = vrot.lane.b32.xlu0 %v767, 126
        %v778 = vpop.permute.xlu0 %777
        %779 = vrot.lane.b32.xlu0 %v768, 126
        %v780 = vpop.permute.xlu0 %779
        %v785 = vadd.f32 %v758, %v774
        %v786 = vadd.f32 %v759, %v776
        %v787 = vadd.f32 %v760, %v778
        %v788 = vadd.f32 %v761, %v780
        %s789 = sadd.s32 %s228, 23
        %s790 = sld [smem:[#allocation4 + %s789]]
        %v791 = vstv %s790
        %v792 = vmul.f32 %v791, %v722
        %v793 = vmul.f32 %v791, %v723
        %v794 = vmul.f32 %v791, %v724
        %v795 = vmul.f32 %v791, %v725
        %800 = vrot.lane.b32.xlu0 %v792, 125
        %v801 = vpop.permute.xlu0 %800
        %802 = vrot.lane.b32.xlu0 %v793, 125
        %v803 = vpop.permute.xlu0 %802
        %804 = vrot.lane.b32.xlu0 %v794, 125
        %v805 = vpop.permute.xlu0 %804
        %806 = vrot.lane.b32.xlu0 %v795, 125
        %v807 = vpop.permute.xlu0 %806
        %v812 = vadd.f32 %v785, %v801
        %v813 = vadd.f32 %v786, %v803
        %v814 = vadd.f32 %v787, %v805
        %v815 = vadd.f32 %v788, %v807
        %s816 = sadd.s32 %s228, 24
        %s817 = sld [smem:[#allocation4 + %s816]]
        %v818 = vstv %s817
        %v819 = vmul.f32 %v818, %v722
        %v820 = vmul.f32 %v818, %v723
        %v821 = vmul.f32 %v818, %v724
        %v822 = vmul.f32 %v818, %v725
        %827 = vrot.lane.b32.xlu0 %v819, 124
        %v828 = vpop.permute.xlu0 %827
        %829 = vrot.lane.b32.xlu0 %v820, 124
        %v830 = vpop.permute.xlu0 %829
        %831 = vrot.lane.b32.xlu0 %v821, 124
        %v832 = vpop.permute.xlu0 %831
        %833 = vrot.lane.b32.xlu0 %v822, 124
        %v834 = vpop.permute.xlu0 %833
        %v839 = vadd.f32 %v812, %v828
        %v840 = vadd.f32 %v813, %v830
        %v841 = vadd.f32 %v814, %v832
        %v842 = vadd.f32 %v815, %v834
        %vm843 = vcmask 130048
        %844 = vst.msk [vmem:[%s207] sm:$0xff] %vm843, %v839
        %845 = vst.msk [vmem:[%s207 + $0x8] sm:$0xff] %vm843, %v840
        %846 = vst.msk [vmem:[%s207 + $0x10] sm:$0xff] %vm843, %v841
        %847 = vst.msk [vmem:[%s207 + $0x18] sm:$0xff] %vm843, %v842
        %s848 = sand.u32 %s69, 1
        %s849 = sand.u32 %s69, 1
        %s850 = smul.addr %s849, 32
        %s851 = scalar_lea.vmem [#allocation6], %s850
        // Predicated region
        $region71: #{branch_5_fun.4} parent=61 // pred_check
          %p852 = pneg %p79
        $region72: #{branch_5_fun.4} parent=61 // pred_check_branch
          %854 = sbr.rel (%p852) target = $region74
        $region73: #{branch_5_fun.4} parent=61 // pred_region
          %s855 = smul.addr %s14, 2
          %s856 = smul.addr %s855, 8
          %s857 = scalar_lea.vmem %s2, %s856
          // Predicated region
          $region75: #{branch_5_fun.4} parent=73 // pred_check
            _
          $region76: #{branch_5_fun.4} parent=73 // pred_check_branch
            %859 = sbr.rel (0) target = $region78
          $region77: #{branch_5_fun.4} parent=73 // pred_region
            // Predicated region
            $region79: #{branch_5_fun.4} parent=77 // pred_check
              _
            $region80: #{branch_5_fun.4} parent=77 // pred_check_branch
              %861 = sbr.rel (0) target = $region82
            $region81: #{branch_5_fun.4} parent=77 // pred_region
              // Predicated region
              $region94: #{branch_5_fun.4} parent=81 // pred_check
                _
              $region95: #{branch_5_fun.4} parent=81 // pred_check_branch
                %883 = sbr.rel (0) target = $region97
              $region96: #{branch_5_fun.4} parent=81 // pred_region
                loop: start=0, step=1, limit=1
                $region98: #{branch_5_fun.4} parent=96 // loop_pre_header
                  _
                $region99: #{branch_5_fun.4} parent=96 // loop_header
                  %s885 = sphi 0, %s889
                  %p886 = scmp.ge.s32.totalorder %s885, 1
                  %s890 = sphi %s851, %s851
                  %s891 = sphi %s857, %s857
                $region100: #{branch_5_fun.4} parent=96 // loop_header_branch
                  %888 = sbr.rel (%p886) target = $region104
                $region101: #{branch_5_fun.4} parent=96 // loop_body
                  %v892 = vld [vmem:[%s890] sm:$0xff]
                  %893 = vst [vmem:[%s891] sm:$0xff] %v892
                  %v894 = vld [vmem:[%s890 + $0x8] sm:$0xff]
                  %895 = vst [vmem:[%s891 + $0x8] sm:$0xff] %v894
                  %v896 = vld [vmem:[%s890 + $0x10] sm:$0xff]
                  %897 = vst [vmem:[%s891 + $0x40] sm:$0xff] %v896
                  %v898 = vld [vmem:[%s890 + $0x18] sm:$0xff]
                  %899 = vst [vmem:[%s891 + $0x48] sm:$0xff] %v898
                $region102: #{branch_5_fun.4} parent=96 // loop_footer
                  %s889 = sadd.s32 1, %s885
                $region103: #{branch_5_fun.4} parent=96 // loop_footer_branch
                  %884 = sbr.rel target = $region99
                $region104: #{branch_5_fun.4} parent=96 // loop_exit
                  _
              $region97: #{branch_5_fun.4} parent=81 // pred_fallthru
                _
              // Predicated region
              $region105: #{branch_5_fun.4} parent=81 // pred_check
                _
              $region106: #{branch_5_fun.4} parent=81 // pred_check_branch
                %901 = sbr.rel target = $region108
              $region107: #{branch_5_fun.4} parent=81 // pred_region
                _
              $region108: #{branch_5_fun.4} parent=81 // pred_fallthru
                _
            $region82: #{branch_5_fun.4} parent=77 // pred_fallthru
              _
            // Predicated region
            $region83: #{branch_5_fun.4} parent=77 // pred_check
              _
            $region84: #{branch_5_fun.4} parent=77 // pred_check_branch
              %863 = sbr.rel target = $region86
            $region85: #{branch_5_fun.4} parent=77 // pred_region
              %s865 = ssub.s32 256, 1
              loop: start=0, step=1, limit=1
              $region87: #{branch_5_fun.4} parent=85 // loop_pre_header
                _
              $region88: #{branch_5_fun.4} parent=85 // loop_header
                %s867 = sphi 0, %s871
                %p868 = scmp.ge.s32.totalorder %s867, 1
                %s872 = sphi %s851, %s851
                %s873 = sphi %s857, %s857
              $region89: #{branch_5_fun.4} parent=85 // loop_header_branch
                %870 = sbr.rel (%p868) target = $region93
              $region90: #{branch_5_fun.4} parent=85 // loop_body
                %v874 = vld [vmem:[%s872] sm:%s865]
                %875 = vst [vmem:[%s873] sm:%s865] %v874
                %v876 = vld [vmem:[%s872 + $0x8] sm:%s865]
                %877 = vst [vmem:[%s873 + $0x8] sm:%s865] %v876
                %v878 = vld [vmem:[%s872 + $0x10] sm:%s865]
                %879 = vst [vmem:[%s873 + $0x40] sm:%s865] %v878
                %v880 = vld [vmem:[%s872 + $0x18] sm:%s865]
                %881 = vst [vmem:[%s873 + $0x48] sm:%s865] %v880
              $region91: #{branch_5_fun.4} parent=85 // loop_footer
                %s871 = sadd.s32 1, %s867
              $region92: #{branch_5_fun.4} parent=85 // loop_footer_branch
                %866 = sbr.rel target = $region88
              $region93: #{branch_5_fun.4} parent=85 // loop_exit
                _
            $region86: #{branch_5_fun.4} parent=77 // pred_fallthru
              _
          $region78: #{branch_5_fun.4} parent=73 // pred_fallthru
            _
          %902 = vnop
        $region74: #{branch_5_fun.4} parent=61 // pred_fallthru
          _
      $region62: #{branch_5_fun.4} parent=5 // pred_fallthru
        _
      %p903 = scmp.le.s32.totalorder 2, %s9
      // Predicated region
      $region109: #{branch_5_fun.4} parent=5 // pred_check
        %p904 = pneg %p903
      $region110: #{branch_5_fun.4} parent=5 // pred_check_branch
        %906 = sbr.rel (%p904) target = $region112
      $region111: #{branch_5_fun.4} parent=5 // pred_region
        %s907 = ssub.s32 %s9, 2
        // Predicated region
        $region113: #{branch_5_fun.4} parent=111 // pred_check
          %p908 = pneg %p85
        $region114: #{branch_5_fun.4} parent=111 // pred_check_branch
          %910 = sbr.rel (%p908) target = $region116
        $region115: #{branch_5_fun.4} parent=111 // pred_region
          %s911 = sand.u32 %s70, 1
          %s912 = sand.u32 %s70, 1
          %s913 = smul.addr %s912, 32
          %s914 = scalar_lea.vmem [#allocation6], %s913
        $region116: #{branch_5_fun.4} parent=111 // pred_fallthru
          _
      $region112: #{branch_5_fun.4} parent=5 // pred_fallthru
        _
    $region6: #{branch_5_fun.4} parent=1 // loop_footer
      %s13 = sadd.s32 1, %s9
    $region7: #{branch_5_fun.4} parent=1 // loop_footer_branch
      %8 = sbr.rel target = $region3
    $region8: #{branch_5_fun.4} parent=1 // loop_exit
      _
    %915 = vsyncpa [#allocation5], 1
    %s916 = scalar_lea.sflag [#allocation5], 1
    %917 = vsyncpa %s916, 1

// kernel: branch_6_fun.2
$region0: #{branch_6_fun.2}
  #allocation0 [shape = 'u32[]', space=smem, size = 0x4, offset = 0x4, fixed_abs, tag = 'smem constant byte address 0x4 - core index']
  #allocation1 [shape = 'u32[72,128]{1,0:T(1,128)}', space=vmem, size = 0x9000, scoped, tag = 'internal scratch']
  #allocation2 [shape = 'f32[2,1,20,20]{3,2,1,0:T(8,128)}', space=vmem, size = 0x6000, scoped, tag = 'scratch operand']
  %s0 = inlined_call_operand.vmem [shape: f32[2,4,20,20], index: 0, kind: input, shape index: {}]
  %s1 = inlined_call_operand.vmem [shape: f32[36], index: 1, kind: input, shape index: {}]
  %s2 = inlined_call_operand.vmem [shape: f32[2,4,16,16], index: 2, kind: output, shape index: {}]
  %s3 = sld [smem:[#allocation0]]
  $region117: #{branch_6_fun.2} parent=0
    _
  %s5 = ssub.s32 1, %s3
  %s6 = scalar_select 0, %s5, %s3
  $region1: #{branch_6_fun.2} parent=0
    #allocation3 [shape = 'u8[49152]{0}', space=vmem, size = 0xc000, scoped, tag = 'input window, operand 0']
    #allocation4 [shape = 'u8[512]{0}', space=smem, size = 0x200, scoped, tag = 'input window, operand 1, single buffered']
    #allocation5 [shape = 's32[2]{0}', space=sflag, size = 0x8, scoped, tag = 'scoped memory for branch_6_fun.2']
    #allocation6 [shape = 'u8[32768]{0}', space=vmem, size = 0x8000, scoped, tag = 'output window, operand 0']
    %7 = vsyncpa [#allocation5], 0
    loop: start=0, step=1, limit=6
    $region2: #{branch_6_fun.2} parent=1 // loop_pre_header
      _
    $region3: #{branch_6_fun.2} parent=1 // loop_header
      %s9 = sphi 0, %s13
      %p10 = scmp.ge.s32.totalorder %s9, 6
      %s19 = sphi 0, %s21
      %s22 = sphi 0, %s19
      %s23 = sphi 0, %s22
      %s39 = sphi 0, %s23
      %s43 = sphi 0, %s43
      %s45 = sphi 0, %s43
      %s46 = sphi 0, %s45
      %s60 = sphi 0, %s46
      %s66 = sphi 0, %s68
      %s69 = sphi 0, %s66
      %s70 = sphi 0, %s69
      %s86 = sphi 0, %s70
    $region4: #{branch_6_fun.2} parent=1 // loop_header_branch
      %12 = sbr.rel (%p10) target = $region8
    $region5: #{branch_6_fun.2} parent=1 // loop_body
      %s14 = ssub.s32 %s9, 1
      %s15 = ssub.s32 %s9, 2
      %s16 = sadd.s32 %s9, 1
      %s17 = ssub.s32 %s9, %s16
      %p18 = scmp.eq.s32.totalorder %s17, 0
      %s20 = sadd.s32 %s19, 1
      %s21 = scalar_select %p18, %s19, %s20
      %p24 = pneg %p18
      %p25 = scmp.eq.s32.totalorder %s9, 3
      %p26 = por %p24, %p25
      %p27 = scmp.ne.s32.totalorder %s19, %s22
      %p28 = scmp.eq.s32.totalorder %s9, 0
      %p29 = por %p27, %p28
      %p30 = scmp.ne.s32.totalorder %s19, %s22
      %p31 = scmp.eq.s32.totalorder %s14, 3
      %p32 = por %p30, %p31
      %p33 = scmp.ne.s32.totalorder %s22, %s23
      %p34 = scmp.eq.s32.totalorder %s14, 0
      %p35 = por %p33, %p34
      %p36 = scmp.ne.s32.totalorder %s22, %s23
      %p37 = scmp.eq.s32.totalorder %s15, 3
      %p38 = por %p36, %p37
      %p40 = scmp.ne.s32.totalorder %s23, %s39
      %p41 = scmp.eq.s32.totalorder %s15, 0
      %p42 = por %p40, %p41
      %s44 = sadd.s32 %s43, 1
      %p47 = scmp.eq.s32.totalorder %s9, 3
      %p48 = scmp.ne.s32.totalorder %s43, %s45
      %p49 = scmp.eq.s32.totalorder %s9, 0
      %p50 = por %p48, %p49
      %p51 = scmp.ne.s32.totalorder %s43, %s45
      %p52 = scmp.eq.s32.totalorder %s14, 3
      %p53 = por %p51, %p52
      %p54 = scmp.ne.s32.totalorder %s45, %s46
      %p55 = scmp.eq.s32.totalorder %s14, 0
      %p56 = por %p54, %p55
      %p57 = scmp.ne.s32.totalorder %s45, %s46
      %p58 = scmp.eq.s32.totalorder %s15, 3
      %p59 = por %p57, %p58
      %p61 = scmp.ne.s32.totalorder %s46, %s60
      %p62 = scmp.eq.s32.totalorder %s15, 0
      %p63 = por %p61, %p62
      %s64 = ssub.s32 %s9, %s16
      %p65 = scmp.eq.s32.totalorder %s64, 0
      %s67 = sadd.s32 %s66, 1
      %s68 = scalar_select %p65, %s66, %s67
      %p71 = pneg %p65
      %p72 = scmp.eq.s32.totalorder %s9, 3
      %p73 = por %p71, %p72
      %p74 = scmp.ne.s32.totalorder %s66, %s69
      %p75 = scmp.eq.s32.totalorder %s9, 0
      %p76 = por %p74, %p75
      %p77 = scmp.ne.s32.totalorder %s66, %s69
      %p78 = scmp.eq.s32.totalorder %s14, 3
      %p79 = por %p77, %p78
      %p80 = scmp.ne.s32.totalorder %s69, %s70
      %p81 = scmp.eq.s32.totalorder %s14, 0
      %p82 = por %p80, %p81
      %p83 = scmp.ne.s32.totalorder %s69, %s70
      %p84 = scmp.eq.s32.totalorder %s15, 3
      %p85 = por %p83, %p84
      %p87 = scmp.ne.s32.totalorder %s70, %s86
      %p88 = scmp.eq.s32.totalorder %s15, 0
      %p89 = por %p87, %p88
      %p90 = scmp.le.s32.totalorder 1, %s9
      %p91 = scmp.lt.s32.totalorder %s9, 5
      %p92 = pnand %p90, %p91
      %p93 = pneg %p92
      // Predicated region
      $region9: #{branch_6_fun.2} parent=5 // pred_check
        _
      $region10: #{branch_6_fun.2} parent=5 // pred_check_branch
        %95 = sbr.rel (%p92) target = $region12
      $region11: #{branch_6_fun.2} parent=5 // pred_region
        %s96 = ssub.s32 %s9, 1
        // Predicated region
        $region13: #{branch_6_fun.2} parent=11 // pred_check
          %p97 = pneg %p56
        $region14: #{branch_6_fun.2} parent=11 // pred_check_branch
          %99 = sbr.rel (%p97) target = $region16
        $region15: #{branch_6_fun.2} parent=11 // pred_region
          %101 = vsyncadd [#allocation5], 0
          %s103 = sshll.u32 %s1, 4
          %s104 = int_to_ptr.vmem [resolvable:$true] %s103
          %106 = dma.vmem_to_smem %s104, 16, [#allocation4], [#allocation5]
        $region16: #{branch_6_fun.2} parent=11 // pred_fallthru
          _
      $region12: #{branch_6_fun.2} parent=5 // pred_fallthru
        _
      %p107 = scmp.lt.s32.totalorder %s9, 4
      // Predicated region
      $region17: #{branch_6_fun.2} parent=5 // pred_check
        %p108 = pneg %p107
      $region18: #{branch_6_fun.2} parent=5 // pred_check_branch
        %110 = sbr.rel (%p108) target = $region20
      $region19: #{branch_6_fun.2} parent=5 // pred_region
        // Predicated region
        $region21: #{branch_6_fun.2} parent=19 // pred_check
          %p111 = pneg %p29
        $region22: #{branch_6_fun.2} parent=19 // pred_check_branch
          %113 = sbr.rel (%p111) target = $region24
        $region23: #{branch_6_fun.2} parent=19 // pred_region
          %s114 = sand.u32 %s19, 1
          %s115 = sand.u32 %s19, 1
          %s116 = smul.addr %s115, 48
          %s117 = scalar_lea.vmem [#allocation3], %s116
          %s118 = smul.addr %s9, 3
          %s119 = smul.addr %s118, 8
          %s120 = scalar_lea.vmem %s0, %s119
          // Predicated region
          $region25: #{branch_6_fun.2} parent=23 // pred_check
            _
          $region26: #{branch_6_fun.2} parent=23 // pred_check_branch
            %122 = sbr.rel (0) target = $region28
          $region27: #{branch_6_fun.2} parent=23 // pred_region
            // Predicated region
            $region29: #{branch_6_fun.2} parent=27 // pred_check
              _
            $region30: #{branch_6_fun.2} parent=27 // pred_check_branch
              %124 = sbr.rel (0) target = $region32
            $region31: #{branch_6_fun.2} parent=27 // pred_region
              // Predicated region
              $region44: #{branch_6_fun.2} parent=31 // pred_check
                _
              $region45: #{branch_6_fun.2} parent=31 // pred_check_branch
                %150 = sbr.rel (0) target = $region47
              $region46: #{branch_6_fun.2} parent=31 // pred_region
                loop: start=0, step=1, limit=1
                $region48: #{branch_6_fun.2} parent=46 // loop_pre_header
                  _
                $region49: #{branch_6_fun.2} parent=46 // loop_header
                  %s152 = sphi 0, %s156
                  %p153 = scmp.ge.s32.totalorder %s152, 1
                  %s157 = sphi %s120, %s120
                  %s158 = sphi %s117, %s117
                $region50: #{branch_6_fun.2} parent=46 // loop_header_branch
                  %155 = sbr.rel (%p153) target = $region54
                $region51: #{branch_6_fun.2} parent=46 // loop_body
                  %v159 = vld [vmem:[%s157] sm:$0xff]
                  %160 = vst [vmem:[%s158] sm:$0xff] %v159
                  %v161 = vld [vmem:[%s157 + $0x8] sm:$0xff]
                  %162 = vst [vmem:[%s158 + $0x8] sm:$0xff] %v161
                  %v163 = vld [vmem:[%s157 + $0x10] sm:$0xff]
                  %164 = vst [vmem:[%s158 + $0x10] sm:$0xff] %v163
                  %v165 = vld [vmem:[%s157 + $0x60] sm:$0xff]
                  %166 = vst [vmem:[%s158 + $0x18] sm:$0xff] %v165
                  %v167 = vld [vmem:[%s157 + $0x68] sm:$0xff]
                  %168 = vst [vmem:[%s158 + $0x20] sm:$0xff] %v167
                  %v169 = vld [vmem:[%s157 + $0x70] sm:$0xff]
                  %170 = vst [vmem:[%s158 + $0x28] sm:$0xff] %v169
                $region52: #{branch_6_fun.2} parent=46 // loop_footer
                  %s156 = sadd.s32 1, %s152
                $region53: #{branch_6_fun.2} parent=46 // loop_footer_branch
                  %151 = sbr.rel target = $region49
                $region54: #{branch_6_fun.2} parent=46 // loop_exit
                  _
              $region47: #{branch_6_fun.2} parent=31 // pred_fallthru
                _
              // Predicated region
              $region55: #{branch_6_fun.2} parent=31 // pred_check
                _
              $region56: #{branch_6_fun.2} parent=31 // pred_check_branch
                %172 = sbr.rel target = $region58
              $region57: #{branch_6_fun.2} parent=31 // pred_region
                _
              $region58: #{branch_6_fun.2} parent=31 // pred_fallthru
                _
            $region32: #{branch_6_fun.2} parent=27 // pred_fallthru
              _
            // Predicated region
            $region33: #{branch_6_fun.2} parent=27 // pred_check
              _
            $region34: #{branch_6_fun.2} parent=27 // pred_check_branch
              %126 = sbr.rel target = $region36
            $region35: #{branch_6_fun.2} parent=27 // pred_region
              %s128 = ssub.s32 256, 1
              loop: start=0, step=1, limit=1
              $region37: #{branch_6_fun.2} parent=35 // loop_pre_header
                _
              $region38: #{branch_6_fun.2} parent=35 // loop_header
                %s130 = sphi 0, %s134
                %p131 = scmp.ge.s32.totalorder %s130, 1
                %s135 = sphi %s120, %s120
                %s136 = sphi %s117, %s117
              $region39: #{branch_6_fun.2} parent=35 // loop_header_branch
                %133 = sbr.rel (%p131) target = $region43
              $region40: #{branch_6_fun.2} parent=35 // loop_body
                %v137 = vld [vmem:[%s135] sm:%s128]
                %138 = vst [vmem:[%s136] sm:%s128] %v137
                %v139 = vld [vmem:[%s135 + $0x8] sm:%s128]
                %140 = vst [vmem:[%s136 + $0x8] sm:%s128] %v139
                %v141 = vld [vmem:[%s135 + $0x10] sm:%s128]
                %142 = vst [vmem:[%s136 + $0x10] sm:%s128] %v141
                %v143 = vld [vmem:[%s135 + $0x60] sm:%s128]
                %144 = vst [vmem:[%s136 + $0x18] sm:%s128] %v143
                %v145 = vld [vmem:[%s135 + $0x68] sm:%s128]
                %146 = vst [vmem:[%s136 + $0x20] sm:%s128] %v145
                %v147 = vld [vmem:[%s135 + $0x70] sm:%s128]
                %148 = vst [vmem:[%s136 + $0x28] sm:%s128] %v147
              $region41: #{branch_6_fun.2} parent=35 // loop_footer
                %s134 = sadd.s32 1, %s130
              $region42: #{branch_6_fun.2} parent=35 // loop_footer_branch
                %129 = sbr.rel target = $region38
              $region43: #{branch_6_fun.2} parent=35 // loop_exit
                _
            $region36: #{branch_6_fun.2} parent=27 // pred_fallthru
              _
          $region28: #{branch_6_fun.2} parent=23 // pred_fallthru
            _
          %173 = vnop
        $region24: #{branch_6_fun.2} parent=19 // pred_fallthru
          _
      $region20: #{branch_6_fun.2} parent=5 // pred_fallthru
        _
      %p174 = scmp.le.s32.totalorder 1, %s9
      %p175 = scmp.lt.s32.totalorder %s9, 5
      %p176 = pnand %p174, %p175
      %p177 = pneg %p176
      // Predicated region
      $region59: #{branch_6_fun.2} parent=5 // pred_check
        _
      $region60: #{branch_6_fun.2} parent=5 // pred_check_branch
        %179 = sbr.rel (%p176) target = $region62
      $region61: #{branch_6_fun.2} parent=5 // pred_region
        %s180 = ssub.s32 %s9, 1
        %s181 = sand.u32 %s22, 1
        %s182 = sand.u32 %s22, 1
        %s183 = smul.addr %s182, 48
        %s184 = scalar_lea.vmem [#allocation3], %s183
        // Predicated region
        $region63: #{branch_6_fun.2} parent=61 // pred_check
          %p185 = pneg %p35
        $region64: #{branch_6_fun.2} parent=61 // pred_check_branch
          %187 = sbr.rel (%p185) target = $region66
        $region65: #{branch_6_fun.2} parent=61 // pred_region
          _
        $region66: #{branch_6_fun.2} parent=61 // pred_fallthru
          _
        // Predicated region
        $region67: #{branch_6_fun.2} parent=61 // pred_check
          %p188 = pneg %p56
        $region68: #{branch_6_fun.2} parent=61 // pred_check_branch
          %190 = sbr.rel (%p188) target = $region70
        $region69: #{branch_6_fun.2} parent=61 // pred_region
          %192 = dma.done [#allocation5], 16
        $region70: #{branch_6_fun.2} parent=61 // pred_fallthru
          _
        %193 = sfence
        %s194 = sand.u32 %s22, 1
        %s195 = sand.u32 %s22, 1
        %s196 = smul.addr %s195, 48
        %s197 = scalar_lea.vmem [#allocation3], %s196
        %p198 = pneg %p35
        %p199 = pneg %p32
        %p200 = pneg %p56
        %p201 = pneg %p53
        %p202 = pneg %p82
        %p203 = pneg %p79
        %s204 = sand.u32 %s69, 1
        %s205 = sand.u32 %s69, 1
        %s206 = smul.addr %s205, 32
        %s207 = scalar_lea.vmem [#allocation6], %s206
        %v208 = vld [vmem:[%s184] sm:$0xff]
        %v209 = vld [vmem:[%s184 + $0x8] sm:$0xff]
        %v210 = vld [vmem:[%s184 + $0x10] sm:$0xf]
        %v211 = vld [vmem:[%s184 + $0x18] sm:$0xff]
        %v212 = vld [vmem:[%s184 + $0x20] sm:$0xff]
        %v213 = vld [vmem:[%s184 + $0x28] sm:$0xf]
        %v214 = vmax.f32 %v208, 0.0
        %v215 = vmax.f32 %v209, 0.0
        %v216 = vmax.f32 %v210, 0.0
        %v217 = vmax.f32 %v211, 0.0
        %v218 = vmax.f32 %v212, 0.0
        %v219 = vmax.f32 %v213, 0.0
        %vm220 = vcmask 162816
        %221 = vst.msk [vmem:[#allocation2] sm:$0xff] %vm220, %v214
        %222 = vst.msk [vmem:[#allocation2 + $0x8] sm:$0xff] %vm220, %v215
        %vm223 = vcmask 158720
        %224 = vst.msk [vmem:[#allocation2 + $0x10] sm:$0xf] %vm223, %v216
        %225 = vst.msk [vmem:[#allocation2 + $0x18] sm:$0xff] %vm220, %v217
        %226 = vst.msk [vmem:[#allocation2 + $0x20] sm:$0xff] %vm220, %v218
        %227 = vst.msk [vmem:[#allocation2 + $0x28] sm:$0xf] %vm223, %v219
        %s228 = smul.u32 %s14, 9
        %s229 = sld [smem:[#allocation4 + %s228]]
        %v230 = vld [vmem:[#allocation2] sm:$0xff]
        %v231 = vld [vmem:[#allocation2 + $0x8] sm:$0xff]
        %v232 = vld [vmem:[#allocation2 + $0x18] sm:$0xff]
        %v233 = vld [vmem:[#allocation2 + $0x20] sm:$0xff]
        %v234 = vstv %s229
        %v235 = vmul.f32 %v234, %v230
        %v236 = vmul.f32 %v234, %v231
        %v237 = vmul.f32 %v234, %v232
        %v238 = vmul.f32 %v234, %v233
        %v239 = vadd.f32 %v235, 0.0
        %v240 = vadd.f32 %v236, 0.0
        %v241 = vadd.f32 %v237, 0.0
        %v242 = vadd.f32 %v238, 0.0
        %s243 = sadd.s32 %s228, 1
        %s244 = sld [smem:[#allocation4 + %s243]]
        %v245 = vstv %s244
        %v246 = vmul.f32 %v245, %v230
        %v247 = vmul.f32 %v245, %v231
        %v248 = vmul.f32 %v245, %v232
        %v249 = vmul.f32 %v245, %v233
        %254 = vrot.lane.b32.xlu0 %v246, 126
        %v255 = vpop.permute.xlu0 %254
        %256 = vrot.lane.b32.xlu0 %v247, 126
        %v257 = vpop.permute.xlu0 %256
        %258 = vrot.lane.b32.xlu0 %v248, 126
        %v259 = vpop.permute.xlu0 %258
        %260 = vrot.lane.b32.xlu0 %v249, 126
        %v261 = vpop.permute.xlu0 %260
        %v266 = vadd.f32 %v239, %v255
        %v267 = vadd.f32 %v240, %v257
        %v268 = vadd.f32 %v241, %v259
        %v269 = vadd.f32 %v242, %v261
        %s270 = sadd.s32 %s228, 2
        %s271 = sld [smem:[#allocation4 + %s270]]
        %v272 = vstv %s271
        %v273 = vmul.f32 %v272, %v230
        %v274 = vmul.f32 %v272, %v231
        %v275 = vmul.f32 %v272, %v232
        %v276 = vmul.f32 %v272, %v233
        %281 = vrot.lane.b32.xlu0 %v273, 124
        %v282 = vpop.permute.xlu0 %281
        %283 = vrot.lane.b32.xlu0 %v274, 124
        %v284 = vpop.permute.xlu0 %283
        %285 = vrot.lane.b32.xlu0 %v275, 124
        %v286 = vpop.permute.xlu0 %285
        %287 = vrot.lane.b32.xlu0 %v276, 124
        %v288 = vpop.permute.xlu0 %287
        %v293 = vadd.f32 %v266, %v282
        %v294 = vadd.f32 %v267, %v284
        %v295 = vadd.f32 %v268, %v286
        %v296 = vadd.f32 %v269, %v288
        %s297 = sadd.s32 %s228, 3
        %s298 = sld [smem:[#allocation4 + %s297]]
        %v299 = vld [vmem:[#allocation2 + $0x2] sm:$0xff]
        %v300 = vld [vmem:[#allocation2 + $0xa] sm:$0xff]
        %v301 = vld [vmem:[#allocation2 + $0x1a] sm:$0xff]
        %v302 = vld [vmem:[#allocation2 + $0x22] sm:$0xff]
        %v303 = vstv %s298
        %v304 = vmul.f32 %v303, %v299
        %v305 = vmul.f32 %v303, %v300
        %v306 = vmul.f32 %v303, %v301
        %v307 = vmul.f32 %v303, %v302
        %v308 = vadd.f32 %v293, %v304
        %v309 = vadd.f32 %v294, %v305
        %v310 = vadd.f32 %v295, %v306
        %v311 = vadd.f32 %v296, %v307
        %s312 = sadd.s32 %s228, 4
        %s313 = sld [smem:[#allocation4 + %s312]]
        %v314 = vstv %s313
        %v315 = vmul.f32 %v314, %v299
        %v316 = vmul.f32 %v314, %v300
        %v317 = vmul.f32 %v314, %v301
        %v318 = vmul.f32 %v314, %v302
        %323 = vrot.lane.b32.xlu0 %v315, 126
        %v324 = vpop.permute.xlu0 %323
        %325 = vrot.lane.b32.xlu0 %v316, 126
        %v326 = vpop.permute.xlu0 %325
        %327 = vrot.lane.b32.xlu0 %v317, 126
        %v328 = vpop.permute.xlu0 %327
        %329 = vrot.lane.b32.xlu0 %v318, 126
        %v330 = vpop.permute.xlu0 %329
        %v335 = vadd.f32 %v308, %v324
        %v336 = vadd.f32 %v309, %v326
        %v337 = vadd.f32 %v310, %v328
        %v338 = vadd.f32 %v311, %v330
        %s339 = sadd.s32 %s228, 5
        %s340 = sld [smem:[#allocation4 + %s339]]
        %v341 = vstv %s340
        %v342 = vmul.f32 %v341, %v299
        %v343 = vmul.f32 %v341, %v300
        %v344 = vmul.f32 %v341, %v301
        %v345 = vmul.f32 %v341, %v302
        %350 = vrot.lane.b32.xlu0 %v342, 124
        %v351 = vpop.permute.xlu0 %350
        %352 = vrot.lane.b32.xlu0 %v343, 124
        %v353 = vpop.permute.xlu0 %352
        %354 = vrot.lane.b32.xlu0 %v344, 124
        %v355 = vpop.permute.xlu0 %354
        %356 = vrot.lane.b32.xlu0 %v345, 124
        %v357 = vpop.permute.xlu0 %356
        %v362 = vadd.f32 %v335, %v351
        %v363 = vadd.f32 %v336, %v353
        %v364 = vadd.f32 %v337, %v355
        %v365 = vadd.f32 %v338, %v357
        %s366 = sadd.s32 %s228, 6
        %s367 = sld [smem:[#allocation4 + %s366]]
        %v368 = vld [vmem:[#allocation2 + $0x4] sm:$0xff]
        %v369 = vld [vmem:[#allocation2 + $0xc] sm:$0xff]
        %v370 = vld [vmem:[#allocation2 + $0x1c] sm:$0xff]
        %v371 = vld [vmem:[#allocation2 + $0x24] sm:$0xff]
        %v372 = vstv %s367
        %v373 = vmul.f32 %v372, %v368
        %v374 = vmul.f32 %v372, %v369
        %v375 = vmul.f32 %v372, %v370
        %v376 = vmul.f32 %v372, %v371
        %v377 = vadd.f32 %v362, %v373
        %v378 = vadd.f32 %v363, %v374
        %v379 = vadd.f32 %v364, %v375
        %v380 = vadd.f32 %v365, %v376
        %s381 = sadd.s32 %s228, 7
        %s382 = sld [smem:[#allocation4 + %s381]]
        %v383 = vstv %s382
        %v384 = vmul.f32 %v383, %v368
        %v385 = vmul.f32 %v383, %v369
        %v386 = vmul.f32 %v383, %v370
        %v387 = vmul.f32 %v383, %v371
        %392 = vrot.lane.b32.xlu0 %v384, 126
        %v393 = vpop.permute.xlu0 %392
        %394 = vrot.lane.b32.xlu0 %v385, 126
        %v395 = vpop.permute.xlu0 %394
        %396 = vrot.lane.b32.xlu0 %v386, 126
        %v397 = vpop.permute.xlu0 %396
        %398 = vrot.lane.b32.xlu0 %v387, 126
        %v399 = vpop.permute.xlu0 %398
        %v404 = vadd.f32 %v377, %v393
        %v405 = vadd.f32 %v378, %v395
        %v406 = vadd.f32 %v379, %v397
        %v407 = vadd.f32 %v380, %v399
        %s408 = sadd.s32 %s228, 8
        %s409 = sld [smem:[#allocation4 + %s408]]
        %v410 = vstv %s409
        %v411 = vmul.f32 %v410, %v368
        %v412 = vmul.f32 %v410, %v369
        %v413 = vmul.f32 %v410, %v370
        %v414 = vmul.f32 %v410, %v371
        %419 = vrot.lane.b32.xlu0 %v411, 124
        %v420 = vpop.permute.xlu0 %419
        %421 = vrot.lane.b32.xlu0 %v412, 124
        %v422 = vpop.permute.xlu0 %421
        %423 = vrot.lane.b32.xlu0 %v413, 124
        %v424 = vpop.permute.xlu0 %423
        %425 = vrot.lane.b32.xlu0 %v414, 124
        %v426 = vpop.permute.xlu0 %425
        %v431 = vadd.f32 %v404, %v420
        %v432 = vadd.f32 %v405, %v422
        %v433 = vadd.f32 %v406, %v424
        %v434 = vadd.f32 %v407, %v426
        %vm435 = vcmask 130048
        %436 = vst.msk [vmem:[%s207] sm:$0xff] %vm435, %v431
        %437 = vst.msk [vmem:[%s207 + $0x8] sm:$0xff] %vm435, %v432
        %438 = vst.msk [vmem:[%s207 + $0x10] sm:$0xff] %vm435, %v433
        %439 = vst.msk [vmem:[%s207 + $0x18] sm:$0xff] %vm435, %v434
        %s440 = sand.u32 %s69, 1
        %s441 = sand.u32 %s69, 1
        %s442 = smul.addr %s441, 32
        %s443 = scalar_lea.vmem [#allocation6], %s442
        // Predicated region
        $region71: #{branch_6_fun.2} parent=61 // pred_check
          %p444 = pneg %p79
        $region72: #{branch_6_fun.2} parent=61 // pred_check_branch
          %446 = sbr.rel (%p444) target = $region74
        $region73: #{branch_6_fun.2} parent=61 // pred_region
          %s447 = smul.addr %s14, 2
          %s448 = smul.addr %s447, 8
          %s449 = scalar_lea.vmem %s2, %s448
          // Predicated region
          $region75: #{branch_6_fun.2} parent=73 // pred_check
            _
          $region76: #{branch_6_fun.2} parent=73 // pred_check_branch
            %451 = sbr.rel (0) target = $region78
          $region77: #{branch_6_fun.2} parent=73 // pred_region
            // Predicated region
            $region79: #{branch_6_fun.2} parent=77 // pred_check
              _
            $region80: #{branch_6_fun.2} parent=77 // pred_check_branch
              %453 = sbr.rel (0) target = $region82
            $region81: #{branch_6_fun.2} parent=77 // pred_region
              // Predicated region
              $region94: #{branch_6_fun.2} parent=81 // pred_check
                _
              $region95: #{branch_6_fun.2} parent=81 // pred_check_branch
                %475 = sbr.rel (0) target = $region97
              $region96: #{branch_6_fun.2} parent=81 // pred_region
                loop: start=0, step=1, limit=1
                $region98: #{branch_6_fun.2} parent=96 // loop_pre_header
                  _
                $region99: #{branch_6_fun.2} parent=96 // loop_header
                  %s477 = sphi 0, %s481
                  %p478 = scmp.ge.s32.totalorder %s477, 1
                  %s482 = sphi %s443, %s443
                  %s483 = sphi %s449, %s449
                $region100: #{branch_6_fun.2} parent=96 // loop_header_branch
                  %480 = sbr.rel (%p478) target = $region104
                $region101: #{branch_6_fun.2} parent=96 // loop_body
                  %v484 = vld [vmem:[%s482] sm:$0xff]
                  %485 = vst [vmem:[%s483] sm:$0xff] %v484
                  %v486 = vld [vmem:[%s482 + $0x8] sm:$0xff]
                  %487 = vst [vmem:[%s483 + $0x8] sm:$0xff] %v486
                  %v488 = vld [vmem:[%s482 + $0x10] sm:$0xff]
                  %489 = vst [vmem:[%s483 + $0x40] sm:$0xff] %v488
                  %v490 = vld [vmem:[%s482 + $0x18] sm:$0xff]
                  %491 = vst [vmem:[%s483 + $0x48] sm:$0xff] %v490
                $region102: #{branch_6_fun.2} parent=96 // loop_footer
                  %s481 = sadd.s32 1, %s477
                $region103: #{branch_6_fun.2} parent=96 // loop_footer_branch
                  %476 = sbr.rel target = $region99
                $region104: #{branch_6_fun.2} parent=96 // loop_exit
                  _
              $region97: #{branch_6_fun.2} parent=81 // pred_fallthru
                _
              // Predicated region
              $region105: #{branch_6_fun.2} parent=81 // pred_check
                _
              $region106: #{branch_6_fun.2} parent=81 // pred_check_branch
                %493 = sbr.rel target = $region108
              $region107: #{branch_6_fun.2} parent=81 // pred_region
                _
              $region108: #{branch_6_fun.2} parent=81 // pred_fallthru
                _
            $region82: #{branch_6_fun.2} parent=77 // pred_fallthru
              _
            // Predicated region
            $region83: #{branch_6_fun.2} parent=77 // pred_check
              _
            $region84: #{branch_6_fun.2} parent=77 // pred_check_branch
              %455 = sbr.rel target = $region86
            $region85: #{branch_6_fun.2} parent=77 // pred_region
              %s457 = ssub.s32 256, 1
              loop: start=0, step=1, limit=1
              $region87: #{branch_6_fun.2} parent=85 // loop_pre_header
                _
              $region88: #{branch_6_fun.2} parent=85 // loop_header
                %s459 = sphi 0, %s463
                %p460 = scmp.ge.s32.totalorder %s459, 1
                %s464 = sphi %s443, %s443
                %s465 = sphi %s449, %s449
              $region89: #{branch_6_fun.2} parent=85 // loop_header_branch
                %462 = sbr.rel (%p460) target = $region93
              $region90: #{branch_6_fun.2} parent=85 // loop_body
                %v466 = vld [vmem:[%s464] sm:%s457]
                %467 = vst [vmem:[%s465] sm:%s457] %v466
                %v468 = vld [vmem:[%s464 + $0x8] sm:%s457]
                %469 = vst [vmem:[%s465 + $0x8] sm:%s457] %v468
                %v470 = vld [vmem:[%s464 + $0x10] sm:%s457]
                %471 = vst [vmem:[%s465 + $0x40] sm:%s457] %v470
                %v472 = vld [vmem:[%s464 + $0x18] sm:%s457]
                %473 = vst [vmem:[%s465 + $0x48] sm:%s457] %v472
              $region91: #{branch_6_fun.2} parent=85 // loop_footer
                %s463 = sadd.s32 1, %s459
              $region92: #{branch_6_fun.2} parent=85 // loop_footer_branch
                %458 = sbr.rel target = $region88
              $region93: #{branch_6_fun.2} parent=85 // loop_exit
                _
            $region86: #{branch_6_fun.2} parent=77 // pred_fallthru
              _
          $region78: #{branch_6_fun.2} parent=73 // pred_fallthru
            _
          %494 = vnop
        $region74: #{branch_6_fun.2} parent=61 // pred_fallthru
          _
      $region62: #{branch_6_fun.2} parent=5 // pred_fallthru
        _
      %p495 = scmp.le.s32.totalorder 2, %s9
      // Predicated region
      $region109: #{branch_6_fun.2} parent=5 // pred_check
        %p496 = pneg %p495
      $region110: #{branch_6_fun.2} parent=5 // pred_check_branch
        %498 = sbr.rel (%p496) target = $region112
      $region111: #{branch_6_fun.2} parent=5 // pred_region
        %s499 = ssub.s32 %s9, 2
        // Predicated region
        $region113: #{branch_6_fun.2} parent=111 // pred_check
          %p500 = pneg %p85
        $region114: #{branch_6_fun.2} parent=111 // pred_check_branch
          %502 = sbr.rel (%p500) target = $region116
        $region115: #{branch_6_fun.2} parent=111 // pred_region
          %s503 = sand.u32 %s70, 1
          %s504 = sand.u32 %s70, 1
          %s505 = smul.addr %s504, 32
          %s506 = scalar_lea.vmem [#allocation6], %s505
        $region116: #{branch_6_fun.2} parent=111 // pred_fallthru
          _
      $region112: #{branch_6_fun.2} parent=5 // pred_fallthru
        _
    $region6: #{branch_6_fun.2} parent=1 // loop_footer
      %s13 = sadd.s32 1, %s9
    $region7: #{branch_6_fun.2} parent=1 // loop_footer_branch
      %8 = sbr.rel target = $region3
    $region8: #{branch_6_fun.2} parent=1 // loop_exit
      _
    %507 = vsyncpa [#allocation5], 1
    %s508 = scalar_lea.sflag [#allocation5], 1
    %509 = vsyncpa %s508, 1

// kernel: branch_7_fun.2
$region0: #{branch_7_fun.2}
  #allocation0 [shape = 'u32[]', space=smem, size = 0x4, offset = 0x4, fixed_abs, tag = 'smem constant byte address 0x4 - core index']
  #allocation1 [shape = 'u32[72,128]{1,0:T(1,128)}', space=vmem, size = 0x9000, scoped, tag = 'internal scratch']
  #allocation2 [shape = 'f32[2,1,24,24]{3,2,1,0:T(8,128)}', space=vmem, size = 0x6000, scoped, tag = 'scratch operand']
  %s0 = inlined_call_operand.vmem [shape: f32[2,4,24,24], index: 0, kind: input, shape index: {}]
  %s1 = inlined_call_operand.vmem [shape: f32[100], index: 1, kind: input, shape index: {}]
  %s2 = inlined_call_operand.vmem [shape: f32[2,4,16,16], index: 2, kind: output, shape index: {}]
  %s3 = sld [smem:[#allocation0]]
  $region117: #{branch_7_fun.2} parent=0
    _
  %s5 = ssub.s32 1, %s3
  %s6 = scalar_select 0, %s5, %s3
  $region1: #{branch_7_fun.2} parent=0
    #allocation3 [shape = 'u8[49152]{0}', space=vmem, size = 0xc000, scoped, tag = 'input window, operand 0']
    #allocation4 [shape = 'u8[512]{0}', space=smem, size = 0x200, scoped, tag = 'input window, operand 1, single buffered']
    #allocation5 [shape = 's32[2]{0}', space=sflag, size = 0x8, scoped, tag = 'scoped memory for branch_7_fun.2']
    #allocation6 [shape = 'u8[32768]{0}', space=vmem, size = 0x8000, scoped, tag = 'output window, operand 0']
    %7 = vsyncpa [#allocation5], 0
    loop: start=0, step=1, limit=6
    $region2: #{branch_7_fun.2} parent=1 // loop_pre_header
      _
    $region3: #{branch_7_fun.2} parent=1 // loop_header
      %s9 = sphi 0, %s13
      %p10 = scmp.ge.s32.totalorder %s9, 6
      %s19 = sphi 0, %s21
      %s22 = sphi 0, %s19
      %s23 = sphi 0, %s22
      %s39 = sphi 0, %s23
      %s43 = sphi 0, %s43
      %s45 = sphi 0, %s43
      %s46 = sphi 0, %s45
      %s60 = sphi 0, %s46
      %s66 = sphi 0, %s68
      %s69 = sphi 0, %s66
      %s70 = sphi 0, %s69
      %s86 = sphi 0, %s70
    $region4: #{branch_7_fun.2} parent=1 // loop_header_branch
      %12 = sbr.rel (%p10) target = $region8
    $region5: #{branch_7_fun.2} parent=1 // loop_body
      %s14 = ssub.s32 %s9, 1
      %s15 = ssub.s32 %s9, 2
      %s16 = sadd.s32 %s9, 1
      %s17 = ssub.s32 %s9, %s16
      %p18 = scmp.eq.s32.totalorder %s17, 0
      %s20 = sadd.s32 %s19, 1
      %s21 = scalar_select %p18, %s19, %s20
      %p24 = pneg %p18
      %p25 = scmp.eq.s32.totalorder %s9, 3
      %p26 = por %p24, %p25
      %p27 = scmp.ne.s32.totalorder %s19, %s22
      %p28 = scmp.eq.s32.totalorder %s9, 0
      %p29 = por %p27, %p28
      %p30 = scmp.ne.s32.totalorder %s19, %s22
      %p31 = scmp.eq.s32.totalorder %s14, 3
      %p32 = por %p30, %p31
      %p33 = scmp.ne.s32.totalorder %s22, %s23
      %p34 = scmp.eq.s32.totalorder %s14, 0
      %p35 = por %p33, %p34
      %p36 = scmp.ne.s32.totalorder %s22, %s23
      %p37 = scmp.eq.s32.totalorder %s15, 3
      %p38 = por %p36, %p37
      %p40 = scmp.ne.s32.totalorder %s23, %s39
      %p41 = scmp.eq.s32.totalorder %s15, 0
      %p42 = por %p40, %p41
      %s44 = sadd.s32 %s43, 1
      %p47 = scmp.eq.s32.totalorder %s9, 3
      %p48 = scmp.ne.s32.totalorder %s43, %s45
      %p49 = scmp.eq.s32.totalorder %s9, 0
      %p50 = por %p48, %p49
      %p51 = scmp.ne.s32.totalorder %s43, %s45
      %p52 = scmp.eq.s32.totalorder %s14, 3
      %p53 = por %p51, %p52
      %p54 = scmp.ne.s32.totalorder %s45, %s46
      %p55 = scmp.eq.s32.totalorder %s14, 0
      %p56 = por %p54, %p55
      %p57 = scmp.ne.s32.totalorder %s45, %s46
      %p58 = scmp.eq.s32.totalorder %s15, 3
      %p59 = por %p57, %p58
      %p61 = scmp.ne.s32.totalorder %s46, %s60
      %p62 = scmp.eq.s32.totalorder %s15, 0
      %p63 = por %p61, %p62
      %s64 = ssub.s32 %s9, %s16
      %p65 = scmp.eq.s32.totalorder %s64, 0
      %s67 = sadd.s32 %s66, 1
      %s68 = scalar_select %p65, %s66, %s67
      %p71 = pneg %p65
      %p72 = scmp.eq.s32.totalorder %s9, 3
      %p73 = por %p71, %p72
      %p74 = scmp.ne.s32.totalorder %s66, %s69
      %p75 = scmp.eq.s32.totalorder %s9, 0
      %p76 = por %p74, %p75
      %p77 = scmp.ne.s32.totalorder %s66, %s69
      %p78 = scmp.eq.s32.totalorder %s14, 3
      %p79 = por %p77, %p78
      %p80 = scmp.ne.s32.totalorder %s69, %s70
      %p81 = scmp.eq.s32.totalorder %s14, 0
      %p82 = por %p80, %p81
      %p83 = scmp.ne.s32.totalorder %s69, %s70
      %p84 = scmp.eq.s32.totalorder %s15, 3
      %p85 = por %p83, %p84
      %p87 = scmp.ne.s32.totalorder %s70, %s86
      %p88 = scmp.eq.s32.totalorder %s15, 0
      %p89 = por %p87, %p88
      %p90 = scmp.le.s32.totalorder 1, %s9
      %p91 = scmp.lt.s32.totalorder %s9, 5
      %p92 = pnand %p90, %p91
      %p93 = pneg %p92
      // Predicated region
      $region9: #{branch_7_fun.2} parent=5 // pred_check
        _
      $region10: #{branch_7_fun.2} parent=5 // pred_check_branch
        %95 = sbr.rel (%p92) target = $region12
      $region11: #{branch_7_fun.2} parent=5 // pred_region
        %s96 = ssub.s32 %s9, 1
        // Predicated region
        $region13: #{branch_7_fun.2} parent=11 // pred_check
          %p97 = pneg %p56
        $region14: #{branch_7_fun.2} parent=11 // pred_check_branch
          %99 = sbr.rel (%p97) target = $region16
        $region15: #{branch_7_fun.2} parent=11 // pred_region
          %101 = vsyncadd [#allocation5], 0
          %s103 = sshll.u32 %s1, 4
          %s104 = int_to_ptr.vmem [resolvable:$true] %s103
          %106 = dma.vmem_to_smem %s104, 16, [#allocation4], [#allocation5]
        $region16: #{branch_7_fun.2} parent=11 // pred_fallthru
          _
      $region12: #{branch_7_fun.2} parent=5 // pred_fallthru
        _
      %p107 = scmp.lt.s32.totalorder %s9, 4
      // Predicated region
      $region17: #{branch_7_fun.2} parent=5 // pred_check
        %p108 = pneg %p107
      $region18: #{branch_7_fun.2} parent=5 // pred_check_branch
        %110 = sbr.rel (%p108) target = $region20
      $region19: #{branch_7_fun.2} parent=5 // pred_region
        // Predicated region
        $region21: #{branch_7_fun.2} parent=19 // pred_check
          %p111 = pneg %p29
        $region22: #{branch_7_fun.2} parent=19 // pred_check_branch
          %113 = sbr.rel (%p111) target = $region24
        $region23: #{branch_7_fun.2} parent=19 // pred_region
          %s114 = sand.u32 %s19, 1
          %s115 = sand.u32 %s19, 1
          %s116 = smul.addr %s115, 48
          %s117 = scalar_lea.vmem [#allocation3], %s116
          %s118 = smul.addr %s9, 3
          %s119 = smul.addr %s118, 8
          %s120 = scalar_lea.vmem %s0, %s119
          // Predicated region
          $region25: #{branch_7_fun.2} parent=23 // pred_check
            _
          $region26: #{branch_7_fun.2} parent=23 // pred_check_branch
            %122 = sbr.rel (0) target = $region28
          $region27: #{branch_7_fun.2} parent=23 // pred_region
            // Predicated region
            $region29: #{branch_7_fun.2} parent=27 // pred_check
              _
            $region30: #{branch_7_fun.2} parent=27 // pred_check_branch
              %124 = sbr.rel (0) target = $region32
            $region31: #{branch_7_fun.2} parent=27 // pred_region
              // Predicated region
              $region44: #{branch_7_fun.2} parent=31 // pred_check
                _
              $region45: #{branch_7_fun.2} parent=31 // pred_check_branch
                %150 = sbr.rel (0) target = $region47
              $region46: #{branch_7_fun.2} parent=31 // pred_region
                loop: start=0, step=1, limit=1
                $region48: #{branch_7_fun.2} parent=46 // loop_pre_header
                  _
                $region49: #{branch_7_fun.2} parent=46 // loop_header
                  %s152 = sphi 0, %s156
                  %p153 = scmp.ge.s32.totalorder %s152, 1
                  %s157 = sphi %s120, %s120
                  %s158 = sphi %s117, %s117
                $region50: #{branch_7_fun.2} parent=46 // loop_header_branch
                  %155 = sbr.rel (%p153) target = $region54
                $region51: #{branch_7_fun.2} parent=46 // loop_body
                  %v159 = vld [vmem:[%s157] sm:$0xff]
                  %160 = vst [vmem:[%s158] sm:$0xff] %v159
                  %v161 = vld [vmem:[%s157 + $0x8] sm:$0xff]
                  %162 = vst [vmem:[%s158 + $0x8] sm:$0xff] %v161
                  %v163 = vld [vmem:[%s157 + $0x10] sm:$0xff]
                  %164 = vst [vmem:[%s158 + $0x10] sm:$0xff] %v163
                  %v165 = vld [vmem:[%s157 + $0x60] sm:$0xff]
                  %166 = vst [vmem:[%s158 + $0x18] sm:$0xff] %v165
                  %v167 = vld [vmem:[%s157 + $0x68] sm:$0xff]
                  %168 = vst [vmem:[%s158 + $0x20] sm:$0xff] %v167
                  %v169 = vld [vmem:[%s157 + $0x70] sm:$0xff]
                  %170 = vst [vmem:[%s158 + $0x28] sm:$0xff] %v169
                $region52: #{branch_7_fun.2} parent=46 // loop_footer
                  %s156 = sadd.s32 1, %s152
                $region53: #{branch_7_fun.2} parent=46 // loop_footer_branch
                  %151 = sbr.rel target = $region49
                $region54: #{branch_7_fun.2} parent=46 // loop_exit
                  _
              $region47: #{branch_7_fun.2} parent=31 // pred_fallthru
                _
              // Predicated region
              $region55: #{branch_7_fun.2} parent=31 // pred_check
                _
              $region56: #{branch_7_fun.2} parent=31 // pred_check_branch
                %172 = sbr.rel target = $region58
              $region57: #{branch_7_fun.2} parent=31 // pred_region
                _
              $region58: #{branch_7_fun.2} parent=31 // pred_fallthru
                _
            $region32: #{branch_7_fun.2} parent=27 // pred_fallthru
              _
            // Predicated region
            $region33: #{branch_7_fun.2} parent=27 // pred_check
              _
            $region34: #{branch_7_fun.2} parent=27 // pred_check_branch
              %126 = sbr.rel target = $region36
            $region35: #{branch_7_fun.2} parent=27 // pred_region
              %s128 = ssub.s32 256, 1
              loop: start=0, step=1, limit=1
              $region37: #{branch_7_fun.2} parent=35 // loop_pre_header
                _
              $region38: #{branch_7_fun.2} parent=35 // loop_header
                %s130 = sphi 0, %s134
                %p131 = scmp.ge.s32.totalorder %s130, 1
                %s135 = sphi %s120, %s120
                %s136 = sphi %s117, %s117
              $region39: #{branch_7_fun.2} parent=35 // loop_header_branch
                %133 = sbr.rel (%p131) target = $region43
              $region40: #{branch_7_fun.2} parent=35 // loop_body
                %v137 = vld [vmem:[%s135] sm:%s128]
                %138 = vst [vmem:[%s136] sm:%s128] %v137
                %v139 = vld [vmem:[%s135 + $0x8] sm:%s128]
                %140 = vst [vmem:[%s136 + $0x8] sm:%s128] %v139
                %v141 = vld [vmem:[%s135 + $0x10] sm:%s128]
                %142 = vst [vmem:[%s136 + $0x10] sm:%s128] %v141
                %v143 = vld [vmem:[%s135 + $0x60] sm:%s128]
                %144 = vst [vmem:[%s136 + $0x18] sm:%s128] %v143
                %v145 = vld [vmem:[%s135 + $0x68] sm:%s128]
                %146 = vst [vmem:[%s136 + $0x20] sm:%s128] %v145
                %v147 = vld [vmem:[%s135 + $0x70] sm:%s128]
                %148 = vst [vmem:[%s136 + $0x28] sm:%s128] %v147
              $region41: #{branch_7_fun.2} parent=35 // loop_footer
                %s134 = sadd.s32 1, %s130
              $region42: #{branch_7_fun.2} parent=35 // loop_footer_branch
                %129 = sbr.rel target = $region38
              $region43: #{branch_7_fun.2} parent=35 // loop_exit
                _
            $region36: #{branch_7_fun.2} parent=27 // pred_fallthru
              _
          $region28: #{branch_7_fun.2} parent=23 // pred_fallthru
            _
          %173 = vnop
        $region24: #{branch_7_fun.2} parent=19 // pred_fallthru
          _
      $region20: #{branch_7_fun.2} parent=5 // pred_fallthru
        _
      %p174 = scmp.le.s32.totalorder 1, %s9
      %p175 = scmp.lt.s32.totalorder %s9, 5
      %p176 = pnand %p174, %p175
      %p177 = pneg %p176
      // Predicated region
      $region59: #{branch_7_fun.2} parent=5 // pred_check
        _
      $region60: #{branch_7_fun.2} parent=5 // pred_check_branch
        %179 = sbr.rel (%p176) target = $region62
      $region61: #{branch_7_fun.2} parent=5 // pred_region
        %s180 = ssub.s32 %s9, 1
        %s181 = sand.u32 %s22, 1
        %s182 = sand.u32 %s22, 1
        %s183 = smul.addr %s182, 48
        %s184 = scalar_lea.vmem [#allocation3], %s183
        // Predicated region
        $region63: #{branch_7_fun.2} parent=61 // pred_check
          %p185 = pneg %p35
        $region64: #{branch_7_fun.2} parent=61 // pred_check_branch
          %187 = sbr.rel (%p185) target = $region66
        $region65: #{branch_7_fun.2} parent=61 // pred_region
          _
        $region66: #{branch_7_fun.2} parent=61 // pred_fallthru
          _
        // Predicated region
        $region67: #{branch_7_fun.2} parent=61 // pred_check
          %p188 = pneg %p56
        $region68: #{branch_7_fun.2} parent=61 // pred_check_branch
          %190 = sbr.rel (%p188) target = $region70
        $region69: #{branch_7_fun.2} parent=61 // pred_region
          %192 = dma.done [#allocation5], 16
        $region70: #{branch_7_fun.2} parent=61 // pred_fallthru
          _
        %193 = sfence
        %s194 = sand.u32 %s22, 1
        %s195 = sand.u32 %s22, 1
        %s196 = smul.addr %s195, 48
        %s197 = scalar_lea.vmem [#allocation3], %s196
        %p198 = pneg %p35
        %p199 = pneg %p32
        %p200 = pneg %p56
        %p201 = pneg %p53
        %p202 = pneg %p82
        %p203 = pneg %p79
        %s204 = sand.u32 %s69, 1
        %s205 = sand.u32 %s69, 1
        %s206 = smul.addr %s205, 32
        %s207 = scalar_lea.vmem [#allocation6], %s206
        %v208 = vld [vmem:[%s184] sm:$0xff]
        %v209 = vld [vmem:[%s184 + $0x8] sm:$0xff]
        %v210 = vld [vmem:[%s184 + $0x10] sm:$0xff]
        %v211 = vld [vmem:[%s184 + $0x18] sm:$0xff]
        %v212 = vld [vmem:[%s184 + $0x20] sm:$0xff]
        %v213 = vld [vmem:[%s184 + $0x28] sm:$0xff]
        %v214 = vmax.f32 %v208, 0.0
        %v215 = vmax.f32 %v209, 0.0
        %v216 = vmax.f32 %v210, 0.0
        %v217 = vmax.f32 %v211, 0.0
        %v218 = vmax.f32 %v212, 0.0
        %v219 = vmax.f32 %v213, 0.0
        %vm220 = vcmask 195584
        %221 = vst.msk [vmem:[#allocation2] sm:$0xff] %vm220, %v214
        %222 = vst.msk [vmem:[#allocation2 + $0x8] sm:$0xff] %vm220, %v215
        %223 = vst.msk [vmem:[#allocation2 + $0x10] sm:$0xff] %vm220, %v216
        %224 = vst.msk [vmem:[#allocation2 + $0x18] sm:$0xff] %vm220, %v217
        %225 = vst.msk [vmem:[#allocation2 + $0x20] sm:$0xff] %vm220, %v218
        %226 = vst.msk [vmem:[#allocation2 + $0x28] sm:$0xff] %vm220, %v219
        %s227 = smul.u32 %s14, 25
        %s228 = sld [smem:[#allocation4 + %s227]]
        %v229 = vld [vmem:[#allocation2] sm:$0xff]
        %v230 = vld [vmem:[#allocation2 + $0x8] sm:$0xff]
        %v231 = vld [vmem:[#allocation2 + $0x18] sm:$0xff]
        %v232 = vld [vmem:[#allocation2 + $0x20] sm:$0xff]
        %v233 = vstv %s228
        %v234 = vmul.f32 %v233, %v229
        %v235 = vmul.f32 %v233, %v230
        %v236 = vmul.f32 %v233, %v231
        %v237 = vmul.f32 %v233, %v232
        %v238 = vadd.f32 %v234, 0.0
        %v239 = vadd.f32 %v235, 0.0
        %v240 = vadd.f32 %v236, 0.0
        %v241 = vadd.f32 %v237, 0.0
        %s242 = sadd.s32 %s227, 1
        %s243 = sld [smem:[#allocation4 + %s242]]
        %v244 = vstv %s243
        %v245 = vmul.f32 %v244, %v229
        %v246 = vmul.f32 %v244, %v230
        %v247 = vmul.f32 %v244, %v231
        %v248 = vmul.f32 %v244, %v232
        %253 = vrot.lane.b32.xlu0 %v245, 126
        %v254 = vpop.permute.xlu0 %253
        %255 = vrot.lane.b32.xlu0 %v246, 126
        %v256 = vpop.permute.xlu0 %255
        %257 = vrot.lane.b32.xlu0 %v247, 126
        %v258 = vpop.permute.xlu0 %257
        %259 = vrot.lane.b32.xlu0 %v248, 126
        %v260 = vpop.permute.xlu0 %259
        %v265 = vadd.f32 %v238, %v254
        %v266 = vadd.f32 %v239, %v256
        %v267 = vadd.f32 %v240, %v258
        %v268 = vadd.f32 %v241, %v260
        %s269 = sadd.s32 %s227, 2
        %s270 = sld [smem:[#allocation4 + %s269]]
        %v271 = vstv %s270
        %v272 = vmul.f32 %v271, %v229
        %v273 = vmul.f32 %v271, %v230
        %v274 = vmul.f32 %v271, %v231
        %v275 = vmul.f32 %v271, %v232
        %280 = vrot.lane.b32.xlu0 %v272, 124
        %v281 = vpop.permute.xlu0 %280
        %282 = vrot.lane.b32.xlu0 %v273, 124
        %v283 = vpop.permute.xlu0 %282
        %284 = vrot.lane.b32.xlu0 %v274, 124
        %v285 = vpop.permute.xlu0 %284
        %286 = vrot.lane.b32.xlu0 %v275, 124
        %v287 = vpop.permute.xlu0 %286
        %v292 = vadd.f32 %v265, %v281
        %v293 = vadd.f32 %v266, %v283
        %v294 = vadd.f32 %v267, %v285
        %v295 = vadd.f32 %v268, %v287
        %s296 = sadd.s32 %s227, 3
        %s297 = sld [smem:[#allocation4 + %s296]]
        %v298 = vstv %s297
        %v299 = vmul.f32 %v298, %v229
        %v300 = vmul.f32 %v298, %v230
        %v301 = vmul.f32 %v298, %v231
        %v302 = vmul.f32 %v298, %v232
        %307 = vrot.lane.b32.xlu0 %v299, 122
        %v308 = vpop.permute.xlu0 %307
        %309 = vrot.lane.b32.xlu0 %v300, 122
        %v310 = vpop.permute.xlu0 %309
        %311 = vrot.lane.b32.xlu0 %v301, 122
        %v312 = vpop.permute.xlu0 %311
        %313 = vrot.lane.b32.xlu0 %v302, 122
        %v314 = vpop.permute.xlu0 %313
        %v319 = vadd.f32 %v292, %v308
        %v320 = vadd.f32 %v293, %v310
        %v321 = vadd.f32 %v294, %v312
        %v322 = vadd.f32 %v295, %v314
        %s323 = sadd.s32 %s227, 4
        %s324 = sld [smem:[#allocation4 + %s323]]
        %v325 = vstv %s324
        %v326 = vmul.f32 %v325, %v229
        %v327 = vmul.f32 %v325, %v230
        %v328 = vmul.f32 %v325, %v231
        %v329 = vmul.f32 %v325, %v232
        %334 = vrot.lane.b32.xlu0 %v326, 120
        %v335 = vpop.permute.xlu0 %334
        %336 = vrot.lane.b32.xlu0 %v327, 120
        %v337 = vpop.permute.xlu0 %336
        %338 = vrot.lane.b32.xlu0 %v328, 120
        %v339 = vpop.permute.xlu0 %338
        %340 = vrot.lane.b32.xlu0 %v329, 120
        %v341 = vpop.permute.xlu0 %340
        %v346 = vadd.f32 %v319, %v335
        %v347 = vadd.f32 %v320, %v337
        %v348 = vadd.f32 %v321, %v339
        %v349 = vadd.f32 %v322, %v341
        %s350 = sadd.s32 %s227, 5
        %s351 = sld [smem:[#allocation4 + %s350]]
        %v352 = vld [vmem:[#allocation2 + $0x2] sm:$0xff]
        %v353 = vld [vmem:[#allocation2 + $0xa] sm:$0xff]
        %v354 = vld [vmem:[#allocation2 + $0x1a] sm:$0xff]
        %v355 = vld [vmem:[#allocation2 + $0x22] sm:$0xff]
        %v356 = vstv %s351
        %v357 = vmul.f32 %v356, %v352
        %v358 = vmul.f32 %v356, %v353
        %v359 = vmul.f32 %v356, %v354
        %v360 = vmul.f32 %v356, %v355
        %v361 = vadd.f32 %v346, %v357
        %v362 = vadd.f32 %v347, %v358
        %v363 = vadd.f32 %v348, %v359
        %v364 = vadd.f32 %v349, %v360
        %s365 = sadd.s32 %s227, 6
        %s366 = sld [smem:[#allocation4 + %s365]]
        %v367 = vstv %s366
        %v368 = vmul.f32 %v367, %v352
        %v369 = vmul.f32 %v367, %v353
        %v370 = vmul.f32 %v367, %v354
        %v371 = vmul.f32 %v367, %v355
        %376 = vrot.lane.b32.xlu0 %v368, 126
        %v377 = vpop.permute.xlu0 %376
        %378 = vrot.lane.b32.xlu0 %v369, 126
        %v379 = vpop.permute.xlu0 %378
        %380 = vrot.lane.b32.xlu0 %v370, 126
        %v381 = vpop.permute.xlu0 %380
        %382 = vrot.lane.b32.xlu0 %v371, 126
        %v383 = vpop.permute.xlu0 %382
        %v388 = vadd.f32 %v361, %v377
        %v389 = vadd.f32 %v362, %v379
        %v390 = vadd.f32 %v363, %v381
        %v391 = vadd.f32 %v364, %v383
        %s392 = sadd.s32 %s227, 7
        %s393 = sld [smem:[#allocation4 + %s392]]
        %v394 = vstv %s393
        %v395 = vmul.f32 %v394, %v352
        %v396 = vmul.f32 %v394, %v353
        %v397 = vmul.f32 %v394, %v354
        %v398 = vmul.f32 %v394, %v355
        %403 = vrot.lane.b32.xlu0 %v395, 124
        %v404 = vpop.permute.xlu0 %403
        %405 = vrot.lane.b32.xlu0 %v396, 124
        %v406 = vpop.permute.xlu0 %405
        %407 = vrot.lane.b32.xlu0 %v397, 124
        %v408 = vpop.permute.xlu0 %407
        %409 = vrot.lane.b32.xlu0 %v398, 124
        %v410 = vpop.permute.xlu0 %409
        %v415 = vadd.f32 %v388, %v404
        %v416 = vadd.f32 %v389, %v406
        %v417 = vadd.f32 %v390, %v408
        %v418 = vadd.f32 %v391, %v410
        %s419 = sadd.s32 %s227, 8
        %s420 = sld [smem:[#allocation4 + %s419]]
        %v421 = vstv %s420
        %v422 = vmul.f32 %v421, %v352
        %v423 = vmul.f32 %v421, %v353
        %v424 = vmul.f32 %v421, %v354
        %v425 = vmul.f32 %v421, %v355
        %430 = vrot.lane.b32.xlu0 %v422, 122
        %v431 = vpop.permute.xlu0 %430
        %432 = vrot.lane.b32.xlu0 %v423, 122
        %v433 = vpop.permute.xlu0 %432
        %434 = vrot.lane.b32.xlu0 %v424, 122
        %v435 = vpop.permute.xlu0 %434
        %436 = vrot.lane.b32.xlu0 %v425, 122
        %v437 = vpop.permute.xlu0 %436
        %v442 = vadd.f32 %v415, %v431
        %v443 = vadd.f32 %v416, %v433
        %v444 = vadd.f32 %v417, %v435
        %v445 = vadd.f32 %v418, %v437
        %s446 = sadd.s32 %s227, 9
        %s447 = sld [smem:[#allocation4 + %s446]]
        %v448 = vstv %s447
        %v449 = vmul.f32 %v448, %v352
        %v450 = vmul.f32 %v448, %v353
        %v451 = vmul.f32 %v448, %v354
        %v452 = vmul.f32 %v448, %v355
        %457 = vrot.lane.b32.xlu0 %v449, 120
        %v458 = vpop.permute.xlu0 %457
        %459 = vrot.lane.b32.xlu0 %v450, 120
        %v460 = vpop.permute.xlu0 %459
        %461 = vrot.lane.b32.xlu0 %v451, 120
        %v462 = vpop.permute.xlu0 %461
        %463 = vrot.lane.b32.xlu0 %v452, 120
        %v464 = vpop.permute.xlu0 %463
        %v469 = vadd.f32 %v442, %v458
        %v470 = vadd.f32 %v443, %v460
        %v471 = vadd.f32 %v444, %v462
        %v472 = vadd.f32 %v445, %v464
        %s473 = sadd.s32 %s227, 10
        %s474 = sld [smem:[#allocation4 + %s473]]
        %v475 = vld [vmem:[#allocation2 + $0x4] sm:$0xff]
        %v476 = vld [vmem:[#allocation2 + $0xc] sm:$0xff]
        %v477 = vld [vmem:[#allocation2 + $0x1c] sm:$0xff]
        %v478 = vld [vmem:[#allocation2 + $0x24] sm:$0xff]
        %v479 = vstv %s474
        %v480 = vmul.f32 %v479, %v475
        %v481 = vmul.f32 %v479, %v476
        %v482 = vmul.f32 %v479, %v477
        %v483 = vmul.f32 %v479, %v478
        %v484 = vadd.f32 %v469, %v480
        %v485 = vadd.f32 %v470, %v481
        %v486 = vadd.f32 %v471, %v482
        %v487 = vadd.f32 %v472, %v483
        %s488 = sadd.s32 %s227, 11
        %s489 = sld [smem:[#allocation4 + %s488]]
        %v490 = vstv %s489
        %v491 = vmul.f32 %v490, %v475
        %v492 = vmul.f32 %v490, %v476
        %v493 = vmul.f32 %v490, %v477
        %v494 = vmul.f32 %v490, %v478
        %499 = vrot.lane.b32.xlu0 %v491, 126
        %v500 = vpop.permute.xlu0 %499
        %501 = vrot.lane.b32.xlu0 %v492, 126
        %v502 = vpop.permute.xlu0 %501
        %503 = vrot.lane.b32.xlu0 %v493, 126
        %v504 = vpop.permute.xlu0 %503
        %505 = vrot.lane.b32.xlu0 %v494, 126
        %v506 = vpop.permute.xlu0 %505
        %v511 = vadd.f32 %v484, %v500
        %v512 = vadd.f32 %v485, %v502
        %v513 = vadd.f32 %v486, %v504
        %v514 = vadd.f32 %v487, %v506
        %s515 = sadd.s32 %s227, 12
        %s516 = sld [smem:[#allocation4 + %s515]]
        %v517 = vstv %s516
        %v518 = vmul.f32 %v517, %v475
        %v519 = vmul.f32 %v517, %v476
        %v520 = vmul.f32 %v517, %v477
        %v521 = vmul.f32 %v517, %v478
        %526 = vrot.lane.b32.xlu0 %v518, 124
        %v527 = vpop.permute.xlu0 %526
        %528 = vrot.lane.b32.xlu0 %v519, 124
        %v529 = vpop.permute.xlu0 %528
        %530 = vrot.lane.b32.xlu0 %v520, 124
        %v531 = vpop.permute.xlu0 %530
        %532 = vrot.lane.b32.xlu0 %v521, 124
        %v533 = vpop.permute.xlu0 %532
        %v538 = vadd.f32 %v511, %v527
        %v539 = vadd.f32 %v512, %v529
        %v540 = vadd.f32 %v513, %v531
        %v541 = vadd.f32 %v514, %v533
        %s542 = sadd.s32 %s227, 13
        %s543 = sld [smem:[#allocation4 + %s542]]
        %v544 = vstv %s543
        %v545 = vmul.f32 %v544, %v475
        %v546 = vmul.f32 %v544, %v476
        %v547 = vmul.f32 %v544, %v477
        %v548 = vmul.f32 %v544, %v478
        %553 = vrot.lane.b32.xlu0 %v545, 122
        %v554 = vpop.permute.xlu0 %553
        %555 = vrot.lane.b32.xlu0 %v546, 122
        %v556 = vpop.permute.xlu0 %555
        %557 = vrot.lane.b32.xlu0 %v547, 122
        %v558 = vpop.permute.xlu0 %557
        %559 = vrot.lane.b32.xlu0 %v548, 122
        %v560 = vpop.permute.xlu0 %559
        %v565 = vadd.f32 %v538, %v554
        %v566 = vadd.f32 %v539, %v556
        %v567 = vadd.f32 %v540, %v558
        %v568 = vadd.f32 %v541, %v560
        %s569 = sadd.s32 %s227, 14
        %s570 = sld [smem:[#allocation4 + %s569]]
        %v571 = vstv %s570
        %v572 = vmul.f32 %v571, %v475
        %v573 = vmul.f32 %v571, %v476
        %v574 = vmul.f32 %v571, %v477
        %v575 = vmul.f32 %v571, %v478
        %580 = vrot.lane.b32.xlu0 %v572, 120
        %v581 = vpop.permute.xlu0 %580
        %582 = vrot.lane.b32.xlu0 %v573, 120
        %v583 = vpop.permute.xlu0 %582
        %584 = vrot.lane.b32.xlu0 %v574, 120
        %v585 = vpop.permute.xlu0 %584
        %586 = vrot.lane.b32.xlu0 %v575, 120
        %v587 = vpop.permute.xlu0 %586
        %v592 = vadd.f32 %v565, %v581
        %v593 = vadd.f32 %v566, %v583
        %v594 = vadd.f32 %v567, %v585
        %v595 = vadd.f32 %v568, %v587
        %s596 = sadd.s32 %s227, 15
        %s597 = sld [smem:[#allocation4 + %s596]]
        %v598 = vld [vmem:[#allocation2 + $0x6] sm:$0xff]
        %v599 = vld [vmem:[#allocation2 + $0xe] sm:$0xff]
        %v600 = vld [vmem:[#allocation2 + $0x1e] sm:$0xff]
        %v601 = vld [vmem:[#allocation2 + $0x26] sm:$0xff]
        %v602 = vstv %s597
        %v603 = vmul.f32 %v602, %v598
        %v604 = vmul.f32 %v602, %v599
        %v605 = vmul.f32 %v602, %v600
        %v606 = vmul.f32 %v602, %v601
        %v607 = vadd.f32 %v592, %v603
        %v608 = vadd.f32 %v593, %v604
        %v609 = vadd.f32 %v594, %v605
        %v610 = vadd.f32 %v595, %v606
        %s611 = sadd.s32 %s227, 16
        %s612 = sld [smem:[#allocation4 + %s611]]
        %v613 = vstv %s612
        %v614 = vmul.f32 %v613, %v598
        %v615 = vmul.f32 %v613, %v599
        %v616 = vmul.f32 %v613, %v600
        %v617 = vmul.f32 %v613, %v601
        %622 = vrot.lane.b32.xlu0 %v614, 126
        %v623 = vpop.permute.xlu0 %622
        %624 = vrot.lane.b32.xlu0 %v615, 126
        %v625 = vpop.permute.xlu0 %624
        %626 = vrot.lane.b32.xlu0 %v616, 126
        %v627 = vpop.permute.xlu0 %626
        %628 = vrot.lane.b32.xlu0 %v617, 126
        %v629 = vpop.permute.xlu0 %628
        %v634 = vadd.f32 %v607, %v623
        %v635 = vadd.f32 %v608, %v625
        %v636 = vadd.f32 %v609, %v627
        %v637 = vadd.f32 %v610, %v629
        %s638 = sadd.s32 %s227, 17
        %s639 = sld [smem:[#allocation4 + %s638]]
        %v640 = vstv %s639
        %v641 = vmul.f32 %v640, %v598
        %v642 = vmul.f32 %v640, %v599
        %v643 = vmul.f32 %v640, %v600
        %v644 = vmul.f32 %v640, %v601
        %649 = vrot.lane.b32.xlu0 %v641, 124
        %v650 = vpop.permute.xlu0 %649
        %651 = vrot.lane.b32.xlu0 %v642, 124
        %v652 = vpop.permute.xlu0 %651
        %653 = vrot.lane.b32.xlu0 %v643, 124
        %v654 = vpop.permute.xlu0 %653
        %655 = vrot.lane.b32.xlu0 %v644, 124
        %v656 = vpop.permute.xlu0 %655
        %v661 = vadd.f32 %v634, %v650
        %v662 = vadd.f32 %v635, %v652
        %v663 = vadd.f32 %v636, %v654
        %v664 = vadd.f32 %v637, %v656
        %s665 = sadd.s32 %s227, 18
        %s666 = sld [smem:[#allocation4 + %s665]]
        %v667 = vstv %s666
        %v668 = vmul.f32 %v667, %v598
        %v669 = vmul.f32 %v667, %v599
        %v670 = vmul.f32 %v667, %v600
        %v671 = vmul.f32 %v667, %v601
        %676 = vrot.lane.b32.xlu0 %v668, 122
        %v677 = vpop.permute.xlu0 %676
        %678 = vrot.lane.b32.xlu0 %v669, 122
        %v679 = vpop.permute.xlu0 %678
        %680 = vrot.lane.b32.xlu0 %v670, 122
        %v681 = vpop.permute.xlu0 %680
        %682 = vrot.lane.b32.xlu0 %v671, 122
        %v683 = vpop.permute.xlu0 %682
        %v688 = vadd.f32 %v661, %v677
        %v689 = vadd.f32 %v662, %v679
        %v690 = vadd.f32 %v663, %v681
        %v691 = vadd.f32 %v664, %v683
        %s692 = sadd.s32 %s227, 19
        %s693 = sld [smem:[#allocation4 + %s692]]
        %v694 = vstv %s693
        %v695 = vmul.f32 %v694, %v598
        %v696 = vmul.f32 %v694, %v599
        %v697 = vmul.f32 %v694, %v600
        %v698 = vmul.f32 %v694, %v601
        %703 = vrot.lane.b32.xlu0 %v695, 120
        %v704 = vpop.permute.xlu0 %703
        %705 = vrot.lane.b32.xlu0 %v696, 120
        %v706 = vpop.permute.xlu0 %705
        %707 = vrot.lane.b32.xlu0 %v697, 120
        %v708 = vpop.permute.xlu0 %707
        %709 = vrot.lane.b32.xlu0 %v698, 120
        %v710 = vpop.permute.xlu0 %709
        %v715 = vadd.f32 %v688, %v704
        %v716 = vadd.f32 %v689, %v706
        %v717 = vadd.f32 %v690, %v708
        %v718 = vadd.f32 %v691, %v710
        %s719 = sadd.s32 %s227, 20
        %s720 = sld [smem:[#allocation4 + %s719]]
        %v721 = vld [vmem:[#allocation2 + $0x8] sm:$0xff]
        %v722 = vld [vmem:[#allocation2 + $0x10] sm:$0xff]
        %v723 = vld [vmem:[#allocation2 + $0x20] sm:$0xff]
        %v724 = vld [vmem:[#allocation2 + $0x28] sm:$0xff]
        %v725 = vstv %s720
        %v726 = vmul.f32 %v725, %v721
        %v727 = vmul.f32 %v725, %v722
        %v728 = vmul.f32 %v725, %v723
        %v729 = vmul.f32 %v725, %v724
        %v730 = vadd.f32 %v715, %v726
        %v731 = vadd.f32 %v716, %v727
        %v732 = vadd.f32 %v717, %v728
        %v733 = vadd.f32 %v718, %v729
        %s734 = sadd.s32 %s227, 21
        %s735 = sld [smem:[#allocation4 + %s734]]
        %v736 = vstv %s735
        %v737 = vmul.f32 %v736, %v721
        %v738 = vmul.f32 %v736, %v722
        %v739 = vmul.f32 %v736, %v723
        %v740 = vmul.f32 %v736, %v724
        %745 = vrot.lane.b32.xlu0 %v737, 126
        %v746 = vpop.permute.xlu0 %745
        %747 = vrot.lane.b32.xlu0 %v738, 126
        %v748 = vpop.permute.xlu0 %747
        %749 = vrot.lane.b32.xlu0 %v739, 126
        %v750 = vpop.permute.xlu0 %749
        %751 = vrot.lane.b32.xlu0 %v740, 126
        %v752 = vpop.permute.xlu0 %751
        %v757 = vadd.f32 %v730, %v746
        %v758 = vadd.f32 %v731, %v748
        %v759 = vadd.f32 %v732, %v750
        %v760 = vadd.f32 %v733, %v752
        %s761 = sadd.s32 %s227, 22
        %s762 = sld [smem:[#allocation4 + %s761]]
        %v763 = vstv %s762
        %v764 = vmul.f32 %v763, %v721
        %v765 = vmul.f32 %v763, %v722
        %v766 = vmul.f32 %v763, %v723
        %v767 = vmul.f32 %v763, %v724
        %772 = vrot.lane.b32.xlu0 %v764, 124
        %v773 = vpop.permute.xlu0 %772
        %774 = vrot.lane.b32.xlu0 %v765, 124
        %v775 = vpop.permute.xlu0 %774
        %776 = vrot.lane.b32.xlu0 %v766, 124
        %v777 = vpop.permute.xlu0 %776
        %778 = vrot.lane.b32.xlu0 %v767, 124
        %v779 = vpop.permute.xlu0 %778
        %v784 = vadd.f32 %v757, %v773
        %v785 = vadd.f32 %v758, %v775
        %v786 = vadd.f32 %v759, %v777
        %v787 = vadd.f32 %v760, %v779
        %s788 = sadd.s32 %s227, 23
        %s789 = sld [smem:[#allocation4 + %s788]]
        %v790 = vstv %s789
        %v791 = vmul.f32 %v790, %v721
        %v792 = vmul.f32 %v790, %v722
        %v793 = vmul.f32 %v790, %v723
        %v794 = vmul.f32 %v790, %v724
        %799 = vrot.lane.b32.xlu0 %v791, 122
        %v800 = vpop.permute.xlu0 %799
        %801 = vrot.lane.b32.xlu0 %v792, 122
        %v802 = vpop.permute.xlu0 %801
        %803 = vrot.lane.b32.xlu0 %v793, 122
        %v804 = vpop.permute.xlu0 %803
        %805 = vrot.lane.b32.xlu0 %v794, 122
        %v806 = vpop.permute.xlu0 %805
        %v811 = vadd.f32 %v784, %v800
        %v812 = vadd.f32 %v785, %v802
        %v813 = vadd.f32 %v786, %v804
        %v814 = vadd.f32 %v787, %v806
        %s815 = sadd.s32 %s227, 24
        %s816 = sld [smem:[#allocation4 + %s815]]
        %v817 = vstv %s816
        %v818 = vmul.f32 %v817, %v721
        %v819 = vmul.f32 %v817, %v722
        %v820 = vmul.f32 %v817, %v723
        %v821 = vmul.f32 %v817, %v724
        %826 = vrot.lane.b32.xlu0 %v818, 120
        %v827 = vpop.permute.xlu0 %826
        %828 = vrot.lane.b32.xlu0 %v819, 120
        %v829 = vpop.permute.xlu0 %828
        %830 = vrot.lane.b32.xlu0 %v820, 120
        %v831 = vpop.permute.xlu0 %830
        %832 = vrot.lane.b32.xlu0 %v821, 120
        %v833 = vpop.permute.xlu0 %832
        %v838 = vadd.f32 %v811, %v827
        %v839 = vadd.f32 %v812, %v829
        %v840 = vadd.f32 %v813, %v831
        %v841 = vadd.f32 %v814, %v833
        %vm842 = vcmask 130048
        %843 = vst.msk [vmem:[%s207] sm:$0xff] %vm842, %v838
        %844 = vst.msk [vmem:[%s207 + $0x8] sm:$0xff] %vm842, %v839
        %845 = vst.msk [vmem:[%s207 + $0x10] sm:$0xff] %vm842, %v840
        %846 = vst.msk [vmem:[%s207 + $0x18] sm:$0xff] %vm842, %v841
        %s847 = sand.u32 %s69, 1
        %s848 = sand.u32 %s69, 1
        %s849 = smul.addr %s848, 32
        %s850 = scalar_lea.vmem [#allocation6], %s849
        // Predicated region
        $region71: #{branch_7_fun.2} parent=61 // pred_check
          %p851 = pneg %p79
        $region72: #{branch_7_fun.2} parent=61 // pred_check_branch
          %853 = sbr.rel (%p851) target = $region74
        $region73: #{branch_7_fun.2} parent=61 // pred_region
          %s854 = smul.addr %s14, 2
          %s855 = smul.addr %s854, 8
          %s856 = scalar_lea.vmem %s2, %s855
          // Predicated region
          $region75: #{branch_7_fun.2} parent=73 // pred_check
            _
          $region76: #{branch_7_fun.2} parent=73 // pred_check_branch
            %858 = sbr.rel (0) target = $region78
          $region77: #{branch_7_fun.2} parent=73 // pred_region
            // Predicated region
            $region79: #{branch_7_fun.2} parent=77 // pred_check
              _
            $region80: #{branch_7_fun.2} parent=77 // pred_check_branch
              %860 = sbr.rel (0) target = $region82
            $region81: #{branch_7_fun.2} parent=77 // pred_region
              // Predicated region
              $region94: #{branch_7_fun.2} parent=81 // pred_check
                _
              $region95: #{branch_7_fun.2} parent=81 // pred_check_branch
                %882 = sbr.rel (0) target = $region97
              $region96: #{branch_7_fun.2} parent=81 // pred_region
                loop: start=0, step=1, limit=1
                $region98: #{branch_7_fun.2} parent=96 // loop_pre_header
                  _
                $region99: #{branch_7_fun.2} parent=96 // loop_header
                  %s884 = sphi 0, %s888
                  %p885 = scmp.ge.s32.totalorder %s884, 1
                  %s889 = sphi %s850, %s850
                  %s890 = sphi %s856, %s856
                $region100: #{branch_7_fun.2} parent=96 // loop_header_branch
                  %887 = sbr.rel (%p885) target = $region104
                $region101: #{branch_7_fun.2} parent=96 // loop_body
                  %v891 = vld [vmem:[%s889] sm:$0xff]
                  %892 = vst [vmem:[%s890] sm:$0xff] %v891
                  %v893 = vld [vmem:[%s889 + $0x8] sm:$0xff]
                  %894 = vst [vmem:[%s890 + $0x8] sm:$0xff] %v893
                  %v895 = vld [vmem:[%s889 + $0x10] sm:$0xff]
                  %896 = vst [vmem:[%s890 + $0x40] sm:$0xff] %v895
                  %v897 = vld [vmem:[%s889 + $0x18] sm:$0xff]
                  %898 = vst [vmem:[%s890 + $0x48] sm:$0xff] %v897
                $region102: #{branch_7_fun.2} parent=96 // loop_footer
                  %s888 = sadd.s32 1, %s884
                $region103: #{branch_7_fun.2} parent=96 // loop_footer_branch
                  %883 = sbr.rel target = $region99
                $region104: #{branch_7_fun.2} parent=96 // loop_exit
                  _
              $region97: #{branch_7_fun.2} parent=81 // pred_fallthru
                _
              // Predicated region
              $region105: #{branch_7_fun.2} parent=81 // pred_check
                _
              $region106: #{branch_7_fun.2} parent=81 // pred_check_branch
                %900 = sbr.rel target = $region108
              $region107: #{branch_7_fun.2} parent=81 // pred_region
                _
              $region108: #{branch_7_fun.2} parent=81 // pred_fallthru
                _
            $region82: #{branch_7_fun.2} parent=77 // pred_fallthru
              _
            // Predicated region
            $region83: #{branch_7_fun.2} parent=77 // pred_check
              _
            $region84: #{branch_7_fun.2} parent=77 // pred_check_branch
              %862 = sbr.rel target = $region86
            $region85: #{branch_7_fun.2} parent=77 // pred_region
              %s864 = ssub.s32 256, 1
              loop: start=0, step=1, limit=1
              $region87: #{branch_7_fun.2} parent=85 // loop_pre_header
                _
              $region88: #{branch_7_fun.2} parent=85 // loop_header
                %s866 = sphi 0, %s870
                %p867 = scmp.ge.s32.totalorder %s866, 1
                %s871 = sphi %s850, %s850
                %s872 = sphi %s856, %s856
              $region89: #{branch_7_fun.2} parent=85 // loop_header_branch
                %869 = sbr.rel (%p867) target = $region93
              $region90: #{branch_7_fun.2} parent=85 // loop_body
                %v873 = vld [vmem:[%s871] sm:%s864]
                %874 = vst [vmem:[%s872] sm:%s864] %v873
                %v875 = vld [vmem:[%s871 + $0x8] sm:%s864]
                %876 = vst [vmem:[%s872 + $0x8] sm:%s864] %v875
                %v877 = vld [vmem:[%s871 + $0x10] sm:%s864]
                %878 = vst [vmem:[%s872 + $0x40] sm:%s864] %v877
                %v879 = vld [vmem:[%s871 + $0x18] sm:%s864]
                %880 = vst [vmem:[%s872 + $0x48] sm:%s864] %v879
              $region91: #{branch_7_fun.2} parent=85 // loop_footer
                %s870 = sadd.s32 1, %s866
              $region92: #{branch_7_fun.2} parent=85 // loop_footer_branch
                %865 = sbr.rel target = $region88
              $region93: #{branch_7_fun.2} parent=85 // loop_exit
                _
            $region86: #{branch_7_fun.2} parent=77 // pred_fallthru
              _
          $region78: #{branch_7_fun.2} parent=73 // pred_fallthru
            _
          %901 = vnop
        $region74: #{branch_7_fun.2} parent=61 // pred_fallthru
          _
      $region62: #{branch_7_fun.2} parent=5 // pred_fallthru
        _
      %p902 = scmp.le.s32.totalorder 2, %s9
      // Predicated region
      $region109: #{branch_7_fun.2} parent=5 // pred_check
        %p903 = pneg %p902
      $region110: #{branch_7_fun.2} parent=5 // pred_check_branch
        %905 = sbr.rel (%p903) target = $region112
      $region111: #{branch_7_fun.2} parent=5 // pred_region
        %s906 = ssub.s32 %s9, 2
        // Predicated region
        $region113: #{branch_7_fun.2} parent=111 // pred_check
          %p907 = pneg %p85
        $region114: #{branch_7_fun.2} parent=111 // pred_check_branch
          %909 = sbr.rel (%p907) target = $region116
        $region115: #{branch_7_fun.2} parent=111 // pred_region
          %s910 = sand.u32 %s70, 1
          %s911 = sand.u32 %s70, 1
          %s912 = smul.addr %s911, 32
          %s913 = scalar_lea.vmem [#allocation6], %s912
        $region116: #{branch_7_fun.2} parent=111 // pred_fallthru
          _
      $region112: #{branch_7_fun.2} parent=5 // pred_fallthru
        _
    $region6: #{branch_7_fun.2} parent=1 // loop_footer
      %s13 = sadd.s32 1, %s9
    $region7: #{branch_7_fun.2} parent=1 // loop_footer_branch
      %8 = sbr.rel target = $region3
    $region8: #{branch_7_fun.2} parent=1 // loop_exit
      _
    %914 = vsyncpa [#allocation5], 1
    %s915 = scalar_lea.sflag [#allocation5], 1
    %916 = vsyncpa %s915, 1

</llo_original>
